<compile_context>
chip_gen: v7x
topology: tpu7x:2x2x1
jax: 0.10.0
libtpu: 0.0.40
codegen_flags: <defaults>
</compile_context>

<pallas_src>
import functools

import numpy as np
import jax
import jax.numpy as jnp
from jax import lax
from jax.experimental import pallas as pl
from jax.experimental.pallas import tpu as pltpu


# ----------------------------------------------------------------------------- #
# Fused kernel (one grid step = one batch element)
# ----------------------------------------------------------------------------- #
def _fused_kernel(c_ref, lw_ref, lb_ref, u_ref, m_ref, x_ref,
                  w1_ref, b1_ref, w2_ref, b2_ref, w3_ref, b3_ref,
                  w4_ref, b4_ref, o_ref, joined_ref, *, ch, base_hw, hw):
    f32 = jnp.float32

    # ---- secret_scaler: Linear -> SiLU (MXU matmul) ------------------------
    emb = jnp.dot(c_ref[...], lw_ref[...], preferred_element_type=f32) + lb_ref[...]
    emb = emb * jax.nn.sigmoid(emb)                       # (1, ch*base_hw)

    # ---- View(-1, ch, base, base) + nearest Upsample + concat([x, emb]) ----
    # joined layout: (2*ch, H*W) — rows = channels (image first), lanes = pixels.
    joined_ref[0:ch, :] = x_ref[...].astype(f32)          # image channels
    u = u_ref[...]                                        # (base_hw, hw) 0/1 upsample op
    for cc in range(ch):                                  # static unroll (ch small)
        e_c = emb[:, cc * base_hw:(cc + 1) * base_hw]     # (1, base_hw) == the View slice
        joined_ref[ch + cc:ch + cc + 1, :] = jnp.dot(e_c, u, preferred_element_type=f32)

    # ---- 3x3 conv (stride 1, zero pad 1) as 9 taps of 2-D MXU matmuls ------
    def conv3x3(act, w_ref, b_ref, apply_silu):
        cout = w_ref.shape[1]
        acc = jnp.zeros((cout, hw), f32)
        for k in range(9):                                # static unroll over taps
            # constant 0/1 matrix applies the spatial shift + zero padding
            shifted = jnp.dot(act, m_ref[k], preferred_element_type=f32)        # (cin, hw)
            acc = acc + jnp.dot(w_ref[k], shifted, preferred_element_type=f32)  # (cout, hw)
        acc = acc + b_ref[...]                            # (cout, 1) broadcasts over lanes
        if apply_silu:
            acc = acc * jax.nn.sigmoid(acc)
        return acc

    h = conv3x3(joined_ref[...], w1_ref, b1_ref, True)    # join_encoder conv 1
    h = conv3x3(h, w2_ref, b2_ref, True)                  # join_encoder conv 2
    h = conv3x3(h, w3_ref, b3_ref, True)                  # join_encoder conv 3
    h = conv3x3(h, w4_ref, b4_ref, False)                 # out_layer (zero-initialized)
    o_ref[...] = h.astype(o_ref.dtype)                    # lane-dense (ch, H*W) store


# ----------------------------------------------------------------------------- #
# Host-built constant selection matrices
# ----------------------------------------------------------------------------- #
def _shift_matrices(H, W):
    """M[k] maps flattened (H*W) pixels to the k-th 3x3 tap (with zero padding)."""
    hw = H * W
    m = np.zeros((9, hw, hw), np.float32)
    for k in range(9):
        dh, dw = k // 3 - 1, k % 3 - 1
        for i in range(H):
            si = i + dh
            if not 0 <= si < H:
                continue
            for j in range(W):
                sj = j + dw
                if 0 <= sj < W:
                    m[k, si * W + sj, i * W + j] = 1.0
    return m


def _upsample_matrix(base, H, W, up):
    """U maps a flattened (base, base) grid to nearest-upsampled flattened (H, W)."""
    u = np.zeros((base * base, H * W), np.float32)
    for i in range(H):
        for j in range(W):
            u[(i // up) * base + (j // up), i * W + j] = 1.0
    return u


# ----------------------------------------------------------------------------- #
# Wrapper: SecretEncoder6 forward (emode='c3')
# ----------------------------------------------------------------------------- #
def secret_encoder6_forward(x_nchw, c, params, *, ch, base_res, resolution):
    B, CH, H, W = x_nchw.shape
    assert CH == ch and H == resolution and W == resolution
    hw = H * W
    base_hw = base_res * base_res
    up = resolution // base_res
    L = c.shape[1]
    D = base_hw * ch

    m = jnp.asarray(_shift_matrices(H, W))                 # (9, hw, hw) constant
    u = jnp.asarray(_upsample_matrix(base_res, H, W, up))  # (base_hw, hw) constant

    def prep_conv(w_hwio, b):
        cin, cout = w_hwio.shape[2], w_hwio.shape[3]
        w9 = jnp.transpose(w_hwio.reshape(9, cin, cout), (0, 2, 1))   # (9, cout, cin)
        return w9, b.reshape(cout, 1)

    w1, b1 = prep_conv(params["w1"], params["b1"])
    w2, b2 = prep_conv(params["w2"], params["b2"])
    w3, b3 = prep_conv(params["w3"], params["b3"])
    w4, b4 = prep_conv(params["w4"], params["b4"])

    c3 = c.reshape(B, 1, L)                 # keep matmul operands 2-D in kernel
    x_r = x_nchw.reshape(B, CH, hw)         # free reshape: NCHW is (C, H*W)-contiguous
    lb = params["lin_b"].reshape(1, D)

    kern = functools.partial(_fused_kernel, ch=ch, base_hw=base_hw, hw=hw)

    def full(*s):
        return pl.BlockSpec(s, lambda b, _s=s: (0,) * len(_s))

    out = pl.pallas_call(
        kern,
        out_shape=jax.ShapeDtypeStruct((B, CH, hw), jnp.float32),
        grid=(B,),
        in_specs=[
            pl.BlockSpec((None, 1, L), lambda b: (b, 0, 0)),       # secret c
            full(L, D),                                            # lin_w
            full(1, D),                                            # lin_b
            full(base_hw, hw),                                     # upsample matrix
            full(9, hw, hw),                                       # shift matrices
            pl.BlockSpec((None, CH, hw), lambda b: (b, 0, 0)),     # image x
            full(*w1.shape), full(*b1.shape),
            full(*w2.shape), full(*b2.shape),
            full(*w3.shape), full(*b3.shape),
            full(*w4.shape), full(*b4.shape),
        ],
        out_specs=pl.BlockSpec((None, CH, hw), lambda b: (b, 0, 0)),
        scratch_shapes=[pltpu.VMEM((2 * ch, hw), jnp.float32)],    # joined activation
        compiler_params=pltpu.CompilerParams(dimension_semantics=("parallel",)),
    )(c3, params["lin_w"], lb, u, m, x_r, w1, b1, w2, b2, w3, b3, w4, b4)

    dx = out.reshape(B, CH, H, W)           # free reshape back to NCHW
    return dx, None


# ----------------------------------------------------------------------------- #
# Pure-JAX reference (for correctness checks)
# ----------------------------------------------------------------------------- #
def _silu(x):
    return x * jax.nn.sigmoid(x)


def _ref_forward(x_nchw, c, params, *, ch, base_res, resolution):
    B = x_nchw.shape[0]
    up = resolution // base_res
    emb = _silu(c @ params["lin_w"] + params["lin_b"][None, :])
    emb = emb.reshape(B, ch, base_res, base_res)                     # View
    emb = jnp.repeat(jnp.repeat(emb, up, axis=2), up, axis=3)        # nearest upsample
    h = jnp.concatenate([x_nchw, emb], axis=1)                       # emode 'c3'
    h = jnp.transpose(h, (0, 2, 3, 1))                               # NHWC

    def conv(h, w, b, act):
        y = lax.conv_general_dilated(h, w, (1, 1), "SAME",
                                     dimension_numbers=("NHWC", "HWIO", "NHWC"))
        y = y + b[None, None, None, :]
        return _silu(y) if act else y

    h = conv(h, params["w1"], params["b1"], True)
    h = conv(h, params["w2"], params["b2"], True)
    h = conv(h, params["w3"], params["b3"], True)
    h = conv(h, params["w4"], params["b4"], False)
    return jnp.transpose(h, (0, 3, 1, 2))                            # NCHW


# ----------------------------------------------------------------------------- #
if __name__ == "__main__":
    B, CH, SECRET_LEN, BASE_RES, RESOLUTION = 2, 3, 8, 8, 16
    JOIN_CH = 2 * CH                                   # emode 'c3'
    D = BASE_RES * BASE_RES * CH

    key = jax.random.PRNGKey(0)
    keys = jax.random.split(key, 12)
    x = jax.random.normal(keys[0], (B, CH, RESOLUTION, RESOLUTION), jnp.float32)
    c = jax.random.normal(keys[1], (B, SECRET_LEN), jnp.float32)

    params = {
        "lin_w": 0.2 * jax.random.normal(keys[2], (SECRET_LEN, D), jnp.float32),
        "lin_b": 0.1 * jax.random.normal(keys[3], (D,), jnp.float32),
        "w1": 0.2 * jax.random.normal(keys[4], (3, 3, JOIN_CH, JOIN_CH), jnp.float32),
        "b1": 0.1 * jax.random.normal(keys[5], (JOIN_CH,), jnp.float32),
        "w2": 0.2 * jax.random.normal(keys[6], (3, 3, JOIN_CH, CH), jnp.float32),
        "b2": 0.1 * jax.random.normal(keys[7], (CH,), jnp.float32),
        "w3": 0.2 * jax.random.normal(keys[8], (3, 3, CH, CH), jnp.float32),
        "b3": 0.1 * jax.random.normal(keys[9], (CH,), jnp.float32),
        # out_layer = zero_module(conv): weights AND bias are zero
        "w4": jnp.zeros((3, 3, CH, CH), jnp.float32),
        "b4": jnp.zeros((CH,), jnp.float32),
    }

    fwd = functools.partial(secret_encoder6_forward,
                            ch=CH, base_res=BASE_RES, resolution=RESOLUTION)

    # 1) Module semantics: zero-initialized out_layer -> exact zeros.
    dx, none_out = fwd(x, c, params)
    dx = jax.block_until_ready(dx)
    assert dx.shape == (B, CH, RESOLUTION, RESOLUTION)
    assert none_out is None
    assert np.allclose(np.asarray(dx), 0.0)

    # 2) Non-trivial end-to-end numerics: random out_layer weights vs pure-JAX ref.
    params_nz = dict(params)
    params_nz["w4"] = 0.2 * jax.random.normal(keys[10], (3, 3, CH, CH), jnp.float32)
    params_nz["b4"] = 0.1 * jax.random.normal(keys[11], (CH,), jnp.float32)
    dx_pl, _ = fwd(x, c, params_nz)
    dx_pl = jax.block_until_ready(dx_pl)
    dx_ref = jax.block_until_ready(
        _ref_forward(x, c, params_nz, ch=CH, base_res=BASE_RES, resolution=RESOLUTION))
    err = np.max(np.abs(np.asarray(dx_pl) - np.asarray(dx_ref)))
    assert np.allclose(np.asarray(dx_pl), np.asarray(dx_ref), atol=1e-3, rtol=1e-3), err

    print("KERNEL_OK")
</pallas_src>

<mosaic_0001>
module attributes {stable_mosaic.version = 11 : i64} {
  func.func @_fused_kernel(%arg0: i32, %arg1: memref<1x1x8xf32, #tpu.memory_space<vmem>>, %arg2: memref<8x192xf32, #tpu.memory_space<vmem>>, %arg3: memref<1x192xf32, #tpu.memory_space<vmem>>, %arg4: memref<64x256xf32, #tpu.memory_space<vmem>>, %arg5: memref<9x256x256xf32, #tpu.memory_space<vmem>>, %arg6: memref<1x3x256xf32, #tpu.memory_space<vmem>>, %arg7: memref<9x6x6xf32, #tpu.memory_space<vmem>>, %arg8: memref<6x1xf32, #tpu.memory_space<vmem>>, %arg9: memref<9x3x6xf32, #tpu.memory_space<vmem>>, %arg10: memref<3x1xf32, #tpu.memory_space<vmem>>, %arg11: memref<9x3x3xf32, #tpu.memory_space<vmem>>, %arg12: memref<3x1xf32, #tpu.memory_space<vmem>>, %arg13: memref<9x3x3xf32, #tpu.memory_space<vmem>>, %arg14: memref<3x1xf32, #tpu.memory_space<vmem>>, %arg15: memref<1x3x256xf32, #tpu.memory_space<vmem>>, %arg16: memref<6x256xf32, #tpu.memory_space<vmem>>) attributes {dimension_semantics = [#tpu.dimension_semantics<parallel>], iteration_bounds = array<i64: 2>, scalar_prefetch = 0 : i64, scratch_operands = 1 : i64, tpu.core_type = #tpu.core_type<tc>, window_params = [{transform_indices = @transform_0, window_bounds = array<i64: 1, 1, 8>}, {pipeline_mode = #tpu.pipeline_mode<synchronous>, transform_indices = @transform_1, window_bounds = array<i64: 8, 192>}, {pipeline_mode = #tpu.pipeline_mode<synchronous>, transform_indices = @transform_2, window_bounds = array<i64: 1, 192>}, {pipeline_mode = #tpu.pipeline_mode<synchronous>, transform_indices = @transform_3, window_bounds = array<i64: 64, 256>}, {pipeline_mode = #tpu.pipeline_mode<synchronous>, transform_indices = @transform_4, window_bounds = array<i64: 9, 256, 256>}, {transform_indices = @transform_5, window_bounds = array<i64: 1, 3, 256>}, {pipeline_mode = #tpu.pipeline_mode<synchronous>, transform_indices = @transform_6, window_bounds = array<i64: 9, 6, 6>}, {pipeline_mode = #tpu.pipeline_mode<synchronous>, transform_indices = @transform_7, window_bounds = array<i64: 6, 1>}, {pipeline_mode = #tpu.pipeline_mode<synchronous>, transform_indices = @transform_8, window_bounds = array<i64: 9, 3, 6>}, {pipeline_mode = #tpu.pipeline_mode<synchronous>, transform_indices = @transform_9, window_bounds = array<i64: 3, 1>}, {pipeline_mode = #tpu.pipeline_mode<synchronous>, transform_indices = @transform_10, window_bounds = array<i64: 9, 3, 3>}, {pipeline_mode = #tpu.pipeline_mode<synchronous>, transform_indices = @transform_11, window_bounds = array<i64: 3, 1>}, {pipeline_mode = #tpu.pipeline_mode<synchronous>, transform_indices = @transform_12, window_bounds = array<i64: 9, 3, 3>}, {pipeline_mode = #tpu.pipeline_mode<synchronous>, transform_indices = @transform_13, window_bounds = array<i64: 3, 1>}, {transform_indices = @transform_14, window_bounds = array<i64: 1, 3, 256>}]} {
    %c0 = arith.constant 0 : index
    %c0_0 = arith.constant 0 : index
    %c0_1 = arith.constant 0 : index
    %0 = vector.load %arg1[%c0, %c0_0, %c0_1] : memref<1x1x8xf32, #tpu.memory_space<vmem>>, vector<1x1x8xf32>
    %1 = vector.shape_cast %0 : vector<1x1x8xf32> to vector<1x8xf32>
    %c0_2 = arith.constant 0 : index
    %c0_3 = arith.constant 0 : index
    %2 = vector.load %arg2[%c0_2, %c0_3] : memref<8x192xf32, #tpu.memory_space<vmem>>, vector<8x192xf32>
    %cst = arith.constant dense<0.000000e+00> : vector<1x192xf32>
    %3 = tpu.matmul %1, %2, %cst {dimension_numbers = #tpu.dot_dimension_numbers<[1], [0], [0], [1], [0, 0, 1, 1], [], []>} : vector<1x8xf32>, vector<8x192xf32>, vector<1x192xf32> -> vector<1x192xf32>
    %c0_4 = arith.constant 0 : index
    %c0_5 = arith.constant 0 : index
    %4 = vector.load %arg3[%c0_4, %c0_5] : memref<1x192xf32, #tpu.memory_space<vmem>>, vector<1x192xf32>
    %5 = arith.addf %3, %4 : vector<1x192xf32>
    %6 = arith.negf %5 : vector<1x192xf32>
    %7 = math.exp %6 : vector<1x192xf32>
    %cst_6 = arith.constant 1.000000e+00 : f32
    %8 = vector.broadcast %cst_6 : f32 to vector<1x192xf32>
    %9 = arith.addf %8, %7 : vector<1x192xf32>
    %10 = arith.divf %8, %9 : vector<1x192xf32>
    %11 = arith.mulf %5, %10 : vector<1x192xf32>
    %c0_7 = arith.constant 0 : index
    %c0_8 = arith.constant 0 : index
    %c0_9 = arith.constant 0 : index
    %12 = vector.load %arg6[%c0_7, %c0_8, %c0_9] : memref<1x3x256xf32, #tpu.memory_space<vmem>>, vector<1x3x256xf32>
    %13 = vector.shape_cast %12 : vector<1x3x256xf32> to vector<3x256xf32>
    %c0_10 = arith.constant 0 : index
    %c0_11 = arith.constant 0 : index
    %14 = vector.load %arg16[%c0_10, %c0_11] : memref<6x256xf32, #tpu.memory_space<vmem>>, vector<3x256xf32>
    tpu.vector_store %arg16[%c0_10, %c0_11], %13 {strides = array<i32>} : memref<6x256xf32, #tpu.memory_space<vmem>>, vector<3x256xf32>,
    %c0_12 = arith.constant 0 : index
    %c0_13 = arith.constant 0 : index
    %15 = vector.load %arg4[%c0_12, %c0_13] : memref<64x256xf32, #tpu.memory_space<vmem>>, vector<64x256xf32>
    %16 = vector.extract_strided_slice %11 {offsets = [0, 0], sizes = [1, 64], strides = [1, 1]} : vector<1x192xf32> to vector<1x64xf32>
    %cst_14 = arith.constant dense<0.000000e+00> : vector<1x256xf32>
    %17 = tpu.matmul %16, %15, %cst_14 {dimension_numbers = #tpu.dot_dimension_numbers<[1], [0], [0], [1], [0, 0, 1, 1], [], []>} : vector<1x64xf32>, vector<64x256xf32>, vector<1x256xf32> -> vector<1x256xf32>
    %c3 = arith.constant 3 : index
    %c0_15 = arith.constant 0 : index
    %18 = vector.load %arg16[%c3, %c0_15] : memref<6x256xf32, #tpu.memory_space<vmem>>, vector<1x256xf32>
    tpu.vector_store %arg16[%c3, %c0_15], %17 {strides = array<i32>} : memref<6x256xf32, #tpu.memory_space<vmem>>, vector<1x256xf32>,
    %19 = vector.extract_strided_slice %11 {offsets = [0, 64], sizes = [1, 64], strides = [1, 1]} : vector<1x192xf32> to vector<1x64xf32>
    %cst_16 = arith.constant dense<0.000000e+00> : vector<1x256xf32>
    %20 = tpu.matmul %19, %15, %cst_16 {dimension_numbers = #tpu.dot_dimension_numbers<[1], [0], [0], [1], [0, 0, 1, 1], [], []>} : vector<1x64xf32>, vector<64x256xf32>, vector<1x256xf32> -> vector<1x256xf32>
    %c4 = arith.constant 4 : index
    %c0_17 = arith.constant 0 : index
    %21 = vector.load %arg16[%c4, %c0_17] : memref<6x256xf32, #tpu.memory_space<vmem>>, vector<1x256xf32>
    tpu.vector_store %arg16[%c4, %c0_17], %20 {strides = array<i32>} : memref<6x256xf32, #tpu.memory_space<vmem>>, vector<1x256xf32>,
    %22 = vector.extract_strided_slice %11 {offsets = [0, 128], sizes = [1, 64], strides = [1, 1]} : vector<1x192xf32> to vector<1x64xf32>
    %cst_18 = arith.constant dense<0.000000e+00> : vector<1x256xf32>
    %23 = tpu.matmul %22, %15, %cst_18 {dimension_numbers = #tpu.dot_dimension_numbers<[1], [0], [0], [1], [0, 0, 1, 1], [], []>} : vector<1x64xf32>, vector<64x256xf32>, vector<1x256xf32> -> vector<1x256xf32>
    %c5 = arith.constant 5 : index
    %c0_19 = arith.constant 0 : index
    %24 = vector.load %arg16[%c5, %c0_19] : memref<6x256xf32, #tpu.memory_space<vmem>>, vector<1x256xf32>
    tpu.vector_store %arg16[%c5, %c0_19], %23 {strides = array<i32>} : memref<6x256xf32, #tpu.memory_space<vmem>>, vector<1x256xf32>,
    %c0_20 = arith.constant 0 : index
    %c0_21 = arith.constant 0 : index
    %25 = vector.load %arg16[%c0_20, %c0_21] : memref<6x256xf32, #tpu.memory_space<vmem>>, vector<6x256xf32>
    %cst_22 = arith.constant 0.000000e+00 : f32
    %26 = vector.broadcast %cst_22 : f32 to vector<6x256xf32>
    %c0_23 = arith.constant 0 : index
    %c0_24 = arith.constant 0 : index
    %c0_25 = arith.constant 0 : index
    %27 = vector.load %arg5[%c0_23, %c0_24, %c0_25] : memref<9x256x256xf32, #tpu.memory_space<vmem>>, vector<1x256x256xf32>
    %28 = vector.shape_cast %27 : vector<1x256x256xf32> to vector<256x256xf32>
    %cst_26 = arith.constant dense<0.000000e+00> : vector<6x256xf32>
    %29 = tpu.matmul %25, %28, %cst_26 {dimension_numbers = #tpu.dot_dimension_numbers<[1], [0], [0], [1], [0, 0, 1, 1], [], []>} : vector<6x256xf32>, vector<256x256xf32>, vector<6x256xf32> -> vector<6x256xf32>
    %c0_27 = arith.constant 0 : index
    %c0_28 = arith.constant 0 : index
    %c0_29 = arith.constant 0 : index
    %30 = vector.load %arg7[%c0_27, %c0_28, %c0_29] : memref<9x6x6xf32, #tpu.memory_space<vmem>>, vector<1x6x6xf32>
    %31 = vector.shape_cast %30 : vector<1x6x6xf32> to vector<6x6xf32>
    %cst_30 = arith.constant dense<0.000000e+00> : vector<6x256xf32>
    %32 = tpu.matmul %31, %29, %cst_30 {dimension_numbers = #tpu.dot_dimension_numbers<[1], [0], [0], [1], [0, 0, 1, 1], [], []>} : vector<6x6xf32>, vector<6x256xf32>, vector<6x256xf32> -> vector<6x256xf32>
    %33 = arith.addf %26, %32 : vector<6x256xf32>
    %c1 = arith.constant 1 : index
    %c0_31 = arith.constant 0 : index
    %c0_32 = arith.constant 0 : index
    %34 = vector.load %arg5[%c1, %c0_31, %c0_32] : memref<9x256x256xf32, #tpu.memory_space<vmem>>, vector<1x256x256xf32>
    %35 = vector.shape_cast %34 : vector<1x256x256xf32> to vector<256x256xf32>
    %cst_33 = arith.constant dense<0.000000e+00> : vector<6x256xf32>
    %36 = tpu.matmul %25, %35, %cst_33 {dimension_numbers = #tpu.dot_dimension_numbers<[1], [0], [0], [1], [0, 0, 1, 1], [], []>} : vector<6x256xf32>, vector<256x256xf32>, vector<6x256xf32> -> vector<6x256xf32>
    %c1_34 = arith.constant 1 : index
    %c0_35 = arith.constant 0 : index
    %c0_36 = arith.constant 0 : index
    %37 = vector.load %arg7[%c1_34, %c0_35, %c0_36] : memref<9x6x6xf32, #tpu.memory_space<vmem>>, vector<1x6x6xf32>
    %38 = vector.shape_cast %37 : vector<1x6x6xf32> to vector<6x6xf32>
    %cst_37 = arith.constant dense<0.000000e+00> : vector<6x256xf32>
    %39 = tpu.matmul %38, %36, %cst_37 {dimension_numbers = #tpu.dot_dimension_numbers<[1], [0], [0], [1], [0, 0, 1, 1], [], []>} : vector<6x6xf32>, vector<6x256xf32>, vector<6x256xf32> -> vector<6x256xf32>
    %40 = arith.addf %33, %39 : vector<6x256xf32>
    %c2 = arith.constant 2 : index
    %c0_38 = arith.constant 0 : index
    %c0_39 = arith.constant 0 : index
    %41 = vector.load %arg5[%c2, %c0_38, %c0_39] : memref<9x256x256xf32, #tpu.memory_space<vmem>>, vector<1x256x256xf32>
    %42 = vector.shape_cast %41 : vector<1x256x256xf32> to vector<256x256xf32>
    %cst_40 = arith.constant dense<0.000000e+00> : vector<6x256xf32>
    %43 = tpu.matmul %25, %42, %cst_40 {dimension_numbers = #tpu.dot_dimension_numbers<[1], [0], [0], [1], [0, 0, 1, 1], [], []>} : vector<6x256xf32>, vector<256x256xf32>, vector<6x256xf32> -> vector<6x256xf32>
    %c2_41 = arith.constant 2 : index
    %c0_42 = arith.constant 0 : index
    %c0_43 = arith.constant 0 : index
    %44 = vector.load %arg7[%c2_41, %c0_42, %c0_43] : memref<9x6x6xf32, #tpu.memory_space<vmem>>, vector<1x6x6xf32>
    %45 = vector.shape_cast %44 : vector<1x6x6xf32> to vector<6x6xf32>
    %cst_44 = arith.constant dense<0.000000e+00> : vector<6x256xf32>
    %46 = tpu.matmul %45, %43, %cst_44 {dimension_numbers = #tpu.dot_dimension_numbers<[1], [0], [0], [1], [0, 0, 1, 1], [], []>} : vector<6x6xf32>, vector<6x256xf32>, vector<6x256xf32> -> vector<6x256xf32>
    %47 = arith.addf %40, %46 : vector<6x256xf32>
    %c3_45 = arith.constant 3 : index
    %c0_46 = arith.constant 0 : index
    %c0_47 = arith.constant 0 : index
    %48 = vector.load %arg5[%c3_45, %c0_46, %c0_47] : memref<9x256x256xf32, #tpu.memory_space<vmem>>, vector<1x256x256xf32>
    %49 = vector.shape_cast %48 : vector<1x256x256xf32> to vector<256x256xf32>
    %cst_48 = arith.constant dense<0.000000e+00> : vector<6x256xf32>
    %50 = tpu.matmul %25, %49, %cst_48 {dimension_numbers = #tpu.dot_dimension_numbers<[1], [0], [0], [1], [0, 0, 1, 1], [], []>} : vector<6x256xf32>, vector<256x256xf32>, vector<6x256xf32> -> vector<6x256xf32>
    %c3_49 = arith.constant 3 : index
    %c0_50 = arith.constant 0 : index
    %c0_51 = arith.constant 0 : index
    %51 = vector.load %arg7[%c3_49, %c0_50, %c0_51] : memref<9x6x6xf32, #tpu.memory_space<vmem>>, vector<1x6x6xf32>
    %52 = vector.shape_cast %51 : vector<1x6x6xf32> to vector<6x6xf32>
    %cst_52 = arith.constant dense<0.000000e+00> : vector<6x256xf32>
    %53 = tpu.matmul %52, %50, %cst_52 {dimension_numbers = #tpu.dot_dimension_numbers<[1], [0], [0], [1], [0, 0, 1, 1], [], []>} : vector<6x6xf32>, vector<6x256xf32>, vector<6x256xf32> -> vector<6x256xf32>
    %54 = arith.addf %47, %53 : vector<6x256xf32>
    %c4_53 = arith.constant 4 : index
    %c0_54 = arith.constant 0 : index
    %c0_55 = arith.constant 0 : index
    %55 = vector.load %arg5[%c4_53, %c0_54, %c0_55] : memref<9x256x256xf32, #tpu.memory_space<vmem>>, vector<1x256x256xf32>
    %56 = vector.shape_cast %55 : vector<1x256x256xf32> to vector<256x256xf32>
    %cst_56 = arith.constant dense<0.000000e+00> : vector<6x256xf32>
    %57 = tpu.matmul %25, %56, %cst_56 {dimension_numbers = #tpu.dot_dimension_numbers<[1], [0], [0], [1], [0, 0, 1, 1], [], []>} : vector<6x256xf32>, vector<256x256xf32>, vector<6x256xf32> -> vector<6x256xf32>
    %c4_57 = arith.constant 4 : index
    %c0_58 = arith.constant 0 : index
    %c0_59 = arith.constant 0 : index
    %58 = vector.load %arg7[%c4_57, %c0_58, %c0_59] : memref<9x6x6xf32, #tpu.memory_space<vmem>>, vector<1x6x6xf32>
    %59 = vector.shape_cast %58 : vector<1x6x6xf32> to vector<6x6xf32>
    %cst_60 = arith.constant dense<0.000000e+00> : vector<6x256xf32>
    %60 = tpu.matmul %59, %57, %cst_60 {dimension_numbers = #tpu.dot_dimension_numbers<[1], [0], [0], [1], [0, 0, 1, 1], [], []>} : vector<6x6xf32>, vector<6x256xf32>, vector<6x256xf32> -> vector<6x256xf32>
    %61 = arith.addf %54, %60 : vector<6x256xf32>
    %c5_61 = arith.constant 5 : index
    %c0_62 = arith.constant 0 : index
    %c0_63 = arith.constant 0 : index
    %62 = vector.load %arg5[%c5_61, %c0_62, %c0_63] : memref<9x256x256xf32, #tpu.memory_space<vmem>>, vector<1x256x256xf32>
    %63 = vector.shape_cast %62 : vector<1x256x256xf32> to vector<256x256xf32>
    %cst_64 = arith.constant dense<0.000000e+00> : vector<6x256xf32>
    %64 = tpu.matmul %25, %63, %cst_64 {dimension_numbers = #tpu.dot_dimension_numbers<[1], [0], [0], [1], [0, 0, 1, 1], [], []>} : vector<6x256xf32>, vector<256x256xf32>, vector<6x256xf32> -> vector<6x256xf32>
    %c5_65 = arith.constant 5 : index
    %c0_66 = arith.constant 0 : index
    %c0_67 = arith.constant 0 : index
    %65 = vector.load %arg7[%c5_65, %c0_66, %c0_67] : memref<9x6x6xf32, #tpu.memory_space<vmem>>, vector<1x6x6xf32>
    %66 = vector.shape_cast %65 : vector<1x6x6xf32> to vector<6x6xf32>
    %cst_68 = arith.constant dense<0.000000e+00> : vector<6x256xf32>
    %67 = tpu.matmul %66, %64, %cst_68 {dimension_numbers = #tpu.dot_dimension_numbers<[1], [0], [0], [1], [0, 0, 1, 1], [], []>} : vector<6x6xf32>, vector<6x256xf32>, vector<6x256xf32> -> vector<6x256xf32>
    %68 = arith.addf %61, %67 : vector<6x256xf32>
    %c6 = arith.constant 6 : index
    %c0_69 = arith.constant 0 : index
    %c0_70 = arith.constant 0 : index
    %69 = vector.load %arg5[%c6, %c0_69, %c0_70] : memref<9x256x256xf32, #tpu.memory_space<vmem>>, vector<1x256x256xf32>
    %70 = vector.shape_cast %69 : vector<1x256x256xf32> to vector<256x256xf32>
    %cst_71 = arith.constant dense<0.000000e+00> : vector<6x256xf32>
    %71 = tpu.matmul %25, %70, %cst_71 {dimension_numbers = #tpu.dot_dimension_numbers<[1], [0], [0], [1], [0, 0, 1, 1], [], []>} : vector<6x256xf32>, vector<256x256xf32>, vector<6x256xf32> -> vector<6x256xf32>
    %c6_72 = arith.constant 6 : index
    %c0_73 = arith.constant 0 : index
    %c0_74 = arith.constant 0 : index
    %72 = vector.load %arg7[%c6_72, %c0_73, %c0_74] : memref<9x6x6xf32, #tpu.memory_space<vmem>>, vector<1x6x6xf32>
    %73 = vector.shape_cast %72 : vector<1x6x6xf32> to vector<6x6xf32>
    %cst_75 = arith.constant dense<0.000000e+00> : vector<6x256xf32>
    %74 = tpu.matmul %73, %71, %cst_75 {dimension_numbers = #tpu.dot_dimension_numbers<[1], [0], [0], [1], [0, 0, 1, 1], [], []>} : vector<6x6xf32>, vector<6x256xf32>, vector<6x256xf32> -> vector<6x256xf32>
    %75 = arith.addf %68, %74 : vector<6x256xf32>
    %c7 = arith.constant 7 : index
    %c0_76 = arith.constant 0 : index
    %c0_77 = arith.constant 0 : index
    %76 = vector.load %arg5[%c7, %c0_76, %c0_77] : memref<9x256x256xf32, #tpu.memory_space<vmem>>, vector<1x256x256xf32>
    %77 = vector.shape_cast %76 : vector<1x256x256xf32> to vector<256x256xf32>
    %cst_78 = arith.constant dense<0.000000e+00> : vector<6x256xf32>
    %78 = tpu.matmul %25, %77, %cst_78 {dimension_numbers = #tpu.dot_dimension_numbers<[1], [0], [0], [1], [0, 0, 1, 1], [], []>} : vector<6x256xf32>, vector<256x256xf32>, vector<6x256xf32> -> vector<6x256xf32>
    %c7_79 = arith.constant 7 : index
    %c0_80 = arith.constant 0 : index
    %c0_81 = arith.constant 0 : index
    %79 = vector.load %arg7[%c7_79, %c0_80, %c0_81] : memref<9x6x6xf32, #tpu.memory_space<vmem>>, vector<1x6x6xf32>
    %80 = vector.shape_cast %79 : vector<1x6x6xf32> to vector<6x6xf32>
    %cst_82 = arith.constant dense<0.000000e+00> : vector<6x256xf32>
    %81 = tpu.matmul %80, %78, %cst_82 {dimension_numbers = #tpu.dot_dimension_numbers<[1], [0], [0], [1], [0, 0, 1, 1], [], []>} : vector<6x6xf32>, vector<6x256xf32>, vector<6x256xf32> -> vector<6x256xf32>
    %82 = arith.addf %75, %81 : vector<6x256xf32>
    %c8 = arith.constant 8 : index
    %c0_83 = arith.constant 0 : index
    %c0_84 = arith.constant 0 : index
    %83 = vector.load %arg5[%c8, %c0_83, %c0_84] : memref<9x256x256xf32, #tpu.memory_space<vmem>>, vector<1x256x256xf32>
    %84 = vector.shape_cast %83 : vector<1x256x256xf32> to vector<256x256xf32>
    %cst_85 = arith.constant dense<0.000000e+00> : vector<6x256xf32>
    %85 = tpu.matmul %25, %84, %cst_85 {dimension_numbers = #tpu.dot_dimension_numbers<[1], [0], [0], [1], [0, 0, 1, 1], [], []>} : vector<6x256xf32>, vector<256x256xf32>, vector<6x256xf32> -> vector<6x256xf32>
    %c8_86 = arith.constant 8 : index
    %c0_87 = arith.constant 0 : index
    %c0_88 = arith.constant 0 : index
    %86 = vector.load %arg7[%c8_86, %c0_87, %c0_88] : memref<9x6x6xf32, #tpu.memory_space<vmem>>, vector<1x6x6xf32>
    %87 = vector.shape_cast %86 : vector<1x6x6xf32> to vector<6x6xf32>
    %cst_89 = arith.constant dense<0.000000e+00> : vector<6x256xf32>
    %88 = tpu.matmul %87, %85, %cst_89 {dimension_numbers = #tpu.dot_dimension_numbers<[1], [0], [0], [1], [0, 0, 1, 1], [], []>} : vector<6x6xf32>, vector<6x256xf32>, vector<6x256xf32> -> vector<6x256xf32>
    %89 = arith.addf %82, %88 : vector<6x256xf32>
    %c0_90 = arith.constant 0 : index
    %c0_91 = arith.constant 0 : index
    %90 = vector.load %arg8[%c0_90, %c0_91] : memref<6x1xf32, #tpu.memory_space<vmem>>, vector<6x1xf32>
    %91 = vector.broadcast %90 : vector<6x1xf32> to vector<6x256xf32>
    %92 = arith.addf %89, %91 : vector<6x256xf32>
    %93 = arith.negf %92 : vector<6x256xf32>
    %94 = math.exp %93 : vector<6x256xf32>
    %cst_92 = arith.constant 1.000000e+00 : f32
    %95 = vector.broadcast %cst_92 : f32 to vector<6x256xf32>
    %96 = arith.addf %95, %94 : vector<6x256xf32>
    %97 = arith.divf %95, %96 : vector<6x256xf32>
    %98 = arith.mulf %92, %97 : vector<6x256xf32>
    %cst_93 = arith.constant 0.000000e+00 : f32
    %99 = vector.broadcast %cst_93 : f32 to vector<3x256xf32>
    %c0_94 = arith.constant 0 : index
    %c0_95 = arith.constant 0 : index
    %c0_96 = arith.constant 0 : index
    %100 = vector.load %arg5[%c0_94, %c0_95, %c0_96] : memref<9x256x256xf32, #tpu.memory_space<vmem>>, vector<1x256x256xf32>
    %101 = vector.shape_cast %100 : vector<1x256x256xf32> to vector<256x256xf32>
    %cst_97 = arith.constant dense<0.000000e+00> : vector<6x256xf32>
    %102 = tpu.matmul %98, %101, %cst_97 {dimension_numbers = #tpu.dot_dimension_numbers<[1], [0], [0], [1], [0, 0, 1, 1], [], []>} : vector<6x256xf32>, vector<256x256xf32>, vector<6x256xf32> -> vector<6x256xf32>
    %c0_98 = arith.constant 0 : index
    %c0_99 = arith.constant 0 : index
    %c0_100 = arith.constant 0 : index
    %103 = vector.load %arg9[%c0_98, %c0_99, %c0_100] : memref<9x3x6xf32, #tpu.memory_space<vmem>>, vector<1x3x6xf32>
    %104 = vector.shape_cast %103 : vector<1x3x6xf32> to vector<3x6xf32>
    %cst_101 = arith.constant dense<0.000000e+00> : vector<3x256xf32>
    %105 = tpu.matmul %104, %102, %cst_101 {dimension_numbers = #tpu.dot_dimension_numbers<[1], [0], [0], [1], [0, 0, 1, 1], [], []>} : vector<3x6xf32>, vector<6x256xf32>, vector<3x256xf32> -> vector<3x256xf32>
    %106 = arith.addf %99, %105 : vector<3x256xf32>
    %c1_102 = arith.constant 1 : index
    %c0_103 = arith.constant 0 : index
    %c0_104 = arith.constant 0 : index
    %107 = vector.load %arg5[%c1_102, %c0_103, %c0_104] : memref<9x256x256xf32, #tpu.memory_space<vmem>>, vector<1x256x256xf32>
    %108 = vector.shape_cast %107 : vector<1x256x256xf32> to vector<256x256xf32>
    %cst_105 = arith.constant dense<0.000000e+00> : vector<6x256xf32>
    %109 = tpu.matmul %98, %108, %cst_105 {dimension_numbers = #tpu.dot_dimension_numbers<[1], [0], [0], [1], [0, 0, 1, 1], [], []>} : vector<6x256xf32>, vector<256x256xf32>, vector<6x256xf32> -> vector<6x256xf32>
    %c1_106 = arith.constant 1 : index
    %c0_107 = arith.constant 0 : index
    %c0_108 = arith.constant 0 : index
    %110 = vector.load %arg9[%c1_106, %c0_107, %c0_108] : memref<9x3x6xf32, #tpu.memory_space<vmem>>, vector<1x3x6xf32>
    %111 = vector.shape_cast %110 : vector<1x3x6xf32> to vector<3x6xf32>
    %cst_109 = arith.constant dense<0.000000e+00> : vector<3x256xf32>
    %112 = tpu.matmul %111, %109, %cst_109 {dimension_numbers = #tpu.dot_dimension_numbers<[1], [0], [0], [1], [0, 0, 1, 1], [], []>} : vector<3x6xf32>, vector<6x256xf32>, vector<3x256xf32> -> vector<3x256xf32>
    %113 = arith.addf %106, %112 : vector<3x256xf32>
    %c2_110 = arith.constant 2 : index
    %c0_111 = arith.constant 0 : index
    %c0_112 = arith.constant 0 : index
    %114 = vector.load %arg5[%c2_110, %c0_111, %c0_112] : memref<9x256x256xf32, #tpu.memory_space<vmem>>, vector<1x256x256xf32>
    %115 = vector.shape_cast %114 : vector<1x256x256xf32> to vector<256x256xf32>
    %cst_113 = arith.constant dense<0.000000e+00> : vector<6x256xf32>
    %116 = tpu.matmul %98, %115, %cst_113 {dimension_numbers = #tpu.dot_dimension_numbers<[1], [0], [0], [1], [0, 0, 1, 1], [], []>} : vector<6x256xf32>, vector<256x256xf32>, vector<6x256xf32> -> vector<6x256xf32>
    %c2_114 = arith.constant 2 : index
    %c0_115 = arith.constant 0 : index
    %c0_116 = arith.constant 0 : index
    %117 = vector.load %arg9[%c2_114, %c0_115, %c0_116] : memref<9x3x6xf32, #tpu.memory_space<vmem>>, vector<1x3x6xf32>
    %118 = vector.shape_cast %117 : vector<1x3x6xf32> to vector<3x6xf32>
    %cst_117 = arith.constant dense<0.000000e+00> : vector<3x256xf32>
    %119 = tpu.matmul %118, %116, %cst_117 {dimension_numbers = #tpu.dot_dimension_numbers<[1], [0], [0], [1], [0, 0, 1, 1], [], []>} : vector<3x6xf32>, vector<6x256xf32>, vector<3x256xf32> -> vector<3x256xf32>
    %120 = arith.addf %113, %119 : vector<3x256xf32>
    %c3_118 = arith.constant 3 : index
    %c0_119 = arith.constant 0 : index
    %c0_120 = arith.constant 0 : index
    %121 = vector.load %arg5[%c3_118, %c0_119, %c0_120] : memref<9x256x256xf32, #tpu.memory_space<vmem>>, vector<1x256x256xf32>
    %122 = vector.shape_cast %121 : vector<1x256x256xf32> to vector<256x256xf32>
    %cst_121 = arith.constant dense<0.000000e+00> : vector<6x256xf32>
    %123 = tpu.matmul %98, %122, %cst_121 {dimension_numbers = #tpu.dot_dimension_numbers<[1], [0], [0], [1], [0, 0, 1, 1], [], []>} : vector<6x256xf32>, vector<256x256xf32>, vector<6x256xf32> -> vector<6x256xf32>
    %c3_122 = arith.constant 3 : index
    %c0_123 = arith.constant 0 : index
    %c0_124 = arith.constant 0 : index
    %124 = vector.load %arg9[%c3_122, %c0_123, %c0_124] : memref<9x3x6xf32, #tpu.memory_space<vmem>>, vector<1x3x6xf32>
    %125 = vector.shape_cast %124 : vector<1x3x6xf32> to vector<3x6xf32>
    %cst_125 = arith.constant dense<0.000000e+00> : vector<3x256xf32>
    %126 = tpu.matmul %125, %123, %cst_125 {dimension_numbers = #tpu.dot_dimension_numbers<[1], [0], [0], [1], [0, 0, 1, 1], [], []>} : vector<3x6xf32>, vector<6x256xf32>, vector<3x256xf32> -> vector<3x256xf32>
    %127 = arith.addf %120, %126 : vector<3x256xf32>
    %c4_126 = arith.constant 4 : index
    %c0_127 = arith.constant 0 : index
    %c0_128 = arith.constant 0 : index
    %128 = vector.load %arg5[%c4_126, %c0_127, %c0_128] : memref<9x256x256xf32, #tpu.memory_space<vmem>>, vector<1x256x256xf32>
    %129 = vector.shape_cast %128 : vector<1x256x256xf32> to vector<256x256xf32>
    %cst_129 = arith.constant dense<0.000000e+00> : vector<6x256xf32>
    %130 = tpu.matmul %98, %129, %cst_129 {dimension_numbers = #tpu.dot_dimension_numbers<[1], [0], [0], [1], [0, 0, 1, 1], [], []>} : vector<6x256xf32>, vector<256x256xf32>, vector<6x256xf32> -> vector<6x256xf32>
    %c4_130 = arith.constant 4 : index
    %c0_131 = arith.constant 0 : index
    %c0_132 = arith.constant 0 : index
    %131 = vector.load %arg9[%c4_130, %c0_131, %c0_132] : memref<9x3x6xf32, #tpu.memory_space<vmem>>, vector<1x3x6xf32>
    %132 = vector.shape_cast %131 : vector<1x3x6xf32> to vector<3x6xf32>
    %cst_133 = arith.constant dense<0.000000e+00> : vector<3x256xf32>
    %133 = tpu.matmul %132, %130, %cst_133 {dimension_numbers = #tpu.dot_dimension_numbers<[1], [0], [0], [1], [0, 0, 1, 1], [], []>} : vector<3x6xf32>, vector<6x256xf32>, vector<3x256xf32> -> vector<3x256xf32>
    %134 = arith.addf %127, %133 : vector<3x256xf32>
    %c5_134 = arith.constant 5 : index
    %c0_135 = arith.constant 0 : index
    %c0_136 = arith.constant 0 : index
    %135 = vector.load %arg5[%c5_134, %c0_135, %c0_136] : memref<9x256x256xf32, #tpu.memory_space<vmem>>, vector<1x256x256xf32>
    %136 = vector.shape_cast %135 : vector<1x256x256xf32> to vector<256x256xf32>
    %cst_137 = arith.constant dense<0.000000e+00> : vector<6x256xf32>
    %137 = tpu.matmul %98, %136, %cst_137 {dimension_numbers = #tpu.dot_dimension_numbers<[1], [0], [0], [1], [0, 0, 1, 1], [], []>} : vector<6x256xf32>, vector<256x256xf32>, vector<6x256xf32> -> vector<6x256xf32>
    %c5_138 = arith.constant 5 : index
    %c0_139 = arith.constant 0 : index
    %c0_140 = arith.constant 0 : index
    %138 = vector.load %arg9[%c5_138, %c0_139, %c0_140] : memref<9x3x6xf32, #tpu.memory_space<vmem>>, vector<1x3x6xf32>
    %139 = vector.shape_cast %138 : vector<1x3x6xf32> to vector<3x6xf32>
    %cst_141 = arith.constant dense<0.000000e+00> : vector<3x256xf32>
    %140 = tpu.matmul %139, %137, %cst_141 {dimension_numbers = #tpu.dot_dimension_numbers<[1], [0], [0], [1], [0, 0, 1, 1], [], []>} : vector<3x6xf32>, vector<6x256xf32>, vector<3x256xf32> -> vector<3x256xf32>
    %141 = arith.addf %134, %140 : vector<3x256xf32>
    %c6_142 = arith.constant 6 : index
    %c0_143 = arith.constant 0 : index
    %c0_144 = arith.constant 0 : index
    %142 = vector.load %arg5[%c6_142, %c0_143, %c0_144] : memref<9x256x256xf32, #tpu.memory_space<vmem>>, vector<1x256x256xf32>
    %143 = vector.shape_cast %142 : vector<1x256x256xf32> to vector<256x256xf32>
    %cst_145 = arith.constant dense<0.000000e+00> : vector<6x256xf32>
    %144 = tpu.matmul %98, %143, %cst_145 {dimension_numbers = #tpu.dot_dimension_numbers<[1], [0], [0], [1], [0, 0, 1, 1], [], []>} : vector<6x256xf32>, vector<256x256xf32>, vector<6x256xf32> -> vector<6x256xf32>
    %c6_146 = arith.constant 6 : index
    %c0_147 = arith.constant 0 : index
    %c0_148 = arith.constant 0 : index
    %145 = vector.load %arg9[%c6_146, %c0_147, %c0_148] : memref<9x3x6xf32, #tpu.memory_space<vmem>>, vector<1x3x6xf32>
    %146 = vector.shape_cast %145 : vector<1x3x6xf32> to vector<3x6xf32>
    %cst_149 = arith.constant dense<0.000000e+00> : vector<3x256xf32>
    %147 = tpu.matmul %146, %144, %cst_149 {dimension_numbers = #tpu.dot_dimension_numbers<[1], [0], [0], [1], [0, 0, 1, 1], [], []>} : vector<3x6xf32>, vector<6x256xf32>, vector<3x256xf32> -> vector<3x256xf32>
    %148 = arith.addf %141, %147 : vector<3x256xf32>
    %c7_150 = arith.constant 7 : index
    %c0_151 = arith.constant 0 : index
    %c0_152 = arith.constant 0 : index
    %149 = vector.load %arg5[%c7_150, %c0_151, %c0_152] : memref<9x256x256xf32, #tpu.memory_space<vmem>>, vector<1x256x256xf32>
    %150 = vector.shape_cast %149 : vector<1x256x256xf32> to vector<256x256xf32>
    %cst_153 = arith.constant dense<0.000000e+00> : vector<6x256xf32>
    %151 = tpu.matmul %98, %150, %cst_153 {dimension_numbers = #tpu.dot_dimension_numbers<[1], [0], [0], [1], [0, 0, 1, 1], [], []>} : vector<6x256xf32>, vector<256x256xf32>, vector<6x256xf32> -> vector<6x256xf32>
    %c7_154 = arith.constant 7 : index
    %c0_155 = arith.constant 0 : index
    %c0_156 = arith.constant 0 : index
    %152 = vector.load %arg9[%c7_154, %c0_155, %c0_156] : memref<9x3x6xf32, #tpu.memory_space<vmem>>, vector<1x3x6xf32>
    %153 = vector.shape_cast %152 : vector<1x3x6xf32> to vector<3x6xf32>
    %cst_157 = arith.constant dense<0.000000e+00> : vector<3x256xf32>
    %154 = tpu.matmul %153, %151, %cst_157 {dimension_numbers = #tpu.dot_dimension_numbers<[1], [0], [0], [1], [0, 0, 1, 1], [], []>} : vector<3x6xf32>, vector<6x256xf32>, vector<3x256xf32> -> vector<3x256xf32>
    %155 = arith.addf %148, %154 : vector<3x256xf32>
    %c8_158 = arith.constant 8 : index
    %c0_159 = arith.constant 0 : index
    %c0_160 = arith.constant 0 : index
    %156 = vector.load %arg5[%c8_158, %c0_159, %c0_160] : memref<9x256x256xf32, #tpu.memory_space<vmem>>, vector<1x256x256xf32>
    %157 = vector.shape_cast %156 : vector<1x256x256xf32> to vector<256x256xf32>
    %cst_161 = arith.constant dense<0.000000e+00> : vector<6x256xf32>
    %158 = tpu.matmul %98, %157, %cst_161 {dimension_numbers = #tpu.dot_dimension_numbers<[1], [0], [0], [1], [0, 0, 1, 1], [], []>} : vector<6x256xf32>, vector<256x256xf32>, vector<6x256xf32> -> vector<6x256xf32>
    %c8_162 = arith.constant 8 : index
    %c0_163 = arith.constant 0 : index
    %c0_164 = arith.constant 0 : index
    %159 = vector.load %arg9[%c8_162, %c0_163, %c0_164] : memref<9x3x6xf32, #tpu.memory_space<vmem>>, vector<1x3x6xf32>
    %160 = vector.shape_cast %159 : vector<1x3x6xf32> to vector<3x6xf32>
    %cst_165 = arith.constant dense<0.000000e+00> : vector<3x256xf32>
    %161 = tpu.matmul %160, %158, %cst_165 {dimension_numbers = #tpu.dot_dimension_numbers<[1], [0], [0], [1], [0, 0, 1, 1], [], []>} : vector<3x6xf32>, vector<6x256xf32>, vector<3x256xf32> -> vector<3x256xf32>
    %162 = arith.addf %155, %161 : vector<3x256xf32>
    %c0_166 = arith.constant 0 : index
    %c0_167 = arith.constant 0 : index
    %163 = vector.load %arg10[%c0_166, %c0_167] : memref<3x1xf32, #tpu.memory_space<vmem>>, vector<3x1xf32>
    %164 = vector.broadcast %163 : vector<3x1xf32> to vector<3x256xf32>
    %165 = arith.addf %162, %164 : vector<3x256xf32>
    %166 = arith.negf %165 : vector<3x256xf32>
    %167 = math.exp %166 : vector<3x256xf32>
    %cst_168 = arith.constant 1.000000e+00 : f32
    %168 = vector.broadcast %cst_168 : f32 to vector<3x256xf32>
    %169 = arith.addf %168, %167 : vector<3x256xf32>
    %170 = arith.divf %168, %169 : vector<3x256xf32>
    %171 = arith.mulf %165, %170 : vector<3x256xf32>
    %cst_169 = arith.constant 0.000000e+00 : f32
    %172 = vector.broadcast %cst_169 : f32 to vector<3x256xf32>
    %c0_170 = arith.constant 0 : index
    %c0_171 = arith.constant 0 : index
    %c0_172 = arith.constant 0 : index
    %173 = vector.load %arg5[%c0_170, %c0_171, %c0_172] : memref<9x256x256xf32, #tpu.memory_space<vmem>>, vector<1x256x256xf32>
    %174 = vector.shape_cast %173 : vector<1x256x256xf32> to vector<256x256xf32>
    %cst_173 = arith.constant dense<0.000000e+00> : vector<3x256xf32>
    %175 = tpu.matmul %171, %174, %cst_173 {dimension_numbers = #tpu.dot_dimension_numbers<[1], [0], [0], [1], [0, 0, 1, 1], [], []>} : vector<3x256xf32>, vector<256x256xf32>, vector<3x256xf32> -> vector<3x256xf32>
    %c0_174 = arith.constant 0 : index
    %c0_175 = arith.constant 0 : index
    %c0_176 = arith.constant 0 : index
    %176 = vector.load %arg11[%c0_174, %c0_175, %c0_176] : memref<9x3x3xf32, #tpu.memory_space<vmem>>, vector<1x3x3xf32>
    %177 = vector.shape_cast %176 : vector<1x3x3xf32> to vector<3x3xf32>
    %cst_177 = arith.constant dense<0.000000e+00> : vector<3x256xf32>
    %178 = tpu.matmul %177, %175, %cst_177 {dimension_numbers = #tpu.dot_dimension_numbers<[1], [0], [0], [1], [0, 0, 1, 1], [], []>} : vector<3x3xf32>, vector<3x256xf32>, vector<3x256xf32> -> vector<3x256xf32>
    %179 = arith.addf %172, %178 : vector<3x256xf32>
    %c1_178 = arith.constant 1 : index
    %c0_179 = arith.constant 0 : index
    %c0_180 = arith.constant 0 : index
    %180 = vector.load %arg5[%c1_178, %c0_179, %c0_180] : memref<9x256x256xf32, #tpu.memory_space<vmem>>, vector<1x256x256xf32>
    %181 = vector.shape_cast %180 : vector<1x256x256xf32> to vector<256x256xf32>
    %cst_181 = arith.constant dense<0.000000e+00> : vector<3x256xf32>
    %182 = tpu.matmul %171, %181, %cst_181 {dimension_numbers = #tpu.dot_dimension_numbers<[1], [0], [0], [1], [0, 0, 1, 1], [], []>} : vector<3x256xf32>, vector<256x256xf32>, vector<3x256xf32> -> vector<3x256xf32>
    %c1_182 = arith.constant 1 : index
    %c0_183 = arith.constant 0 : index
    %c0_184 = arith.constant 0 : index
    %183 = vector.load %arg11[%c1_182, %c0_183, %c0_184] : memref<9x3x3xf32, #tpu.memory_space<vmem>>, vector<1x3x3xf32>
    %184 = vector.shape_cast %183 : vector<1x3x3xf32> to vector<3x3xf32>
    %cst_185 = arith.constant dense<0.000000e+00> : vector<3x256xf32>
    %185 = tpu.matmul %184, %182, %cst_185 {dimension_numbers = #tpu.dot_dimension_numbers<[1], [0], [0], [1], [0, 0, 1, 1], [], []>} : vector<3x3xf32>, vector<3x256xf32>, vector<3x256xf32> -> vector<3x256xf32>
    %186 = arith.addf %179, %185 : vector<3x256xf32>
    %c2_186 = arith.constant 2 : index
    %c0_187 = arith.constant 0 : index
    %c0_188 = arith.constant 0 : index
    %187 = vector.load %arg5[%c2_186, %c0_187, %c0_188] : memref<9x256x256xf32, #tpu.memory_space<vmem>>, vector<1x256x256xf32>
    %188 = vector.shape_cast %187 : vector<1x256x256xf32> to vector<256x256xf32>
    %cst_189 = arith.constant dense<0.000000e+00> : vector<3x256xf32>
    %189 = tpu.matmul %171, %188, %cst_189 {dimension_numbers = #tpu.dot_dimension_numbers<[1], [0], [0], [1], [0, 0, 1, 1], [], []>} : vector<3x256xf32>, vector<256x256xf32>, vector<3x256xf32> -> vector<3x256xf32>
    %c2_190 = arith.constant 2 : index
    %c0_191 = arith.constant 0 : index
    %c0_192 = arith.constant 0 : index
    %190 = vector.load %arg11[%c2_190, %c0_191, %c0_192] : memref<9x3x3xf32, #tpu.memory_space<vmem>>, vector<1x3x3xf32>
    %191 = vector.shape_cast %190 : vector<1x3x3xf32> to vector<3x3xf32>
    %cst_193 = arith.constant dense<0.000000e+00> : vector<3x256xf32>
    %192 = tpu.matmul %191, %189, %cst_193 {dimension_numbers = #tpu.dot_dimension_numbers<[1], [0], [0], [1], [0, 0, 1, 1], [], []>} : vector<3x3xf32>, vector<3x256xf32>, vector<3x256xf32> -> vector<3x256xf32>
    %193 = arith.addf %186, %192 : vector<3x256xf32>
    %c3_194 = arith.constant 3 : index
    %c0_195 = arith.constant 0 : index
    %c0_196 = arith.constant 0 : index
    %194 = vector.load %arg5[%c3_194, %c0_195, %c0_196] : memref<9x256x256xf32, #tpu.memory_space<vmem>>, vector<1x256x256xf32>
    %195 = vector.shape_cast %194 : vector<1x256x256xf32> to vector<256x256xf32>
    %cst_197 = arith.constant dense<0.000000e+00> : vector<3x256xf32>
    %196 = tpu.matmul %171, %195, %cst_197 {dimension_numbers = #tpu.dot_dimension_numbers<[1], [0], [0], [1], [0, 0, 1, 1], [], []>} : vector<3x256xf32>, vector<256x256xf32>, vector<3x256xf32> -> vector<3x256xf32>
    %c3_198 = arith.constant 3 : index
    %c0_199 = arith.constant 0 : index
    %c0_200 = arith.constant 0 : index
    %197 = vector.load %arg11[%c3_198, %c0_199, %c0_200] : memref<9x3x3xf32, #tpu.memory_space<vmem>>, vector<1x3x3xf32>
    %198 = vector.shape_cast %197 : vector<1x3x3xf32> to vector<3x3xf32>
    %cst_201 = arith.constant dense<0.000000e+00> : vector<3x256xf32>
    %199 = tpu.matmul %198, %196, %cst_201 {dimension_numbers = #tpu.dot_dimension_numbers<[1], [0], [0], [1], [0, 0, 1, 1], [], []>} : vector<3x3xf32>, vector<3x256xf32>, vector<3x256xf32> -> vector<3x256xf32>
    %200 = arith.addf %193, %199 : vector<3x256xf32>
    %c4_202 = arith.constant 4 : index
    %c0_203 = arith.constant 0 : index
    %c0_204 = arith.constant 0 : index
    %201 = vector.load %arg5[%c4_202, %c0_203, %c0_204] : memref<9x256x256xf32, #tpu.memory_space<vmem>>, vector<1x256x256xf32>
    %202 = vector.shape_cast %201 : vector<1x256x256xf32> to vector<256x256xf32>
    %cst_205 = arith.constant dense<0.000000e+00> : vector<3x256xf32>
    %203 = tpu.matmul %171, %202, %cst_205 {dimension_numbers = #tpu.dot_dimension_numbers<[1], [0], [0], [1], [0, 0, 1, 1], [], []>} : vector<3x256xf32>, vector<256x256xf32>, vector<3x256xf32> -> vector<3x256xf32>
    %c4_206 = arith.constant 4 : index
    %c0_207 = arith.constant 0 : index
    %c0_208 = arith.constant 0 : index
    %204 = vector.load %arg11[%c4_206, %c0_207, %c0_208] : memref<9x3x3xf32, #tpu.memory_space<vmem>>, vector<1x3x3xf32>
    %205 = vector.shape_cast %204 : vector<1x3x3xf32> to vector<3x3xf32>
    %cst_209 = arith.constant dense<0.000000e+00> : vector<3x256xf32>
    %206 = tpu.matmul %205, %203, %cst_209 {dimension_numbers = #tpu.dot_dimension_numbers<[1], [0], [0], [1], [0, 0, 1, 1], [], []>} : vector<3x3xf32>, vector<3x256xf32>, vector<3x256xf32> -> vector<3x256xf32>
    %207 = arith.addf %200, %206 : vector<3x256xf32>
    %c5_210 = arith.constant 5 : index
    %c0_211 = arith.constant 0 : index
    %c0_212 = arith.constant 0 : index
    %208 = vector.load %arg5[%c5_210, %c0_211, %c0_212] : memref<9x256x256xf32, #tpu.memory_space<vmem>>, vector<1x256x256xf32>
    %209 = vector.shape_cast %208 : vector<1x256x256xf32> to vector<256x256xf32>
    %cst_213 = arith.constant dense<0.000000e+00> : vector<3x256xf32>
    %210 = tpu.matmul %171, %209, %cst_213 {dimension_numbers = #tpu.dot_dimension_numbers<[1], [0], [0], [1], [0, 0, 1, 1], [], []>} : vector<3x256xf32>, vector<256x256xf32>, vector<3x256xf32> -> vector<3x256xf32>
    %c5_214 = arith.constant 5 : index
    %c0_215 = arith.constant 0 : index
    %c0_216 = arith.constant 0 : index
    %211 = vector.load %arg11[%c5_214, %c0_215, %c0_216] : memref<9x3x3xf32, #tpu.memory_space<vmem>>, vector<1x3x3xf32>
    %212 = vector.shape_cast %211 : vector<1x3x3xf32> to vector<3x3xf32>
    %cst_217 = arith.constant dense<0.000000e+00> : vector<3x256xf32>
    %213 = tpu.matmul %212, %210, %cst_217 {dimension_numbers = #tpu.dot_dimension_numbers<[1], [0], [0], [1], [0, 0, 1, 1], [], []>} : vector<3x3xf32>, vector<3x256xf32>, vector<3x256xf32> -> vector<3x256xf32>
    %214 = arith.addf %207, %213 : vector<3x256xf32>
    %c6_218 = arith.constant 6 : index
    %c0_219 = arith.constant 0 : index
    %c0_220 = arith.constant 0 : index
    %215 = vector.load %arg5[%c6_218, %c0_219, %c0_220] : memref<9x256x256xf32, #tpu.memory_space<vmem>>, vector<1x256x256xf32>
    %216 = vector.shape_cast %215 : vector<1x256x256xf32> to vector<256x256xf32>
    %cst_221 = arith.constant dense<0.000000e+00> : vector<3x256xf32>
    %217 = tpu.matmul %171, %216, %cst_221 {dimension_numbers = #tpu.dot_dimension_numbers<[1], [0], [0], [1], [0, 0, 1, 1], [], []>} : vector<3x256xf32>, vector<256x256xf32>, vector<3x256xf32> -> vector<3x256xf32>
    %c6_222 = arith.constant 6 : index
    %c0_223 = arith.constant 0 : index
    %c0_224 = arith.constant 0 : index
    %218 = vector.load %arg11[%c6_222, %c0_223, %c0_224] : memref<9x3x3xf32, #tpu.memory_space<vmem>>, vector<1x3x3xf32>
    %219 = vector.shape_cast %218 : vector<1x3x3xf32> to vector<3x3xf32>
    %cst_225 = arith.constant dense<0.000000e+00> : vector<3x256xf32>
    %220 = tpu.matmul %219, %217, %cst_225 {dimension_numbers = #tpu.dot_dimension_numbers<[1], [0], [0], [1], [0, 0, 1, 1], [], []>} : vector<3x3xf32>, vector<3x256xf32>, vector<3x256xf32> -> vector<3x256xf32>
    %221 = arith.addf %214, %220 : vector<3x256xf32>
    %c7_226 = arith.constant 7 : index
    %c0_227 = arith.constant 0 : index
    %c0_228 = arith.constant 0 : index
    %222 = vector.load %arg5[%c7_226, %c0_227, %c0_228] : memref<9x256x256xf32, #tpu.memory_space<vmem>>, vector<1x256x256xf32>
    %223 = vector.shape_cast %222 : vector<1x256x256xf32> to vector<256x256xf32>
    %cst_229 = arith.constant dense<0.000000e+00> : vector<3x256xf32>
    %224 = tpu.matmul %171, %223, %cst_229 {dimension_numbers = #tpu.dot_dimension_numbers<[1], [0], [0], [1], [0, 0, 1, 1], [], []>} : vector<3x256xf32>, vector<256x256xf32>, vector<3x256xf32> -> vector<3x256xf32>
    %c7_230 = arith.constant 7 : index
    %c0_231 = arith.constant 0 : index
    %c0_232 = arith.constant 0 : index
    %225 = vector.load %arg11[%c7_230, %c0_231, %c0_232] : memref<9x3x3xf32, #tpu.memory_space<vmem>>, vector<1x3x3xf32>
    %226 = vector.shape_cast %225 : vector<1x3x3xf32> to vector<3x3xf32>
    %cst_233 = arith.constant dense<0.000000e+00> : vector<3x256xf32>
    %227 = tpu.matmul %226, %224, %cst_233 {dimension_numbers = #tpu.dot_dimension_numbers<[1], [0], [0], [1], [0, 0, 1, 1], [], []>} : vector<3x3xf32>, vector<3x256xf32>, vector<3x256xf32> -> vector<3x256xf32>
    %228 = arith.addf %221, %227 : vector<3x256xf32>
    %c8_234 = arith.constant 8 : index
    %c0_235 = arith.constant 0 : index
    %c0_236 = arith.constant 0 : index
    %229 = vector.load %arg5[%c8_234, %c0_235, %c0_236] : memref<9x256x256xf32, #tpu.memory_space<vmem>>, vector<1x256x256xf32>
    %230 = vector.shape_cast %229 : vector<1x256x256xf32> to vector<256x256xf32>
    %cst_237 = arith.constant dense<0.000000e+00> : vector<3x256xf32>
    %231 = tpu.matmul %171, %230, %cst_237 {dimension_numbers = #tpu.dot_dimension_numbers<[1], [0], [0], [1], [0, 0, 1, 1], [], []>} : vector<3x256xf32>, vector<256x256xf32>, vector<3x256xf32> -> vector<3x256xf32>
    %c8_238 = arith.constant 8 : index
    %c0_239 = arith.constant 0 : index
    %c0_240 = arith.constant 0 : index
    %232 = vector.load %arg11[%c8_238, %c0_239, %c0_240] : memref<9x3x3xf32, #tpu.memory_space<vmem>>, vector<1x3x3xf32>
    %233 = vector.shape_cast %232 : vector<1x3x3xf32> to vector<3x3xf32>
    %cst_241 = arith.constant dense<0.000000e+00> : vector<3x256xf32>
    %234 = tpu.matmul %233, %231, %cst_241 {dimension_numbers = #tpu.dot_dimension_numbers<[1], [0], [0], [1], [0, 0, 1, 1], [], []>} : vector<3x3xf32>, vector<3x256xf32>, vector<3x256xf32> -> vector<3x256xf32>
    %235 = arith.addf %228, %234 : vector<3x256xf32>
    %c0_242 = arith.constant 0 : index
    %c0_243 = arith.constant 0 : index
    %236 = vector.load %arg12[%c0_242, %c0_243] : memref<3x1xf32, #tpu.memory_space<vmem>>, vector<3x1xf32>
    %237 = vector.broadcast %236 : vector<3x1xf32> to vector<3x256xf32>
    %238 = arith.addf %235, %237 : vector<3x256xf32>
    %239 = arith.negf %238 : vector<3x256xf32>
    %240 = math.exp %239 : vector<3x256xf32>
    %cst_244 = arith.constant 1.000000e+00 : f32
    %241 = vector.broadcast %cst_244 : f32 to vector<3x256xf32>
    %242 = arith.addf %241, %240 : vector<3x256xf32>
    %243 = arith.divf %241, %242 : vector<3x256xf32>
    %244 = arith.mulf %238, %243 : vector<3x256xf32>
    %cst_245 = arith.constant 0.000000e+00 : f32
    %245 = vector.broadcast %cst_245 : f32 to vector<3x256xf32>
    %c0_246 = arith.constant 0 : index
    %c0_247 = arith.constant 0 : index
    %c0_248 = arith.constant 0 : index
    %246 = vector.load %arg5[%c0_246, %c0_247, %c0_248] : memref<9x256x256xf32, #tpu.memory_space<vmem>>, vector<1x256x256xf32>
    %247 = vector.shape_cast %246 : vector<1x256x256xf32> to vector<256x256xf32>
    %cst_249 = arith.constant dense<0.000000e+00> : vector<3x256xf32>
    %248 = tpu.matmul %244, %247, %cst_249 {dimension_numbers = #tpu.dot_dimension_numbers<[1], [0], [0], [1], [0, 0, 1, 1], [], []>} : vector<3x256xf32>, vector<256x256xf32>, vector<3x256xf32> -> vector<3x256xf32>
    %c0_250 = arith.constant 0 : index
    %c0_251 = arith.constant 0 : index
    %c0_252 = arith.constant 0 : index
    %249 = vector.load %arg13[%c0_250, %c0_251, %c0_252] : memref<9x3x3xf32, #tpu.memory_space<vmem>>, vector<1x3x3xf32>
    %250 = vector.shape_cast %249 : vector<1x3x3xf32> to vector<3x3xf32>
    %cst_253 = arith.constant dense<0.000000e+00> : vector<3x256xf32>
    %251 = tpu.matmul %250, %248, %cst_253 {dimension_numbers = #tpu.dot_dimension_numbers<[1], [0], [0], [1], [0, 0, 1, 1], [], []>} : vector<3x3xf32>, vector<3x256xf32>, vector<3x256xf32> -> vector<3x256xf32>
    %252 = arith.addf %245, %251 : vector<3x256xf32>
    %c1_254 = arith.constant 1 : index
    %c0_255 = arith.constant 0 : index
    %c0_256 = arith.constant 0 : index
    %253 = vector.load %arg5[%c1_254, %c0_255, %c0_256] : memref<9x256x256xf32, #tpu.memory_space<vmem>>, vector<1x256x256xf32>
    %254 = vector.shape_cast %253 : vector<1x256x256xf32> to vector<256x256xf32>
    %cst_257 = arith.constant dense<0.000000e+00> : vector<3x256xf32>
    %255 = tpu.matmul %244, %254, %cst_257 {dimension_numbers = #tpu.dot_dimension_numbers<[1], [0], [0], [1], [0, 0, 1, 1], [], []>} : vector<3x256xf32>, vector<256x256xf32>, vector<3x256xf32> -> vector<3x256xf32>
    %c1_258 = arith.constant 1 : index
    %c0_259 = arith.constant 0 : index
    %c0_260 = arith.constant 0 : index
    %256 = vector.load %arg13[%c1_258, %c0_259, %c0_260] : memref<9x3x3xf32, #tpu.memory_space<vmem>>, vector<1x3x3xf32>
    %257 = vector.shape_cast %256 : vector<1x3x3xf32> to vector<3x3xf32>
    %cst_261 = arith.constant dense<0.000000e+00> : vector<3x256xf32>
    %258 = tpu.matmul %257, %255, %cst_261 {dimension_numbers = #tpu.dot_dimension_numbers<[1], [0], [0], [1], [0, 0, 1, 1], [], []>} : vector<3x3xf32>, vector<3x256xf32>, vector<3x256xf32> -> vector<3x256xf32>
    %259 = arith.addf %252, %258 : vector<3x256xf32>
    %c2_262 = arith.constant 2 : index
    %c0_263 = arith.constant 0 : index
    %c0_264 = arith.constant 0 : index
    %260 = vector.load %arg5[%c2_262, %c0_263, %c0_264] : memref<9x256x256xf32, #tpu.memory_space<vmem>>, vector<1x256x256xf32>
    %261 = vector.shape_cast %260 : vector<1x256x256xf32> to vector<256x256xf32>
    %cst_265 = arith.constant dense<0.000000e+00> : vector<3x256xf32>
    %262 = tpu.matmul %244, %261, %cst_265 {dimension_numbers = #tpu.dot_dimension_numbers<[1], [0], [0], [1], [0, 0, 1, 1], [], []>} : vector<3x256xf32>, vector<256x256xf32>, vector<3x256xf32> -> vector<3x256xf32>
    %c2_266 = arith.constant 2 : index
    %c0_267 = arith.constant 0 : index
    %c0_268 = arith.constant 0 : index
    %263 = vector.load %arg13[%c2_266, %c0_267, %c0_268] : memref<9x3x3xf32, #tpu.memory_space<vmem>>, vector<1x3x3xf32>
    %264 = vector.shape_cast %263 : vector<1x3x3xf32> to vector<3x3xf32>
    %cst_269 = arith.constant dense<0.000000e+00> : vector<3x256xf32>
    %265 = tpu.matmul %264, %262, %cst_269 {dimension_numbers = #tpu.dot_dimension_numbers<[1], [0], [0], [1], [0, 0, 1, 1], [], []>} : vector<3x3xf32>, vector<3x256xf32>, vector<3x256xf32> -> vector<3x256xf32>
    %266 = arith.addf %259, %265 : vector<3x256xf32>
    %c3_270 = arith.constant 3 : index
    %c0_271 = arith.constant 0 : index
    %c0_272 = arith.constant 0 : index
    %267 = vector.load %arg5[%c3_270, %c0_271, %c0_272] : memref<9x256x256xf32, #tpu.memory_space<vmem>>, vector<1x256x256xf32>
    %268 = vector.shape_cast %267 : vector<1x256x256xf32> to vector<256x256xf32>
    %cst_273 = arith.constant dense<0.000000e+00> : vector<3x256xf32>
    %269 = tpu.matmul %244, %268, %cst_273 {dimension_numbers = #tpu.dot_dimension_numbers<[1], [0], [0], [1], [0, 0, 1, 1], [], []>} : vector<3x256xf32>, vector<256x256xf32>, vector<3x256xf32> -> vector<3x256xf32>
    %c3_274 = arith.constant 3 : index
    %c0_275 = arith.constant 0 : index
    %c0_276 = arith.constant 0 : index
    %270 = vector.load %arg13[%c3_274, %c0_275, %c0_276] : memref<9x3x3xf32, #tpu.memory_space<vmem>>, vector<1x3x3xf32>
    %271 = vector.shape_cast %270 : vector<1x3x3xf32> to vector<3x3xf32>
    %cst_277 = arith.constant dense<0.000000e+00> : vector<3x256xf32>
    %272 = tpu.matmul %271, %269, %cst_277 {dimension_numbers = #tpu.dot_dimension_numbers<[1], [0], [0], [1], [0, 0, 1, 1], [], []>} : vector<3x3xf32>, vector<3x256xf32>, vector<3x256xf32> -> vector<3x256xf32>
    %273 = arith.addf %266, %272 : vector<3x256xf32>
    %c4_278 = arith.constant 4 : index
    %c0_279 = arith.constant 0 : index
    %c0_280 = arith.constant 0 : index
    %274 = vector.load %arg5[%c4_278, %c0_279, %c0_280] : memref<9x256x256xf32, #tpu.memory_space<vmem>>, vector<1x256x256xf32>
    %275 = vector.shape_cast %274 : vector<1x256x256xf32> to vector<256x256xf32>
    %cst_281 = arith.constant dense<0.000000e+00> : vector<3x256xf32>
    %276 = tpu.matmul %244, %275, %cst_281 {dimension_numbers = #tpu.dot_dimension_numbers<[1], [0], [0], [1], [0, 0, 1, 1], [], []>} : vector<3x256xf32>, vector<256x256xf32>, vector<3x256xf32> -> vector<3x256xf32>
    %c4_282 = arith.constant 4 : index
    %c0_283 = arith.constant 0 : index
    %c0_284 = arith.constant 0 : index
    %277 = vector.load %arg13[%c4_282, %c0_283, %c0_284] : memref<9x3x3xf32, #tpu.memory_space<vmem>>, vector<1x3x3xf32>
    %278 = vector.shape_cast %277 : vector<1x3x3xf32> to vector<3x3xf32>
    %cst_285 = arith.constant dense<0.000000e+00> : vector<3x256xf32>
    %279 = tpu.matmul %278, %276, %cst_285 {dimension_numbers = #tpu.dot_dimension_numbers<[1], [0], [0], [1], [0, 0, 1, 1], [], []>} : vector<3x3xf32>, vector<3x256xf32>, vector<3x256xf32> -> vector<3x256xf32>
    %280 = arith.addf %273, %279 : vector<3x256xf32>
    %c5_286 = arith.constant 5 : index
    %c0_287 = arith.constant 0 : index
    %c0_288 = arith.constant 0 : index
    %281 = vector.load %arg5[%c5_286, %c0_287, %c0_288] : memref<9x256x256xf32, #tpu.memory_space<vmem>>, vector<1x256x256xf32>
    %282 = vector.shape_cast %281 : vector<1x256x256xf32> to vector<256x256xf32>
    %cst_289 = arith.constant dense<0.000000e+00> : vector<3x256xf32>
    %283 = tpu.matmul %244, %282, %cst_289 {dimension_numbers = #tpu.dot_dimension_numbers<[1], [0], [0], [1], [0, 0, 1, 1], [], []>} : vector<3x256xf32>, vector<256x256xf32>, vector<3x256xf32> -> vector<3x256xf32>
    %c5_290 = arith.constant 5 : index
    %c0_291 = arith.constant 0 : index
    %c0_292 = arith.constant 0 : index
    %284 = vector.load %arg13[%c5_290, %c0_291, %c0_292] : memref<9x3x3xf32, #tpu.memory_space<vmem>>, vector<1x3x3xf32>
    %285 = vector.shape_cast %284 : vector<1x3x3xf32> to vector<3x3xf32>
    %cst_293 = arith.constant dense<0.000000e+00> : vector<3x256xf32>
    %286 = tpu.matmul %285, %283, %cst_293 {dimension_numbers = #tpu.dot_dimension_numbers<[1], [0], [0], [1], [0, 0, 1, 1], [], []>} : vector<3x3xf32>, vector<3x256xf32>, vector<3x256xf32> -> vector<3x256xf32>
    %287 = arith.addf %280, %286 : vector<3x256xf32>
    %c6_294 = arith.constant 6 : index
    %c0_295 = arith.constant 0 : index
    %c0_296 = arith.constant 0 : index
    %288 = vector.load %arg5[%c6_294, %c0_295, %c0_296] : memref<9x256x256xf32, #tpu.memory_space<vmem>>, vector<1x256x256xf32>
    %289 = vector.shape_cast %288 : vector<1x256x256xf32> to vector<256x256xf32>
    %cst_297 = arith.constant dense<0.000000e+00> : vector<3x256xf32>
    %290 = tpu.matmul %244, %289, %cst_297 {dimension_numbers = #tpu.dot_dimension_numbers<[1], [0], [0], [1], [0, 0, 1, 1], [], []>} : vector<3x256xf32>, vector<256x256xf32>, vector<3x256xf32> -> vector<3x256xf32>
    %c6_298 = arith.constant 6 : index
    %c0_299 = arith.constant 0 : index
    %c0_300 = arith.constant 0 : index
    %291 = vector.load %arg13[%c6_298, %c0_299, %c0_300] : memref<9x3x3xf32, #tpu.memory_space<vmem>>, vector<1x3x3xf32>
    %292 = vector.shape_cast %291 : vector<1x3x3xf32> to vector<3x3xf32>
    %cst_301 = arith.constant dense<0.000000e+00> : vector<3x256xf32>
    %293 = tpu.matmul %292, %290, %cst_301 {dimension_numbers = #tpu.dot_dimension_numbers<[1], [0], [0], [1], [0, 0, 1, 1], [], []>} : vector<3x3xf32>, vector<3x256xf32>, vector<3x256xf32> -> vector<3x256xf32>
    %294 = arith.addf %287, %293 : vector<3x256xf32>
    %c7_302 = arith.constant 7 : index
    %c0_303 = arith.constant 0 : index
    %c0_304 = arith.constant 0 : index
    %295 = vector.load %arg5[%c7_302, %c0_303, %c0_304] : memref<9x256x256xf32, #tpu.memory_space<vmem>>, vector<1x256x256xf32>
    %296 = vector.shape_cast %295 : vector<1x256x256xf32> to vector<256x256xf32>
    %cst_305 = arith.constant dense<0.000000e+00> : vector<3x256xf32>
    %297 = tpu.matmul %244, %296, %cst_305 {dimension_numbers = #tpu.dot_dimension_numbers<[1], [0], [0], [1], [0, 0, 1, 1], [], []>} : vector<3x256xf32>, vector<256x256xf32>, vector<3x256xf32> -> vector<3x256xf32>
    %c7_306 = arith.constant 7 : index
    %c0_307 = arith.constant 0 : index
    %c0_308 = arith.constant 0 : index
    %298 = vector.load %arg13[%c7_306, %c0_307, %c0_308] : memref<9x3x3xf32, #tpu.memory_space<vmem>>, vector<1x3x3xf32>
    %299 = vector.shape_cast %298 : vector<1x3x3xf32> to vector<3x3xf32>
    %cst_309 = arith.constant dense<0.000000e+00> : vector<3x256xf32>
    %300 = tpu.matmul %299, %297, %cst_309 {dimension_numbers = #tpu.dot_dimension_numbers<[1], [0], [0], [1], [0, 0, 1, 1], [], []>} : vector<3x3xf32>, vector<3x256xf32>, vector<3x256xf32> -> vector<3x256xf32>
    %301 = arith.addf %294, %300 : vector<3x256xf32>
    %c8_310 = arith.constant 8 : index
    %c0_311 = arith.constant 0 : index
    %c0_312 = arith.constant 0 : index
    %302 = vector.load %arg5[%c8_310, %c0_311, %c0_312] : memref<9x256x256xf32, #tpu.memory_space<vmem>>, vector<1x256x256xf32>
    %303 = vector.shape_cast %302 : vector<1x256x256xf32> to vector<256x256xf32>
    %cst_313 = arith.constant dense<0.000000e+00> : vector<3x256xf32>
    %304 = tpu.matmul %244, %303, %cst_313 {dimension_numbers = #tpu.dot_dimension_numbers<[1], [0], [0], [1], [0, 0, 1, 1], [], []>} : vector<3x256xf32>, vector<256x256xf32>, vector<3x256xf32> -> vector<3x256xf32>
    %c8_314 = arith.constant 8 : index
    %c0_315 = arith.constant 0 : index
    %c0_316 = arith.constant 0 : index
    %305 = vector.load %arg13[%c8_314, %c0_315, %c0_316] : memref<9x3x3xf32, #tpu.memory_space<vmem>>, vector<1x3x3xf32>
    %306 = vector.shape_cast %305 : vector<1x3x3xf32> to vector<3x3xf32>
    %cst_317 = arith.constant dense<0.000000e+00> : vector<3x256xf32>
    %307 = tpu.matmul %306, %304, %cst_317 {dimension_numbers = #tpu.dot_dimension_numbers<[1], [0], [0], [1], [0, 0, 1, 1], [], []>} : vector<3x3xf32>, vector<3x256xf32>, vector<3x256xf32> -> vector<3x256xf32>
    %308 = arith.addf %301, %307 : vector<3x256xf32>
    %c0_318 = arith.constant 0 : index
    %c0_319 = arith.constant 0 : index
    %309 = vector.load %arg14[%c0_318, %c0_319] : memref<3x1xf32, #tpu.memory_space<vmem>>, vector<3x1xf32>
    %310 = vector.broadcast %309 : vector<3x1xf32> to vector<3x256xf32>
    %311 = arith.addf %308, %310 : vector<3x256xf32>
    %c0_320 = arith.constant 0 : index
    %c0_321 = arith.constant 0 : index
    %c0_322 = arith.constant 0 : index
    %312 = vector.load %arg15[%c0_320, %c0_321, %c0_322] : memref<1x3x256xf32, #tpu.memory_space<vmem>>, vector<1x3x256xf32>
    %313 = vector.shape_cast %312 : vector<1x3x256xf32> to vector<3x256xf32>
    %314 = vector.shape_cast %311 : vector<3x256xf32> to vector<1x3x256xf32>
    tpu.vector_store %arg15[%c0_320, %c0_321, %c0_322], %314 {strides = array<i32>} : memref<1x3x256xf32, #tpu.memory_space<vmem>>, vector<1x3x256xf32>,
    return
  }
  func.func @transform_0(%arg0: i32) -> (i32, i32, i32) {
    %c0_i32 = arith.constant 0 : i32
    %c0_i32_0 = arith.constant 0 : i32
    %c0_i32_1 = arith.constant 0 : i32
    return %arg0, %c0_i32, %c0_i32_0 : i32, i32, i32
  }
  func.func @transform_1(%arg0: i32) -> (i32, i32) {
    %c0_i32 = arith.constant 0 : i32
    %c0_i32_0 = arith.constant 0 : i32
    %c0_i32_1 = arith.constant 0 : i32
    return %c0_i32, %c0_i32_0 : i32, i32
  }
  func.func @transform_2(%arg0: i32) -> (i32, i32) {
    %c0_i32 = arith.constant 0 : i32
    %c0_i32_0 = arith.constant 0 : i32
    %c0_i32_1 = arith.constant 0 : i32
    return %c0_i32, %c0_i32_0 : i32, i32
  }
  func.func @transform_3(%arg0: i32) -> (i32, i32) {
    %c0_i32 = arith.constant 0 : i32
    %c0_i32_0 = arith.constant 0 : i32
    %c0_i32_1 = arith.constant 0 : i32
    return %c0_i32, %c0_i32_0 : i32, i32
  }
  func.func @transform_4(%arg0: i32) -> (i32, i32, i32) {
    %c0_i32 = arith.constant 0 : i32
    %c0_i32_0 = arith.constant 0 : i32
    %c0_i32_1 = arith.constant 0 : i32
    %c0_i32_2 = arith.constant 0 : i32
    return %c0_i32, %c0_i32_0, %c0_i32_1 : i32, i32, i32
  }
  func.func @transform_5(%arg0: i32) -> (i32, i32, i32) {
    %c0_i32 = arith.constant 0 : i32
    %c0_i32_0 = arith.constant 0 : i32
    %c0_i32_1 = arith.constant 0 : i32
    return %arg0, %c0_i32, %c0_i32_0 : i32, i32, i32
  }
  func.func @transform_6(%arg0: i32) -> (i32, i32, i32) {
    %c0_i32 = arith.constant 0 : i32
    %c0_i32_0 = arith.constant 0 : i32
    %c0_i32_1 = arith.constant 0 : i32
    %c0_i32_2 = arith.constant 0 : i32
    return %c0_i32, %c0_i32_0, %c0_i32_1 : i32, i32, i32
  }
  func.func @transform_7(%arg0: i32) -> (i32, i32) {
    %c0_i32 = arith.constant 0 : i32
    %c0_i32_0 = arith.constant 0 : i32
    %c0_i32_1 = arith.constant 0 : i32
    return %c0_i32, %c0_i32_0 : i32, i32
  }
  func.func @transform_8(%arg0: i32) -> (i32, i32, i32) {
    %c0_i32 = arith.constant 0 : i32
    %c0_i32_0 = arith.constant 0 : i32
    %c0_i32_1 = arith.constant 0 : i32
    %c0_i32_2 = arith.constant 0 : i32
    return %c0_i32, %c0_i32_0, %c0_i32_1 : i32, i32, i32
  }
  func.func @transform_9(%arg0: i32) -> (i32, i32) {
    %c0_i32 = arith.constant 0 : i32
    %c0_i32_0 = arith.constant 0 : i32
    %c0_i32_1 = arith.constant 0 : i32
    return %c0_i32, %c0_i32_0 : i32, i32
  }
  func.func @transform_10(%arg0: i32) -> (i32, i32, i32) {
    %c0_i32 = arith.constant 0 : i32
    %c0_i32_0 = arith.constant 0 : i32
    %c0_i32_1 = arith.constant 0 : i32
    %c0_i32_2 = arith.constant 0 : i32
    return %c0_i32, %c0_i32_0, %c0_i32_1 : i32, i32, i32
  }
  func.func @transform_11(%arg0: i32) -> (i32, i32) {
    %c0_i32 = arith.constant 0 : i32
    %c0_i32_0 = arith.constant 0 : i32
    %c0_i32_1 = arith.constant 0 : i32
    return %c0_i32, %c0_i32_0 : i32, i32
  }
  func.func @transform_12(%arg0: i32) -> (i32, i32, i32) {
    %c0_i32 = arith.constant 0 : i32
    %c0_i32_0 = arith.constant 0 : i32
    %c0_i32_1 = arith.constant 0 : i32
    %c0_i32_2 = arith.constant 0 : i32
    return %c0_i32, %c0_i32_0, %c0_i32_1 : i32, i32, i32
  }
  func.func @transform_13(%arg0: i32) -> (i32, i32) {
    %c0_i32 = arith.constant 0 : i32
    %c0_i32_0 = arith.constant 0 : i32
    %c0_i32_1 = arith.constant 0 : i32
    return %c0_i32, %c0_i32_0 : i32, i32
  }
  func.func @transform_14(%arg0: i32) -> (i32, i32, i32) {
    %c0_i32 = arith.constant 0 : i32
    %c0_i32_0 = arith.constant 0 : i32
    %c0_i32_1 = arith.constant 0 : i32
    return %arg0, %c0_i32, %c0_i32_0 : i32, i32, i32
  }
}

</mosaic_0001>

<llo_original>
// kernel: tpu_custom_call.1
$region0: #{tpu_custom_call.1}
  #allocation0 [shape = 'u32[]', space=smem, size = 0x4, offset = 0x4, fixed_abs, tag = 'smem constant byte address 0x4 - core index']
  #allocation1 [shape = 'u32[144,128]{1,0:T(1,128)}', space=vmem, size = 0x12000, scoped, tag = 'internal scratch']
  #allocation2 [shape = 'f32[6,256]{1,0:T(8,128)}', space=vmem, size = 0x2000, scoped, tag = 'scratch operand']
  %s0 = inlined_call_operand.hbm [shape: f32[2,1,8], index: 0, kind: input, shape index: {}]
  %s1 = inlined_call_operand.hbm [shape: f32[8,192], index: 1, kind: input, shape index: {}]
  %s2 = inlined_call_operand.hbm [shape: f32[1,192], index: 2, kind: input, shape index: {}]
  %s3 = inlined_call_operand.hbm [shape: f32[64,256], index: 3, kind: input, shape index: {}]
  %s4 = inlined_call_operand.hbm [shape: f32[9,256,256], index: 4, kind: input, shape index: {}]
  %s5 = inlined_call_operand.vmem [shape: f32[2,3,256], index: 5, kind: input, shape index: {}]
  %s6 = inlined_call_operand.vmem [shape: f32[9,6,6], index: 6, kind: input, shape index: {}]
  %s7 = inlined_call_operand.vmem [shape: f32[6,1], index: 7, kind: input, shape index: {}]
  %s8 = inlined_call_operand.vmem [shape: f32[9,3,6], index: 8, kind: input, shape index: {}]
  %s9 = inlined_call_operand.vmem [shape: f32[3,1], index: 9, kind: input, shape index: {}]
  %s10 = inlined_call_operand.vmem [shape: f32[9,3,3], index: 10, kind: input, shape index: {}]
  %s11 = inlined_call_operand.vmem [shape: f32[3,1], index: 11, kind: input, shape index: {}]
  %s12 = inlined_call_operand.vmem [shape: f32[9,3,3], index: 12, kind: input, shape index: {}]
  %s13 = inlined_call_operand.vmem [shape: f32[3,1], index: 13, kind: input, shape index: {}]
  %s14 = inlined_call_operand.vmem [shape: f32[2,3,256], index: 14, kind: output, shape index: {}]
  %s15 = sld [smem:[#allocation0]]
  $region109: #{tpu_custom_call.1} parent=0
    _
  %s17 = ssub.s32 1, %s15
  %s18 = scalar_select 0, %s17, %s15
  $region1: #{tpu_custom_call.1} parent=0
    #allocation3 [shape = 'u8[1024]{0}', space=vmem, size = 0x400, scoped, tag = 'input window, operand 0']
    #allocation4 [shape = 's32[2]{0}', space=sflag, size = 0x8, scoped, tag = 'scoped memory for tpu_custom_call.1']
    #allocation5 [shape = 'u8[8192]{0}', space=vmem, size = 0x2000, scoped, tag = 'input window, operand 1, single buffered']
    #allocation6 [shape = 's32[1]{0}', space=sflag, size = 0x4, scoped, tag = 'scoped memory for tpu_custom_call.1']
    #allocation7 [shape = 'u8[1024]{0}', space=vmem, size = 0x400, scoped, tag = 'input window, operand 2, single buffered']
    #allocation8 [shape = 'u8[65536]{0}', space=vmem, size = 0x10000, scoped, tag = 'input window, operand 3, single buffered']
    #allocation9 [shape = 's32[1]{0}', space=sflag, size = 0x4, scoped, tag = 'scoped memory for tpu_custom_call.1']
    #allocation10 [shape = 'u8[2359296]{0}', space=vmem, size = 0x240000, scoped, tag = 'input window, operand 4, single buffered']
    %19 = vsyncpa [#allocation4], 0
    %s20 = scalar_lea.sflag [#allocation4], 1
    %21 = vsyncpa %s20, 0
    %22 = vsyncpa [#allocation6], 0
    %23 = vsyncpa [#allocation9], 0
    loop: start=0, step=1, limit=4
    $region2: #{tpu_custom_call.1} parent=1 // loop_pre_header
      _
    $region3: #{tpu_custom_call.1} parent=1 // loop_header
      %s25 = sphi 0, %s29
      %p26 = scmp.ge.s32.totalorder %s25, 4
      %s35 = sphi 0, %s37
      %s38 = sphi 0, %s35
      %s39 = sphi 0, %s38
      %s55 = sphi 0, %s39
      %s59 = sphi 0, %s59
      %s61 = sphi 0, %s59
      %s62 = sphi 0, %s61
      %s76 = sphi 0, %s62
      %s80 = sphi 0, %s80
      %s82 = sphi 0, %s80
      %s83 = sphi 0, %s82
      %s97 = sphi 0, %s83
      %s101 = sphi 0, %s101
      %s103 = sphi 0, %s101
      %s104 = sphi 0, %s103
      %s118 = sphi 0, %s104
      %s122 = sphi 0, %s122
      %s124 = sphi 0, %s122
      %s125 = sphi 0, %s124
      %s139 = sphi 0, %s125
      %s145 = sphi 0, %s147
      %s148 = sphi 0, %s145
      %s149 = sphi 0, %s148
      %s165 = sphi 0, %s149
      %s169 = sphi 0, %s169
      %s171 = sphi 0, %s169
      %s172 = sphi 0, %s171
      %s186 = sphi 0, %s172
      %s190 = sphi 0, %s190
      %s192 = sphi 0, %s190
      %s193 = sphi 0, %s192
      %s207 = sphi 0, %s193
      %s211 = sphi 0, %s211
      %s213 = sphi 0, %s211
      %s214 = sphi 0, %s213
      %s228 = sphi 0, %s214
      %s232 = sphi 0, %s232
      %s234 = sphi 0, %s232
      %s235 = sphi 0, %s234
      %s249 = sphi 0, %s235
      %s253 = sphi 0, %s253
      %s255 = sphi 0, %s253
      %s256 = sphi 0, %s255
      %s270 = sphi 0, %s256
      %s274 = sphi 0, %s274
      %s276 = sphi 0, %s274
      %s277 = sphi 0, %s276
      %s291 = sphi 0, %s277
      %s295 = sphi 0, %s295
      %s297 = sphi 0, %s295
      %s298 = sphi 0, %s297
      %s312 = sphi 0, %s298
      %s316 = sphi 0, %s316
      %s318 = sphi 0, %s316
      %s319 = sphi 0, %s318
      %s333 = sphi 0, %s319
      %s339 = sphi 0, %s341
      %s342 = sphi 0, %s339
      %s343 = sphi 0, %s342
      %s359 = sphi 0, %s343
    $region4: #{tpu_custom_call.1} parent=1 // loop_header_branch
      %28 = sbr.rel (%p26) target = $region8
    $region5: #{tpu_custom_call.1} parent=1 // loop_body
      %s30 = ssub.s32 %s25, 1
      %s31 = ssub.s32 %s25, 2
      %s32 = sadd.s32 %s25, 1
      %s33 = ssub.s32 %s25, %s32
      %p34 = scmp.eq.s32.totalorder %s33, 0
      %s36 = sadd.s32 %s35, 1
      %s37 = scalar_select %p34, %s35, %s36
      %p40 = pneg %p34
      %p41 = scmp.eq.s32.totalorder %s25, 1
      %p42 = por %p40, %p41
      %p43 = scmp.ne.s32.totalorder %s35, %s38
      %p44 = scmp.eq.s32.totalorder %s25, 0
      %p45 = por %p43, %p44
      %p46 = scmp.ne.s32.totalorder %s35, %s38
      %p47 = scmp.eq.s32.totalorder %s30, 1
      %p48 = por %p46, %p47
      %p49 = scmp.ne.s32.totalorder %s38, %s39
      %p50 = scmp.eq.s32.totalorder %s30, 0
      %p51 = por %p49, %p50
      %p52 = scmp.ne.s32.totalorder %s38, %s39
      %p53 = scmp.eq.s32.totalorder %s31, 1
      %p54 = por %p52, %p53
      %p56 = scmp.ne.s32.totalorder %s39, %s55
      %p57 = scmp.eq.s32.totalorder %s31, 0
      %p58 = por %p56, %p57
      %s60 = sadd.s32 %s59, 1
      %p63 = scmp.eq.s32.totalorder %s25, 1
      %p64 = scmp.ne.s32.totalorder %s59, %s61
      %p65 = scmp.eq.s32.totalorder %s25, 0
      %p66 = por %p64, %p65
      %p67 = scmp.ne.s32.totalorder %s59, %s61
      %p68 = scmp.eq.s32.totalorder %s30, 1
      %p69 = por %p67, %p68
      %p70 = scmp.ne.s32.totalorder %s61, %s62
      %p71 = scmp.eq.s32.totalorder %s30, 0
      %p72 = por %p70, %p71
      %p73 = scmp.ne.s32.totalorder %s61, %s62
      %p74 = scmp.eq.s32.totalorder %s31, 1
      %p75 = por %p73, %p74
      %p77 = scmp.ne.s32.totalorder %s62, %s76
      %p78 = scmp.eq.s32.totalorder %s31, 0
      %p79 = por %p77, %p78
      %s81 = sadd.s32 %s80, 1
      %p84 = scmp.eq.s32.totalorder %s25, 1
      %p85 = scmp.ne.s32.totalorder %s80, %s82
      %p86 = scmp.eq.s32.totalorder %s25, 0
      %p87 = por %p85, %p86
      %p88 = scmp.ne.s32.totalorder %s80, %s82
      %p89 = scmp.eq.s32.totalorder %s30, 1
      %p90 = por %p88, %p89
      %p91 = scmp.ne.s32.totalorder %s82, %s83
      %p92 = scmp.eq.s32.totalorder %s30, 0
      %p93 = por %p91, %p92
      %p94 = scmp.ne.s32.totalorder %s82, %s83
      %p95 = scmp.eq.s32.totalorder %s31, 1
      %p96 = por %p94, %p95
      %p98 = scmp.ne.s32.totalorder %s83, %s97
      %p99 = scmp.eq.s32.totalorder %s31, 0
      %p100 = por %p98, %p99
      %s102 = sadd.s32 %s101, 1
      %p105 = scmp.eq.s32.totalorder %s25, 1
      %p106 = scmp.ne.s32.totalorder %s101, %s103
      %p107 = scmp.eq.s32.totalorder %s25, 0
      %p108 = por %p106, %p107
      %p109 = scmp.ne.s32.totalorder %s101, %s103
      %p110 = scmp.eq.s32.totalorder %s30, 1
      %p111 = por %p109, %p110
      %p112 = scmp.ne.s32.totalorder %s103, %s104
      %p113 = scmp.eq.s32.totalorder %s30, 0
      %p114 = por %p112, %p113
      %p115 = scmp.ne.s32.totalorder %s103, %s104
      %p116 = scmp.eq.s32.totalorder %s31, 1
      %p117 = por %p115, %p116
      %p119 = scmp.ne.s32.totalorder %s104, %s118
      %p120 = scmp.eq.s32.totalorder %s31, 0
      %p121 = por %p119, %p120
      %s123 = sadd.s32 %s122, 1
      %p126 = scmp.eq.s32.totalorder %s25, 1
      %p127 = scmp.ne.s32.totalorder %s122, %s124
      %p128 = scmp.eq.s32.totalorder %s25, 0
      %p129 = por %p127, %p128
      %p130 = scmp.ne.s32.totalorder %s122, %s124
      %p131 = scmp.eq.s32.totalorder %s30, 1
      %p132 = por %p130, %p131
      %p133 = scmp.ne.s32.totalorder %s124, %s125
      %p134 = scmp.eq.s32.totalorder %s30, 0
      %p135 = por %p133, %p134
      %p136 = scmp.ne.s32.totalorder %s124, %s125
      %p137 = scmp.eq.s32.totalorder %s31, 1
      %p138 = por %p136, %p137
      %p140 = scmp.ne.s32.totalorder %s125, %s139
      %p141 = scmp.eq.s32.totalorder %s31, 0
      %p142 = por %p140, %p141
      %s143 = ssub.s32 %s25, %s32
      %p144 = scmp.eq.s32.totalorder %s143, 0
      %s146 = sadd.s32 %s145, 1
      %s147 = scalar_select %p144, %s145, %s146
      %p150 = pneg %p144
      %p151 = scmp.eq.s32.totalorder %s25, 1
      %p152 = por %p150, %p151
      %p153 = scmp.ne.s32.totalorder %s145, %s148
      %p154 = scmp.eq.s32.totalorder %s25, 0
      %p155 = por %p153, %p154
      %p156 = scmp.ne.s32.totalorder %s145, %s148
      %p157 = scmp.eq.s32.totalorder %s30, 1
      %p158 = por %p156, %p157
      %p159 = scmp.ne.s32.totalorder %s148, %s149
      %p160 = scmp.eq.s32.totalorder %s30, 0
      %p161 = por %p159, %p160
      %p162 = scmp.ne.s32.totalorder %s148, %s149
      %p163 = scmp.eq.s32.totalorder %s31, 1
      %p164 = por %p162, %p163
      %p166 = scmp.ne.s32.totalorder %s149, %s165
      %p167 = scmp.eq.s32.totalorder %s31, 0
      %p168 = por %p166, %p167
      %s170 = sadd.s32 %s169, 1
      %p173 = scmp.eq.s32.totalorder %s25, 1
      %p174 = scmp.ne.s32.totalorder %s169, %s171
      %p175 = scmp.eq.s32.totalorder %s25, 0
      %p176 = por %p174, %p175
      %p177 = scmp.ne.s32.totalorder %s169, %s171
      %p178 = scmp.eq.s32.totalorder %s30, 1
      %p179 = por %p177, %p178
      %p180 = scmp.ne.s32.totalorder %s171, %s172
      %p181 = scmp.eq.s32.totalorder %s30, 0
      %p182 = por %p180, %p181
      %p183 = scmp.ne.s32.totalorder %s171, %s172
      %p184 = scmp.eq.s32.totalorder %s31, 1
      %p185 = por %p183, %p184
      %p187 = scmp.ne.s32.totalorder %s172, %s186
      %p188 = scmp.eq.s32.totalorder %s31, 0
      %p189 = por %p187, %p188
      %s191 = sadd.s32 %s190, 1
      %p194 = scmp.eq.s32.totalorder %s25, 1
      %p195 = scmp.ne.s32.totalorder %s190, %s192
      %p196 = scmp.eq.s32.totalorder %s25, 0
      %p197 = por %p195, %p196
      %p198 = scmp.ne.s32.totalorder %s190, %s192
      %p199 = scmp.eq.s32.totalorder %s30, 1
      %p200 = por %p198, %p199
      %p201 = scmp.ne.s32.totalorder %s192, %s193
      %p202 = scmp.eq.s32.totalorder %s30, 0
      %p203 = por %p201, %p202
      %p204 = scmp.ne.s32.totalorder %s192, %s193
      %p205 = scmp.eq.s32.totalorder %s31, 1
      %p206 = por %p204, %p205
      %p208 = scmp.ne.s32.totalorder %s193, %s207
      %p209 = scmp.eq.s32.totalorder %s31, 0
      %p210 = por %p208, %p209
      %s212 = sadd.s32 %s211, 1
      %p215 = scmp.eq.s32.totalorder %s25, 1
      %p216 = scmp.ne.s32.totalorder %s211, %s213
      %p217 = scmp.eq.s32.totalorder %s25, 0
      %p218 = por %p216, %p217
      %p219 = scmp.ne.s32.totalorder %s211, %s213
      %p220 = scmp.eq.s32.totalorder %s30, 1
      %p221 = por %p219, %p220
      %p222 = scmp.ne.s32.totalorder %s213, %s214
      %p223 = scmp.eq.s32.totalorder %s30, 0
      %p224 = por %p222, %p223
      %p225 = scmp.ne.s32.totalorder %s213, %s214
      %p226 = scmp.eq.s32.totalorder %s31, 1
      %p227 = por %p225, %p226
      %p229 = scmp.ne.s32.totalorder %s214, %s228
      %p230 = scmp.eq.s32.totalorder %s31, 0
      %p231 = por %p229, %p230
      %s233 = sadd.s32 %s232, 1
      %p236 = scmp.eq.s32.totalorder %s25, 1
      %p237 = scmp.ne.s32.totalorder %s232, %s234
      %p238 = scmp.eq.s32.totalorder %s25, 0
      %p239 = por %p237, %p238
      %p240 = scmp.ne.s32.totalorder %s232, %s234
      %p241 = scmp.eq.s32.totalorder %s30, 1
      %p242 = por %p240, %p241
      %p243 = scmp.ne.s32.totalorder %s234, %s235
      %p244 = scmp.eq.s32.totalorder %s30, 0
      %p245 = por %p243, %p244
      %p246 = scmp.ne.s32.totalorder %s234, %s235
      %p247 = scmp.eq.s32.totalorder %s31, 1
      %p248 = por %p246, %p247
      %p250 = scmp.ne.s32.totalorder %s235, %s249
      %p251 = scmp.eq.s32.totalorder %s31, 0
      %p252 = por %p250, %p251
      %s254 = sadd.s32 %s253, 1
      %p257 = scmp.eq.s32.totalorder %s25, 1
      %p258 = scmp.ne.s32.totalorder %s253, %s255
      %p259 = scmp.eq.s32.totalorder %s25, 0
      %p260 = por %p258, %p259
      %p261 = scmp.ne.s32.totalorder %s253, %s255
      %p262 = scmp.eq.s32.totalorder %s30, 1
      %p263 = por %p261, %p262
      %p264 = scmp.ne.s32.totalorder %s255, %s256
      %p265 = scmp.eq.s32.totalorder %s30, 0
      %p266 = por %p264, %p265
      %p267 = scmp.ne.s32.totalorder %s255, %s256
      %p268 = scmp.eq.s32.totalorder %s31, 1
      %p269 = por %p267, %p268
      %p271 = scmp.ne.s32.totalorder %s256, %s270
      %p272 = scmp.eq.s32.totalorder %s31, 0
      %p273 = por %p271, %p272
      %s275 = sadd.s32 %s274, 1
      %p278 = scmp.eq.s32.totalorder %s25, 1
      %p279 = scmp.ne.s32.totalorder %s274, %s276
      %p280 = scmp.eq.s32.totalorder %s25, 0
      %p281 = por %p279, %p280
      %p282 = scmp.ne.s32.totalorder %s274, %s276
      %p283 = scmp.eq.s32.totalorder %s30, 1
      %p284 = por %p282, %p283
      %p285 = scmp.ne.s32.totalorder %s276, %s277
      %p286 = scmp.eq.s32.totalorder %s30, 0
      %p287 = por %p285, %p286
      %p288 = scmp.ne.s32.totalorder %s276, %s277
      %p289 = scmp.eq.s32.totalorder %s31, 1
      %p290 = por %p288, %p289
      %p292 = scmp.ne.s32.totalorder %s277, %s291
      %p293 = scmp.eq.s32.totalorder %s31, 0
      %p294 = por %p292, %p293
      %s296 = sadd.s32 %s295, 1
      %p299 = scmp.eq.s32.totalorder %s25, 1
      %p300 = scmp.ne.s32.totalorder %s295, %s297
      %p301 = scmp.eq.s32.totalorder %s25, 0
      %p302 = por %p300, %p301
      %p303 = scmp.ne.s32.totalorder %s295, %s297
      %p304 = scmp.eq.s32.totalorder %s30, 1
      %p305 = por %p303, %p304
      %p306 = scmp.ne.s32.totalorder %s297, %s298
      %p307 = scmp.eq.s32.totalorder %s30, 0
      %p308 = por %p306, %p307
      %p309 = scmp.ne.s32.totalorder %s297, %s298
      %p310 = scmp.eq.s32.totalorder %s31, 1
      %p311 = por %p309, %p310
      %p313 = scmp.ne.s32.totalorder %s298, %s312
      %p314 = scmp.eq.s32.totalorder %s31, 0
      %p315 = por %p313, %p314
      %s317 = sadd.s32 %s316, 1
      %p320 = scmp.eq.s32.totalorder %s25, 1
      %p321 = scmp.ne.s32.totalorder %s316, %s318
      %p322 = scmp.eq.s32.totalorder %s25, 0
      %p323 = por %p321, %p322
      %p324 = scmp.ne.s32.totalorder %s316, %s318
      %p325 = scmp.eq.s32.totalorder %s30, 1
      %p326 = por %p324, %p325
      %p327 = scmp.ne.s32.totalorder %s318, %s319
      %p328 = scmp.eq.s32.totalorder %s30, 0
      %p329 = por %p327, %p328
      %p330 = scmp.ne.s32.totalorder %s318, %s319
      %p331 = scmp.eq.s32.totalorder %s31, 1
      %p332 = por %p330, %p331
      %p334 = scmp.ne.s32.totalorder %s319, %s333
      %p335 = scmp.eq.s32.totalorder %s31, 0
      %p336 = por %p334, %p335
      %s337 = ssub.s32 %s25, %s32
      %p338 = scmp.eq.s32.totalorder %s337, 0
      %s340 = sadd.s32 %s339, 1
      %s341 = scalar_select %p338, %s339, %s340
      %p344 = pneg %p338
      %p345 = scmp.eq.s32.totalorder %s25, 1
      %p346 = por %p344, %p345
      %p347 = scmp.ne.s32.totalorder %s339, %s342
      %p348 = scmp.eq.s32.totalorder %s25, 0
      %p349 = por %p347, %p348
      %p350 = scmp.ne.s32.totalorder %s339, %s342
      %p351 = scmp.eq.s32.totalorder %s30, 1
      %p352 = por %p350, %p351
      %p353 = scmp.ne.s32.totalorder %s342, %s343
      %p354 = scmp.eq.s32.totalorder %s30, 0
      %p355 = por %p353, %p354
      %p356 = scmp.ne.s32.totalorder %s342, %s343
      %p357 = scmp.eq.s32.totalorder %s31, 1
      %p358 = por %p356, %p357
      %p360 = scmp.ne.s32.totalorder %s343, %s359
      %p361 = scmp.eq.s32.totalorder %s31, 0
      %p362 = por %p360, %p361
      %p363 = scmp.le.s32.totalorder 1, %s25
      %p364 = scmp.lt.s32.totalorder %s25, 3
      %p365 = pnand %p363, %p364
      %p366 = pneg %p365
      // Predicated region
      $region9: #{tpu_custom_call.1} parent=5 // pred_check
        _
      $region10: #{tpu_custom_call.1} parent=5 // pred_check_branch
        %368 = sbr.rel (%p365) target = $region12
      $region11: #{tpu_custom_call.1} parent=5 // pred_region
        %s369 = ssub.s32 %s25, 1
        // Predicated region
        $region13: #{tpu_custom_call.1} parent=11 // pred_check
          %p370 = pneg %p72
        $region14: #{tpu_custom_call.1} parent=11 // pred_check_branch
          %372 = sbr.rel (%p370) target = $region16
        $region15: #{tpu_custom_call.1} parent=11 // pred_region
          %s374 = ssub.s32 256, 256
          %375 = vsyncadd [#allocation6], %s374
          %s377 = sshll.u32 [#allocation5], 4
          %s378 = int_to_ptr.vmem [resolvable:$true] %s377
          %380 = dma.hbm_to_vmem [thread:$0]  %s1, 256, %s378, [#allocation6]
        $region16: #{tpu_custom_call.1} parent=11 // pred_fallthru
          _
        // Predicated region
        $region17: #{tpu_custom_call.1} parent=11 // pred_check
          %p381 = pneg %p93
        $region18: #{tpu_custom_call.1} parent=11 // pred_check_branch
          %383 = sbr.rel (%p381) target = $region20
        $region19: #{tpu_custom_call.1} parent=11 // pred_region
          %s385 = ssub.s32 32, 32
          %386 = vsyncadd [#allocation6], %s385
          %s388 = sshll.u32 [#allocation7], 4
          %s389 = int_to_ptr.vmem [resolvable:$true] %s388
          %391 = dma.hbm_to_vmem [thread:$0]  %s2, 32, %s389, [#allocation6]
        $region20: #{tpu_custom_call.1} parent=11 // pred_fallthru
          _
        // Predicated region
        $region21: #{tpu_custom_call.1} parent=11 // pred_check
          %p392 = pneg %p114
        $region22: #{tpu_custom_call.1} parent=11 // pred_check_branch
          %394 = sbr.rel (%p392) target = $region24
        $region23: #{tpu_custom_call.1} parent=11 // pred_region
          %s396 = ssub.s32 2048, 2048
          %397 = vsyncadd [#allocation9], %s396
          %s398 = sshll.u32 [#allocation8], 4
          %s399 = int_to_ptr.vmem [resolvable:$true] %s398
          %404 = dma.hbm_to_vmem [thread:$0]  %s3, 2048, %s399, [#allocation9], 256, 256, 16
        $region24: #{tpu_custom_call.1} parent=11 // pred_fallthru
          _
        // Predicated region
        $region25: #{tpu_custom_call.1} parent=11 // pred_check
          %p405 = pneg %p135
        $region26: #{tpu_custom_call.1} parent=11 // pred_check_branch
          %407 = sbr.rel (%p405) target = $region28
        $region27: #{tpu_custom_call.1} parent=11 // pred_region
          %s409 = ssub.s32 73728, 73728
          %410 = vsyncadd [#allocation9], %s409
          %s411 = sshll.u32 [#allocation10], 4
          %s412 = int_to_ptr.vmem [resolvable:$true] %s411
          %417 = dma.hbm_to_vmem [thread:$0]  %s4, 73728, %s412, [#allocation9], 256, 256, 16
        $region28: #{tpu_custom_call.1} parent=11 // pred_fallthru
          _
        // Predicated region
        $region29: #{tpu_custom_call.1} parent=11 // pred_check
          %p418 = pneg %p182
        $region30: #{tpu_custom_call.1} parent=11 // pred_check_branch
          %420 = sbr.rel (%p418) target = $region32
        $region31: #{tpu_custom_call.1} parent=11 // pred_region
          _
        $region32: #{tpu_custom_call.1} parent=11 // pred_fallthru
          _
        // Predicated region
        $region33: #{tpu_custom_call.1} parent=11 // pred_check
          %p421 = pneg %p203
        $region34: #{tpu_custom_call.1} parent=11 // pred_check_branch
          %423 = sbr.rel (%p421) target = $region36
        $region35: #{tpu_custom_call.1} parent=11 // pred_region
          _
        $region36: #{tpu_custom_call.1} parent=11 // pred_fallthru
          _
        // Predicated region
        $region37: #{tpu_custom_call.1} parent=11 // pred_check
          %p424 = pneg %p224
        $region38: #{tpu_custom_call.1} parent=11 // pred_check_branch
          %426 = sbr.rel (%p424) target = $region40
        $region39: #{tpu_custom_call.1} parent=11 // pred_region
          _
        $region40: #{tpu_custom_call.1} parent=11 // pred_fallthru
          _
        // Predicated region
        $region41: #{tpu_custom_call.1} parent=11 // pred_check
          %p427 = pneg %p245
        $region42: #{tpu_custom_call.1} parent=11 // pred_check_branch
          %429 = sbr.rel (%p427) target = $region44
        $region43: #{tpu_custom_call.1} parent=11 // pred_region
          _
        $region44: #{tpu_custom_call.1} parent=11 // pred_fallthru
          _
        // Predicated region
        $region45: #{tpu_custom_call.1} parent=11 // pred_check
          %p430 = pneg %p266
        $region46: #{tpu_custom_call.1} parent=11 // pred_check_branch
          %432 = sbr.rel (%p430) target = $region48
        $region47: #{tpu_custom_call.1} parent=11 // pred_region
          _
        $region48: #{tpu_custom_call.1} parent=11 // pred_fallthru
          _
        // Predicated region
        $region49: #{tpu_custom_call.1} parent=11 // pred_check
          %p433 = pneg %p287
        $region50: #{tpu_custom_call.1} parent=11 // pred_check_branch
          %435 = sbr.rel (%p433) target = $region52
        $region51: #{tpu_custom_call.1} parent=11 // pred_region
          _
        $region52: #{tpu_custom_call.1} parent=11 // pred_fallthru
          _
        // Predicated region
        $region53: #{tpu_custom_call.1} parent=11 // pred_check
          %p436 = pneg %p308
        $region54: #{tpu_custom_call.1} parent=11 // pred_check_branch
          %438 = sbr.rel (%p436) target = $region56
        $region55: #{tpu_custom_call.1} parent=11 // pred_region
          _
        $region56: #{tpu_custom_call.1} parent=11 // pred_fallthru
          _
        // Predicated region
        $region57: #{tpu_custom_call.1} parent=11 // pred_check
          %p439 = pneg %p329
        $region58: #{tpu_custom_call.1} parent=11 // pred_check_branch
          %441 = sbr.rel (%p439) target = $region60
        $region59: #{tpu_custom_call.1} parent=11 // pred_region
          _
        $region60: #{tpu_custom_call.1} parent=11 // pred_fallthru
          _
      $region12: #{tpu_custom_call.1} parent=5 // pred_fallthru
        _
      %p442 = scmp.lt.s32.totalorder %s25, 2
      // Predicated region
      $region61: #{tpu_custom_call.1} parent=5 // pred_check
        %p443 = pneg %p442
      $region62: #{tpu_custom_call.1} parent=5 // pred_check_branch
        %445 = sbr.rel (%p443) target = $region64
      $region63: #{tpu_custom_call.1} parent=5 // pred_region
        // Predicated region
        $region65: #{tpu_custom_call.1} parent=63 // pred_check
          %p446 = pneg %p45
        $region66: #{tpu_custom_call.1} parent=63 // pred_check_branch
          %448 = sbr.rel (%p446) target = $region68
        $region67: #{tpu_custom_call.1} parent=63 // pred_region
          %s449 = sand.u32 %s35, 1
          %s450 = scalar_lea.sflag [#allocation4], %s449
          %s451 = sand.u32 %s35, 1
          %s452 = scalar_lea.vmem [#allocation3], %s451
          %s454 = ssub.s32 16, 16
          %455 = vsyncadd %s450, %s454
          %s456 = smul.addr %s25, 16
          %s457 = scalar_lea.hbm %s0, %s456
          %s459 = sshll.u32 %s452, 4
          %s460 = int_to_ptr.vmem [resolvable:$true] %s459
          %462 = dma.hbm_to_vmem [thread:$0]  %s457, 16, %s460, %s450
        $region68: #{tpu_custom_call.1} parent=63 // pred_fallthru
          _
        // Predicated region
        $region69: #{tpu_custom_call.1} parent=63 // pred_check
          %p463 = pneg %p155
        $region70: #{tpu_custom_call.1} parent=63 // pred_check_branch
          %465 = sbr.rel (%p463) target = $region72
        $region71: #{tpu_custom_call.1} parent=63 // pred_region
          %p466 = scmp.lt.s32.totalorder %s25, 1
          %s467 = scalar_select %p466, %s25, 1
          %s468 = smul.addr %s467, 2
          %s469 = smul.addr %s468, 4
          %s470 = scalar_lea.vmem %s5, %s469
        $region72: #{tpu_custom_call.1} parent=63 // pred_fallthru
          _
      $region64: #{tpu_custom_call.1} parent=5 // pred_fallthru
        _
      %p471 = scmp.le.s32.totalorder 1, %s25
      %p472 = scmp.lt.s32.totalorder %s25, 3
      %p473 = pnand %p471, %p472
      %p474 = pneg %p473
      // Predicated region
      $region73: #{tpu_custom_call.1} parent=5 // pred_check
        _
      $region74: #{tpu_custom_call.1} parent=5 // pred_check_branch
        %476 = sbr.rel (%p473) target = $region76
      $region75: #{tpu_custom_call.1} parent=5 // pred_region
        %s477 = ssub.s32 %s25, 1
        %s478 = sand.u32 %s38, 1
        %s479 = scalar_lea.sflag [#allocation4], %s478
        %s480 = sand.u32 %s38, 1
        %s481 = scalar_lea.vmem [#allocation3], %s480
        // Predicated region
        $region77: #{tpu_custom_call.1} parent=75 // pred_check
          %p482 = pneg %p51
        $region78: #{tpu_custom_call.1} parent=75 // pred_check_branch
          %484 = sbr.rel (%p482) target = $region80
        $region79: #{tpu_custom_call.1} parent=75 // pred_region
          %485 = dma.done %s479, 16
        $region80: #{tpu_custom_call.1} parent=75 // pred_fallthru
          _
        // Predicated region
        $region81: #{tpu_custom_call.1} parent=75 // pred_check
          %p486 = pneg %p72
        $region82: #{tpu_custom_call.1} parent=75 // pred_check_branch
          %488 = sbr.rel (%p486) target = $region84
        $region83: #{tpu_custom_call.1} parent=75 // pred_region
          %489 = dma.done [#allocation6], 256
        $region84: #{tpu_custom_call.1} parent=75 // pred_fallthru
          _
        // Predicated region
        $region85: #{tpu_custom_call.1} parent=75 // pred_check
          %p490 = pneg %p93
        $region86: #{tpu_custom_call.1} parent=75 // pred_check_branch
          %492 = sbr.rel (%p490) target = $region88
        $region87: #{tpu_custom_call.1} parent=75 // pred_region
          %493 = dma.done [#allocation6], 32
        $region88: #{tpu_custom_call.1} parent=75 // pred_fallthru
          _
        // Predicated region
        $region89: #{tpu_custom_call.1} parent=75 // pred_check
          %p494 = pneg %p114
        $region90: #{tpu_custom_call.1} parent=75 // pred_check_branch
          %496 = sbr.rel (%p494) target = $region92
        $region91: #{tpu_custom_call.1} parent=75 // pred_region
          %497 = dma.done [#allocation9], 2048
        $region92: #{tpu_custom_call.1} parent=75 // pred_fallthru
          _
        // Predicated region
        $region93: #{tpu_custom_call.1} parent=75 // pred_check
          %p498 = pneg %p135
        $region94: #{tpu_custom_call.1} parent=75 // pred_check_branch
          %500 = sbr.rel (%p498) target = $region96
        $region95: #{tpu_custom_call.1} parent=75 // pred_region
          %501 = dma.done [#allocation9], 73728
        $region96: #{tpu_custom_call.1} parent=75 // pred_fallthru
          _
        %s502 = sand.u32 %s38, 1
        %s503 = scalar_lea.sflag [#allocation4], %s502
        %s504 = sand.u32 %s38, 1
        %s505 = scalar_lea.vmem [#allocation3], %s504
        %p506 = pneg %p51
        %p507 = pneg %p48
        %p508 = pneg %p72
        %p509 = pneg %p69
        %p510 = pneg %p93
        %p511 = pneg %p90
        %p512 = pneg %p114
        %p513 = pneg %p111
        %p514 = pneg %p135
        %p515 = pneg %p132
        %p516 = scmp.lt.s32.totalorder %s30, 1
        %s517 = scalar_select %p516, %s30, 1
        %s518 = smul.addr %s517, 2
        %s519 = smul.addr %s518, 4
        %s520 = scalar_lea.vmem %s5, %s519
        %p521 = pneg %p161
        %p522 = pneg %p158
        %p523 = pneg %p182
        %p524 = pneg %p179
        %p525 = pneg %p203
        %p526 = pneg %p200
        %p527 = pneg %p224
        %p528 = pneg %p221
        %p529 = pneg %p245
        %p530 = pneg %p242
        %p531 = pneg %p266
        %p532 = pneg %p263
        %p533 = pneg %p287
        %p534 = pneg %p284
        %p535 = pneg %p308
        %p536 = pneg %p305
        %p537 = pneg %p329
        %p538 = pneg %p326
        %p539 = pneg %p355
        %p540 = pneg %p352
        %p541 = scmp.lt.s32.totalorder %s30, 1
        %s542 = scalar_select %p541, %s30, 1
        %s543 = smul.addr %s542, 2
        %s544 = smul.addr %s543, 4
        %s545 = scalar_lea.vmem %s14, %s544
        %p546 = scmp.lt.s32.totalorder %s30, 1
        %s547 = scalar_select %p546, %s30, 1
        %s548 = smul.addr %s547, 2
        %s549 = smul.addr %s548, 4
        %s550 = scalar_lea.vmem %s5, %s549
        %p551 = scmp.lt.s32.totalorder %s30, 1
        %s552 = scalar_select %p551, %s30, 1
        %s553 = smul.addr %s552, 2
        %s554 = smul.addr %s553, 4
        %s555 = scalar_lea.vmem %s14, %s554
        %v556 = vld [vmem:[%s481] sm:$0x1]
        %v557 = vld [vmem:[#allocation5] sm:$0xff]
        %v558 = vld [vmem:[#allocation5 + $0x8] sm:$0xff]
        %v559 = vld [vmem:[#allocation7] sm:$0x3]
        %v561 = vlaneseq
        %v562 = vshrl.u32 %v561, 7
        %v563 = vsub.s32 0, %v562
        %v564 = vrot.slane %v559, %v563
        %v565 = vlaneseq
        %v566 = vshrl.u32 %v565, 7
        %v567 = vsub.s32 1, %v566
        %v568 = vrot.slane %v559, %v567
        %vm571 = vcmask 64512
        %v573 = vsel %vm571, %v556, 0
        %575 = vmatprep.subr.mxu0 %v558
        %576 = vmatpush1.msra.mxu0 %v557
        %577 = vmatprep.subr.mxu0 0.0
        %578 = vmatpush1.msra.mxu0 0.0
        %579 = vmatprep.subr.mxu0 0.0
        %580 = vmatpush1.msra.mxu0 0.0
        %581 = vmatprep.subr.mxu0 0.0
        %582 = vmatpush1.msra.mxu0 0.0
        %583 = vmatprep.subr.mxu0 0.0
        %584 = vmatpush1.msra.mxu0 0.0
        %585 = vmatprep.subr.mxu0 0.0
        %586 = vmatpush1.msra.mxu0 0.0
        %587 = vmatprep.subr.mxu0 0.0
        %588 = vmatpush1.msra.mxu0 0.0
        %589 = vmatprep.subr.mxu0 0.0
        %590 = vmatpush1.msra.mxu0 0.0
        %591 = vmatprep.subr.mxu0 0.0
        %592 = vmatpush1.msra.mxu0 0.0
        %593 = vmatprep.subr.mxu0 0.0
        %594 = vmatpush1.msra.mxu0 0.0
        %595 = vmatprep.subr.mxu0 0.0
        %596 = vmatpush1.msra.mxu0 0.0
        %597 = vmatprep.subr.mxu0 0.0
        %598 = vmatpush1.msra.mxu0 0.0
        %599 = vmatprep.subr.mxu0 0.0
        %600 = vmatpush1.msra.mxu0 0.0
        %601 = vmatprep.subr.mxu0 0.0
        %602 = vmatpush1.msra.mxu0 0.0
        %603 = vmatprep.subr.mxu0 0.0
        %604 = vmatpush1.msra.mxu0 0.0
        %605 = vmatprep.subr.mxu0 0.0
        %606 = vmatpush1.msra.mxu0 0.0
        %607 = vmatprep.subr.mxu0 0.0
        %608 = vmatpush1.msra.mxu0 0.0
        %609 = vmatprep.subr.mxu0 0.0
        %610 = vmatpush1.msra.mxu0 0.0
        %611 = vmatprep.subr.mxu0 0.0
        %612 = vmatpush1.msra.mxu0 0.0
        %613 = vmatprep.subr.mxu0 0.0
        %614 = vmatpush1.msra.mxu0 0.0
        %615 = vmatprep.subr.mxu0 0.0
        %616 = vmatpush1.msra.mxu0 0.0
        %617 = vmatprep.subr.mxu0 0.0
        %618 = vmatpush1.msra.mxu0 0.0
        %619 = vmatprep.subr.mxu0 0.0
        %620 = vmatpush1.msra.mxu0 0.0
        %621 = vmatprep.subr.mxu0 0.0
        %622 = vmatpush1.msra.mxu0 0.0
        %623 = vmatprep.subr.mxu0 0.0
        %624 = vmatpush1.msra.mxu0 0.0
        %625 = vmatprep.subr.mxu0 0.0
        %626 = vmatpush1.msra.mxu0 0.0
        %627 = vmatprep.subr.mxu0 0.0
        %628 = vmatpush1.msra.mxu0 0.0
        %629 = vmatprep.subr.mxu0 0.0
        %630 = vmatpush1.msra.mxu0 0.0
        %631 = vmatprep.subr.mxu0 0.0
        %632 = vmatpush1.msra.mxu0 0.0
        %633 = vmatprep.subr.mxu0 0.0
        %634 = vmatpush1.msra.mxu0 0.0
        %635 = vmatprep.subr.mxu0 0.0
        %636 = vmatpush1.msra.mxu0 0.0
        %637 = vmatprep.subr.mxu0 0.0
        %638 = vmatpush1.msra.mxu0 0.0
        %639 = vmatprep.mubr.f32.mxu0 0.0
        %640 = vmatmul.mubr.f32.gmra.mrb[0].mxu0 %v573
        %v641 = vpop.f32.mrb[0].mxu0
        %v642 = vadd.f32 %v564, %v641
        %v643 = vpop.f32.mrb[0].mxu0
        %v644 = vadd.f32 %v568, %v643
        %645 = vdwg.mxu0
        %v646 = vxor.u32 %v642, 2147483648
        %v647 = vxor.u32 %v644, 2147483648
        %v648 = vmul.f32 %v646, 1.442695
        %v649 = vpow.pop %v648
        %v650 = vmul.f32 %v647, 1.442695
        %v651 = vpow.pop %v650
        %v652 = vadd.f32 %v649, 1.0
        %v653 = vadd.f32 %v651, 1.0
        %v654 = vrcp.pop %v652
        %v655 = vmul.f32 1.0, %v654
        %v656 = vrcp.pop %v653
        %v657 = vmul.f32 1.0, %v656
        %v658 = vmul.f32 %v642, %v655
        %v659 = vmul.f32 %v644, %v657
        %v660 = vld [vmem:[%s550] sm:$0x77]
        %v662 = vcombine.high %v660, %v660
        %664 = vst [vmem:[#allocation2] sm:$0x7] %v660
        %665 = vst [vmem:[#allocation2 + $0x8] sm:$0x7] %v662
        %v666 = vld [vmem:[#allocation8] sm:$0xff]
        %v667 = vld [vmem:[#allocation8 + $0x8] sm:$0xff]
        %v668 = vld [vmem:[#allocation8 + $0x10] sm:$0xff]
        %v669 = vld [vmem:[#allocation8 + $0x18] sm:$0xff]
        %v670 = vld [vmem:[#allocation8 + $0x20] sm:$0xff]
        %v671 = vld [vmem:[#allocation8 + $0x28] sm:$0xff]
        %v672 = vld [vmem:[#allocation8 + $0x30] sm:$0xff]
        %v673 = vld [vmem:[#allocation8 + $0x38] sm:$0xff]
        %v674 = vld [vmem:[#allocation8 + $0x40] sm:$0xff]
        %v675 = vld [vmem:[#allocation8 + $0x48] sm:$0xff]
        %v676 = vld [vmem:[#allocation8 + $0x50] sm:$0xff]
        %v677 = vld [vmem:[#allocation8 + $0x58] sm:$0xff]
        %v678 = vld [vmem:[#allocation8 + $0x60] sm:$0xff]
        %v679 = vld [vmem:[#allocation8 + $0x68] sm:$0xff]
        %v680 = vld [vmem:[#allocation8 + $0x70] sm:$0xff]
        %v681 = vld [vmem:[#allocation8 + $0x78] sm:$0xff]
        %vm682 = vcmask 523264
        %v684 = vsel %vm682, %v658, 0
        %686 = vmatprep.subr.mxu0 %v667
        %687 = vmatpush1.msra.mxu0 %v666
        %688 = vmatprep.subr.mxu0 %v669
        %689 = vmatpush1.msra.mxu0 %v668
        %690 = vmatprep.subr.mxu0 %v671
        %691 = vmatpush1.msra.mxu0 %v670
        %692 = vmatprep.subr.mxu0 %v673
        %693 = vmatpush1.msra.mxu0 %v672
        %694 = vmatprep.subr.mxu0 %v675
        %695 = vmatpush1.msra.mxu0 %v674
        %696 = vmatprep.subr.mxu0 %v677
        %697 = vmatpush1.msra.mxu0 %v676
        %698 = vmatprep.subr.mxu0 %v679
        %699 = vmatpush1.msra.mxu0 %v678
        %700 = vmatprep.subr.mxu0 %v681
        %701 = vmatpush1.msra.mxu0 %v680
        %702 = vmatprep.subr.mxu0 0.0
        %703 = vmatpush1.msra.mxu0 0.0
        %704 = vmatprep.subr.mxu0 0.0
        %705 = vmatpush1.msra.mxu0 0.0
        %706 = vmatprep.subr.mxu0 0.0
        %707 = vmatpush1.msra.mxu0 0.0
        %708 = vmatprep.subr.mxu0 0.0
        %709 = vmatpush1.msra.mxu0 0.0
        %710 = vmatprep.subr.mxu0 0.0
        %711 = vmatpush1.msra.mxu0 0.0
        %712 = vmatprep.subr.mxu0 0.0
        %713 = vmatpush1.msra.mxu0 0.0
        %714 = vmatprep.subr.mxu0 0.0
        %715 = vmatpush1.msra.mxu0 0.0
        %716 = vmatprep.subr.mxu0 0.0
        %717 = vmatpush1.msra.mxu0 0.0
        %718 = vmatprep.subr.mxu0 0.0
        %719 = vmatpush1.msra.mxu0 0.0
        %720 = vmatprep.subr.mxu0 0.0
        %721 = vmatpush1.msra.mxu0 0.0
        %722 = vmatprep.subr.mxu0 0.0
        %723 = vmatpush1.msra.mxu0 0.0
        %724 = vmatprep.subr.mxu0 0.0
        %725 = vmatpush1.msra.mxu0 0.0
        %726 = vmatprep.subr.mxu0 0.0
        %727 = vmatpush1.msra.mxu0 0.0
        %728 = vmatprep.subr.mxu0 0.0
        %729 = vmatpush1.msra.mxu0 0.0
        %730 = vmatprep.subr.mxu0 0.0
        %731 = vmatpush1.msra.mxu0 0.0
        %732 = vmatprep.subr.mxu0 0.0
        %733 = vmatpush1.msra.mxu0 0.0
        %734 = vmatprep.subr.mxu0 0.0
        %735 = vmatpush1.msra.mxu0 0.0
        %736 = vmatprep.subr.mxu0 0.0
        %737 = vmatpush1.msra.mxu0 0.0
        %738 = vmatprep.subr.mxu0 0.0
        %739 = vmatpush1.msra.mxu0 0.0
        %740 = vmatprep.subr.mxu0 0.0
        %741 = vmatpush1.msra.mxu0 0.0
        %742 = vmatprep.subr.mxu0 0.0
        %743 = vmatpush1.msra.mxu0 0.0
        %744 = vmatprep.subr.mxu0 0.0
        %745 = vmatpush1.msra.mxu0 0.0
        %746 = vmatprep.subr.mxu0 0.0
        %747 = vmatpush1.msra.mxu0 0.0
        %748 = vmatprep.subr.mxu0 0.0
        %749 = vmatpush1.msra.mxu0 0.0
        %750 = vmatprep.mubr.f32.mxu0 0.0
        %751 = vmatmul.mubr.f32.gmra.mrb[0].mxu0 %v684
        %v752 = vpop.f32.mrb[0].mxu0
        %v753 = vadd.f32 0.0, %v752
        %v754 = vpop.f32.mrb[0].mxu0
        %v755 = vadd.f32 0.0, %v754
        %756 = vdwg.mxu0
        %v759 = vcombine.low %v753, %v755
        %v761 = vunpack.c.l.s4 1966171168
        %v762 = vunpack.c.0.s8 %v761
        %v763 = vlaneseq
        %v764 = vshrl.u32 %v763, 7
        %v765 = vsub.s32 %v762, %v764
        %v766 = vrot.slane %v759, %v765
        %v768 = vunpack.c.l.s4 1966171168
        %v769 = vunpack.c.0.s8 %v768
        %v770 = vlaneseq
        %v771 = vshrl.u32 %v770, 7
        %v772 = vsub.s32 %v769, %v771
        %v773 = vrot.slane %v766, %v772
        %v775 = vlaneseq
        %vm776 = vcmp.ge.s32.totalorder %v775, 0
        %vm777 = vcmp.lt.s32.totalorder %v775, 256
        %vm778 = vmand %vm776, %vm777
        %s779 = scalar_lea.vmem [#allocation2], 3
        %780 = vst.msk [vmem:[%s779] ss:$8 sm:$0x3] %vm778, %v773
        %781 = vst.msk [vmem:[%s779] ss:$8 sm:$0x0] %vm778, %v773
        %782 = vrot.lane.b32.xlu0 %v658, 64
        %v783 = vpop.permute.xlu0 %782
        %v784 = vsel %vm682, %v783, 0
        %786 = vmatprep.subr.mxu0 %v667
        %787 = vmatpush1.msra.mxu0 %v666
        %788 = vmatprep.subr.mxu0 %v669
        %789 = vmatpush1.msra.mxu0 %v668
        %790 = vmatprep.subr.mxu0 %v671
        %791 = vmatpush1.msra.mxu0 %v670
        %792 = vmatprep.subr.mxu0 %v673
        %793 = vmatpush1.msra.mxu0 %v672
        %794 = vmatprep.subr.mxu0 %v675
        %795 = vmatpush1.msra.mxu0 %v674
        %796 = vmatprep.subr.mxu0 %v677
        %797 = vmatpush1.msra.mxu0 %v676
        %798 = vmatprep.subr.mxu0 %v679
        %799 = vmatpush1.msra.mxu0 %v678
        %800 = vmatprep.subr.mxu0 %v681
        %801 = vmatpush1.msra.mxu0 %v680
        %802 = vmatprep.subr.mxu0 0.0
        %803 = vmatpush1.msra.mxu0 0.0
        %804 = vmatprep.subr.mxu0 0.0
        %805 = vmatpush1.msra.mxu0 0.0
        %806 = vmatprep.subr.mxu0 0.0
        %807 = vmatpush1.msra.mxu0 0.0
        %808 = vmatprep.subr.mxu0 0.0
        %809 = vmatpush1.msra.mxu0 0.0
        %810 = vmatprep.subr.mxu0 0.0
        %811 = vmatpush1.msra.mxu0 0.0
        %812 = vmatprep.subr.mxu0 0.0
        %813 = vmatpush1.msra.mxu0 0.0
        %814 = vmatprep.subr.mxu0 0.0
        %815 = vmatpush1.msra.mxu0 0.0
        %816 = vmatprep.subr.mxu0 0.0
        %817 = vmatpush1.msra.mxu0 0.0
        %818 = vmatprep.subr.mxu0 0.0
        %819 = vmatpush1.msra.mxu0 0.0
        %820 = vmatprep.subr.mxu0 0.0
        %821 = vmatpush1.msra.mxu0 0.0
        %822 = vmatprep.subr.mxu0 0.0
        %823 = vmatpush1.msra.mxu0 0.0
        %824 = vmatprep.subr.mxu0 0.0
        %825 = vmatpush1.msra.mxu0 0.0
        %826 = vmatprep.subr.mxu0 0.0
        %827 = vmatpush1.msra.mxu0 0.0
        %828 = vmatprep.subr.mxu0 0.0
        %829 = vmatpush1.msra.mxu0 0.0
        %830 = vmatprep.subr.mxu0 0.0
        %831 = vmatpush1.msra.mxu0 0.0
        %832 = vmatprep.subr.mxu0 0.0
        %833 = vmatpush1.msra.mxu0 0.0
        %834 = vmatprep.subr.mxu0 0.0
        %835 = vmatpush1.msra.mxu0 0.0
        %836 = vmatprep.subr.mxu0 0.0
        %837 = vmatpush1.msra.mxu0 0.0
        %838 = vmatprep.subr.mxu0 0.0
        %839 = vmatpush1.msra.mxu0 0.0
        %840 = vmatprep.subr.mxu0 0.0
        %841 = vmatpush1.msra.mxu0 0.0
        %842 = vmatprep.subr.mxu0 0.0
        %843 = vmatpush1.msra.mxu0 0.0
        %844 = vmatprep.subr.mxu0 0.0
        %845 = vmatpush1.msra.mxu0 0.0
        %846 = vmatprep.subr.mxu0 0.0
        %847 = vmatpush1.msra.mxu0 0.0
        %848 = vmatprep.subr.mxu0 0.0
        %849 = vmatpush1.msra.mxu0 0.0
        %850 = vmatprep.mubr.f32.mxu0 0.0
        %851 = vmatmul.mubr.f32.gmra.mrb[0].mxu0 %v784
        %v852 = vpop.f32.mrb[0].mxu0
        %v853 = vadd.f32 0.0, %v852
        %v854 = vpop.f32.mrb[0].mxu0
        %v855 = vadd.f32 0.0, %v854
        %856 = vdwg.mxu0
        %v859 = vcombine.low %v853, %v855
        %v861 = vunpack.c.l.s4 1966171168
        %v862 = vunpack.c.0.s8 %v861
        %v863 = vlaneseq
        %v864 = vshrl.u32 %v863, 7
        %v865 = vsub.s32 %v862, %v864
        %v866 = vrot.slane %v859, %v865
        %v868 = vunpack.c.l.s4 1966171168
        %v869 = vunpack.c.0.s8 %v868
        %v870 = vlaneseq
        %v871 = vshrl.u32 %v870, 7
        %v872 = vsub.s32 %v869, %v871
        %v873 = vrot.slane %v866, %v872
        %s875 = scalar_lea.vmem [#allocation2], 4
        %876 = vst.msk [vmem:[%s875] ss:$8 sm:$0x3] %vm778, %v873
        %877 = vst.msk [vmem:[%s875] ss:$8 sm:$0x0] %vm778, %v873
        %v879 = vsel %vm682, %v659, 0
        %881 = vmatprep.subr.mxu0 %v667
        %882 = vmatpush1.msra.mxu0 %v666
        %883 = vmatprep.subr.mxu0 %v669
        %884 = vmatpush1.msra.mxu0 %v668
        %885 = vmatprep.subr.mxu0 %v671
        %886 = vmatpush1.msra.mxu0 %v670
        %887 = vmatprep.subr.mxu0 %v673
        %888 = vmatpush1.msra.mxu0 %v672
        %889 = vmatprep.subr.mxu0 %v675
        %890 = vmatpush1.msra.mxu0 %v674
        %891 = vmatprep.subr.mxu0 %v677
        %892 = vmatpush1.msra.mxu0 %v676
        %893 = vmatprep.subr.mxu0 %v679
        %894 = vmatpush1.msra.mxu0 %v678
        %895 = vmatprep.subr.mxu0 %v681
        %896 = vmatpush1.msra.mxu0 %v680
        %897 = vmatprep.subr.mxu0 0.0
        %898 = vmatpush1.msra.mxu0 0.0
        %899 = vmatprep.subr.mxu0 0.0
        %900 = vmatpush1.msra.mxu0 0.0
        %901 = vmatprep.subr.mxu0 0.0
        %902 = vmatpush1.msra.mxu0 0.0
        %903 = vmatprep.subr.mxu0 0.0
        %904 = vmatpush1.msra.mxu0 0.0
        %905 = vmatprep.subr.mxu0 0.0
        %906 = vmatpush1.msra.mxu0 0.0
        %907 = vmatprep.subr.mxu0 0.0
        %908 = vmatpush1.msra.mxu0 0.0
        %909 = vmatprep.subr.mxu0 0.0
        %910 = vmatpush1.msra.mxu0 0.0
        %911 = vmatprep.subr.mxu0 0.0
        %912 = vmatpush1.msra.mxu0 0.0
        %913 = vmatprep.subr.mxu0 0.0
        %914 = vmatpush1.msra.mxu0 0.0
        %915 = vmatprep.subr.mxu0 0.0
        %916 = vmatpush1.msra.mxu0 0.0
        %917 = vmatprep.subr.mxu0 0.0
        %918 = vmatpush1.msra.mxu0 0.0
        %919 = vmatprep.subr.mxu0 0.0
        %920 = vmatpush1.msra.mxu0 0.0
        %921 = vmatprep.subr.mxu0 0.0
        %922 = vmatpush1.msra.mxu0 0.0
        %923 = vmatprep.subr.mxu0 0.0
        %924 = vmatpush1.msra.mxu0 0.0
        %925 = vmatprep.subr.mxu0 0.0
        %926 = vmatpush1.msra.mxu0 0.0
        %927 = vmatprep.subr.mxu0 0.0
        %928 = vmatpush1.msra.mxu0 0.0
        %929 = vmatprep.subr.mxu0 0.0
        %930 = vmatpush1.msra.mxu0 0.0
        %931 = vmatprep.subr.mxu0 0.0
        %932 = vmatpush1.msra.mxu0 0.0
        %933 = vmatprep.subr.mxu0 0.0
        %934 = vmatpush1.msra.mxu0 0.0
        %935 = vmatprep.subr.mxu0 0.0
        %936 = vmatpush1.msra.mxu0 0.0
        %937 = vmatprep.subr.mxu0 0.0
        %938 = vmatpush1.msra.mxu0 0.0
        %939 = vmatprep.subr.mxu0 0.0
        %940 = vmatpush1.msra.mxu0 0.0
        %941 = vmatprep.subr.mxu0 0.0
        %942 = vmatpush1.msra.mxu0 0.0
        %943 = vmatprep.subr.mxu0 0.0
        %944 = vmatpush1.msra.mxu0 0.0
        %945 = vmatprep.mubr.f32.mxu0 0.0
        %946 = vmatmul.mubr.f32.gmra.mrb[0].mxu0 %v879
        %v947 = vpop.f32.mrb[0].mxu0
        %v948 = vadd.f32 0.0, %v947
        %v949 = vpop.f32.mrb[0].mxu0
        %v950 = vadd.f32 0.0, %v949
        %951 = vdwg.mxu0
        %v954 = vcombine.low %v948, %v950
        %v956 = vunpack.c.l.s4 1966171168
        %v957 = vunpack.c.0.s8 %v956
        %v958 = vlaneseq
        %v959 = vshrl.u32 %v958, 7
        %v960 = vsub.s32 %v957, %v959
        %v961 = vrot.slane %v954, %v960
        %v963 = vunpack.c.l.s4 1966171168
        %v964 = vunpack.c.0.s8 %v963
        %v965 = vlaneseq
        %v966 = vshrl.u32 %v965, 7
        %v967 = vsub.s32 %v964, %v966
        %v968 = vrot.slane %v961, %v967
        %s970 = scalar_lea.vmem [#allocation2], 5
        %971 = vst.msk [vmem:[%s970] ss:$8 sm:$0x3] %vm778, %v968
        %972 = vst.msk [vmem:[%s970] ss:$8 sm:$0x0] %vm778, %v968
        %v973 = vld [vmem:[#allocation2] sm:$0x3f]
        %v974 = vld [vmem:[#allocation2 + $0x8] sm:$0x3f]
        %v975 = vld [vmem:[#allocation10] sm:$0xff]
        %v976 = vld [vmem:[#allocation10 + $0x8] sm:$0xff]
        %v977 = vld [vmem:[#allocation10 + $0x10] sm:$0xff]
        %v978 = vld [vmem:[#allocation10 + $0x18] sm:$0xff]
        %v979 = vld [vmem:[#allocation10 + $0x20] sm:$0xff]
        %v980 = vld [vmem:[#allocation10 + $0x28] sm:$0xff]
        %v981 = vld [vmem:[#allocation10 + $0x30] sm:$0xff]
        %v982 = vld [vmem:[#allocation10 + $0x38] sm:$0xff]
        %v983 = vld [vmem:[#allocation10 + $0x40] sm:$0xff]
        %v984 = vld [vmem:[#allocation10 + $0x48] sm:$0xff]
        %v985 = vld [vmem:[#allocation10 + $0x50] sm:$0xff]
        %v986 = vld [vmem:[#allocation10 + $0x58] sm:$0xff]
        %v987 = vld [vmem:[#allocation10 + $0x60] sm:$0xff]
        %v988 = vld [vmem:[#allocation10 + $0x68] sm:$0xff]
        %v989 = vld [vmem:[#allocation10 + $0x70] sm:$0xff]
        %v990 = vld [vmem:[#allocation10 + $0x78] sm:$0xff]
        %v991 = vld [vmem:[#allocation10 + $0x80] sm:$0xff]
        %v992 = vld [vmem:[#allocation10 + $0x88] sm:$0xff]
        %v993 = vld [vmem:[#allocation10 + $0x90] sm:$0xff]
        %v994 = vld [vmem:[#allocation10 + $0x98] sm:$0xff]
        %v995 = vld [vmem:[#allocation10 + $0xa0] sm:$0xff]
        %v996 = vld [vmem:[#allocation10 + $0xa8] sm:$0xff]
        %v997 = vld [vmem:[#allocation10 + $0xb0] sm:$0xff]
        %v998 = vld [vmem:[#allocation10 + $0xb8] sm:$0xff]
        %v999 = vld [vmem:[#allocation10 + $0xc0] sm:$0xff]
        %v1000 = vld [vmem:[#allocation10 + $0xc8] sm:$0xff]
        %v1001 = vld [vmem:[#allocation10 + $0xd0] sm:$0xff]
        %v1002 = vld [vmem:[#allocation10 + $0xd8] sm:$0xff]
        %v1003 = vld [vmem:[#allocation10 + $0xe0] sm:$0xff]
        %v1004 = vld [vmem:[#allocation10 + $0xe8] sm:$0xff]
        %v1005 = vld [vmem:[#allocation10 + $0xf0] sm:$0xff]
        %v1006 = vld [vmem:[#allocation10 + $0xf8] sm:$0xff]
        %v1007 = vld [vmem:[#allocation10 + $0x100] sm:$0xff]
        %v1008 = vld [vmem:[#allocation10 + $0x108] sm:$0xff]
        %v1009 = vld [vmem:[#allocation10 + $0x110] sm:$0xff]
        %v1010 = vld [vmem:[#allocation10 + $0x118] sm:$0xff]
        %v1011 = vld [vmem:[#allocation10 + $0x120] sm:$0xff]
        %v1012 = vld [vmem:[#allocation10 + $0x128] sm:$0xff]
        %v1013 = vld [vmem:[#allocation10 + $0x130] sm:$0xff]
        %v1014 = vld [vmem:[#allocation10 + $0x138] sm:$0xff]
        %v1015 = vld [vmem:[#allocation10 + $0x140] sm:$0xff]
        %v1016 = vld [vmem:[#allocation10 + $0x148] sm:$0xff]
        %v1017 = vld [vmem:[#allocation10 + $0x150] sm:$0xff]
        %v1018 = vld [vmem:[#allocation10 + $0x158] sm:$0xff]
        %v1019 = vld [vmem:[#allocation10 + $0x160] sm:$0xff]
        %v1020 = vld [vmem:[#allocation10 + $0x168] sm:$0xff]
        %v1021 = vld [vmem:[#allocation10 + $0x170] sm:$0xff]
        %v1022 = vld [vmem:[#allocation10 + $0x178] sm:$0xff]
        %v1023 = vld [vmem:[#allocation10 + $0x180] sm:$0xff]
        %v1024 = vld [vmem:[#allocation10 + $0x188] sm:$0xff]
        %v1025 = vld [vmem:[#allocation10 + $0x190] sm:$0xff]
        %v1026 = vld [vmem:[#allocation10 + $0x198] sm:$0xff]
        %v1027 = vld [vmem:[#allocation10 + $0x1a0] sm:$0xff]
        %v1028 = vld [vmem:[#allocation10 + $0x1a8] sm:$0xff]
        %v1029 = vld [vmem:[#allocation10 + $0x1b0] sm:$0xff]
        %v1030 = vld [vmem:[#allocation10 + $0x1b8] sm:$0xff]
        %v1031 = vld [vmem:[#allocation10 + $0x1c0] sm:$0xff]
        %v1032 = vld [vmem:[#allocation10 + $0x1c8] sm:$0xff]
        %v1033 = vld [vmem:[#allocation10 + $0x1d0] sm:$0xff]
        %v1034 = vld [vmem:[#allocation10 + $0x1d8] sm:$0xff]
        %v1035 = vld [vmem:[#allocation10 + $0x1e0] sm:$0xff]
        %v1036 = vld [vmem:[#allocation10 + $0x1e8] sm:$0xff]
        %v1037 = vld [vmem:[#allocation10 + $0x1f0] sm:$0xff]
        %v1038 = vld [vmem:[#allocation10 + $0x1f8] sm:$0xff]
        %1039 = vmatprep.subr.mxu0 %v976
        %1040 = vmatpush1.msra.mxu0 %v975
        %1041 = vmatprep.subr.mxu0 %v978
        %1042 = vmatpush1.msra.mxu0 %v977
        %1043 = vmatprep.subr.mxu0 %v980
        %1044 = vmatpush1.msra.mxu0 %v979
        %1045 = vmatprep.subr.mxu0 %v982
        %1046 = vmatpush1.msra.mxu0 %v981
        %1047 = vmatprep.subr.mxu0 %v984
        %1048 = vmatpush1.msra.mxu0 %v983
        %1049 = vmatprep.subr.mxu0 %v986
        %1050 = vmatpush1.msra.mxu0 %v985
        %1051 = vmatprep.subr.mxu0 %v988
        %1052 = vmatpush1.msra.mxu0 %v987
        %1053 = vmatprep.subr.mxu0 %v990
        %1054 = vmatpush1.msra.mxu0 %v989
        %1055 = vmatprep.subr.mxu0 %v992
        %1056 = vmatpush1.msra.mxu0 %v991
        %1057 = vmatprep.subr.mxu0 %v994
        %1058 = vmatpush1.msra.mxu0 %v993
        %1059 = vmatprep.subr.mxu0 %v996
        %1060 = vmatpush1.msra.mxu0 %v995
        %1061 = vmatprep.subr.mxu0 %v998
        %1062 = vmatpush1.msra.mxu0 %v997
        %1063 = vmatprep.subr.mxu0 %v1000
        %1064 = vmatpush1.msra.mxu0 %v999
        %1065 = vmatprep.subr.mxu0 %v1002
        %1066 = vmatpush1.msra.mxu0 %v1001
        %1067 = vmatprep.subr.mxu0 %v1004
        %1068 = vmatpush1.msra.mxu0 %v1003
        %1069 = vmatprep.subr.mxu0 %v1006
        %1070 = vmatpush1.msra.mxu0 %v1005
        %1071 = vmatprep.subr.mxu0 %v1008
        %1072 = vmatpush1.msra.mxu0 %v1007
        %1073 = vmatprep.subr.mxu0 %v1010
        %1074 = vmatpush1.msra.mxu0 %v1009
        %1075 = vmatprep.subr.mxu0 %v1012
        %1076 = vmatpush1.msra.mxu0 %v1011
        %1077 = vmatprep.subr.mxu0 %v1014
        %1078 = vmatpush1.msra.mxu0 %v1013
        %1079 = vmatprep.subr.mxu0 %v1016
        %1080 = vmatpush1.msra.mxu0 %v1015
        %1081 = vmatprep.subr.mxu0 %v1018
        %1082 = vmatpush1.msra.mxu0 %v1017
        %1083 = vmatprep.subr.mxu0 %v1020
        %1084 = vmatpush1.msra.mxu0 %v1019
        %1085 = vmatprep.subr.mxu0 %v1022
        %1086 = vmatpush1.msra.mxu0 %v1021
        %1087 = vmatprep.subr.mxu0 %v1024
        %1088 = vmatpush1.msra.mxu0 %v1023
        %1089 = vmatprep.subr.mxu0 %v1026
        %1090 = vmatpush1.msra.mxu0 %v1025
        %1091 = vmatprep.subr.mxu0 %v1028
        %1092 = vmatpush1.msra.mxu0 %v1027
        %1093 = vmatprep.subr.mxu0 %v1030
        %1094 = vmatpush1.msra.mxu0 %v1029
        %1095 = vmatprep.subr.mxu0 %v1032
        %1096 = vmatpush1.msra.mxu0 %v1031
        %1097 = vmatprep.subr.mxu0 %v1034
        %1098 = vmatpush1.msra.mxu0 %v1033
        %1099 = vmatprep.subr.mxu0 %v1036
        %1100 = vmatpush1.msra.mxu0 %v1035
        %1101 = vmatprep.subr.mxu0 %v1038
        %1102 = vmatpush1.msra.mxu0 %v1037
        %1103 = vmatprep.mubr.f32.mxu0 %v974
        %1104 = vmatmul.mubr.f32.gmra.mrb[0].mxu0 %v973
        %v1105 = vpop.f32.mrb[0].mxu0
        %v1106 = vadd.f32 0.0, %v1105
        %v1107 = vpop.f32.mrb[0].mxu0
        %v1108 = vadd.f32 0.0, %v1107
        %1109 = vdwg.mxu0
        %v1110 = vld [vmem:[%s6] sm:$0x3f]
        %s1111 = scalar_lea.vmem [#allocation10], 512
        %v1112 = vld [vmem:[%s1111] sm:$0xff]
        %v1113 = vld [vmem:[%s1111 + $0x8] sm:$0xff]
        %v1114 = vld [vmem:[%s1111 + $0x10] sm:$0xff]
        %v1115 = vld [vmem:[%s1111 + $0x18] sm:$0xff]
        %v1116 = vld [vmem:[%s1111 + $0x20] sm:$0xff]
        %v1117 = vld [vmem:[%s1111 + $0x28] sm:$0xff]
        %v1118 = vld [vmem:[%s1111 + $0x30] sm:$0xff]
        %v1119 = vld [vmem:[%s1111 + $0x38] sm:$0xff]
        %v1120 = vld [vmem:[%s1111 + $0x40] sm:$0xff]
        %v1121 = vld [vmem:[%s1111 + $0x48] sm:$0xff]
        %v1122 = vld [vmem:[%s1111 + $0x50] sm:$0xff]
        %v1123 = vld [vmem:[%s1111 + $0x58] sm:$0xff]
        %v1124 = vld [vmem:[%s1111 + $0x60] sm:$0xff]
        %v1125 = vld [vmem:[%s1111 + $0x68] sm:$0xff]
        %v1126 = vld [vmem:[%s1111 + $0x70] sm:$0xff]
        %v1127 = vld [vmem:[%s1111 + $0x78] sm:$0xff]
        %v1128 = vld [vmem:[%s1111 + $0x80] sm:$0xff]
        %v1129 = vld [vmem:[%s1111 + $0x88] sm:$0xff]
        %v1130 = vld [vmem:[%s1111 + $0x90] sm:$0xff]
        %v1131 = vld [vmem:[%s1111 + $0x98] sm:$0xff]
        %v1132 = vld [vmem:[%s1111 + $0xa0] sm:$0xff]
        %v1133 = vld [vmem:[%s1111 + $0xa8] sm:$0xff]
        %v1134 = vld [vmem:[%s1111 + $0xb0] sm:$0xff]
        %v1135 = vld [vmem:[%s1111 + $0xb8] sm:$0xff]
        %v1136 = vld [vmem:[%s1111 + $0xc0] sm:$0xff]
        %v1137 = vld [vmem:[%s1111 + $0xc8] sm:$0xff]
        %v1138 = vld [vmem:[%s1111 + $0xd0] sm:$0xff]
        %v1139 = vld [vmem:[%s1111 + $0xd8] sm:$0xff]
        %v1140 = vld [vmem:[%s1111 + $0xe0] sm:$0xff]
        %v1141 = vld [vmem:[%s1111 + $0xe8] sm:$0xff]
        %v1142 = vld [vmem:[%s1111 + $0xf0] sm:$0xff]
        %v1143 = vld [vmem:[%s1111 + $0xf8] sm:$0xff]
        %v1144 = vld [vmem:[%s1111 + $0x100] sm:$0xff]
        %v1145 = vld [vmem:[%s1111 + $0x108] sm:$0xff]
        %v1146 = vld [vmem:[%s1111 + $0x110] sm:$0xff]
        %v1147 = vld [vmem:[%s1111 + $0x118] sm:$0xff]
        %v1148 = vld [vmem:[%s1111 + $0x120] sm:$0xff]
        %v1149 = vld [vmem:[%s1111 + $0x128] sm:$0xff]
        %v1150 = vld [vmem:[%s1111 + $0x130] sm:$0xff]
        %v1151 = vld [vmem:[%s1111 + $0x138] sm:$0xff]
        %v1152 = vld [vmem:[%s1111 + $0x140] sm:$0xff]
        %v1153 = vld [vmem:[%s1111 + $0x148] sm:$0xff]
        %v1154 = vld [vmem:[%s1111 + $0x150] sm:$0xff]
        %v1155 = vld [vmem:[%s1111 + $0x158] sm:$0xff]
        %v1156 = vld [vmem:[%s1111 + $0x160] sm:$0xff]
        %v1157 = vld [vmem:[%s1111 + $0x168] sm:$0xff]
        %v1158 = vld [vmem:[%s1111 + $0x170] sm:$0xff]
        %v1159 = vld [vmem:[%s1111 + $0x178] sm:$0xff]
        %v1160 = vld [vmem:[%s1111 + $0x180] sm:$0xff]
        %v1161 = vld [vmem:[%s1111 + $0x188] sm:$0xff]
        %v1162 = vld [vmem:[%s1111 + $0x190] sm:$0xff]
        %v1163 = vld [vmem:[%s1111 + $0x198] sm:$0xff]
        %v1164 = vld [vmem:[%s1111 + $0x1a0] sm:$0xff]
        %v1165 = vld [vmem:[%s1111 + $0x1a8] sm:$0xff]
        %v1166 = vld [vmem:[%s1111 + $0x1b0] sm:$0xff]
        %v1167 = vld [vmem:[%s1111 + $0x1b8] sm:$0xff]
        %v1168 = vld [vmem:[%s1111 + $0x1c0] sm:$0xff]
        %v1169 = vld [vmem:[%s1111 + $0x1c8] sm:$0xff]
        %v1170 = vld [vmem:[%s1111 + $0x1d0] sm:$0xff]
        %v1171 = vld [vmem:[%s1111 + $0x1d8] sm:$0xff]
        %v1172 = vld [vmem:[%s1111 + $0x1e0] sm:$0xff]
        %v1173 = vld [vmem:[%s1111 + $0x1e8] sm:$0xff]
        %v1174 = vld [vmem:[%s1111 + $0x1f0] sm:$0xff]
        %v1175 = vld [vmem:[%s1111 + $0x1f8] sm:$0xff]
        %1176 = vmatprep.subr.mxu0 %v1113
        %1177 = vmatpush1.msra.mxu0 %v1112
        %1178 = vmatprep.subr.mxu0 %v1115
        %1179 = vmatpush1.msra.mxu0 %v1114
        %1180 = vmatprep.subr.mxu0 %v1117
        %1181 = vmatpush1.msra.mxu0 %v1116
        %1182 = vmatprep.subr.mxu0 %v1119
        %1183 = vmatpush1.msra.mxu0 %v1118
        %1184 = vmatprep.subr.mxu0 %v1121
        %1185 = vmatpush1.msra.mxu0 %v1120
        %1186 = vmatprep.subr.mxu0 %v1123
        %1187 = vmatpush1.msra.mxu0 %v1122
        %1188 = vmatprep.subr.mxu0 %v1125
        %1189 = vmatpush1.msra.mxu0 %v1124
        %1190 = vmatprep.subr.mxu0 %v1127
        %1191 = vmatpush1.msra.mxu0 %v1126
        %1192 = vmatprep.subr.mxu0 %v1129
        %1193 = vmatpush1.msra.mxu0 %v1128
        %1194 = vmatprep.subr.mxu0 %v1131
        %1195 = vmatpush1.msra.mxu0 %v1130
        %1196 = vmatprep.subr.mxu0 %v1133
        %1197 = vmatpush1.msra.mxu0 %v1132
        %1198 = vmatprep.subr.mxu0 %v1135
        %1199 = vmatpush1.msra.mxu0 %v1134
        %1200 = vmatprep.subr.mxu0 %v1137
        %1201 = vmatpush1.msra.mxu0 %v1136
        %1202 = vmatprep.subr.mxu0 %v1139
        %1203 = vmatpush1.msra.mxu0 %v1138
        %1204 = vmatprep.subr.mxu0 %v1141
        %1205 = vmatpush1.msra.mxu0 %v1140
        %1206 = vmatprep.subr.mxu0 %v1143
        %1207 = vmatpush1.msra.mxu0 %v1142
        %1208 = vmatprep.subr.mxu0 %v1145
        %1209 = vmatpush1.msra.mxu0 %v1144
        %1210 = vmatprep.subr.mxu0 %v1147
        %1211 = vmatpush1.msra.mxu0 %v1146
        %1212 = vmatprep.subr.mxu0 %v1149
        %1213 = vmatpush1.msra.mxu0 %v1148
        %1214 = vmatprep.subr.mxu0 %v1151
        %1215 = vmatpush1.msra.mxu0 %v1150
        %1216 = vmatprep.subr.mxu0 %v1153
        %1217 = vmatpush1.msra.mxu0 %v1152
        %1218 = vmatprep.subr.mxu0 %v1155
        %1219 = vmatpush1.msra.mxu0 %v1154
        %1220 = vmatprep.subr.mxu0 %v1157
        %1221 = vmatpush1.msra.mxu0 %v1156
        %1222 = vmatprep.subr.mxu0 %v1159
        %1223 = vmatpush1.msra.mxu0 %v1158
        %1224 = vmatprep.subr.mxu0 %v1161
        %1225 = vmatpush1.msra.mxu0 %v1160
        %1226 = vmatprep.subr.mxu0 %v1163
        %1227 = vmatpush1.msra.mxu0 %v1162
        %1228 = vmatprep.subr.mxu0 %v1165
        %1229 = vmatpush1.msra.mxu0 %v1164
        %1230 = vmatprep.subr.mxu0 %v1167
        %1231 = vmatpush1.msra.mxu0 %v1166
        %1232 = vmatprep.subr.mxu0 %v1169
        %1233 = vmatpush1.msra.mxu0 %v1168
        %1234 = vmatprep.subr.mxu0 %v1171
        %1235 = vmatpush1.msra.mxu0 %v1170
        %1236 = vmatprep.subr.mxu0 %v1173
        %1237 = vmatpush1.msra.mxu0 %v1172
        %1238 = vmatprep.subr.mxu0 %v1175
        %1239 = vmatpush1.msra.mxu0 %v1174
        %1240 = vmatprep.mubr.f32.mxu0 %v974
        %1241 = vmatmul.mubr.f32.gmra.mrb[0].mxu0 %v973
        %v1242 = vpop.f32.mrb[0].mxu0
        %v1243 = vadd.f32 0.0, %v1242
        %v1244 = vpop.f32.mrb[0].mxu0
        %v1245 = vadd.f32 0.0, %v1244
        %1246 = vdwg.mxu0
        %s1247 = scalar_lea.vmem %s6, 8
        %v1248 = vld [vmem:[%s1247] sm:$0x3f]
        %vm1249 = vcmask 48128
        %v1251 = vsel %vm1249, %v1248, 0
        %vm1253 = vcmask 1045504
        %v1255 = vsel %vm1253, %v1243, 0
        %v1258 = vsel %vm1253, %v1245, 0
        %1260 = vmatprep.subr.mxu0 %v1258
        %1261 = vmatpush1.msra.mxu0 %v1255
        %1262 = vmatprep.subr.mxu0 0.0
        %1263 = vmatpush1.msra.mxu0 0.0
        %1264 = vmatprep.subr.mxu0 0.0
        %1265 = vmatpush1.msra.mxu0 0.0
        %1266 = vmatprep.subr.mxu0 0.0
        %1267 = vmatpush1.msra.mxu0 0.0
        %1268 = vmatprep.subr.mxu0 0.0
        %1269 = vmatpush1.msra.mxu0 0.0
        %1270 = vmatprep.subr.mxu0 0.0
        %1271 = vmatpush1.msra.mxu0 0.0
        %1272 = vmatprep.subr.mxu0 0.0
        %1273 = vmatpush1.msra.mxu0 0.0
        %1274 = vmatprep.subr.mxu0 0.0
        %1275 = vmatpush1.msra.mxu0 0.0
        %1276 = vmatprep.subr.mxu0 0.0
        %1277 = vmatpush1.msra.mxu0 0.0
        %1278 = vmatprep.subr.mxu0 0.0
        %1279 = vmatpush1.msra.mxu0 0.0
        %1280 = vmatprep.subr.mxu0 0.0
        %1281 = vmatpush1.msra.mxu0 0.0
        %1282 = vmatprep.subr.mxu0 0.0
        %1283 = vmatpush1.msra.mxu0 0.0
        %1284 = vmatprep.subr.mxu0 0.0
        %1285 = vmatpush1.msra.mxu0 0.0
        %1286 = vmatprep.subr.mxu0 0.0
        %1287 = vmatpush1.msra.mxu0 0.0
        %1288 = vmatprep.subr.mxu0 0.0
        %1289 = vmatpush1.msra.mxu0 0.0
        %1290 = vmatprep.subr.mxu0 0.0
        %1291 = vmatpush1.msra.mxu0 0.0
        %1292 = vmatprep.subr.mxu0 0.0
        %1293 = vmatpush1.msra.mxu0 0.0
        %1294 = vmatprep.subr.mxu0 0.0
        %1295 = vmatpush1.msra.mxu0 0.0
        %1296 = vmatprep.subr.mxu0 0.0
        %1297 = vmatpush1.msra.mxu0 0.0
        %1298 = vmatprep.subr.mxu0 0.0
        %1299 = vmatpush1.msra.mxu0 0.0
        %1300 = vmatprep.subr.mxu0 0.0
        %1301 = vmatpush1.msra.mxu0 0.0
        %1302 = vmatprep.subr.mxu0 0.0
        %1303 = vmatpush1.msra.mxu0 0.0
        %1304 = vmatprep.subr.mxu0 0.0
        %1305 = vmatpush1.msra.mxu0 0.0
        %1306 = vmatprep.subr.mxu0 0.0
        %1307 = vmatpush1.msra.mxu0 0.0
        %1308 = vmatprep.subr.mxu0 0.0
        %1309 = vmatpush1.msra.mxu0 0.0
        %1310 = vmatprep.subr.mxu0 0.0
        %1311 = vmatpush1.msra.mxu0 0.0
        %1312 = vmatprep.subr.mxu0 0.0
        %1313 = vmatpush1.msra.mxu0 0.0
        %1314 = vmatprep.subr.mxu0 0.0
        %1315 = vmatpush1.msra.mxu0 0.0
        %1316 = vmatprep.subr.mxu0 0.0
        %1317 = vmatpush1.msra.mxu0 0.0
        %1318 = vmatprep.subr.mxu0 0.0
        %1319 = vmatpush1.msra.mxu0 0.0
        %1320 = vmatprep.subr.mxu0 0.0
        %1321 = vmatpush1.msra.mxu0 0.0
        %1322 = vmatprep.subr.mxu0 0.0
        %1323 = vmatpush1.msra.mxu0 0.0
        %1324 = vmatprep.mubr.f32.mxu0 0.0
        %1325 = vmatmul.mubr.f32.gmra.mrb[0].mxu0 %v1251
        %v1326 = vpop.f32.mrb[0].mxu0
        %v1327 = vadd.f32 0.0, %v1326
        %v1328 = vpop.f32.mrb[0].mxu0
        %v1329 = vadd.f32 0.0, %v1328
        %1330 = vdwg.mxu0
        %v1332 = vsel %vm1249, %v1110, 0
        %v1335 = vsel %vm1253, %v1106, 0
        %v1338 = vsel %vm1253, %v1108, 0
        %1340 = vmatprep.subr.mxu0 %v1338
        %1341 = vmatpush1.msra.mxu0 %v1335
        %1342 = vmatprep.subr.mxu0 0.0
        %1343 = vmatpush1.msra.mxu0 0.0
        %1344 = vmatprep.subr.mxu0 0.0
        %1345 = vmatpush1.msra.mxu0 0.0
        %1346 = vmatprep.subr.mxu0 0.0
        %1347 = vmatpush1.msra.mxu0 0.0
        %1348 = vmatprep.subr.mxu0 0.0
        %1349 = vmatpush1.msra.mxu0 0.0
        %1350 = vmatprep.subr.mxu0 0.0
        %1351 = vmatpush1.msra.mxu0 0.0
        %1352 = vmatprep.subr.mxu0 0.0
        %1353 = vmatpush1.msra.mxu0 0.0
        %1354 = vmatprep.subr.mxu0 0.0
        %1355 = vmatpush1.msra.mxu0 0.0
        %1356 = vmatprep.subr.mxu0 0.0
        %1357 = vmatpush1.msra.mxu0 0.0
        %1358 = vmatprep.subr.mxu0 0.0
        %1359 = vmatpush1.msra.mxu0 0.0
        %1360 = vmatprep.subr.mxu0 0.0
        %1361 = vmatpush1.msra.mxu0 0.0
        %1362 = vmatprep.subr.mxu0 0.0
        %1363 = vmatpush1.msra.mxu0 0.0
        %1364 = vmatprep.subr.mxu0 0.0
        %1365 = vmatpush1.msra.mxu0 0.0
        %1366 = vmatprep.subr.mxu0 0.0
        %1367 = vmatpush1.msra.mxu0 0.0
        %1368 = vmatprep.subr.mxu0 0.0
        %1369 = vmatpush1.msra.mxu0 0.0
        %1370 = vmatprep.subr.mxu0 0.0
        %1371 = vmatpush1.msra.mxu0 0.0
        %1372 = vmatprep.subr.mxu0 0.0
        %1373 = vmatpush1.msra.mxu0 0.0
        %1374 = vmatprep.subr.mxu0 0.0
        %1375 = vmatpush1.msra.mxu0 0.0
        %1376 = vmatprep.subr.mxu0 0.0
        %1377 = vmatpush1.msra.mxu0 0.0
        %1378 = vmatprep.subr.mxu0 0.0
        %1379 = vmatpush1.msra.mxu0 0.0
        %1380 = vmatprep.subr.mxu0 0.0
        %1381 = vmatpush1.msra.mxu0 0.0
        %1382 = vmatprep.subr.mxu0 0.0
        %1383 = vmatpush1.msra.mxu0 0.0
        %1384 = vmatprep.subr.mxu0 0.0
        %1385 = vmatpush1.msra.mxu0 0.0
        %1386 = vmatprep.subr.mxu0 0.0
        %1387 = vmatpush1.msra.mxu0 0.0
        %1388 = vmatprep.subr.mxu0 0.0
        %1389 = vmatpush1.msra.mxu0 0.0
        %1390 = vmatprep.subr.mxu0 0.0
        %1391 = vmatpush1.msra.mxu0 0.0
        %1392 = vmatprep.subr.mxu0 0.0
        %1393 = vmatpush1.msra.mxu0 0.0
        %1394 = vmatprep.subr.mxu0 0.0
        %1395 = vmatpush1.msra.mxu0 0.0
        %1396 = vmatprep.subr.mxu0 0.0
        %1397 = vmatpush1.msra.mxu0 0.0
        %1398 = vmatprep.subr.mxu0 0.0
        %1399 = vmatpush1.msra.mxu0 0.0
        %1400 = vmatprep.subr.mxu0 0.0
        %1401 = vmatpush1.msra.mxu0 0.0
        %1402 = vmatprep.subr.mxu0 0.0
        %1403 = vmatpush1.msra.mxu0 0.0
        %1404 = vmatprep.mubr.f32.mxu0 0.0
        %1405 = vmatmul.mubr.f32.gmra.mrb[0].mxu0 %v1332
        %v1406 = vpop.f32.mrb[0].mxu0
        %v1407 = vadd.f32 %v1327, %v1406
        %v1408 = vpop.f32.mrb[0].mxu0
        %v1409 = vadd.f32 %v1329, %v1408
        %1410 = vdwg.mxu0
        %s1411 = scalar_lea.vmem [#allocation10], 1024
        %v1412 = vld [vmem:[%s1411] sm:$0xff]
        %v1413 = vld [vmem:[%s1411 + $0x8] sm:$0xff]
        %v1414 = vld [vmem:[%s1411 + $0x10] sm:$0xff]
        %v1415 = vld [vmem:[%s1411 + $0x18] sm:$0xff]
        %v1416 = vld [vmem:[%s1411 + $0x20] sm:$0xff]
        %v1417 = vld [vmem:[%s1411 + $0x28] sm:$0xff]
        %v1418 = vld [vmem:[%s1411 + $0x30] sm:$0xff]
        %v1419 = vld [vmem:[%s1411 + $0x38] sm:$0xff]
        %v1420 = vld [vmem:[%s1411 + $0x40] sm:$0xff]
        %v1421 = vld [vmem:[%s1411 + $0x48] sm:$0xff]
        %v1422 = vld [vmem:[%s1411 + $0x50] sm:$0xff]
        %v1423 = vld [vmem:[%s1411 + $0x58] sm:$0xff]
        %v1424 = vld [vmem:[%s1411 + $0x60] sm:$0xff]
        %v1425 = vld [vmem:[%s1411 + $0x68] sm:$0xff]
        %v1426 = vld [vmem:[%s1411 + $0x70] sm:$0xff]
        %v1427 = vld [vmem:[%s1411 + $0x78] sm:$0xff]
        %v1428 = vld [vmem:[%s1411 + $0x80] sm:$0xff]
        %v1429 = vld [vmem:[%s1411 + $0x88] sm:$0xff]
        %v1430 = vld [vmem:[%s1411 + $0x90] sm:$0xff]
        %v1431 = vld [vmem:[%s1411 + $0x98] sm:$0xff]
        %v1432 = vld [vmem:[%s1411 + $0xa0] sm:$0xff]
        %v1433 = vld [vmem:[%s1411 + $0xa8] sm:$0xff]
        %v1434 = vld [vmem:[%s1411 + $0xb0] sm:$0xff]
        %v1435 = vld [vmem:[%s1411 + $0xb8] sm:$0xff]
        %v1436 = vld [vmem:[%s1411 + $0xc0] sm:$0xff]
        %v1437 = vld [vmem:[%s1411 + $0xc8] sm:$0xff]
        %v1438 = vld [vmem:[%s1411 + $0xd0] sm:$0xff]
        %v1439 = vld [vmem:[%s1411 + $0xd8] sm:$0xff]
        %v1440 = vld [vmem:[%s1411 + $0xe0] sm:$0xff]
        %v1441 = vld [vmem:[%s1411 + $0xe8] sm:$0xff]
        %v1442 = vld [vmem:[%s1411 + $0xf0] sm:$0xff]
        %v1443 = vld [vmem:[%s1411 + $0xf8] sm:$0xff]
        %v1444 = vld [vmem:[%s1411 + $0x100] sm:$0xff]
        %v1445 = vld [vmem:[%s1411 + $0x108] sm:$0xff]
        %v1446 = vld [vmem:[%s1411 + $0x110] sm:$0xff]
        %v1447 = vld [vmem:[%s1411 + $0x118] sm:$0xff]
        %v1448 = vld [vmem:[%s1411 + $0x120] sm:$0xff]
        %v1449 = vld [vmem:[%s1411 + $0x128] sm:$0xff]
        %v1450 = vld [vmem:[%s1411 + $0x130] sm:$0xff]
        %v1451 = vld [vmem:[%s1411 + $0x138] sm:$0xff]
        %v1452 = vld [vmem:[%s1411 + $0x140] sm:$0xff]
        %v1453 = vld [vmem:[%s1411 + $0x148] sm:$0xff]
        %v1454 = vld [vmem:[%s1411 + $0x150] sm:$0xff]
        %v1455 = vld [vmem:[%s1411 + $0x158] sm:$0xff]
        %v1456 = vld [vmem:[%s1411 + $0x160] sm:$0xff]
        %v1457 = vld [vmem:[%s1411 + $0x168] sm:$0xff]
        %v1458 = vld [vmem:[%s1411 + $0x170] sm:$0xff]
        %v1459 = vld [vmem:[%s1411 + $0x178] sm:$0xff]
        %v1460 = vld [vmem:[%s1411 + $0x180] sm:$0xff]
        %v1461 = vld [vmem:[%s1411 + $0x188] sm:$0xff]
        %v1462 = vld [vmem:[%s1411 + $0x190] sm:$0xff]
        %v1463 = vld [vmem:[%s1411 + $0x198] sm:$0xff]
        %v1464 = vld [vmem:[%s1411 + $0x1a0] sm:$0xff]
        %v1465 = vld [vmem:[%s1411 + $0x1a8] sm:$0xff]
        %v1466 = vld [vmem:[%s1411 + $0x1b0] sm:$0xff]
        %v1467 = vld [vmem:[%s1411 + $0x1b8] sm:$0xff]
        %v1468 = vld [vmem:[%s1411 + $0x1c0] sm:$0xff]
        %v1469 = vld [vmem:[%s1411 + $0x1c8] sm:$0xff]
        %v1470 = vld [vmem:[%s1411 + $0x1d0] sm:$0xff]
        %v1471 = vld [vmem:[%s1411 + $0x1d8] sm:$0xff]
        %v1472 = vld [vmem:[%s1411 + $0x1e0] sm:$0xff]
        %v1473 = vld [vmem:[%s1411 + $0x1e8] sm:$0xff]
        %v1474 = vld [vmem:[%s1411 + $0x1f0] sm:$0xff]
        %v1475 = vld [vmem:[%s1411 + $0x1f8] sm:$0xff]
        %1476 = vmatprep.subr.mxu0 %v1413
        %1477 = vmatpush1.msra.mxu0 %v1412
        %1478 = vmatprep.subr.mxu0 %v1415
        %1479 = vmatpush1.msra.mxu0 %v1414
        %1480 = vmatprep.subr.mxu0 %v1417
        %1481 = vmatpush1.msra.mxu0 %v1416
        %1482 = vmatprep.subr.mxu0 %v1419
        %1483 = vmatpush1.msra.mxu0 %v1418
        %1484 = vmatprep.subr.mxu0 %v1421
        %1485 = vmatpush1.msra.mxu0 %v1420
        %1486 = vmatprep.subr.mxu0 %v1423
        %1487 = vmatpush1.msra.mxu0 %v1422
        %1488 = vmatprep.subr.mxu0 %v1425
        %1489 = vmatpush1.msra.mxu0 %v1424
        %1490 = vmatprep.subr.mxu0 %v1427
        %1491 = vmatpush1.msra.mxu0 %v1426
        %1492 = vmatprep.subr.mxu0 %v1429
        %1493 = vmatpush1.msra.mxu0 %v1428
        %1494 = vmatprep.subr.mxu0 %v1431
        %1495 = vmatpush1.msra.mxu0 %v1430
        %1496 = vmatprep.subr.mxu0 %v1433
        %1497 = vmatpush1.msra.mxu0 %v1432
        %1498 = vmatprep.subr.mxu0 %v1435
        %1499 = vmatpush1.msra.mxu0 %v1434
        %1500 = vmatprep.subr.mxu0 %v1437
        %1501 = vmatpush1.msra.mxu0 %v1436
        %1502 = vmatprep.subr.mxu0 %v1439
        %1503 = vmatpush1.msra.mxu0 %v1438
        %1504 = vmatprep.subr.mxu0 %v1441
        %1505 = vmatpush1.msra.mxu0 %v1440
        %1506 = vmatprep.subr.mxu0 %v1443
        %1507 = vmatpush1.msra.mxu0 %v1442
        %1508 = vmatprep.subr.mxu0 %v1445
        %1509 = vmatpush1.msra.mxu0 %v1444
        %1510 = vmatprep.subr.mxu0 %v1447
        %1511 = vmatpush1.msra.mxu0 %v1446
        %1512 = vmatprep.subr.mxu0 %v1449
        %1513 = vmatpush1.msra.mxu0 %v1448
        %1514 = vmatprep.subr.mxu0 %v1451
        %1515 = vmatpush1.msra.mxu0 %v1450
        %1516 = vmatprep.subr.mxu0 %v1453
        %1517 = vmatpush1.msra.mxu0 %v1452
        %1518 = vmatprep.subr.mxu0 %v1455
        %1519 = vmatpush1.msra.mxu0 %v1454
        %1520 = vmatprep.subr.mxu0 %v1457
        %1521 = vmatpush1.msra.mxu0 %v1456
        %1522 = vmatprep.subr.mxu0 %v1459
        %1523 = vmatpush1.msra.mxu0 %v1458
        %1524 = vmatprep.subr.mxu0 %v1461
        %1525 = vmatpush1.msra.mxu0 %v1460
        %1526 = vmatprep.subr.mxu0 %v1463
        %1527 = vmatpush1.msra.mxu0 %v1462
        %1528 = vmatprep.subr.mxu0 %v1465
        %1529 = vmatpush1.msra.mxu0 %v1464
        %1530 = vmatprep.subr.mxu0 %v1467
        %1531 = vmatpush1.msra.mxu0 %v1466
        %1532 = vmatprep.subr.mxu0 %v1469
        %1533 = vmatpush1.msra.mxu0 %v1468
        %1534 = vmatprep.subr.mxu0 %v1471
        %1535 = vmatpush1.msra.mxu0 %v1470
        %1536 = vmatprep.subr.mxu0 %v1473
        %1537 = vmatpush1.msra.mxu0 %v1472
        %1538 = vmatprep.subr.mxu0 %v1475
        %1539 = vmatpush1.msra.mxu0 %v1474
        %1540 = vmatprep.mubr.f32.mxu0 %v974
        %1541 = vmatmul.mubr.f32.gmra.mrb[0].mxu0 %v973
        %v1542 = vpop.f32.mrb[0].mxu0
        %v1543 = vadd.f32 0.0, %v1542
        %v1544 = vpop.f32.mrb[0].mxu0
        %v1545 = vadd.f32 0.0, %v1544
        %1546 = vdwg.mxu0
        %s1547 = scalar_lea.vmem %s6, 16
        %v1548 = vld [vmem:[%s1547] sm:$0x3f]
        %v1550 = vsel %vm1249, %v1548, 0
        %v1553 = vsel %vm1253, %v1543, 0
        %v1556 = vsel %vm1253, %v1545, 0
        %1558 = vmatprep.subr.mxu0 %v1556
        %1559 = vmatpush1.msra.mxu0 %v1553
        %1560 = vmatprep.subr.mxu0 0.0
        %1561 = vmatpush1.msra.mxu0 0.0
        %1562 = vmatprep.subr.mxu0 0.0
        %1563 = vmatpush1.msra.mxu0 0.0
        %1564 = vmatprep.subr.mxu0 0.0
        %1565 = vmatpush1.msra.mxu0 0.0
        %1566 = vmatprep.subr.mxu0 0.0
        %1567 = vmatpush1.msra.mxu0 0.0
        %1568 = vmatprep.subr.mxu0 0.0
        %1569 = vmatpush1.msra.mxu0 0.0
        %1570 = vmatprep.subr.mxu0 0.0
        %1571 = vmatpush1.msra.mxu0 0.0
        %1572 = vmatprep.subr.mxu0 0.0
        %1573 = vmatpush1.msra.mxu0 0.0
        %1574 = vmatprep.subr.mxu0 0.0
        %1575 = vmatpush1.msra.mxu0 0.0
        %1576 = vmatprep.subr.mxu0 0.0
        %1577 = vmatpush1.msra.mxu0 0.0
        %1578 = vmatprep.subr.mxu0 0.0
        %1579 = vmatpush1.msra.mxu0 0.0
        %1580 = vmatprep.subr.mxu0 0.0
        %1581 = vmatpush1.msra.mxu0 0.0
        %1582 = vmatprep.subr.mxu0 0.0
        %1583 = vmatpush1.msra.mxu0 0.0
        %1584 = vmatprep.subr.mxu0 0.0
        %1585 = vmatpush1.msra.mxu0 0.0
        %1586 = vmatprep.subr.mxu0 0.0
        %1587 = vmatpush1.msra.mxu0 0.0
        %1588 = vmatprep.subr.mxu0 0.0
        %1589 = vmatpush1.msra.mxu0 0.0
        %1590 = vmatprep.subr.mxu0 0.0
        %1591 = vmatpush1.msra.mxu0 0.0
        %1592 = vmatprep.subr.mxu0 0.0
        %1593 = vmatpush1.msra.mxu0 0.0
        %1594 = vmatprep.subr.mxu0 0.0
        %1595 = vmatpush1.msra.mxu0 0.0
        %1596 = vmatprep.subr.mxu0 0.0
        %1597 = vmatpush1.msra.mxu0 0.0
        %1598 = vmatprep.subr.mxu0 0.0
        %1599 = vmatpush1.msra.mxu0 0.0
        %1600 = vmatprep.subr.mxu0 0.0
        %1601 = vmatpush1.msra.mxu0 0.0
        %1602 = vmatprep.subr.mxu0 0.0
        %1603 = vmatpush1.msra.mxu0 0.0
        %1604 = vmatprep.subr.mxu0 0.0
        %1605 = vmatpush1.msra.mxu0 0.0
        %1606 = vmatprep.subr.mxu0 0.0
        %1607 = vmatpush1.msra.mxu0 0.0
        %1608 = vmatprep.subr.mxu0 0.0
        %1609 = vmatpush1.msra.mxu0 0.0
        %1610 = vmatprep.subr.mxu0 0.0
        %1611 = vmatpush1.msra.mxu0 0.0
        %1612 = vmatprep.subr.mxu0 0.0
        %1613 = vmatpush1.msra.mxu0 0.0
        %1614 = vmatprep.subr.mxu0 0.0
        %1615 = vmatpush1.msra.mxu0 0.0
        %1616 = vmatprep.subr.mxu0 0.0
        %1617 = vmatpush1.msra.mxu0 0.0
        %1618 = vmatprep.subr.mxu0 0.0
        %1619 = vmatpush1.msra.mxu0 0.0
        %1620 = vmatprep.subr.mxu0 0.0
        %1621 = vmatpush1.msra.mxu0 0.0
        %1622 = vmatprep.mubr.f32.mxu0 0.0
        %1623 = vmatmul.mubr.f32.gmra.mrb[0].mxu0 %v1550
        %v1624 = vpop.f32.mrb[0].mxu0
        %v1625 = vadd.f32 0.0, %v1624
        %v1626 = vpop.f32.mrb[0].mxu0
        %v1627 = vadd.f32 0.0, %v1626
        %1628 = vdwg.mxu0
        %v1629 = vadd.f32 %v1407, %v1625
        %v1630 = vadd.f32 %v1409, %v1627
        %s1631 = scalar_lea.vmem [#allocation10], 1536
        %v1632 = vld [vmem:[%s1631] sm:$0xff]
        %v1633 = vld [vmem:[%s1631 + $0x8] sm:$0xff]
        %v1634 = vld [vmem:[%s1631 + $0x10] sm:$0xff]
        %v1635 = vld [vmem:[%s1631 + $0x18] sm:$0xff]
        %v1636 = vld [vmem:[%s1631 + $0x20] sm:$0xff]
        %v1637 = vld [vmem:[%s1631 + $0x28] sm:$0xff]
        %v1638 = vld [vmem:[%s1631 + $0x30] sm:$0xff]
        %v1639 = vld [vmem:[%s1631 + $0x38] sm:$0xff]
        %v1640 = vld [vmem:[%s1631 + $0x40] sm:$0xff]
        %v1641 = vld [vmem:[%s1631 + $0x48] sm:$0xff]
        %v1642 = vld [vmem:[%s1631 + $0x50] sm:$0xff]
        %v1643 = vld [vmem:[%s1631 + $0x58] sm:$0xff]
        %v1644 = vld [vmem:[%s1631 + $0x60] sm:$0xff]
        %v1645 = vld [vmem:[%s1631 + $0x68] sm:$0xff]
        %v1646 = vld [vmem:[%s1631 + $0x70] sm:$0xff]
        %v1647 = vld [vmem:[%s1631 + $0x78] sm:$0xff]
        %v1648 = vld [vmem:[%s1631 + $0x80] sm:$0xff]
        %v1649 = vld [vmem:[%s1631 + $0x88] sm:$0xff]
        %v1650 = vld [vmem:[%s1631 + $0x90] sm:$0xff]
        %v1651 = vld [vmem:[%s1631 + $0x98] sm:$0xff]
        %v1652 = vld [vmem:[%s1631 + $0xa0] sm:$0xff]
        %v1653 = vld [vmem:[%s1631 + $0xa8] sm:$0xff]
        %v1654 = vld [vmem:[%s1631 + $0xb0] sm:$0xff]
        %v1655 = vld [vmem:[%s1631 + $0xb8] sm:$0xff]
        %v1656 = vld [vmem:[%s1631 + $0xc0] sm:$0xff]
        %v1657 = vld [vmem:[%s1631 + $0xc8] sm:$0xff]
        %v1658 = vld [vmem:[%s1631 + $0xd0] sm:$0xff]
        %v1659 = vld [vmem:[%s1631 + $0xd8] sm:$0xff]
        %v1660 = vld [vmem:[%s1631 + $0xe0] sm:$0xff]
        %v1661 = vld [vmem:[%s1631 + $0xe8] sm:$0xff]
        %v1662 = vld [vmem:[%s1631 + $0xf0] sm:$0xff]
        %v1663 = vld [vmem:[%s1631 + $0xf8] sm:$0xff]
        %v1664 = vld [vmem:[%s1631 + $0x100] sm:$0xff]
        %v1665 = vld [vmem:[%s1631 + $0x108] sm:$0xff]
        %v1666 = vld [vmem:[%s1631 + $0x110] sm:$0xff]
        %v1667 = vld [vmem:[%s1631 + $0x118] sm:$0xff]
        %v1668 = vld [vmem:[%s1631 + $0x120] sm:$0xff]
        %v1669 = vld [vmem:[%s1631 + $0x128] sm:$0xff]
        %v1670 = vld [vmem:[%s1631 + $0x130] sm:$0xff]
        %v1671 = vld [vmem:[%s1631 + $0x138] sm:$0xff]
        %v1672 = vld [vmem:[%s1631 + $0x140] sm:$0xff]
        %v1673 = vld [vmem:[%s1631 + $0x148] sm:$0xff]
        %v1674 = vld [vmem:[%s1631 + $0x150] sm:$0xff]
        %v1675 = vld [vmem:[%s1631 + $0x158] sm:$0xff]
        %v1676 = vld [vmem:[%s1631 + $0x160] sm:$0xff]
        %v1677 = vld [vmem:[%s1631 + $0x168] sm:$0xff]
        %v1678 = vld [vmem:[%s1631 + $0x170] sm:$0xff]
        %v1679 = vld [vmem:[%s1631 + $0x178] sm:$0xff]
        %v1680 = vld [vmem:[%s1631 + $0x180] sm:$0xff]
        %v1681 = vld [vmem:[%s1631 + $0x188] sm:$0xff]
        %v1682 = vld [vmem:[%s1631 + $0x190] sm:$0xff]
        %v1683 = vld [vmem:[%s1631 + $0x198] sm:$0xff]
        %v1684 = vld [vmem:[%s1631 + $0x1a0] sm:$0xff]
        %v1685 = vld [vmem:[%s1631 + $0x1a8] sm:$0xff]
        %v1686 = vld [vmem:[%s1631 + $0x1b0] sm:$0xff]
        %v1687 = vld [vmem:[%s1631 + $0x1b8] sm:$0xff]
        %v1688 = vld [vmem:[%s1631 + $0x1c0] sm:$0xff]
        %v1689 = vld [vmem:[%s1631 + $0x1c8] sm:$0xff]
        %v1690 = vld [vmem:[%s1631 + $0x1d0] sm:$0xff]
        %v1691 = vld [vmem:[%s1631 + $0x1d8] sm:$0xff]
        %v1692 = vld [vmem:[%s1631 + $0x1e0] sm:$0xff]
        %v1693 = vld [vmem:[%s1631 + $0x1e8] sm:$0xff]
        %v1694 = vld [vmem:[%s1631 + $0x1f0] sm:$0xff]
        %v1695 = vld [vmem:[%s1631 + $0x1f8] sm:$0xff]
        %1696 = vmatprep.subr.mxu0 %v1633
        %1697 = vmatpush1.msra.mxu0 %v1632
        %1698 = vmatprep.subr.mxu0 %v1635
        %1699 = vmatpush1.msra.mxu0 %v1634
        %1700 = vmatprep.subr.mxu0 %v1637
        %1701 = vmatpush1.msra.mxu0 %v1636
        %1702 = vmatprep.subr.mxu0 %v1639
        %1703 = vmatpush1.msra.mxu0 %v1638
        %1704 = vmatprep.subr.mxu0 %v1641
        %1705 = vmatpush1.msra.mxu0 %v1640
        %1706 = vmatprep.subr.mxu0 %v1643
        %1707 = vmatpush1.msra.mxu0 %v1642
        %1708 = vmatprep.subr.mxu0 %v1645
        %1709 = vmatpush1.msra.mxu0 %v1644
        %1710 = vmatprep.subr.mxu0 %v1647
        %1711 = vmatpush1.msra.mxu0 %v1646
        %1712 = vmatprep.subr.mxu0 %v1649
        %1713 = vmatpush1.msra.mxu0 %v1648
        %1714 = vmatprep.subr.mxu0 %v1651
        %1715 = vmatpush1.msra.mxu0 %v1650
        %1716 = vmatprep.subr.mxu0 %v1653
        %1717 = vmatpush1.msra.mxu0 %v1652
        %1718 = vmatprep.subr.mxu0 %v1655
        %1719 = vmatpush1.msra.mxu0 %v1654
        %1720 = vmatprep.subr.mxu0 %v1657
        %1721 = vmatpush1.msra.mxu0 %v1656
        %1722 = vmatprep.subr.mxu0 %v1659
        %1723 = vmatpush1.msra.mxu0 %v1658
        %1724 = vmatprep.subr.mxu0 %v1661
        %1725 = vmatpush1.msra.mxu0 %v1660
        %1726 = vmatprep.subr.mxu0 %v1663
        %1727 = vmatpush1.msra.mxu0 %v1662
        %1728 = vmatprep.subr.mxu0 %v1665
        %1729 = vmatpush1.msra.mxu0 %v1664
        %1730 = vmatprep.subr.mxu0 %v1667
        %1731 = vmatpush1.msra.mxu0 %v1666
        %1732 = vmatprep.subr.mxu0 %v1669
        %1733 = vmatpush1.msra.mxu0 %v1668
        %1734 = vmatprep.subr.mxu0 %v1671
        %1735 = vmatpush1.msra.mxu0 %v1670
        %1736 = vmatprep.subr.mxu0 %v1673
        %1737 = vmatpush1.msra.mxu0 %v1672
        %1738 = vmatprep.subr.mxu0 %v1675
        %1739 = vmatpush1.msra.mxu0 %v1674
        %1740 = vmatprep.subr.mxu0 %v1677
        %1741 = vmatpush1.msra.mxu0 %v1676
        %1742 = vmatprep.subr.mxu0 %v1679
        %1743 = vmatpush1.msra.mxu0 %v1678
        %1744 = vmatprep.subr.mxu0 %v1681
        %1745 = vmatpush1.msra.mxu0 %v1680
        %1746 = vmatprep.subr.mxu0 %v1683
        %1747 = vmatpush1.msra.mxu0 %v1682
        %1748 = vmatprep.subr.mxu0 %v1685
        %1749 = vmatpush1.msra.mxu0 %v1684
        %1750 = vmatprep.subr.mxu0 %v1687
        %1751 = vmatpush1.msra.mxu0 %v1686
        %1752 = vmatprep.subr.mxu0 %v1689
        %1753 = vmatpush1.msra.mxu0 %v1688
        %1754 = vmatprep.subr.mxu0 %v1691
        %1755 = vmatpush1.msra.mxu0 %v1690
        %1756 = vmatprep.subr.mxu0 %v1693
        %1757 = vmatpush1.msra.mxu0 %v1692
        %1758 = vmatprep.subr.mxu0 %v1695
        %1759 = vmatpush1.msra.mxu0 %v1694
        %1760 = vmatprep.mubr.f32.mxu0 %v974
        %1761 = vmatmul.mubr.f32.gmra.mrb[0].mxu0 %v973
        %v1762 = vpop.f32.mrb[0].mxu0
        %v1763 = vadd.f32 0.0, %v1762
        %v1764 = vpop.f32.mrb[0].mxu0
        %v1765 = vadd.f32 0.0, %v1764
        %1766 = vdwg.mxu0
        %s1767 = scalar_lea.vmem %s6, 24
        %v1768 = vld [vmem:[%s1767] sm:$0x3f]
        %v1770 = vsel %vm1249, %v1768, 0
        %v1773 = vsel %vm1253, %v1763, 0
        %v1776 = vsel %vm1253, %v1765, 0
        %1778 = vmatprep.subr.mxu0 %v1776
        %1779 = vmatpush1.msra.mxu0 %v1773
        %1780 = vmatprep.subr.mxu0 0.0
        %1781 = vmatpush1.msra.mxu0 0.0
        %1782 = vmatprep.subr.mxu0 0.0
        %1783 = vmatpush1.msra.mxu0 0.0
        %1784 = vmatprep.subr.mxu0 0.0
        %1785 = vmatpush1.msra.mxu0 0.0
        %1786 = vmatprep.subr.mxu0 0.0
        %1787 = vmatpush1.msra.mxu0 0.0
        %1788 = vmatprep.subr.mxu0 0.0
        %1789 = vmatpush1.msra.mxu0 0.0
        %1790 = vmatprep.subr.mxu0 0.0
        %1791 = vmatpush1.msra.mxu0 0.0
        %1792 = vmatprep.subr.mxu0 0.0
        %1793 = vmatpush1.msra.mxu0 0.0
        %1794 = vmatprep.subr.mxu0 0.0
        %1795 = vmatpush1.msra.mxu0 0.0
        %1796 = vmatprep.subr.mxu0 0.0
        %1797 = vmatpush1.msra.mxu0 0.0
        %1798 = vmatprep.subr.mxu0 0.0
        %1799 = vmatpush1.msra.mxu0 0.0
        %1800 = vmatprep.subr.mxu0 0.0
        %1801 = vmatpush1.msra.mxu0 0.0
        %1802 = vmatprep.subr.mxu0 0.0
        %1803 = vmatpush1.msra.mxu0 0.0
        %1804 = vmatprep.subr.mxu0 0.0
        %1805 = vmatpush1.msra.mxu0 0.0
        %1806 = vmatprep.subr.mxu0 0.0
        %1807 = vmatpush1.msra.mxu0 0.0
        %1808 = vmatprep.subr.mxu0 0.0
        %1809 = vmatpush1.msra.mxu0 0.0
        %1810 = vmatprep.subr.mxu0 0.0
        %1811 = vmatpush1.msra.mxu0 0.0
        %1812 = vmatprep.subr.mxu0 0.0
        %1813 = vmatpush1.msra.mxu0 0.0
        %1814 = vmatprep.subr.mxu0 0.0
        %1815 = vmatpush1.msra.mxu0 0.0
        %1816 = vmatprep.subr.mxu0 0.0
        %1817 = vmatpush1.msra.mxu0 0.0
        %1818 = vmatprep.subr.mxu0 0.0
        %1819 = vmatpush1.msra.mxu0 0.0
        %1820 = vmatprep.subr.mxu0 0.0
        %1821 = vmatpush1.msra.mxu0 0.0
        %1822 = vmatprep.subr.mxu0 0.0
        %1823 = vmatpush1.msra.mxu0 0.0
        %1824 = vmatprep.subr.mxu0 0.0
        %1825 = vmatpush1.msra.mxu0 0.0
        %1826 = vmatprep.subr.mxu0 0.0
        %1827 = vmatpush1.msra.mxu0 0.0
        %1828 = vmatprep.subr.mxu0 0.0
        %1829 = vmatpush1.msra.mxu0 0.0
        %1830 = vmatprep.subr.mxu0 0.0
        %1831 = vmatpush1.msra.mxu0 0.0
        %1832 = vmatprep.subr.mxu0 0.0
        %1833 = vmatpush1.msra.mxu0 0.0
        %1834 = vmatprep.subr.mxu0 0.0
        %1835 = vmatpush1.msra.mxu0 0.0
        %1836 = vmatprep.subr.mxu0 0.0
        %1837 = vmatpush1.msra.mxu0 0.0
        %1838 = vmatprep.subr.mxu0 0.0
        %1839 = vmatpush1.msra.mxu0 0.0
        %1840 = vmatprep.subr.mxu0 0.0
        %1841 = vmatpush1.msra.mxu0 0.0
        %1842 = vmatprep.mubr.f32.mxu0 0.0
        %1843 = vmatmul.mubr.f32.gmra.mrb[0].mxu0 %v1770
        %v1844 = vpop.f32.mrb[0].mxu0
        %v1845 = vadd.f32 0.0, %v1844
        %v1846 = vpop.f32.mrb[0].mxu0
        %v1847 = vadd.f32 0.0, %v1846
        %1848 = vdwg.mxu0
        %v1849 = vadd.f32 %v1629, %v1845
        %v1850 = vadd.f32 %v1630, %v1847
        %s1851 = scalar_lea.vmem [#allocation10], 2048
        %v1852 = vld [vmem:[%s1851] sm:$0xff]
        %v1853 = vld [vmem:[%s1851 + $0x8] sm:$0xff]
        %v1854 = vld [vmem:[%s1851 + $0x10] sm:$0xff]
        %v1855 = vld [vmem:[%s1851 + $0x18] sm:$0xff]
        %v1856 = vld [vmem:[%s1851 + $0x20] sm:$0xff]
        %v1857 = vld [vmem:[%s1851 + $0x28] sm:$0xff]
        %v1858 = vld [vmem:[%s1851 + $0x30] sm:$0xff]
        %v1859 = vld [vmem:[%s1851 + $0x38] sm:$0xff]
        %v1860 = vld [vmem:[%s1851 + $0x40] sm:$0xff]
        %v1861 = vld [vmem:[%s1851 + $0x48] sm:$0xff]
        %v1862 = vld [vmem:[%s1851 + $0x50] sm:$0xff]
        %v1863 = vld [vmem:[%s1851 + $0x58] sm:$0xff]
        %v1864 = vld [vmem:[%s1851 + $0x60] sm:$0xff]
        %v1865 = vld [vmem:[%s1851 + $0x68] sm:$0xff]
        %v1866 = vld [vmem:[%s1851 + $0x70] sm:$0xff]
        %v1867 = vld [vmem:[%s1851 + $0x78] sm:$0xff]
        %v1868 = vld [vmem:[%s1851 + $0x80] sm:$0xff]
        %v1869 = vld [vmem:[%s1851 + $0x88] sm:$0xff]
        %v1870 = vld [vmem:[%s1851 + $0x90] sm:$0xff]
        %v1871 = vld [vmem:[%s1851 + $0x98] sm:$0xff]
        %v1872 = vld [vmem:[%s1851 + $0xa0] sm:$0xff]
        %v1873 = vld [vmem:[%s1851 + $0xa8] sm:$0xff]
        %v1874 = vld [vmem:[%s1851 + $0xb0] sm:$0xff]
        %v1875 = vld [vmem:[%s1851 + $0xb8] sm:$0xff]
        %v1876 = vld [vmem:[%s1851 + $0xc0] sm:$0xff]
        %v1877 = vld [vmem:[%s1851 + $0xc8] sm:$0xff]
        %v1878 = vld [vmem:[%s1851 + $0xd0] sm:$0xff]
        %v1879 = vld [vmem:[%s1851 + $0xd8] sm:$0xff]
        %v1880 = vld [vmem:[%s1851 + $0xe0] sm:$0xff]
        %v1881 = vld [vmem:[%s1851 + $0xe8] sm:$0xff]
        %v1882 = vld [vmem:[%s1851 + $0xf0] sm:$0xff]
        %v1883 = vld [vmem:[%s1851 + $0xf8] sm:$0xff]
        %v1884 = vld [vmem:[%s1851 + $0x100] sm:$0xff]
        %v1885 = vld [vmem:[%s1851 + $0x108] sm:$0xff]
        %v1886 = vld [vmem:[%s1851 + $0x110] sm:$0xff]
        %v1887 = vld [vmem:[%s1851 + $0x118] sm:$0xff]
        %v1888 = vld [vmem:[%s1851 + $0x120] sm:$0xff]
        %v1889 = vld [vmem:[%s1851 + $0x128] sm:$0xff]
        %v1890 = vld [vmem:[%s1851 + $0x130] sm:$0xff]
        %v1891 = vld [vmem:[%s1851 + $0x138] sm:$0xff]
        %v1892 = vld [vmem:[%s1851 + $0x140] sm:$0xff]
        %v1893 = vld [vmem:[%s1851 + $0x148] sm:$0xff]
        %v1894 = vld [vmem:[%s1851 + $0x150] sm:$0xff]
        %v1895 = vld [vmem:[%s1851 + $0x158] sm:$0xff]
        %v1896 = vld [vmem:[%s1851 + $0x160] sm:$0xff]
        %v1897 = vld [vmem:[%s1851 + $0x168] sm:$0xff]
        %v1898 = vld [vmem:[%s1851 + $0x170] sm:$0xff]
        %v1899 = vld [vmem:[%s1851 + $0x178] sm:$0xff]
        %v1900 = vld [vmem:[%s1851 + $0x180] sm:$0xff]
        %v1901 = vld [vmem:[%s1851 + $0x188] sm:$0xff]
        %v1902 = vld [vmem:[%s1851 + $0x190] sm:$0xff]
        %v1903 = vld [vmem:[%s1851 + $0x198] sm:$0xff]
        %v1904 = vld [vmem:[%s1851 + $0x1a0] sm:$0xff]
        %v1905 = vld [vmem:[%s1851 + $0x1a8] sm:$0xff]
        %v1906 = vld [vmem:[%s1851 + $0x1b0] sm:$0xff]
        %v1907 = vld [vmem:[%s1851 + $0x1b8] sm:$0xff]
        %v1908 = vld [vmem:[%s1851 + $0x1c0] sm:$0xff]
        %v1909 = vld [vmem:[%s1851 + $0x1c8] sm:$0xff]
        %v1910 = vld [vmem:[%s1851 + $0x1d0] sm:$0xff]
        %v1911 = vld [vmem:[%s1851 + $0x1d8] sm:$0xff]
        %v1912 = vld [vmem:[%s1851 + $0x1e0] sm:$0xff]
        %v1913 = vld [vmem:[%s1851 + $0x1e8] sm:$0xff]
        %v1914 = vld [vmem:[%s1851 + $0x1f0] sm:$0xff]
        %v1915 = vld [vmem:[%s1851 + $0x1f8] sm:$0xff]
        %1916 = vmatprep.subr.mxu0 %v1853
        %1917 = vmatpush1.msra.mxu0 %v1852
        %1918 = vmatprep.subr.mxu0 %v1855
        %1919 = vmatpush1.msra.mxu0 %v1854
        %1920 = vmatprep.subr.mxu0 %v1857
        %1921 = vmatpush1.msra.mxu0 %v1856
        %1922 = vmatprep.subr.mxu0 %v1859
        %1923 = vmatpush1.msra.mxu0 %v1858
        %1924 = vmatprep.subr.mxu0 %v1861
        %1925 = vmatpush1.msra.mxu0 %v1860
        %1926 = vmatprep.subr.mxu0 %v1863
        %1927 = vmatpush1.msra.mxu0 %v1862
        %1928 = vmatprep.subr.mxu0 %v1865
        %1929 = vmatpush1.msra.mxu0 %v1864
        %1930 = vmatprep.subr.mxu0 %v1867
        %1931 = vmatpush1.msra.mxu0 %v1866
        %1932 = vmatprep.subr.mxu0 %v1869
        %1933 = vmatpush1.msra.mxu0 %v1868
        %1934 = vmatprep.subr.mxu0 %v1871
        %1935 = vmatpush1.msra.mxu0 %v1870
        %1936 = vmatprep.subr.mxu0 %v1873
        %1937 = vmatpush1.msra.mxu0 %v1872
        %1938 = vmatprep.subr.mxu0 %v1875
        %1939 = vmatpush1.msra.mxu0 %v1874
        %1940 = vmatprep.subr.mxu0 %v1877
        %1941 = vmatpush1.msra.mxu0 %v1876
        %1942 = vmatprep.subr.mxu0 %v1879
        %1943 = vmatpush1.msra.mxu0 %v1878
        %1944 = vmatprep.subr.mxu0 %v1881
        %1945 = vmatpush1.msra.mxu0 %v1880
        %1946 = vmatprep.subr.mxu0 %v1883
        %1947 = vmatpush1.msra.mxu0 %v1882
        %1948 = vmatprep.subr.mxu0 %v1885
        %1949 = vmatpush1.msra.mxu0 %v1884
        %1950 = vmatprep.subr.mxu0 %v1887
        %1951 = vmatpush1.msra.mxu0 %v1886
        %1952 = vmatprep.subr.mxu0 %v1889
        %1953 = vmatpush1.msra.mxu0 %v1888
        %1954 = vmatprep.subr.mxu0 %v1891
        %1955 = vmatpush1.msra.mxu0 %v1890
        %1956 = vmatprep.subr.mxu0 %v1893
        %1957 = vmatpush1.msra.mxu0 %v1892
        %1958 = vmatprep.subr.mxu0 %v1895
        %1959 = vmatpush1.msra.mxu0 %v1894
        %1960 = vmatprep.subr.mxu0 %v1897
        %1961 = vmatpush1.msra.mxu0 %v1896
        %1962 = vmatprep.subr.mxu0 %v1899
        %1963 = vmatpush1.msra.mxu0 %v1898
        %1964 = vmatprep.subr.mxu0 %v1901
        %1965 = vmatpush1.msra.mxu0 %v1900
        %1966 = vmatprep.subr.mxu0 %v1903
        %1967 = vmatpush1.msra.mxu0 %v1902
        %1968 = vmatprep.subr.mxu0 %v1905
        %1969 = vmatpush1.msra.mxu0 %v1904
        %1970 = vmatprep.subr.mxu0 %v1907
        %1971 = vmatpush1.msra.mxu0 %v1906
        %1972 = vmatprep.subr.mxu0 %v1909
        %1973 = vmatpush1.msra.mxu0 %v1908
        %1974 = vmatprep.subr.mxu0 %v1911
        %1975 = vmatpush1.msra.mxu0 %v1910
        %1976 = vmatprep.subr.mxu0 %v1913
        %1977 = vmatpush1.msra.mxu0 %v1912
        %1978 = vmatprep.subr.mxu0 %v1915
        %1979 = vmatpush1.msra.mxu0 %v1914
        %1980 = vmatprep.mubr.f32.mxu0 %v974
        %1981 = vmatmul.mubr.f32.gmra.mrb[0].mxu0 %v973
        %v1982 = vpop.f32.mrb[0].mxu0
        %v1983 = vadd.f32 0.0, %v1982
        %v1984 = vpop.f32.mrb[0].mxu0
        %v1985 = vadd.f32 0.0, %v1984
        %1986 = vdwg.mxu0
        %s1987 = scalar_lea.vmem %s6, 32
        %v1988 = vld [vmem:[%s1987] sm:$0x3f]
        %v1990 = vsel %vm1249, %v1988, 0
        %v1993 = vsel %vm1253, %v1983, 0
        %v1996 = vsel %vm1253, %v1985, 0
        %1998 = vmatprep.subr.mxu0 %v1996
        %1999 = vmatpush1.msra.mxu0 %v1993
        %2000 = vmatprep.subr.mxu0 0.0
        %2001 = vmatpush1.msra.mxu0 0.0
        %2002 = vmatprep.subr.mxu0 0.0
        %2003 = vmatpush1.msra.mxu0 0.0
        %2004 = vmatprep.subr.mxu0 0.0
        %2005 = vmatpush1.msra.mxu0 0.0
        %2006 = vmatprep.subr.mxu0 0.0
        %2007 = vmatpush1.msra.mxu0 0.0
        %2008 = vmatprep.subr.mxu0 0.0
        %2009 = vmatpush1.msra.mxu0 0.0
        %2010 = vmatprep.subr.mxu0 0.0
        %2011 = vmatpush1.msra.mxu0 0.0
        %2012 = vmatprep.subr.mxu0 0.0
        %2013 = vmatpush1.msra.mxu0 0.0
        %2014 = vmatprep.subr.mxu0 0.0
        %2015 = vmatpush1.msra.mxu0 0.0
        %2016 = vmatprep.subr.mxu0 0.0
        %2017 = vmatpush1.msra.mxu0 0.0
        %2018 = vmatprep.subr.mxu0 0.0
        %2019 = vmatpush1.msra.mxu0 0.0
        %2020 = vmatprep.subr.mxu0 0.0
        %2021 = vmatpush1.msra.mxu0 0.0
        %2022 = vmatprep.subr.mxu0 0.0
        %2023 = vmatpush1.msra.mxu0 0.0
        %2024 = vmatprep.subr.mxu0 0.0
        %2025 = vmatpush1.msra.mxu0 0.0
        %2026 = vmatprep.subr.mxu0 0.0
        %2027 = vmatpush1.msra.mxu0 0.0
        %2028 = vmatprep.subr.mxu0 0.0
        %2029 = vmatpush1.msra.mxu0 0.0
        %2030 = vmatprep.subr.mxu0 0.0
        %2031 = vmatpush1.msra.mxu0 0.0
        %2032 = vmatprep.subr.mxu0 0.0
        %2033 = vmatpush1.msra.mxu0 0.0
        %2034 = vmatprep.subr.mxu0 0.0
        %2035 = vmatpush1.msra.mxu0 0.0
        %2036 = vmatprep.subr.mxu0 0.0
        %2037 = vmatpush1.msra.mxu0 0.0
        %2038 = vmatprep.subr.mxu0 0.0
        %2039 = vmatpush1.msra.mxu0 0.0
        %2040 = vmatprep.subr.mxu0 0.0
        %2041 = vmatpush1.msra.mxu0 0.0
        %2042 = vmatprep.subr.mxu0 0.0
        %2043 = vmatpush1.msra.mxu0 0.0
        %2044 = vmatprep.subr.mxu0 0.0
        %2045 = vmatpush1.msra.mxu0 0.0
        %2046 = vmatprep.subr.mxu0 0.0
        %2047 = vmatpush1.msra.mxu0 0.0
        %2048 = vmatprep.subr.mxu0 0.0
        %2049 = vmatpush1.msra.mxu0 0.0
        %2050 = vmatprep.subr.mxu0 0.0
        %2051 = vmatpush1.msra.mxu0 0.0
        %2052 = vmatprep.subr.mxu0 0.0
        %2053 = vmatpush1.msra.mxu0 0.0
        %2054 = vmatprep.subr.mxu0 0.0
        %2055 = vmatpush1.msra.mxu0 0.0
        %2056 = vmatprep.subr.mxu0 0.0
        %2057 = vmatpush1.msra.mxu0 0.0
        %2058 = vmatprep.subr.mxu0 0.0
        %2059 = vmatpush1.msra.mxu0 0.0
        %2060 = vmatprep.subr.mxu0 0.0
        %2061 = vmatpush1.msra.mxu0 0.0
        %2062 = vmatprep.mubr.f32.mxu0 0.0
        %2063 = vmatmul.mubr.f32.gmra.mrb[0].mxu0 %v1990
        %v2064 = vpop.f32.mrb[0].mxu0
        %v2065 = vadd.f32 0.0, %v2064
        %v2066 = vpop.f32.mrb[0].mxu0
        %v2067 = vadd.f32 0.0, %v2066
        %2068 = vdwg.mxu0
        %v2069 = vadd.f32 %v1849, %v2065
        %v2070 = vadd.f32 %v1850, %v2067
        %s2071 = scalar_lea.vmem [#allocation10], 2560
        %v2072 = vld [vmem:[%s2071] sm:$0xff]
        %v2073 = vld [vmem:[%s2071 + $0x8] sm:$0xff]
        %v2074 = vld [vmem:[%s2071 + $0x10] sm:$0xff]
        %v2075 = vld [vmem:[%s2071 + $0x18] sm:$0xff]
        %v2076 = vld [vmem:[%s2071 + $0x20] sm:$0xff]
        %v2077 = vld [vmem:[%s2071 + $0x28] sm:$0xff]
        %v2078 = vld [vmem:[%s2071 + $0x30] sm:$0xff]
        %v2079 = vld [vmem:[%s2071 + $0x38] sm:$0xff]
        %v2080 = vld [vmem:[%s2071 + $0x40] sm:$0xff]
        %v2081 = vld [vmem:[%s2071 + $0x48] sm:$0xff]
        %v2082 = vld [vmem:[%s2071 + $0x50] sm:$0xff]
        %v2083 = vld [vmem:[%s2071 + $0x58] sm:$0xff]
        %v2084 = vld [vmem:[%s2071 + $0x60] sm:$0xff]
        %v2085 = vld [vmem:[%s2071 + $0x68] sm:$0xff]
        %v2086 = vld [vmem:[%s2071 + $0x70] sm:$0xff]
        %v2087 = vld [vmem:[%s2071 + $0x78] sm:$0xff]
        %v2088 = vld [vmem:[%s2071 + $0x80] sm:$0xff]
        %v2089 = vld [vmem:[%s2071 + $0x88] sm:$0xff]
        %v2090 = vld [vmem:[%s2071 + $0x90] sm:$0xff]
        %v2091 = vld [vmem:[%s2071 + $0x98] sm:$0xff]
        %v2092 = vld [vmem:[%s2071 + $0xa0] sm:$0xff]
        %v2093 = vld [vmem:[%s2071 + $0xa8] sm:$0xff]
        %v2094 = vld [vmem:[%s2071 + $0xb0] sm:$0xff]
        %v2095 = vld [vmem:[%s2071 + $0xb8] sm:$0xff]
        %v2096 = vld [vmem:[%s2071 + $0xc0] sm:$0xff]
        %v2097 = vld [vmem:[%s2071 + $0xc8] sm:$0xff]
        %v2098 = vld [vmem:[%s2071 + $0xd0] sm:$0xff]
        %v2099 = vld [vmem:[%s2071 + $0xd8] sm:$0xff]
        %v2100 = vld [vmem:[%s2071 + $0xe0] sm:$0xff]
        %v2101 = vld [vmem:[%s2071 + $0xe8] sm:$0xff]
        %v2102 = vld [vmem:[%s2071 + $0xf0] sm:$0xff]
        %v2103 = vld [vmem:[%s2071 + $0xf8] sm:$0xff]
        %v2104 = vld [vmem:[%s2071 + $0x100] sm:$0xff]
        %v2105 = vld [vmem:[%s2071 + $0x108] sm:$0xff]
        %v2106 = vld [vmem:[%s2071 + $0x110] sm:$0xff]
        %v2107 = vld [vmem:[%s2071 + $0x118] sm:$0xff]
        %v2108 = vld [vmem:[%s2071 + $0x120] sm:$0xff]
        %v2109 = vld [vmem:[%s2071 + $0x128] sm:$0xff]
        %v2110 = vld [vmem:[%s2071 + $0x130] sm:$0xff]
        %v2111 = vld [vmem:[%s2071 + $0x138] sm:$0xff]
        %v2112 = vld [vmem:[%s2071 + $0x140] sm:$0xff]
        %v2113 = vld [vmem:[%s2071 + $0x148] sm:$0xff]
        %v2114 = vld [vmem:[%s2071 + $0x150] sm:$0xff]
        %v2115 = vld [vmem:[%s2071 + $0x158] sm:$0xff]
        %v2116 = vld [vmem:[%s2071 + $0x160] sm:$0xff]
        %v2117 = vld [vmem:[%s2071 + $0x168] sm:$0xff]
        %v2118 = vld [vmem:[%s2071 + $0x170] sm:$0xff]
        %v2119 = vld [vmem:[%s2071 + $0x178] sm:$0xff]
        %v2120 = vld [vmem:[%s2071 + $0x180] sm:$0xff]
        %v2121 = vld [vmem:[%s2071 + $0x188] sm:$0xff]
        %v2122 = vld [vmem:[%s2071 + $0x190] sm:$0xff]
        %v2123 = vld [vmem:[%s2071 + $0x198] sm:$0xff]
        %v2124 = vld [vmem:[%s2071 + $0x1a0] sm:$0xff]
        %v2125 = vld [vmem:[%s2071 + $0x1a8] sm:$0xff]
        %v2126 = vld [vmem:[%s2071 + $0x1b0] sm:$0xff]
        %v2127 = vld [vmem:[%s2071 + $0x1b8] sm:$0xff]
        %v2128 = vld [vmem:[%s2071 + $0x1c0] sm:$0xff]
        %v2129 = vld [vmem:[%s2071 + $0x1c8] sm:$0xff]
        %v2130 = vld [vmem:[%s2071 + $0x1d0] sm:$0xff]
        %v2131 = vld [vmem:[%s2071 + $0x1d8] sm:$0xff]
        %v2132 = vld [vmem:[%s2071 + $0x1e0] sm:$0xff]
        %v2133 = vld [vmem:[%s2071 + $0x1e8] sm:$0xff]
        %v2134 = vld [vmem:[%s2071 + $0x1f0] sm:$0xff]
        %v2135 = vld [vmem:[%s2071 + $0x1f8] sm:$0xff]
        %2136 = vmatprep.subr.mxu0 %v2073
        %2137 = vmatpush1.msra.mxu0 %v2072
        %2138 = vmatprep.subr.mxu0 %v2075
        %2139 = vmatpush1.msra.mxu0 %v2074
        %2140 = vmatprep.subr.mxu0 %v2077
        %2141 = vmatpush1.msra.mxu0 %v2076
        %2142 = vmatprep.subr.mxu0 %v2079
        %2143 = vmatpush1.msra.mxu0 %v2078
        %2144 = vmatprep.subr.mxu0 %v2081
        %2145 = vmatpush1.msra.mxu0 %v2080
        %2146 = vmatprep.subr.mxu0 %v2083
        %2147 = vmatpush1.msra.mxu0 %v2082
        %2148 = vmatprep.subr.mxu0 %v2085
        %2149 = vmatpush1.msra.mxu0 %v2084
        %2150 = vmatprep.subr.mxu0 %v2087
        %2151 = vmatpush1.msra.mxu0 %v2086
        %2152 = vmatprep.subr.mxu0 %v2089
        %2153 = vmatpush1.msra.mxu0 %v2088
        %2154 = vmatprep.subr.mxu0 %v2091
        %2155 = vmatpush1.msra.mxu0 %v2090
        %2156 = vmatprep.subr.mxu0 %v2093
        %2157 = vmatpush1.msra.mxu0 %v2092
        %2158 = vmatprep.subr.mxu0 %v2095
        %2159 = vmatpush1.msra.mxu0 %v2094
        %2160 = vmatprep.subr.mxu0 %v2097
        %2161 = vmatpush1.msra.mxu0 %v2096
        %2162 = vmatprep.subr.mxu0 %v2099
        %2163 = vmatpush1.msra.mxu0 %v2098
        %2164 = vmatprep.subr.mxu0 %v2101
        %2165 = vmatpush1.msra.mxu0 %v2100
        %2166 = vmatprep.subr.mxu0 %v2103
        %2167 = vmatpush1.msra.mxu0 %v2102
        %2168 = vmatprep.subr.mxu0 %v2105
        %2169 = vmatpush1.msra.mxu0 %v2104
        %2170 = vmatprep.subr.mxu0 %v2107
        %2171 = vmatpush1.msra.mxu0 %v2106
        %2172 = vmatprep.subr.mxu0 %v2109
        %2173 = vmatpush1.msra.mxu0 %v2108
        %2174 = vmatprep.subr.mxu0 %v2111
        %2175 = vmatpush1.msra.mxu0 %v2110
        %2176 = vmatprep.subr.mxu0 %v2113
        %2177 = vmatpush1.msra.mxu0 %v2112
        %2178 = vmatprep.subr.mxu0 %v2115
        %2179 = vmatpush1.msra.mxu0 %v2114
        %2180 = vmatprep.subr.mxu0 %v2117
        %2181 = vmatpush1.msra.mxu0 %v2116
        %2182 = vmatprep.subr.mxu0 %v2119
        %2183 = vmatpush1.msra.mxu0 %v2118
        %2184 = vmatprep.subr.mxu0 %v2121
        %2185 = vmatpush1.msra.mxu0 %v2120
        %2186 = vmatprep.subr.mxu0 %v2123
        %2187 = vmatpush1.msra.mxu0 %v2122
        %2188 = vmatprep.subr.mxu0 %v2125
        %2189 = vmatpush1.msra.mxu0 %v2124
        %2190 = vmatprep.subr.mxu0 %v2127
        %2191 = vmatpush1.msra.mxu0 %v2126
        %2192 = vmatprep.subr.mxu0 %v2129
        %2193 = vmatpush1.msra.mxu0 %v2128
        %2194 = vmatprep.subr.mxu0 %v2131
        %2195 = vmatpush1.msra.mxu0 %v2130
        %2196 = vmatprep.subr.mxu0 %v2133
        %2197 = vmatpush1.msra.mxu0 %v2132
        %2198 = vmatprep.subr.mxu0 %v2135
        %2199 = vmatpush1.msra.mxu0 %v2134
        %2200 = vmatprep.mubr.f32.mxu0 %v974
        %2201 = vmatmul.mubr.f32.gmra.mrb[0].mxu0 %v973
        %v2202 = vpop.f32.mrb[0].mxu0
        %v2203 = vadd.f32 0.0, %v2202
        %v2204 = vpop.f32.mrb[0].mxu0
        %v2205 = vadd.f32 0.0, %v2204
        %2206 = vdwg.mxu0
        %s2207 = scalar_lea.vmem %s6, 40
        %v2208 = vld [vmem:[%s2207] sm:$0x3f]
        %v2210 = vsel %vm1249, %v2208, 0
        %v2213 = vsel %vm1253, %v2203, 0
        %v2216 = vsel %vm1253, %v2205, 0
        %2218 = vmatprep.subr.mxu0 %v2216
        %2219 = vmatpush1.msra.mxu0 %v2213
        %2220 = vmatprep.subr.mxu0 0.0
        %2221 = vmatpush1.msra.mxu0 0.0
        %2222 = vmatprep.subr.mxu0 0.0
        %2223 = vmatpush1.msra.mxu0 0.0
        %2224 = vmatprep.subr.mxu0 0.0
        %2225 = vmatpush1.msra.mxu0 0.0
        %2226 = vmatprep.subr.mxu0 0.0
        %2227 = vmatpush1.msra.mxu0 0.0
        %2228 = vmatprep.subr.mxu0 0.0
        %2229 = vmatpush1.msra.mxu0 0.0
        %2230 = vmatprep.subr.mxu0 0.0
        %2231 = vmatpush1.msra.mxu0 0.0
        %2232 = vmatprep.subr.mxu0 0.0
        %2233 = vmatpush1.msra.mxu0 0.0
        %2234 = vmatprep.subr.mxu0 0.0
        %2235 = vmatpush1.msra.mxu0 0.0
        %2236 = vmatprep.subr.mxu0 0.0
        %2237 = vmatpush1.msra.mxu0 0.0
        %2238 = vmatprep.subr.mxu0 0.0
        %2239 = vmatpush1.msra.mxu0 0.0
        %2240 = vmatprep.subr.mxu0 0.0
        %2241 = vmatpush1.msra.mxu0 0.0
        %2242 = vmatprep.subr.mxu0 0.0
        %2243 = vmatpush1.msra.mxu0 0.0
        %2244 = vmatprep.subr.mxu0 0.0
        %2245 = vmatpush1.msra.mxu0 0.0
        %2246 = vmatprep.subr.mxu0 0.0
        %2247 = vmatpush1.msra.mxu0 0.0
        %2248 = vmatprep.subr.mxu0 0.0
        %2249 = vmatpush1.msra.mxu0 0.0
        %2250 = vmatprep.subr.mxu0 0.0
        %2251 = vmatpush1.msra.mxu0 0.0
        %2252 = vmatprep.subr.mxu0 0.0
        %2253 = vmatpush1.msra.mxu0 0.0
        %2254 = vmatprep.subr.mxu0 0.0
        %2255 = vmatpush1.msra.mxu0 0.0
        %2256 = vmatprep.subr.mxu0 0.0
        %2257 = vmatpush1.msra.mxu0 0.0
        %2258 = vmatprep.subr.mxu0 0.0
        %2259 = vmatpush1.msra.mxu0 0.0
        %2260 = vmatprep.subr.mxu0 0.0
        %2261 = vmatpush1.msra.mxu0 0.0
        %2262 = vmatprep.subr.mxu0 0.0
        %2263 = vmatpush1.msra.mxu0 0.0
        %2264 = vmatprep.subr.mxu0 0.0
        %2265 = vmatpush1.msra.mxu0 0.0
        %2266 = vmatprep.subr.mxu0 0.0
        %2267 = vmatpush1.msra.mxu0 0.0
        %2268 = vmatprep.subr.mxu0 0.0
        %2269 = vmatpush1.msra.mxu0 0.0
        %2270 = vmatprep.subr.mxu0 0.0
        %2271 = vmatpush1.msra.mxu0 0.0
        %2272 = vmatprep.subr.mxu0 0.0
        %2273 = vmatpush1.msra.mxu0 0.0
        %2274 = vmatprep.subr.mxu0 0.0
        %2275 = vmatpush1.msra.mxu0 0.0
        %2276 = vmatprep.subr.mxu0 0.0
        %2277 = vmatpush1.msra.mxu0 0.0
        %2278 = vmatprep.subr.mxu0 0.0
        %2279 = vmatpush1.msra.mxu0 0.0
        %2280 = vmatprep.subr.mxu0 0.0
        %2281 = vmatpush1.msra.mxu0 0.0
        %2282 = vmatprep.mubr.f32.mxu0 0.0
        %2283 = vmatmul.mubr.f32.gmra.mrb[0].mxu0 %v2210
        %v2284 = vpop.f32.mrb[0].mxu0
        %v2285 = vadd.f32 0.0, %v2284
        %v2286 = vpop.f32.mrb[0].mxu0
        %v2287 = vadd.f32 0.0, %v2286
        %2288 = vdwg.mxu0
        %v2289 = vadd.f32 %v2069, %v2285
        %v2290 = vadd.f32 %v2070, %v2287
        %s2291 = scalar_lea.vmem [#allocation10], 3072
        %v2292 = vld [vmem:[%s2291] sm:$0xff]
        %v2293 = vld [vmem:[%s2291 + $0x8] sm:$0xff]
        %v2294 = vld [vmem:[%s2291 + $0x10] sm:$0xff]
        %v2295 = vld [vmem:[%s2291 + $0x18] sm:$0xff]
        %v2296 = vld [vmem:[%s2291 + $0x20] sm:$0xff]
        %v2297 = vld [vmem:[%s2291 + $0x28] sm:$0xff]
        %v2298 = vld [vmem:[%s2291 + $0x30] sm:$0xff]
        %v2299 = vld [vmem:[%s2291 + $0x38] sm:$0xff]
        %v2300 = vld [vmem:[%s2291 + $0x40] sm:$0xff]
        %v2301 = vld [vmem:[%s2291 + $0x48] sm:$0xff]
        %v2302 = vld [vmem:[%s2291 + $0x50] sm:$0xff]
        %v2303 = vld [vmem:[%s2291 + $0x58] sm:$0xff]
        %v2304 = vld [vmem:[%s2291 + $0x60] sm:$0xff]
        %v2305 = vld [vmem:[%s2291 + $0x68] sm:$0xff]
        %v2306 = vld [vmem:[%s2291 + $0x70] sm:$0xff]
        %v2307 = vld [vmem:[%s2291 + $0x78] sm:$0xff]
        %v2308 = vld [vmem:[%s2291 + $0x80] sm:$0xff]
        %v2309 = vld [vmem:[%s2291 + $0x88] sm:$0xff]
        %v2310 = vld [vmem:[%s2291 + $0x90] sm:$0xff]
        %v2311 = vld [vmem:[%s2291 + $0x98] sm:$0xff]
        %v2312 = vld [vmem:[%s2291 + $0xa0] sm:$0xff]
        %v2313 = vld [vmem:[%s2291 + $0xa8] sm:$0xff]
        %v2314 = vld [vmem:[%s2291 + $0xb0] sm:$0xff]
        %v2315 = vld [vmem:[%s2291 + $0xb8] sm:$0xff]
        %v2316 = vld [vmem:[%s2291 + $0xc0] sm:$0xff]
        %v2317 = vld [vmem:[%s2291 + $0xc8] sm:$0xff]
        %v2318 = vld [vmem:[%s2291 + $0xd0] sm:$0xff]
        %v2319 = vld [vmem:[%s2291 + $0xd8] sm:$0xff]
        %v2320 = vld [vmem:[%s2291 + $0xe0] sm:$0xff]
        %v2321 = vld [vmem:[%s2291 + $0xe8] sm:$0xff]
        %v2322 = vld [vmem:[%s2291 + $0xf0] sm:$0xff]
        %v2323 = vld [vmem:[%s2291 + $0xf8] sm:$0xff]
        %v2324 = vld [vmem:[%s2291 + $0x100] sm:$0xff]
        %v2325 = vld [vmem:[%s2291 + $0x108] sm:$0xff]
        %v2326 = vld [vmem:[%s2291 + $0x110] sm:$0xff]
        %v2327 = vld [vmem:[%s2291 + $0x118] sm:$0xff]
        %v2328 = vld [vmem:[%s2291 + $0x120] sm:$0xff]
        %v2329 = vld [vmem:[%s2291 + $0x128] sm:$0xff]
        %v2330 = vld [vmem:[%s2291 + $0x130] sm:$0xff]
        %v2331 = vld [vmem:[%s2291 + $0x138] sm:$0xff]
        %v2332 = vld [vmem:[%s2291 + $0x140] sm:$0xff]
        %v2333 = vld [vmem:[%s2291 + $0x148] sm:$0xff]
        %v2334 = vld [vmem:[%s2291 + $0x150] sm:$0xff]
        %v2335 = vld [vmem:[%s2291 + $0x158] sm:$0xff]
        %v2336 = vld [vmem:[%s2291 + $0x160] sm:$0xff]
        %v2337 = vld [vmem:[%s2291 + $0x168] sm:$0xff]
        %v2338 = vld [vmem:[%s2291 + $0x170] sm:$0xff]
        %v2339 = vld [vmem:[%s2291 + $0x178] sm:$0xff]
        %v2340 = vld [vmem:[%s2291 + $0x180] sm:$0xff]
        %v2341 = vld [vmem:[%s2291 + $0x188] sm:$0xff]
        %v2342 = vld [vmem:[%s2291 + $0x190] sm:$0xff]
        %v2343 = vld [vmem:[%s2291 + $0x198] sm:$0xff]
        %v2344 = vld [vmem:[%s2291 + $0x1a0] sm:$0xff]
        %v2345 = vld [vmem:[%s2291 + $0x1a8] sm:$0xff]
        %v2346 = vld [vmem:[%s2291 + $0x1b0] sm:$0xff]
        %v2347 = vld [vmem:[%s2291 + $0x1b8] sm:$0xff]
        %v2348 = vld [vmem:[%s2291 + $0x1c0] sm:$0xff]
        %v2349 = vld [vmem:[%s2291 + $0x1c8] sm:$0xff]
        %v2350 = vld [vmem:[%s2291 + $0x1d0] sm:$0xff]
        %v2351 = vld [vmem:[%s2291 + $0x1d8] sm:$0xff]
        %v2352 = vld [vmem:[%s2291 + $0x1e0] sm:$0xff]
        %v2353 = vld [vmem:[%s2291 + $0x1e8] sm:$0xff]
        %v2354 = vld [vmem:[%s2291 + $0x1f0] sm:$0xff]
        %v2355 = vld [vmem:[%s2291 + $0x1f8] sm:$0xff]
        %2356 = vmatprep.subr.mxu0 %v2293
        %2357 = vmatpush1.msra.mxu0 %v2292
        %2358 = vmatprep.subr.mxu0 %v2295
        %2359 = vmatpush1.msra.mxu0 %v2294
        %2360 = vmatprep.subr.mxu0 %v2297
        %2361 = vmatpush1.msra.mxu0 %v2296
        %2362 = vmatprep.subr.mxu0 %v2299
        %2363 = vmatpush1.msra.mxu0 %v2298
        %2364 = vmatprep.subr.mxu0 %v2301
        %2365 = vmatpush1.msra.mxu0 %v2300
        %2366 = vmatprep.subr.mxu0 %v2303
        %2367 = vmatpush1.msra.mxu0 %v2302
        %2368 = vmatprep.subr.mxu0 %v2305
        %2369 = vmatpush1.msra.mxu0 %v2304
        %2370 = vmatprep.subr.mxu0 %v2307
        %2371 = vmatpush1.msra.mxu0 %v2306
        %2372 = vmatprep.subr.mxu0 %v2309
        %2373 = vmatpush1.msra.mxu0 %v2308
        %2374 = vmatprep.subr.mxu0 %v2311
        %2375 = vmatpush1.msra.mxu0 %v2310
        %2376 = vmatprep.subr.mxu0 %v2313
        %2377 = vmatpush1.msra.mxu0 %v2312
        %2378 = vmatprep.subr.mxu0 %v2315
        %2379 = vmatpush1.msra.mxu0 %v2314
        %2380 = vmatprep.subr.mxu0 %v2317
        %2381 = vmatpush1.msra.mxu0 %v2316
        %2382 = vmatprep.subr.mxu0 %v2319
        %2383 = vmatpush1.msra.mxu0 %v2318
        %2384 = vmatprep.subr.mxu0 %v2321
        %2385 = vmatpush1.msra.mxu0 %v2320
        %2386 = vmatprep.subr.mxu0 %v2323
        %2387 = vmatpush1.msra.mxu0 %v2322
        %2388 = vmatprep.subr.mxu0 %v2325
        %2389 = vmatpush1.msra.mxu0 %v2324
        %2390 = vmatprep.subr.mxu0 %v2327
        %2391 = vmatpush1.msra.mxu0 %v2326
        %2392 = vmatprep.subr.mxu0 %v2329
        %2393 = vmatpush1.msra.mxu0 %v2328
        %2394 = vmatprep.subr.mxu0 %v2331
        %2395 = vmatpush1.msra.mxu0 %v2330
        %2396 = vmatprep.subr.mxu0 %v2333
        %2397 = vmatpush1.msra.mxu0 %v2332
        %2398 = vmatprep.subr.mxu0 %v2335
        %2399 = vmatpush1.msra.mxu0 %v2334
        %2400 = vmatprep.subr.mxu0 %v2337
        %2401 = vmatpush1.msra.mxu0 %v2336
        %2402 = vmatprep.subr.mxu0 %v2339
        %2403 = vmatpush1.msra.mxu0 %v2338
        %2404 = vmatprep.subr.mxu0 %v2341
        %2405 = vmatpush1.msra.mxu0 %v2340
        %2406 = vmatprep.subr.mxu0 %v2343
        %2407 = vmatpush1.msra.mxu0 %v2342
        %2408 = vmatprep.subr.mxu0 %v2345
        %2409 = vmatpush1.msra.mxu0 %v2344
        %2410 = vmatprep.subr.mxu0 %v2347
        %2411 = vmatpush1.msra.mxu0 %v2346
        %2412 = vmatprep.subr.mxu0 %v2349
        %2413 = vmatpush1.msra.mxu0 %v2348
        %2414 = vmatprep.subr.mxu0 %v2351
        %2415 = vmatpush1.msra.mxu0 %v2350
        %2416 = vmatprep.subr.mxu0 %v2353
        %2417 = vmatpush1.msra.mxu0 %v2352
        %2418 = vmatprep.subr.mxu0 %v2355
        %2419 = vmatpush1.msra.mxu0 %v2354
        %2420 = vmatprep.mubr.f32.mxu0 %v974
        %2421 = vmatmul.mubr.f32.gmra.mrb[0].mxu0 %v973
        %v2422 = vpop.f32.mrb[0].mxu0
        %v2423 = vadd.f32 0.0, %v2422
        %v2424 = vpop.f32.mrb[0].mxu0
        %v2425 = vadd.f32 0.0, %v2424
        %2426 = vdwg.mxu0
        %s2427 = scalar_lea.vmem %s6, 48
        %v2428 = vld [vmem:[%s2427] sm:$0x3f]
        %v2430 = vsel %vm1249, %v2428, 0
        %v2433 = vsel %vm1253, %v2423, 0
        %v2436 = vsel %vm1253, %v2425, 0
        %2438 = vmatprep.subr.mxu0 %v2436
        %2439 = vmatpush1.msra.mxu0 %v2433
        %2440 = vmatprep.subr.mxu0 0.0
        %2441 = vmatpush1.msra.mxu0 0.0
        %2442 = vmatprep.subr.mxu0 0.0
        %2443 = vmatpush1.msra.mxu0 0.0
        %2444 = vmatprep.subr.mxu0 0.0
        %2445 = vmatpush1.msra.mxu0 0.0
        %2446 = vmatprep.subr.mxu0 0.0
        %2447 = vmatpush1.msra.mxu0 0.0
        %2448 = vmatprep.subr.mxu0 0.0
        %2449 = vmatpush1.msra.mxu0 0.0
        %2450 = vmatprep.subr.mxu0 0.0
        %2451 = vmatpush1.msra.mxu0 0.0
        %2452 = vmatprep.subr.mxu0 0.0
        %2453 = vmatpush1.msra.mxu0 0.0
        %2454 = vmatprep.subr.mxu0 0.0
        %2455 = vmatpush1.msra.mxu0 0.0
        %2456 = vmatprep.subr.mxu0 0.0
        %2457 = vmatpush1.msra.mxu0 0.0
        %2458 = vmatprep.subr.mxu0 0.0
        %2459 = vmatpush1.msra.mxu0 0.0
        %2460 = vmatprep.subr.mxu0 0.0
        %2461 = vmatpush1.msra.mxu0 0.0
        %2462 = vmatprep.subr.mxu0 0.0
        %2463 = vmatpush1.msra.mxu0 0.0
        %2464 = vmatprep.subr.mxu0 0.0
        %2465 = vmatpush1.msra.mxu0 0.0
        %2466 = vmatprep.subr.mxu0 0.0
        %2467 = vmatpush1.msra.mxu0 0.0
        %2468 = vmatprep.subr.mxu0 0.0
        %2469 = vmatpush1.msra.mxu0 0.0
        %2470 = vmatprep.subr.mxu0 0.0
        %2471 = vmatpush1.msra.mxu0 0.0
        %2472 = vmatprep.subr.mxu0 0.0
        %2473 = vmatpush1.msra.mxu0 0.0
        %2474 = vmatprep.subr.mxu0 0.0
        %2475 = vmatpush1.msra.mxu0 0.0
        %2476 = vmatprep.subr.mxu0 0.0
        %2477 = vmatpush1.msra.mxu0 0.0
        %2478 = vmatprep.subr.mxu0 0.0
        %2479 = vmatpush1.msra.mxu0 0.0
        %2480 = vmatprep.subr.mxu0 0.0
        %2481 = vmatpush1.msra.mxu0 0.0
        %2482 = vmatprep.subr.mxu0 0.0
        %2483 = vmatpush1.msra.mxu0 0.0
        %2484 = vmatprep.subr.mxu0 0.0
        %2485 = vmatpush1.msra.mxu0 0.0
        %2486 = vmatprep.subr.mxu0 0.0
        %2487 = vmatpush1.msra.mxu0 0.0
        %2488 = vmatprep.subr.mxu0 0.0
        %2489 = vmatpush1.msra.mxu0 0.0
        %2490 = vmatprep.subr.mxu0 0.0
        %2491 = vmatpush1.msra.mxu0 0.0
        %2492 = vmatprep.subr.mxu0 0.0
        %2493 = vmatpush1.msra.mxu0 0.0
        %2494 = vmatprep.subr.mxu0 0.0
        %2495 = vmatpush1.msra.mxu0 0.0
        %2496 = vmatprep.subr.mxu0 0.0
        %2497 = vmatpush1.msra.mxu0 0.0
        %2498 = vmatprep.subr.mxu0 0.0
        %2499 = vmatpush1.msra.mxu0 0.0
        %2500 = vmatprep.subr.mxu0 0.0
        %2501 = vmatpush1.msra.mxu0 0.0
        %2502 = vmatprep.mubr.f32.mxu0 0.0
        %2503 = vmatmul.mubr.f32.gmra.mrb[0].mxu0 %v2430
        %v2504 = vpop.f32.mrb[0].mxu0
        %v2505 = vadd.f32 0.0, %v2504
        %v2506 = vpop.f32.mrb[0].mxu0
        %v2507 = vadd.f32 0.0, %v2506
        %2508 = vdwg.mxu0
        %v2509 = vadd.f32 %v2289, %v2505
        %v2510 = vadd.f32 %v2290, %v2507
        %s2511 = scalar_lea.vmem [#allocation10], 3584
        %v2512 = vld [vmem:[%s2511] sm:$0xff]
        %v2513 = vld [vmem:[%s2511 + $0x8] sm:$0xff]
        %v2514 = vld [vmem:[%s2511 + $0x10] sm:$0xff]
        %v2515 = vld [vmem:[%s2511 + $0x18] sm:$0xff]
        %v2516 = vld [vmem:[%s2511 + $0x20] sm:$0xff]
        %v2517 = vld [vmem:[%s2511 + $0x28] sm:$0xff]
        %v2518 = vld [vmem:[%s2511 + $0x30] sm:$0xff]
        %v2519 = vld [vmem:[%s2511 + $0x38] sm:$0xff]
        %v2520 = vld [vmem:[%s2511 + $0x40] sm:$0xff]
        %v2521 = vld [vmem:[%s2511 + $0x48] sm:$0xff]
        %v2522 = vld [vmem:[%s2511 + $0x50] sm:$0xff]
        %v2523 = vld [vmem:[%s2511 + $0x58] sm:$0xff]
        %v2524 = vld [vmem:[%s2511 + $0x60] sm:$0xff]
        %v2525 = vld [vmem:[%s2511 + $0x68] sm:$0xff]
        %v2526 = vld [vmem:[%s2511 + $0x70] sm:$0xff]
        %v2527 = vld [vmem:[%s2511 + $0x78] sm:$0xff]
        %v2528 = vld [vmem:[%s2511 + $0x80] sm:$0xff]
        %v2529 = vld [vmem:[%s2511 + $0x88] sm:$0xff]
        %v2530 = vld [vmem:[%s2511 + $0x90] sm:$0xff]
        %v2531 = vld [vmem:[%s2511 + $0x98] sm:$0xff]
        %v2532 = vld [vmem:[%s2511 + $0xa0] sm:$0xff]
        %v2533 = vld [vmem:[%s2511 + $0xa8] sm:$0xff]
        %v2534 = vld [vmem:[%s2511 + $0xb0] sm:$0xff]
        %v2535 = vld [vmem:[%s2511 + $0xb8] sm:$0xff]
        %v2536 = vld [vmem:[%s2511 + $0xc0] sm:$0xff]
        %v2537 = vld [vmem:[%s2511 + $0xc8] sm:$0xff]
        %v2538 = vld [vmem:[%s2511 + $0xd0] sm:$0xff]
        %v2539 = vld [vmem:[%s2511 + $0xd8] sm:$0xff]
        %v2540 = vld [vmem:[%s2511 + $0xe0] sm:$0xff]
        %v2541 = vld [vmem:[%s2511 + $0xe8] sm:$0xff]
        %v2542 = vld [vmem:[%s2511 + $0xf0] sm:$0xff]
        %v2543 = vld [vmem:[%s2511 + $0xf8] sm:$0xff]
        %v2544 = vld [vmem:[%s2511 + $0x100] sm:$0xff]
        %v2545 = vld [vmem:[%s2511 + $0x108] sm:$0xff]
        %v2546 = vld [vmem:[%s2511 + $0x110] sm:$0xff]
        %v2547 = vld [vmem:[%s2511 + $0x118] sm:$0xff]
        %v2548 = vld [vmem:[%s2511 + $0x120] sm:$0xff]
        %v2549 = vld [vmem:[%s2511 + $0x128] sm:$0xff]
        %v2550 = vld [vmem:[%s2511 + $0x130] sm:$0xff]
        %v2551 = vld [vmem:[%s2511 + $0x138] sm:$0xff]
        %v2552 = vld [vmem:[%s2511 + $0x140] sm:$0xff]
        %v2553 = vld [vmem:[%s2511 + $0x148] sm:$0xff]
        %v2554 = vld [vmem:[%s2511 + $0x150] sm:$0xff]
        %v2555 = vld [vmem:[%s2511 + $0x158] sm:$0xff]
        %v2556 = vld [vmem:[%s2511 + $0x160] sm:$0xff]
        %v2557 = vld [vmem:[%s2511 + $0x168] sm:$0xff]
        %v2558 = vld [vmem:[%s2511 + $0x170] sm:$0xff]
        %v2559 = vld [vmem:[%s2511 + $0x178] sm:$0xff]
        %v2560 = vld [vmem:[%s2511 + $0x180] sm:$0xff]
        %v2561 = vld [vmem:[%s2511 + $0x188] sm:$0xff]
        %v2562 = vld [vmem:[%s2511 + $0x190] sm:$0xff]
        %v2563 = vld [vmem:[%s2511 + $0x198] sm:$0xff]
        %v2564 = vld [vmem:[%s2511 + $0x1a0] sm:$0xff]
        %v2565 = vld [vmem:[%s2511 + $0x1a8] sm:$0xff]
        %v2566 = vld [vmem:[%s2511 + $0x1b0] sm:$0xff]
        %v2567 = vld [vmem:[%s2511 + $0x1b8] sm:$0xff]
        %v2568 = vld [vmem:[%s2511 + $0x1c0] sm:$0xff]
        %v2569 = vld [vmem:[%s2511 + $0x1c8] sm:$0xff]
        %v2570 = vld [vmem:[%s2511 + $0x1d0] sm:$0xff]
        %v2571 = vld [vmem:[%s2511 + $0x1d8] sm:$0xff]
        %v2572 = vld [vmem:[%s2511 + $0x1e0] sm:$0xff]
        %v2573 = vld [vmem:[%s2511 + $0x1e8] sm:$0xff]
        %v2574 = vld [vmem:[%s2511 + $0x1f0] sm:$0xff]
        %v2575 = vld [vmem:[%s2511 + $0x1f8] sm:$0xff]
        %2576 = vmatprep.subr.mxu0 %v2513
        %2577 = vmatpush1.msra.mxu0 %v2512
        %2578 = vmatprep.subr.mxu0 %v2515
        %2579 = vmatpush1.msra.mxu0 %v2514
        %2580 = vmatprep.subr.mxu0 %v2517
        %2581 = vmatpush1.msra.mxu0 %v2516
        %2582 = vmatprep.subr.mxu0 %v2519
        %2583 = vmatpush1.msra.mxu0 %v2518
        %2584 = vmatprep.subr.mxu0 %v2521
        %2585 = vmatpush1.msra.mxu0 %v2520
        %2586 = vmatprep.subr.mxu0 %v2523
        %2587 = vmatpush1.msra.mxu0 %v2522
        %2588 = vmatprep.subr.mxu0 %v2525
        %2589 = vmatpush1.msra.mxu0 %v2524
        %2590 = vmatprep.subr.mxu0 %v2527
        %2591 = vmatpush1.msra.mxu0 %v2526
        %2592 = vmatprep.subr.mxu0 %v2529
        %2593 = vmatpush1.msra.mxu0 %v2528
        %2594 = vmatprep.subr.mxu0 %v2531
        %2595 = vmatpush1.msra.mxu0 %v2530
        %2596 = vmatprep.subr.mxu0 %v2533
        %2597 = vmatpush1.msra.mxu0 %v2532
        %2598 = vmatprep.subr.mxu0 %v2535
        %2599 = vmatpush1.msra.mxu0 %v2534
        %2600 = vmatprep.subr.mxu0 %v2537
        %2601 = vmatpush1.msra.mxu0 %v2536
        %2602 = vmatprep.subr.mxu0 %v2539
        %2603 = vmatpush1.msra.mxu0 %v2538
        %2604 = vmatprep.subr.mxu0 %v2541
        %2605 = vmatpush1.msra.mxu0 %v2540
        %2606 = vmatprep.subr.mxu0 %v2543
        %2607 = vmatpush1.msra.mxu0 %v2542
        %2608 = vmatprep.subr.mxu0 %v2545
        %2609 = vmatpush1.msra.mxu0 %v2544
        %2610 = vmatprep.subr.mxu0 %v2547
        %2611 = vmatpush1.msra.mxu0 %v2546
        %2612 = vmatprep.subr.mxu0 %v2549
        %2613 = vmatpush1.msra.mxu0 %v2548
        %2614 = vmatprep.subr.mxu0 %v2551
        %2615 = vmatpush1.msra.mxu0 %v2550
        %2616 = vmatprep.subr.mxu0 %v2553
        %2617 = vmatpush1.msra.mxu0 %v2552
        %2618 = vmatprep.subr.mxu0 %v2555
        %2619 = vmatpush1.msra.mxu0 %v2554
        %2620 = vmatprep.subr.mxu0 %v2557
        %2621 = vmatpush1.msra.mxu0 %v2556
        %2622 = vmatprep.subr.mxu0 %v2559
        %2623 = vmatpush1.msra.mxu0 %v2558
        %2624 = vmatprep.subr.mxu0 %v2561
        %2625 = vmatpush1.msra.mxu0 %v2560
        %2626 = vmatprep.subr.mxu0 %v2563
        %2627 = vmatpush1.msra.mxu0 %v2562
        %2628 = vmatprep.subr.mxu0 %v2565
        %2629 = vmatpush1.msra.mxu0 %v2564
        %2630 = vmatprep.subr.mxu0 %v2567
        %2631 = vmatpush1.msra.mxu0 %v2566
        %2632 = vmatprep.subr.mxu0 %v2569
        %2633 = vmatpush1.msra.mxu0 %v2568
        %2634 = vmatprep.subr.mxu0 %v2571
        %2635 = vmatpush1.msra.mxu0 %v2570
        %2636 = vmatprep.subr.mxu0 %v2573
        %2637 = vmatpush1.msra.mxu0 %v2572
        %2638 = vmatprep.subr.mxu0 %v2575
        %2639 = vmatpush1.msra.mxu0 %v2574
        %2640 = vmatprep.mubr.f32.mxu0 %v974
        %2641 = vmatmul.mubr.f32.gmra.mrb[0].mxu0 %v973
        %v2642 = vpop.f32.mrb[0].mxu0
        %v2643 = vadd.f32 0.0, %v2642
        %v2644 = vpop.f32.mrb[0].mxu0
        %v2645 = vadd.f32 0.0, %v2644
        %2646 = vdwg.mxu0
        %s2647 = scalar_lea.vmem %s6, 56
        %v2648 = vld [vmem:[%s2647] sm:$0x3f]
        %v2650 = vsel %vm1249, %v2648, 0
        %v2653 = vsel %vm1253, %v2643, 0
        %v2656 = vsel %vm1253, %v2645, 0
        %2658 = vmatprep.subr.mxu0 %v2656
        %2659 = vmatpush1.msra.mxu0 %v2653
        %2660 = vmatprep.subr.mxu0 0.0
        %2661 = vmatpush1.msra.mxu0 0.0
        %2662 = vmatprep.subr.mxu0 0.0
        %2663 = vmatpush1.msra.mxu0 0.0
        %2664 = vmatprep.subr.mxu0 0.0
        %2665 = vmatpush1.msra.mxu0 0.0
        %2666 = vmatprep.subr.mxu0 0.0
        %2667 = vmatpush1.msra.mxu0 0.0
        %2668 = vmatprep.subr.mxu0 0.0
        %2669 = vmatpush1.msra.mxu0 0.0
        %2670 = vmatprep.subr.mxu0 0.0
        %2671 = vmatpush1.msra.mxu0 0.0
        %2672 = vmatprep.subr.mxu0 0.0
        %2673 = vmatpush1.msra.mxu0 0.0
        %2674 = vmatprep.subr.mxu0 0.0
        %2675 = vmatpush1.msra.mxu0 0.0
        %2676 = vmatprep.subr.mxu0 0.0
        %2677 = vmatpush1.msra.mxu0 0.0
        %2678 = vmatprep.subr.mxu0 0.0
        %2679 = vmatpush1.msra.mxu0 0.0
        %2680 = vmatprep.subr.mxu0 0.0
        %2681 = vmatpush1.msra.mxu0 0.0
        %2682 = vmatprep.subr.mxu0 0.0
        %2683 = vmatpush1.msra.mxu0 0.0
        %2684 = vmatprep.subr.mxu0 0.0
        %2685 = vmatpush1.msra.mxu0 0.0
        %2686 = vmatprep.subr.mxu0 0.0
        %2687 = vmatpush1.msra.mxu0 0.0
        %2688 = vmatprep.subr.mxu0 0.0
        %2689 = vmatpush1.msra.mxu0 0.0
        %2690 = vmatprep.subr.mxu0 0.0
        %2691 = vmatpush1.msra.mxu0 0.0
        %2692 = vmatprep.subr.mxu0 0.0
        %2693 = vmatpush1.msra.mxu0 0.0
        %2694 = vmatprep.subr.mxu0 0.0
        %2695 = vmatpush1.msra.mxu0 0.0
        %2696 = vmatprep.subr.mxu0 0.0
        %2697 = vmatpush1.msra.mxu0 0.0
        %2698 = vmatprep.subr.mxu0 0.0
        %2699 = vmatpush1.msra.mxu0 0.0
        %2700 = vmatprep.subr.mxu0 0.0
        %2701 = vmatpush1.msra.mxu0 0.0
        %2702 = vmatprep.subr.mxu0 0.0
        %2703 = vmatpush1.msra.mxu0 0.0
        %2704 = vmatprep.subr.mxu0 0.0
        %2705 = vmatpush1.msra.mxu0 0.0
        %2706 = vmatprep.subr.mxu0 0.0
        %2707 = vmatpush1.msra.mxu0 0.0
        %2708 = vmatprep.subr.mxu0 0.0
        %2709 = vmatpush1.msra.mxu0 0.0
        %2710 = vmatprep.subr.mxu0 0.0
        %2711 = vmatpush1.msra.mxu0 0.0
        %2712 = vmatprep.subr.mxu0 0.0
        %2713 = vmatpush1.msra.mxu0 0.0
        %2714 = vmatprep.subr.mxu0 0.0
        %2715 = vmatpush1.msra.mxu0 0.0
        %2716 = vmatprep.subr.mxu0 0.0
        %2717 = vmatpush1.msra.mxu0 0.0
        %2718 = vmatprep.subr.mxu0 0.0
        %2719 = vmatpush1.msra.mxu0 0.0
        %2720 = vmatprep.subr.mxu0 0.0
        %2721 = vmatpush1.msra.mxu0 0.0
        %2722 = vmatprep.mubr.f32.mxu0 0.0
        %2723 = vmatmul.mubr.f32.gmra.mrb[0].mxu0 %v2650
        %v2724 = vpop.f32.mrb[0].mxu0
        %v2725 = vadd.f32 0.0, %v2724
        %v2726 = vpop.f32.mrb[0].mxu0
        %v2727 = vadd.f32 0.0, %v2726
        %2728 = vdwg.mxu0
        %v2729 = vadd.f32 %v2509, %v2725
        %v2730 = vadd.f32 %v2510, %v2727
        %s2731 = scalar_lea.vmem [#allocation10], 4096
        %v2732 = vld [vmem:[%s2731] sm:$0xff]
        %v2733 = vld [vmem:[%s2731 + $0x8] sm:$0xff]
        %v2734 = vld [vmem:[%s2731 + $0x10] sm:$0xff]
        %v2735 = vld [vmem:[%s2731 + $0x18] sm:$0xff]
        %v2736 = vld [vmem:[%s2731 + $0x20] sm:$0xff]
        %v2737 = vld [vmem:[%s2731 + $0x28] sm:$0xff]
        %v2738 = vld [vmem:[%s2731 + $0x30] sm:$0xff]
        %v2739 = vld [vmem:[%s2731 + $0x38] sm:$0xff]
        %v2740 = vld [vmem:[%s2731 + $0x40] sm:$0xff]
        %v2741 = vld [vmem:[%s2731 + $0x48] sm:$0xff]
        %v2742 = vld [vmem:[%s2731 + $0x50] sm:$0xff]
        %v2743 = vld [vmem:[%s2731 + $0x58] sm:$0xff]
        %v2744 = vld [vmem:[%s2731 + $0x60] sm:$0xff]
        %v2745 = vld [vmem:[%s2731 + $0x68] sm:$0xff]
        %v2746 = vld [vmem:[%s2731 + $0x70] sm:$0xff]
        %v2747 = vld [vmem:[%s2731 + $0x78] sm:$0xff]
        %v2748 = vld [vmem:[%s2731 + $0x80] sm:$0xff]
        %v2749 = vld [vmem:[%s2731 + $0x88] sm:$0xff]
        %v2750 = vld [vmem:[%s2731 + $0x90] sm:$0xff]
        %v2751 = vld [vmem:[%s2731 + $0x98] sm:$0xff]
        %v2752 = vld [vmem:[%s2731 + $0xa0] sm:$0xff]
        %v2753 = vld [vmem:[%s2731 + $0xa8] sm:$0xff]
        %v2754 = vld [vmem:[%s2731 + $0xb0] sm:$0xff]
        %v2755 = vld [vmem:[%s2731 + $0xb8] sm:$0xff]
        %v2756 = vld [vmem:[%s2731 + $0xc0] sm:$0xff]
        %v2757 = vld [vmem:[%s2731 + $0xc8] sm:$0xff]
        %v2758 = vld [vmem:[%s2731 + $0xd0] sm:$0xff]
        %v2759 = vld [vmem:[%s2731 + $0xd8] sm:$0xff]
        %v2760 = vld [vmem:[%s2731 + $0xe0] sm:$0xff]
        %v2761 = vld [vmem:[%s2731 + $0xe8] sm:$0xff]
        %v2762 = vld [vmem:[%s2731 + $0xf0] sm:$0xff]
        %v2763 = vld [vmem:[%s2731 + $0xf8] sm:$0xff]
        %v2764 = vld [vmem:[%s2731 + $0x100] sm:$0xff]
        %v2765 = vld [vmem:[%s2731 + $0x108] sm:$0xff]
        %v2766 = vld [vmem:[%s2731 + $0x110] sm:$0xff]
        %v2767 = vld [vmem:[%s2731 + $0x118] sm:$0xff]
        %v2768 = vld [vmem:[%s2731 + $0x120] sm:$0xff]
        %v2769 = vld [vmem:[%s2731 + $0x128] sm:$0xff]
        %v2770 = vld [vmem:[%s2731 + $0x130] sm:$0xff]
        %v2771 = vld [vmem:[%s2731 + $0x138] sm:$0xff]
        %v2772 = vld [vmem:[%s2731 + $0x140] sm:$0xff]
        %v2773 = vld [vmem:[%s2731 + $0x148] sm:$0xff]
        %v2774 = vld [vmem:[%s2731 + $0x150] sm:$0xff]
        %v2775 = vld [vmem:[%s2731 + $0x158] sm:$0xff]
        %v2776 = vld [vmem:[%s2731 + $0x160] sm:$0xff]
        %v2777 = vld [vmem:[%s2731 + $0x168] sm:$0xff]
        %v2778 = vld [vmem:[%s2731 + $0x170] sm:$0xff]
        %v2779 = vld [vmem:[%s2731 + $0x178] sm:$0xff]
        %v2780 = vld [vmem:[%s2731 + $0x180] sm:$0xff]
        %v2781 = vld [vmem:[%s2731 + $0x188] sm:$0xff]
        %v2782 = vld [vmem:[%s2731 + $0x190] sm:$0xff]
        %v2783 = vld [vmem:[%s2731 + $0x198] sm:$0xff]
        %v2784 = vld [vmem:[%s2731 + $0x1a0] sm:$0xff]
        %v2785 = vld [vmem:[%s2731 + $0x1a8] sm:$0xff]
        %v2786 = vld [vmem:[%s2731 + $0x1b0] sm:$0xff]
        %v2787 = vld [vmem:[%s2731 + $0x1b8] sm:$0xff]
        %v2788 = vld [vmem:[%s2731 + $0x1c0] sm:$0xff]
        %v2789 = vld [vmem:[%s2731 + $0x1c8] sm:$0xff]
        %v2790 = vld [vmem:[%s2731 + $0x1d0] sm:$0xff]
        %v2791 = vld [vmem:[%s2731 + $0x1d8] sm:$0xff]
        %v2792 = vld [vmem:[%s2731 + $0x1e0] sm:$0xff]
        %v2793 = vld [vmem:[%s2731 + $0x1e8] sm:$0xff]
        %v2794 = vld [vmem:[%s2731 + $0x1f0] sm:$0xff]
        %v2795 = vld [vmem:[%s2731 + $0x1f8] sm:$0xff]
        %2796 = vmatprep.subr.mxu0 %v2733
        %2797 = vmatpush1.msra.mxu0 %v2732
        %2798 = vmatprep.subr.mxu0 %v2735
        %2799 = vmatpush1.msra.mxu0 %v2734
        %2800 = vmatprep.subr.mxu0 %v2737
        %2801 = vmatpush1.msra.mxu0 %v2736
        %2802 = vmatprep.subr.mxu0 %v2739
        %2803 = vmatpush1.msra.mxu0 %v2738
        %2804 = vmatprep.subr.mxu0 %v2741
        %2805 = vmatpush1.msra.mxu0 %v2740
        %2806 = vmatprep.subr.mxu0 %v2743
        %2807 = vmatpush1.msra.mxu0 %v2742
        %2808 = vmatprep.subr.mxu0 %v2745
        %2809 = vmatpush1.msra.mxu0 %v2744
        %2810 = vmatprep.subr.mxu0 %v2747
        %2811 = vmatpush1.msra.mxu0 %v2746
        %2812 = vmatprep.subr.mxu0 %v2749
        %2813 = vmatpush1.msra.mxu0 %v2748
        %2814 = vmatprep.subr.mxu0 %v2751
        %2815 = vmatpush1.msra.mxu0 %v2750
        %2816 = vmatprep.subr.mxu0 %v2753
        %2817 = vmatpush1.msra.mxu0 %v2752
        %2818 = vmatprep.subr.mxu0 %v2755
        %2819 = vmatpush1.msra.mxu0 %v2754
        %2820 = vmatprep.subr.mxu0 %v2757
        %2821 = vmatpush1.msra.mxu0 %v2756
        %2822 = vmatprep.subr.mxu0 %v2759
        %2823 = vmatpush1.msra.mxu0 %v2758
        %2824 = vmatprep.subr.mxu0 %v2761
        %2825 = vmatpush1.msra.mxu0 %v2760
        %2826 = vmatprep.subr.mxu0 %v2763
        %2827 = vmatpush1.msra.mxu0 %v2762
        %2828 = vmatprep.subr.mxu0 %v2765
        %2829 = vmatpush1.msra.mxu0 %v2764
        %2830 = vmatprep.subr.mxu0 %v2767
        %2831 = vmatpush1.msra.mxu0 %v2766
        %2832 = vmatprep.subr.mxu0 %v2769
        %2833 = vmatpush1.msra.mxu0 %v2768
        %2834 = vmatprep.subr.mxu0 %v2771
        %2835 = vmatpush1.msra.mxu0 %v2770
        %2836 = vmatprep.subr.mxu0 %v2773
        %2837 = vmatpush1.msra.mxu0 %v2772
        %2838 = vmatprep.subr.mxu0 %v2775
        %2839 = vmatpush1.msra.mxu0 %v2774
        %2840 = vmatprep.subr.mxu0 %v2777
        %2841 = vmatpush1.msra.mxu0 %v2776
        %2842 = vmatprep.subr.mxu0 %v2779
        %2843 = vmatpush1.msra.mxu0 %v2778
        %2844 = vmatprep.subr.mxu0 %v2781
        %2845 = vmatpush1.msra.mxu0 %v2780
        %2846 = vmatprep.subr.mxu0 %v2783
        %2847 = vmatpush1.msra.mxu0 %v2782
        %2848 = vmatprep.subr.mxu0 %v2785
        %2849 = vmatpush1.msra.mxu0 %v2784
        %2850 = vmatprep.subr.mxu0 %v2787
        %2851 = vmatpush1.msra.mxu0 %v2786
        %2852 = vmatprep.subr.mxu0 %v2789
        %2853 = vmatpush1.msra.mxu0 %v2788
        %2854 = vmatprep.subr.mxu0 %v2791
        %2855 = vmatpush1.msra.mxu0 %v2790
        %2856 = vmatprep.subr.mxu0 %v2793
        %2857 = vmatpush1.msra.mxu0 %v2792
        %2858 = vmatprep.subr.mxu0 %v2795
        %2859 = vmatpush1.msra.mxu0 %v2794
        %2860 = vmatprep.mubr.f32.mxu0 %v974
        %2861 = vmatmul.mubr.f32.gmra.mrb[0].mxu0 %v973
        %v2862 = vpop.f32.mrb[0].mxu0
        %v2863 = vadd.f32 0.0, %v2862
        %v2864 = vpop.f32.mrb[0].mxu0
        %v2865 = vadd.f32 0.0, %v2864
        %2866 = vdwg.mxu0
        %s2867 = scalar_lea.vmem %s6, 64
        %v2868 = vld [vmem:[%s2867] sm:$0x3f]
        %v2870 = vsel %vm1249, %v2868, 0
        %v2873 = vsel %vm1253, %v2863, 0
        %v2876 = vsel %vm1253, %v2865, 0
        %2878 = vmatprep.subr.mxu0 %v2876
        %2879 = vmatpush1.msra.mxu0 %v2873
        %2880 = vmatprep.subr.mxu0 0.0
        %2881 = vmatpush1.msra.mxu0 0.0
        %2882 = vmatprep.subr.mxu0 0.0
        %2883 = vmatpush1.msra.mxu0 0.0
        %2884 = vmatprep.subr.mxu0 0.0
        %2885 = vmatpush1.msra.mxu0 0.0
        %2886 = vmatprep.subr.mxu0 0.0
        %2887 = vmatpush1.msra.mxu0 0.0
        %2888 = vmatprep.subr.mxu0 0.0
        %2889 = vmatpush1.msra.mxu0 0.0
        %2890 = vmatprep.subr.mxu0 0.0
        %2891 = vmatpush1.msra.mxu0 0.0
        %2892 = vmatprep.subr.mxu0 0.0
        %2893 = vmatpush1.msra.mxu0 0.0
        %2894 = vmatprep.subr.mxu0 0.0
        %2895 = vmatpush1.msra.mxu0 0.0
        %2896 = vmatprep.subr.mxu0 0.0
        %2897 = vmatpush1.msra.mxu0 0.0
        %2898 = vmatprep.subr.mxu0 0.0
        %2899 = vmatpush1.msra.mxu0 0.0
        %2900 = vmatprep.subr.mxu0 0.0
        %2901 = vmatpush1.msra.mxu0 0.0
        %2902 = vmatprep.subr.mxu0 0.0
        %2903 = vmatpush1.msra.mxu0 0.0
        %2904 = vmatprep.subr.mxu0 0.0
        %2905 = vmatpush1.msra.mxu0 0.0
        %2906 = vmatprep.subr.mxu0 0.0
        %2907 = vmatpush1.msra.mxu0 0.0
        %2908 = vmatprep.subr.mxu0 0.0
        %2909 = vmatpush1.msra.mxu0 0.0
        %2910 = vmatprep.subr.mxu0 0.0
        %2911 = vmatpush1.msra.mxu0 0.0
        %2912 = vmatprep.subr.mxu0 0.0
        %2913 = vmatpush1.msra.mxu0 0.0
        %2914 = vmatprep.subr.mxu0 0.0
        %2915 = vmatpush1.msra.mxu0 0.0
        %2916 = vmatprep.subr.mxu0 0.0
        %2917 = vmatpush1.msra.mxu0 0.0
        %2918 = vmatprep.subr.mxu0 0.0
        %2919 = vmatpush1.msra.mxu0 0.0
        %2920 = vmatprep.subr.mxu0 0.0
        %2921 = vmatpush1.msra.mxu0 0.0
        %2922 = vmatprep.subr.mxu0 0.0
        %2923 = vmatpush1.msra.mxu0 0.0
        %2924 = vmatprep.subr.mxu0 0.0
        %2925 = vmatpush1.msra.mxu0 0.0
        %2926 = vmatprep.subr.mxu0 0.0
        %2927 = vmatpush1.msra.mxu0 0.0
        %2928 = vmatprep.subr.mxu0 0.0
        %2929 = vmatpush1.msra.mxu0 0.0
        %2930 = vmatprep.subr.mxu0 0.0
        %2931 = vmatpush1.msra.mxu0 0.0
        %2932 = vmatprep.subr.mxu0 0.0
        %2933 = vmatpush1.msra.mxu0 0.0
        %2934 = vmatprep.subr.mxu0 0.0
        %2935 = vmatpush1.msra.mxu0 0.0
        %2936 = vmatprep.subr.mxu0 0.0
        %2937 = vmatpush1.msra.mxu0 0.0
        %2938 = vmatprep.subr.mxu0 0.0
        %2939 = vmatpush1.msra.mxu0 0.0
        %2940 = vmatprep.subr.mxu0 0.0
        %2941 = vmatpush1.msra.mxu0 0.0
        %2942 = vmatprep.mubr.f32.mxu0 0.0
        %2943 = vmatmul.mubr.f32.gmra.mrb[0].mxu0 %v2870
        %v2944 = vpop.f32.mrb[0].mxu0
        %v2945 = vadd.f32 0.0, %v2944
        %v2946 = vpop.f32.mrb[0].mxu0
        %v2947 = vadd.f32 0.0, %v2946
        %2948 = vdwg.mxu0
        %v2949 = vadd.f32 %v2729, %v2945
        %v2950 = vadd.f32 %v2730, %v2947
        %v2951 = vld [vmem:[%s7] sm:$0x3f]
        %2953 = vset.pattern.permute.xlu0 0
        %2954 = vperm.xlu0 %2953, %v2951
        %v2955 = vpop.permute.xlu0 %2954
        %v2957 = vadd.f32 %v2949, %v2955
        %v2958 = vadd.f32 %v2950, %v2955
        %v2959 = vxor.u32 %v2957, 2147483648
        %v2960 = vxor.u32 %v2958, 2147483648
        %v2961 = vmul.f32 %v2959, 1.442695
        %v2962 = vpow.pop %v2961
        %v2963 = vmul.f32 %v2960, 1.442695
        %v2964 = vpow.pop %v2963
        %v2965 = vadd.f32 %v2962, 1.0
        %v2966 = vadd.f32 %v2964, 1.0
        %v2967 = vrcp.pop %v2965
        %v2968 = vmul.f32 1.0, %v2967
        %v2969 = vrcp.pop %v2966
        %v2970 = vmul.f32 1.0, %v2969
        %v2971 = vmul.f32 %v2957, %v2968
        %v2972 = vmul.f32 %v2958, %v2970
        %2973 = vmatprep.subr.mxu0 %v976
        %2974 = vmatpush1.msra.mxu0 %v975
        %2975 = vmatprep.subr.mxu0 %v978
        %2976 = vmatpush1.msra.mxu0 %v977
        %2977 = vmatprep.subr.mxu0 %v980
        %2978 = vmatpush1.msra.mxu0 %v979
        %2979 = vmatprep.subr.mxu0 %v982
        %2980 = vmatpush1.msra.mxu0 %v981
        %2981 = vmatprep.subr.mxu0 %v984
        %2982 = vmatpush1.msra.mxu0 %v983
        %2983 = vmatprep.subr.mxu0 %v986
        %2984 = vmatpush1.msra.mxu0 %v985
        %2985 = vmatprep.subr.mxu0 %v988
        %2986 = vmatpush1.msra.mxu0 %v987
        %2987 = vmatprep.subr.mxu0 %v990
        %2988 = vmatpush1.msra.mxu0 %v989
        %2989 = vmatprep.subr.mxu0 %v992
        %2990 = vmatpush1.msra.mxu0 %v991
        %2991 = vmatprep.subr.mxu0 %v994
        %2992 = vmatpush1.msra.mxu0 %v993
        %2993 = vmatprep.subr.mxu0 %v996
        %2994 = vmatpush1.msra.mxu0 %v995
        %2995 = vmatprep.subr.mxu0 %v998
        %2996 = vmatpush1.msra.mxu0 %v997
        %2997 = vmatprep.subr.mxu0 %v1000
        %2998 = vmatpush1.msra.mxu0 %v999
        %2999 = vmatprep.subr.mxu0 %v1002
        %3000 = vmatpush1.msra.mxu0 %v1001
        %3001 = vmatprep.subr.mxu0 %v1004
        %3002 = vmatpush1.msra.mxu0 %v1003
        %3003 = vmatprep.subr.mxu0 %v1006
        %3004 = vmatpush1.msra.mxu0 %v1005
        %3005 = vmatprep.subr.mxu0 %v1008
        %3006 = vmatpush1.msra.mxu0 %v1007
        %3007 = vmatprep.subr.mxu0 %v1010
        %3008 = vmatpush1.msra.mxu0 %v1009
        %3009 = vmatprep.subr.mxu0 %v1012
        %3010 = vmatpush1.msra.mxu0 %v1011
        %3011 = vmatprep.subr.mxu0 %v1014
        %3012 = vmatpush1.msra.mxu0 %v1013
        %3013 = vmatprep.subr.mxu0 %v1016
        %3014 = vmatpush1.msra.mxu0 %v1015
        %3015 = vmatprep.subr.mxu0 %v1018
        %3016 = vmatpush1.msra.mxu0 %v1017
        %3017 = vmatprep.subr.mxu0 %v1020
        %3018 = vmatpush1.msra.mxu0 %v1019
        %3019 = vmatprep.subr.mxu0 %v1022
        %3020 = vmatpush1.msra.mxu0 %v1021
        %3021 = vmatprep.subr.mxu0 %v1024
        %3022 = vmatpush1.msra.mxu0 %v1023
        %3023 = vmatprep.subr.mxu0 %v1026
        %3024 = vmatpush1.msra.mxu0 %v1025
        %3025 = vmatprep.subr.mxu0 %v1028
        %3026 = vmatpush1.msra.mxu0 %v1027
        %3027 = vmatprep.subr.mxu0 %v1030
        %3028 = vmatpush1.msra.mxu0 %v1029
        %3029 = vmatprep.subr.mxu0 %v1032
        %3030 = vmatpush1.msra.mxu0 %v1031
        %3031 = vmatprep.subr.mxu0 %v1034
        %3032 = vmatpush1.msra.mxu0 %v1033
        %3033 = vmatprep.subr.mxu0 %v1036
        %3034 = vmatpush1.msra.mxu0 %v1035
        %3035 = vmatprep.subr.mxu0 %v1038
        %3036 = vmatpush1.msra.mxu0 %v1037
        %3037 = vmatprep.mubr.f32.mxu0 %v2972
        %3038 = vmatmul.mubr.f32.gmra.mrb[0].mxu0 %v2971
        %v3039 = vpop.f32.mrb[0].mxu0
        %v3040 = vadd.f32 0.0, %v3039
        %v3041 = vpop.f32.mrb[0].mxu0
        %v3042 = vadd.f32 0.0, %v3041
        %3043 = vdwg.mxu0
        %v3044 = vld [vmem:[%s8] sm:$0x7]
        %3045 = vmatprep.subr.mxu0 %v1113
        %3046 = vmatpush1.msra.mxu0 %v1112
        %3047 = vmatprep.subr.mxu0 %v1115
        %3048 = vmatpush1.msra.mxu0 %v1114
        %3049 = vmatprep.subr.mxu0 %v1117
        %3050 = vmatpush1.msra.mxu0 %v1116
        %3051 = vmatprep.subr.mxu0 %v1119
        %3052 = vmatpush1.msra.mxu0 %v1118
        %3053 = vmatprep.subr.mxu0 %v1121
        %3054 = vmatpush1.msra.mxu0 %v1120
        %3055 = vmatprep.subr.mxu0 %v1123
        %3056 = vmatpush1.msra.mxu0 %v1122
        %3057 = vmatprep.subr.mxu0 %v1125
        %3058 = vmatpush1.msra.mxu0 %v1124
        %3059 = vmatprep.subr.mxu0 %v1127
        %3060 = vmatpush1.msra.mxu0 %v1126
        %3061 = vmatprep.subr.mxu0 %v1129
        %3062 = vmatpush1.msra.mxu0 %v1128
        %3063 = vmatprep.subr.mxu0 %v1131
        %3064 = vmatpush1.msra.mxu0 %v1130
        %3065 = vmatprep.subr.mxu0 %v1133
        %3066 = vmatpush1.msra.mxu0 %v1132
        %3067 = vmatprep.subr.mxu0 %v1135
        %3068 = vmatpush1.msra.mxu0 %v1134
        %3069 = vmatprep.subr.mxu0 %v1137
        %3070 = vmatpush1.msra.mxu0 %v1136
        %3071 = vmatprep.subr.mxu0 %v1139
        %3072 = vmatpush1.msra.mxu0 %v1138
        %3073 = vmatprep.subr.mxu0 %v1141
        %3074 = vmatpush1.msra.mxu0 %v1140
        %3075 = vmatprep.subr.mxu0 %v1143
        %3076 = vmatpush1.msra.mxu0 %v1142
        %3077 = vmatprep.subr.mxu0 %v1145
        %3078 = vmatpush1.msra.mxu0 %v1144
        %3079 = vmatprep.subr.mxu0 %v1147
        %3080 = vmatpush1.msra.mxu0 %v1146
        %3081 = vmatprep.subr.mxu0 %v1149
        %3082 = vmatpush1.msra.mxu0 %v1148
        %3083 = vmatprep.subr.mxu0 %v1151
        %3084 = vmatpush1.msra.mxu0 %v1150
        %3085 = vmatprep.subr.mxu0 %v1153
        %3086 = vmatpush1.msra.mxu0 %v1152
        %3087 = vmatprep.subr.mxu0 %v1155
        %3088 = vmatpush1.msra.mxu0 %v1154
        %3089 = vmatprep.subr.mxu0 %v1157
        %3090 = vmatpush1.msra.mxu0 %v1156
        %3091 = vmatprep.subr.mxu0 %v1159
        %3092 = vmatpush1.msra.mxu0 %v1158
        %3093 = vmatprep.subr.mxu0 %v1161
        %3094 = vmatpush1.msra.mxu0 %v1160
        %3095 = vmatprep.subr.mxu0 %v1163
        %3096 = vmatpush1.msra.mxu0 %v1162
        %3097 = vmatprep.subr.mxu0 %v1165
        %3098 = vmatpush1.msra.mxu0 %v1164
        %3099 = vmatprep.subr.mxu0 %v1167
        %3100 = vmatpush1.msra.mxu0 %v1166
        %3101 = vmatprep.subr.mxu0 %v1169
        %3102 = vmatpush1.msra.mxu0 %v1168
        %3103 = vmatprep.subr.mxu0 %v1171
        %3104 = vmatpush1.msra.mxu0 %v1170
        %3105 = vmatprep.subr.mxu0 %v1173
        %3106 = vmatpush1.msra.mxu0 %v1172
        %3107 = vmatprep.subr.mxu0 %v1175
        %3108 = vmatpush1.msra.mxu0 %v1174
        %3109 = vmatprep.mubr.f32.mxu0 %v2972
        %3110 = vmatmul.mubr.f32.gmra.mrb[0].mxu0 %v2971
        %v3111 = vpop.f32.mrb[0].mxu0
        %v3112 = vadd.f32 0.0, %v3111
        %v3113 = vpop.f32.mrb[0].mxu0
        %v3114 = vadd.f32 0.0, %v3113
        %3115 = vdwg.mxu0
        %s3116 = scalar_lea.vmem %s8, 4
        %v3117 = vld [vmem:[%s3116] sm:$0x7]
        %v3119 = vsel %vm1249, %v3117, 0
        %v3122 = vsel %vm1253, %v3112, 0
        %v3125 = vsel %vm1253, %v3114, 0
        %3127 = vmatprep.subr.mxu0 %v3125
        %3128 = vmatpush1.msra.mxu0 %v3122
        %3129 = vmatprep.subr.mxu0 0.0
        %3130 = vmatpush1.msra.mxu0 0.0
        %3131 = vmatprep.subr.mxu0 0.0
        %3132 = vmatpush1.msra.mxu0 0.0
        %3133 = vmatprep.subr.mxu0 0.0
        %3134 = vmatpush1.msra.mxu0 0.0
        %3135 = vmatprep.subr.mxu0 0.0
        %3136 = vmatpush1.msra.mxu0 0.0
        %3137 = vmatprep.subr.mxu0 0.0
        %3138 = vmatpush1.msra.mxu0 0.0
        %3139 = vmatprep.subr.mxu0 0.0
        %3140 = vmatpush1.msra.mxu0 0.0
        %3141 = vmatprep.subr.mxu0 0.0
        %3142 = vmatpush1.msra.mxu0 0.0
        %3143 = vmatprep.subr.mxu0 0.0
        %3144 = vmatpush1.msra.mxu0 0.0
        %3145 = vmatprep.subr.mxu0 0.0
        %3146 = vmatpush1.msra.mxu0 0.0
        %3147 = vmatprep.subr.mxu0 0.0
        %3148 = vmatpush1.msra.mxu0 0.0
        %3149 = vmatprep.subr.mxu0 0.0
        %3150 = vmatpush1.msra.mxu0 0.0
        %3151 = vmatprep.subr.mxu0 0.0
        %3152 = vmatpush1.msra.mxu0 0.0
        %3153 = vmatprep.subr.mxu0 0.0
        %3154 = vmatpush1.msra.mxu0 0.0
        %3155 = vmatprep.subr.mxu0 0.0
        %3156 = vmatpush1.msra.mxu0 0.0
        %3157 = vmatprep.subr.mxu0 0.0
        %3158 = vmatpush1.msra.mxu0 0.0
        %3159 = vmatprep.subr.mxu0 0.0
        %3160 = vmatpush1.msra.mxu0 0.0
        %3161 = vmatprep.subr.mxu0 0.0
        %3162 = vmatpush1.msra.mxu0 0.0
        %3163 = vmatprep.subr.mxu0 0.0
        %3164 = vmatpush1.msra.mxu0 0.0
        %3165 = vmatprep.subr.mxu0 0.0
        %3166 = vmatpush1.msra.mxu0 0.0
        %3167 = vmatprep.subr.mxu0 0.0
        %3168 = vmatpush1.msra.mxu0 0.0
        %3169 = vmatprep.subr.mxu0 0.0
        %3170 = vmatpush1.msra.mxu0 0.0
        %3171 = vmatprep.subr.mxu0 0.0
        %3172 = vmatpush1.msra.mxu0 0.0
        %3173 = vmatprep.subr.mxu0 0.0
        %3174 = vmatpush1.msra.mxu0 0.0
        %3175 = vmatprep.subr.mxu0 0.0
        %3176 = vmatpush1.msra.mxu0 0.0
        %3177 = vmatprep.subr.mxu0 0.0
        %3178 = vmatpush1.msra.mxu0 0.0
        %3179 = vmatprep.subr.mxu0 0.0
        %3180 = vmatpush1.msra.mxu0 0.0
        %3181 = vmatprep.subr.mxu0 0.0
        %3182 = vmatpush1.msra.mxu0 0.0
        %3183 = vmatprep.subr.mxu0 0.0
        %3184 = vmatpush1.msra.mxu0 0.0
        %3185 = vmatprep.subr.mxu0 0.0
        %3186 = vmatpush1.msra.mxu0 0.0
        %3187 = vmatprep.subr.mxu0 0.0
        %3188 = vmatpush1.msra.mxu0 0.0
        %3189 = vmatprep.subr.mxu0 0.0
        %3190 = vmatpush1.msra.mxu0 0.0
        %3191 = vmatprep.mubr.f32.mxu0 0.0
        %3192 = vmatmul.mubr.f32.gmra.mrb[0].mxu0 %v3119
        %v3193 = vpop.f32.mrb[0].mxu0
        %v3194 = vadd.f32 0.0, %v3193
        %v3195 = vpop.f32.mrb[0].mxu0
        %v3196 = vadd.f32 0.0, %v3195
        %3197 = vdwg.mxu0
        %v3199 = vsel %vm1249, %v3044, 0
        %v3202 = vsel %vm1253, %v3040, 0
        %v3205 = vsel %vm1253, %v3042, 0
        %3207 = vmatprep.subr.mxu0 %v3205
        %3208 = vmatpush1.msra.mxu0 %v3202
        %3209 = vmatprep.subr.mxu0 0.0
        %3210 = vmatpush1.msra.mxu0 0.0
        %3211 = vmatprep.subr.mxu0 0.0
        %3212 = vmatpush1.msra.mxu0 0.0
        %3213 = vmatprep.subr.mxu0 0.0
        %3214 = vmatpush1.msra.mxu0 0.0
        %3215 = vmatprep.subr.mxu0 0.0
        %3216 = vmatpush1.msra.mxu0 0.0
        %3217 = vmatprep.subr.mxu0 0.0
        %3218 = vmatpush1.msra.mxu0 0.0
        %3219 = vmatprep.subr.mxu0 0.0
        %3220 = vmatpush1.msra.mxu0 0.0
        %3221 = vmatprep.subr.mxu0 0.0
        %3222 = vmatpush1.msra.mxu0 0.0
        %3223 = vmatprep.subr.mxu0 0.0
        %3224 = vmatpush1.msra.mxu0 0.0
        %3225 = vmatprep.subr.mxu0 0.0
        %3226 = vmatpush1.msra.mxu0 0.0
        %3227 = vmatprep.subr.mxu0 0.0
        %3228 = vmatpush1.msra.mxu0 0.0
        %3229 = vmatprep.subr.mxu0 0.0
        %3230 = vmatpush1.msra.mxu0 0.0
        %3231 = vmatprep.subr.mxu0 0.0
        %3232 = vmatpush1.msra.mxu0 0.0
        %3233 = vmatprep.subr.mxu0 0.0
        %3234 = vmatpush1.msra.mxu0 0.0
        %3235 = vmatprep.subr.mxu0 0.0
        %3236 = vmatpush1.msra.mxu0 0.0
        %3237 = vmatprep.subr.mxu0 0.0
        %3238 = vmatpush1.msra.mxu0 0.0
        %3239 = vmatprep.subr.mxu0 0.0
        %3240 = vmatpush1.msra.mxu0 0.0
        %3241 = vmatprep.subr.mxu0 0.0
        %3242 = vmatpush1.msra.mxu0 0.0
        %3243 = vmatprep.subr.mxu0 0.0
        %3244 = vmatpush1.msra.mxu0 0.0
        %3245 = vmatprep.subr.mxu0 0.0
        %3246 = vmatpush1.msra.mxu0 0.0
        %3247 = vmatprep.subr.mxu0 0.0
        %3248 = vmatpush1.msra.mxu0 0.0
        %3249 = vmatprep.subr.mxu0 0.0
        %3250 = vmatpush1.msra.mxu0 0.0
        %3251 = vmatprep.subr.mxu0 0.0
        %3252 = vmatpush1.msra.mxu0 0.0
        %3253 = vmatprep.subr.mxu0 0.0
        %3254 = vmatpush1.msra.mxu0 0.0
        %3255 = vmatprep.subr.mxu0 0.0
        %3256 = vmatpush1.msra.mxu0 0.0
        %3257 = vmatprep.subr.mxu0 0.0
        %3258 = vmatpush1.msra.mxu0 0.0
        %3259 = vmatprep.subr.mxu0 0.0
        %3260 = vmatpush1.msra.mxu0 0.0
        %3261 = vmatprep.subr.mxu0 0.0
        %3262 = vmatpush1.msra.mxu0 0.0
        %3263 = vmatprep.subr.mxu0 0.0
        %3264 = vmatpush1.msra.mxu0 0.0
        %3265 = vmatprep.subr.mxu0 0.0
        %3266 = vmatpush1.msra.mxu0 0.0
        %3267 = vmatprep.subr.mxu0 0.0
        %3268 = vmatpush1.msra.mxu0 0.0
        %3269 = vmatprep.subr.mxu0 0.0
        %3270 = vmatpush1.msra.mxu0 0.0
        %3271 = vmatprep.mubr.f32.mxu0 0.0
        %3272 = vmatmul.mubr.f32.gmra.mrb[0].mxu0 %v3199
        %v3273 = vpop.f32.mrb[0].mxu0
        %v3274 = vadd.f32 %v3194, %v3273
        %v3275 = vpop.f32.mrb[0].mxu0
        %v3276 = vadd.f32 %v3196, %v3275
        %3277 = vdwg.mxu0
        %3278 = vmatprep.subr.mxu0 %v1413
        %3279 = vmatpush1.msra.mxu0 %v1412
        %3280 = vmatprep.subr.mxu0 %v1415
        %3281 = vmatpush1.msra.mxu0 %v1414
        %3282 = vmatprep.subr.mxu0 %v1417
        %3283 = vmatpush1.msra.mxu0 %v1416
        %3284 = vmatprep.subr.mxu0 %v1419
        %3285 = vmatpush1.msra.mxu0 %v1418
        %3286 = vmatprep.subr.mxu0 %v1421
        %3287 = vmatpush1.msra.mxu0 %v1420
        %3288 = vmatprep.subr.mxu0 %v1423
        %3289 = vmatpush1.msra.mxu0 %v1422
        %3290 = vmatprep.subr.mxu0 %v1425
        %3291 = vmatpush1.msra.mxu0 %v1424
        %3292 = vmatprep.subr.mxu0 %v1427
        %3293 = vmatpush1.msra.mxu0 %v1426
        %3294 = vmatprep.subr.mxu0 %v1429
        %3295 = vmatpush1.msra.mxu0 %v1428
        %3296 = vmatprep.subr.mxu0 %v1431
        %3297 = vmatpush1.msra.mxu0 %v1430
        %3298 = vmatprep.subr.mxu0 %v1433
        %3299 = vmatpush1.msra.mxu0 %v1432
        %3300 = vmatprep.subr.mxu0 %v1435
        %3301 = vmatpush1.msra.mxu0 %v1434
        %3302 = vmatprep.subr.mxu0 %v1437
        %3303 = vmatpush1.msra.mxu0 %v1436
        %3304 = vmatprep.subr.mxu0 %v1439
        %3305 = vmatpush1.msra.mxu0 %v1438
        %3306 = vmatprep.subr.mxu0 %v1441
        %3307 = vmatpush1.msra.mxu0 %v1440
        %3308 = vmatprep.subr.mxu0 %v1443
        %3309 = vmatpush1.msra.mxu0 %v1442
        %3310 = vmatprep.subr.mxu0 %v1445
        %3311 = vmatpush1.msra.mxu0 %v1444
        %3312 = vmatprep.subr.mxu0 %v1447
        %3313 = vmatpush1.msra.mxu0 %v1446
        %3314 = vmatprep.subr.mxu0 %v1449
        %3315 = vmatpush1.msra.mxu0 %v1448
        %3316 = vmatprep.subr.mxu0 %v1451
        %3317 = vmatpush1.msra.mxu0 %v1450
        %3318 = vmatprep.subr.mxu0 %v1453
        %3319 = vmatpush1.msra.mxu0 %v1452
        %3320 = vmatprep.subr.mxu0 %v1455
        %3321 = vmatpush1.msra.mxu0 %v1454
        %3322 = vmatprep.subr.mxu0 %v1457
        %3323 = vmatpush1.msra.mxu0 %v1456
        %3324 = vmatprep.subr.mxu0 %v1459
        %3325 = vmatpush1.msra.mxu0 %v1458
        %3326 = vmatprep.subr.mxu0 %v1461
        %3327 = vmatpush1.msra.mxu0 %v1460
        %3328 = vmatprep.subr.mxu0 %v1463
        %3329 = vmatpush1.msra.mxu0 %v1462
        %3330 = vmatprep.subr.mxu0 %v1465
        %3331 = vmatpush1.msra.mxu0 %v1464
        %3332 = vmatprep.subr.mxu0 %v1467
        %3333 = vmatpush1.msra.mxu0 %v1466
        %3334 = vmatprep.subr.mxu0 %v1469
        %3335 = vmatpush1.msra.mxu0 %v1468
        %3336 = vmatprep.subr.mxu0 %v1471
        %3337 = vmatpush1.msra.mxu0 %v1470
        %3338 = vmatprep.subr.mxu0 %v1473
        %3339 = vmatpush1.msra.mxu0 %v1472
        %3340 = vmatprep.subr.mxu0 %v1475
        %3341 = vmatpush1.msra.mxu0 %v1474
        %3342 = vmatprep.mubr.f32.mxu0 %v2972
        %3343 = vmatmul.mubr.f32.gmra.mrb[0].mxu0 %v2971
        %v3344 = vpop.f32.mrb[0].mxu0
        %v3345 = vadd.f32 0.0, %v3344
        %v3346 = vpop.f32.mrb[0].mxu0
        %v3347 = vadd.f32 0.0, %v3346
        %3348 = vdwg.mxu0
        %s3349 = scalar_lea.vmem %s8, 8
        %v3350 = vld [vmem:[%s3349] sm:$0x7]
        %v3352 = vsel %vm1249, %v3350, 0
        %v3355 = vsel %vm1253, %v3345, 0
        %v3358 = vsel %vm1253, %v3347, 0
        %3360 = vmatprep.subr.mxu0 %v3358
        %3361 = vmatpush1.msra.mxu0 %v3355
        %3362 = vmatprep.subr.mxu0 0.0
        %3363 = vmatpush1.msra.mxu0 0.0
        %3364 = vmatprep.subr.mxu0 0.0
        %3365 = vmatpush1.msra.mxu0 0.0
        %3366 = vmatprep.subr.mxu0 0.0
        %3367 = vmatpush1.msra.mxu0 0.0
        %3368 = vmatprep.subr.mxu0 0.0
        %3369 = vmatpush1.msra.mxu0 0.0
        %3370 = vmatprep.subr.mxu0 0.0
        %3371 = vmatpush1.msra.mxu0 0.0
        %3372 = vmatprep.subr.mxu0 0.0
        %3373 = vmatpush1.msra.mxu0 0.0
        %3374 = vmatprep.subr.mxu0 0.0
        %3375 = vmatpush1.msra.mxu0 0.0
        %3376 = vmatprep.subr.mxu0 0.0
        %3377 = vmatpush1.msra.mxu0 0.0
        %3378 = vmatprep.subr.mxu0 0.0
        %3379 = vmatpush1.msra.mxu0 0.0
        %3380 = vmatprep.subr.mxu0 0.0
        %3381 = vmatpush1.msra.mxu0 0.0
        %3382 = vmatprep.subr.mxu0 0.0
        %3383 = vmatpush1.msra.mxu0 0.0
        %3384 = vmatprep.subr.mxu0 0.0
        %3385 = vmatpush1.msra.mxu0 0.0
        %3386 = vmatprep.subr.mxu0 0.0
        %3387 = vmatpush1.msra.mxu0 0.0
        %3388 = vmatprep.subr.mxu0 0.0
        %3389 = vmatpush1.msra.mxu0 0.0
        %3390 = vmatprep.subr.mxu0 0.0
        %3391 = vmatpush1.msra.mxu0 0.0
        %3392 = vmatprep.subr.mxu0 0.0
        %3393 = vmatpush1.msra.mxu0 0.0
        %3394 = vmatprep.subr.mxu0 0.0
        %3395 = vmatpush1.msra.mxu0 0.0
        %3396 = vmatprep.subr.mxu0 0.0
        %3397 = vmatpush1.msra.mxu0 0.0
        %3398 = vmatprep.subr.mxu0 0.0
        %3399 = vmatpush1.msra.mxu0 0.0
        %3400 = vmatprep.subr.mxu0 0.0
        %3401 = vmatpush1.msra.mxu0 0.0
        %3402 = vmatprep.subr.mxu0 0.0
        %3403 = vmatpush1.msra.mxu0 0.0
        %3404 = vmatprep.subr.mxu0 0.0
        %3405 = vmatpush1.msra.mxu0 0.0
        %3406 = vmatprep.subr.mxu0 0.0
        %3407 = vmatpush1.msra.mxu0 0.0
        %3408 = vmatprep.subr.mxu0 0.0
        %3409 = vmatpush1.msra.mxu0 0.0
        %3410 = vmatprep.subr.mxu0 0.0
        %3411 = vmatpush1.msra.mxu0 0.0
        %3412 = vmatprep.subr.mxu0 0.0
        %3413 = vmatpush1.msra.mxu0 0.0
        %3414 = vmatprep.subr.mxu0 0.0
        %3415 = vmatpush1.msra.mxu0 0.0
        %3416 = vmatprep.subr.mxu0 0.0
        %3417 = vmatpush1.msra.mxu0 0.0
        %3418 = vmatprep.subr.mxu0 0.0
        %3419 = vmatpush1.msra.mxu0 0.0
        %3420 = vmatprep.subr.mxu0 0.0
        %3421 = vmatpush1.msra.mxu0 0.0
        %3422 = vmatprep.subr.mxu0 0.0
        %3423 = vmatpush1.msra.mxu0 0.0
        %3424 = vmatprep.mubr.f32.mxu0 0.0
        %3425 = vmatmul.mubr.f32.gmra.mrb[0].mxu0 %v3352
        %v3426 = vpop.f32.mrb[0].mxu0
        %v3427 = vadd.f32 0.0, %v3426
        %v3428 = vpop.f32.mrb[0].mxu0
        %v3429 = vadd.f32 0.0, %v3428
        %3430 = vdwg.mxu0
        %v3431 = vadd.f32 %v3274, %v3427
        %v3432 = vadd.f32 %v3276, %v3429
        %3433 = vmatprep.subr.mxu0 %v1633
        %3434 = vmatpush1.msra.mxu0 %v1632
        %3435 = vmatprep.subr.mxu0 %v1635
        %3436 = vmatpush1.msra.mxu0 %v1634
        %3437 = vmatprep.subr.mxu0 %v1637
        %3438 = vmatpush1.msra.mxu0 %v1636
        %3439 = vmatprep.subr.mxu0 %v1639
        %3440 = vmatpush1.msra.mxu0 %v1638
        %3441 = vmatprep.subr.mxu0 %v1641
        %3442 = vmatpush1.msra.mxu0 %v1640
        %3443 = vmatprep.subr.mxu0 %v1643
        %3444 = vmatpush1.msra.mxu0 %v1642
        %3445 = vmatprep.subr.mxu0 %v1645
        %3446 = vmatpush1.msra.mxu0 %v1644
        %3447 = vmatprep.subr.mxu0 %v1647
        %3448 = vmatpush1.msra.mxu0 %v1646
        %3449 = vmatprep.subr.mxu0 %v1649
        %3450 = vmatpush1.msra.mxu0 %v1648
        %3451 = vmatprep.subr.mxu0 %v1651
        %3452 = vmatpush1.msra.mxu0 %v1650
        %3453 = vmatprep.subr.mxu0 %v1653
        %3454 = vmatpush1.msra.mxu0 %v1652
        %3455 = vmatprep.subr.mxu0 %v1655
        %3456 = vmatpush1.msra.mxu0 %v1654
        %3457 = vmatprep.subr.mxu0 %v1657
        %3458 = vmatpush1.msra.mxu0 %v1656
        %3459 = vmatprep.subr.mxu0 %v1659
        %3460 = vmatpush1.msra.mxu0 %v1658
        %3461 = vmatprep.subr.mxu0 %v1661
        %3462 = vmatpush1.msra.mxu0 %v1660
        %3463 = vmatprep.subr.mxu0 %v1663
        %3464 = vmatpush1.msra.mxu0 %v1662
        %3465 = vmatprep.subr.mxu0 %v1665
        %3466 = vmatpush1.msra.mxu0 %v1664
        %3467 = vmatprep.subr.mxu0 %v1667
        %3468 = vmatpush1.msra.mxu0 %v1666
        %3469 = vmatprep.subr.mxu0 %v1669
        %3470 = vmatpush1.msra.mxu0 %v1668
        %3471 = vmatprep.subr.mxu0 %v1671
        %3472 = vmatpush1.msra.mxu0 %v1670
        %3473 = vmatprep.subr.mxu0 %v1673
        %3474 = vmatpush1.msra.mxu0 %v1672
        %3475 = vmatprep.subr.mxu0 %v1675
        %3476 = vmatpush1.msra.mxu0 %v1674
        %3477 = vmatprep.subr.mxu0 %v1677
        %3478 = vmatpush1.msra.mxu0 %v1676
        %3479 = vmatprep.subr.mxu0 %v1679
        %3480 = vmatpush1.msra.mxu0 %v1678
        %3481 = vmatprep.subr.mxu0 %v1681
        %3482 = vmatpush1.msra.mxu0 %v1680
        %3483 = vmatprep.subr.mxu0 %v1683
        %3484 = vmatpush1.msra.mxu0 %v1682
        %3485 = vmatprep.subr.mxu0 %v1685
        %3486 = vmatpush1.msra.mxu0 %v1684
        %3487 = vmatprep.subr.mxu0 %v1687
        %3488 = vmatpush1.msra.mxu0 %v1686
        %3489 = vmatprep.subr.mxu0 %v1689
        %3490 = vmatpush1.msra.mxu0 %v1688
        %3491 = vmatprep.subr.mxu0 %v1691
        %3492 = vmatpush1.msra.mxu0 %v1690
        %3493 = vmatprep.subr.mxu0 %v1693
        %3494 = vmatpush1.msra.mxu0 %v1692
        %3495 = vmatprep.subr.mxu0 %v1695
        %3496 = vmatpush1.msra.mxu0 %v1694
        %3497 = vmatprep.mubr.f32.mxu0 %v2972
        %3498 = vmatmul.mubr.f32.gmra.mrb[0].mxu0 %v2971
        %v3499 = vpop.f32.mrb[0].mxu0
        %v3500 = vadd.f32 0.0, %v3499
        %v3501 = vpop.f32.mrb[0].mxu0
        %v3502 = vadd.f32 0.0, %v3501
        %3503 = vdwg.mxu0
        %s3504 = scalar_lea.vmem %s8, 12
        %v3505 = vld [vmem:[%s3504] sm:$0x7]
        %v3507 = vsel %vm1249, %v3505, 0
        %v3510 = vsel %vm1253, %v3500, 0
        %v3513 = vsel %vm1253, %v3502, 0
        %3515 = vmatprep.subr.mxu0 %v3513
        %3516 = vmatpush1.msra.mxu0 %v3510
        %3517 = vmatprep.subr.mxu0 0.0
        %3518 = vmatpush1.msra.mxu0 0.0
        %3519 = vmatprep.subr.mxu0 0.0
        %3520 = vmatpush1.msra.mxu0 0.0
        %3521 = vmatprep.subr.mxu0 0.0
        %3522 = vmatpush1.msra.mxu0 0.0
        %3523 = vmatprep.subr.mxu0 0.0
        %3524 = vmatpush1.msra.mxu0 0.0
        %3525 = vmatprep.subr.mxu0 0.0
        %3526 = vmatpush1.msra.mxu0 0.0
        %3527 = vmatprep.subr.mxu0 0.0
        %3528 = vmatpush1.msra.mxu0 0.0
        %3529 = vmatprep.subr.mxu0 0.0
        %3530 = vmatpush1.msra.mxu0 0.0
        %3531 = vmatprep.subr.mxu0 0.0
        %3532 = vmatpush1.msra.mxu0 0.0
        %3533 = vmatprep.subr.mxu0 0.0
        %3534 = vmatpush1.msra.mxu0 0.0
        %3535 = vmatprep.subr.mxu0 0.0
        %3536 = vmatpush1.msra.mxu0 0.0
        %3537 = vmatprep.subr.mxu0 0.0
        %3538 = vmatpush1.msra.mxu0 0.0
        %3539 = vmatprep.subr.mxu0 0.0
        %3540 = vmatpush1.msra.mxu0 0.0
        %3541 = vmatprep.subr.mxu0 0.0
        %3542 = vmatpush1.msra.mxu0 0.0
        %3543 = vmatprep.subr.mxu0 0.0
        %3544 = vmatpush1.msra.mxu0 0.0
        %3545 = vmatprep.subr.mxu0 0.0
        %3546 = vmatpush1.msra.mxu0 0.0
        %3547 = vmatprep.subr.mxu0 0.0
        %3548 = vmatpush1.msra.mxu0 0.0
        %3549 = vmatprep.subr.mxu0 0.0
        %3550 = vmatpush1.msra.mxu0 0.0
        %3551 = vmatprep.subr.mxu0 0.0
        %3552 = vmatpush1.msra.mxu0 0.0
        %3553 = vmatprep.subr.mxu0 0.0
        %3554 = vmatpush1.msra.mxu0 0.0
        %3555 = vmatprep.subr.mxu0 0.0
        %3556 = vmatpush1.msra.mxu0 0.0
        %3557 = vmatprep.subr.mxu0 0.0
        %3558 = vmatpush1.msra.mxu0 0.0
        %3559 = vmatprep.subr.mxu0 0.0
        %3560 = vmatpush1.msra.mxu0 0.0
        %3561 = vmatprep.subr.mxu0 0.0
        %3562 = vmatpush1.msra.mxu0 0.0
        %3563 = vmatprep.subr.mxu0 0.0
        %3564 = vmatpush1.msra.mxu0 0.0
        %3565 = vmatprep.subr.mxu0 0.0
        %3566 = vmatpush1.msra.mxu0 0.0
        %3567 = vmatprep.subr.mxu0 0.0
        %3568 = vmatpush1.msra.mxu0 0.0
        %3569 = vmatprep.subr.mxu0 0.0
        %3570 = vmatpush1.msra.mxu0 0.0
        %3571 = vmatprep.subr.mxu0 0.0
        %3572 = vmatpush1.msra.mxu0 0.0
        %3573 = vmatprep.subr.mxu0 0.0
        %3574 = vmatpush1.msra.mxu0 0.0
        %3575 = vmatprep.subr.mxu0 0.0
        %3576 = vmatpush1.msra.mxu0 0.0
        %3577 = vmatprep.subr.mxu0 0.0
        %3578 = vmatpush1.msra.mxu0 0.0
        %3579 = vmatprep.mubr.f32.mxu0 0.0
        %3580 = vmatmul.mubr.f32.gmra.mrb[0].mxu0 %v3507
        %v3581 = vpop.f32.mrb[0].mxu0
        %v3582 = vadd.f32 0.0, %v3581
        %v3583 = vpop.f32.mrb[0].mxu0
        %v3584 = vadd.f32 0.0, %v3583
        %3585 = vdwg.mxu0
        %v3586 = vadd.f32 %v3431, %v3582
        %v3587 = vadd.f32 %v3432, %v3584
        %3588 = vmatprep.subr.mxu0 %v1853
        %3589 = vmatpush1.msra.mxu0 %v1852
        %3590 = vmatprep.subr.mxu0 %v1855
        %3591 = vmatpush1.msra.mxu0 %v1854
        %3592 = vmatprep.subr.mxu0 %v1857
        %3593 = vmatpush1.msra.mxu0 %v1856
        %3594 = vmatprep.subr.mxu0 %v1859
        %3595 = vmatpush1.msra.mxu0 %v1858
        %3596 = vmatprep.subr.mxu0 %v1861
        %3597 = vmatpush1.msra.mxu0 %v1860
        %3598 = vmatprep.subr.mxu0 %v1863
        %3599 = vmatpush1.msra.mxu0 %v1862
        %3600 = vmatprep.subr.mxu0 %v1865
        %3601 = vmatpush1.msra.mxu0 %v1864
        %3602 = vmatprep.subr.mxu0 %v1867
        %3603 = vmatpush1.msra.mxu0 %v1866
        %3604 = vmatprep.subr.mxu0 %v1869
        %3605 = vmatpush1.msra.mxu0 %v1868
        %3606 = vmatprep.subr.mxu0 %v1871
        %3607 = vmatpush1.msra.mxu0 %v1870
        %3608 = vmatprep.subr.mxu0 %v1873
        %3609 = vmatpush1.msra.mxu0 %v1872
        %3610 = vmatprep.subr.mxu0 %v1875
        %3611 = vmatpush1.msra.mxu0 %v1874
        %3612 = vmatprep.subr.mxu0 %v1877
        %3613 = vmatpush1.msra.mxu0 %v1876
        %3614 = vmatprep.subr.mxu0 %v1879
        %3615 = vmatpush1.msra.mxu0 %v1878
        %3616 = vmatprep.subr.mxu0 %v1881
        %3617 = vmatpush1.msra.mxu0 %v1880
        %3618 = vmatprep.subr.mxu0 %v1883
        %3619 = vmatpush1.msra.mxu0 %v1882
        %3620 = vmatprep.subr.mxu0 %v1885
        %3621 = vmatpush1.msra.mxu0 %v1884
        %3622 = vmatprep.subr.mxu0 %v1887
        %3623 = vmatpush1.msra.mxu0 %v1886
        %3624 = vmatprep.subr.mxu0 %v1889
        %3625 = vmatpush1.msra.mxu0 %v1888
        %3626 = vmatprep.subr.mxu0 %v1891
        %3627 = vmatpush1.msra.mxu0 %v1890
        %3628 = vmatprep.subr.mxu0 %v1893
        %3629 = vmatpush1.msra.mxu0 %v1892
        %3630 = vmatprep.subr.mxu0 %v1895
        %3631 = vmatpush1.msra.mxu0 %v1894
        %3632 = vmatprep.subr.mxu0 %v1897
        %3633 = vmatpush1.msra.mxu0 %v1896
        %3634 = vmatprep.subr.mxu0 %v1899
        %3635 = vmatpush1.msra.mxu0 %v1898
        %3636 = vmatprep.subr.mxu0 %v1901
        %3637 = vmatpush1.msra.mxu0 %v1900
        %3638 = vmatprep.subr.mxu0 %v1903
        %3639 = vmatpush1.msra.mxu0 %v1902
        %3640 = vmatprep.subr.mxu0 %v1905
        %3641 = vmatpush1.msra.mxu0 %v1904
        %3642 = vmatprep.subr.mxu0 %v1907
        %3643 = vmatpush1.msra.mxu0 %v1906
        %3644 = vmatprep.subr.mxu0 %v1909
        %3645 = vmatpush1.msra.mxu0 %v1908
        %3646 = vmatprep.subr.mxu0 %v1911
        %3647 = vmatpush1.msra.mxu0 %v1910
        %3648 = vmatprep.subr.mxu0 %v1913
        %3649 = vmatpush1.msra.mxu0 %v1912
        %3650 = vmatprep.subr.mxu0 %v1915
        %3651 = vmatpush1.msra.mxu0 %v1914
        %3652 = vmatprep.mubr.f32.mxu0 %v2972
        %3653 = vmatmul.mubr.f32.gmra.mrb[0].mxu0 %v2971
        %v3654 = vpop.f32.mrb[0].mxu0
        %v3655 = vadd.f32 0.0, %v3654
        %v3656 = vpop.f32.mrb[0].mxu0
        %v3657 = vadd.f32 0.0, %v3656
        %3658 = vdwg.mxu0
        %s3659 = scalar_lea.vmem %s8, 16
        %v3660 = vld [vmem:[%s3659] sm:$0x7]
        %v3662 = vsel %vm1249, %v3660, 0
        %v3665 = vsel %vm1253, %v3655, 0
        %v3668 = vsel %vm1253, %v3657, 0
        %3670 = vmatprep.subr.mxu0 %v3668
        %3671 = vmatpush1.msra.mxu0 %v3665
        %3672 = vmatprep.subr.mxu0 0.0
        %3673 = vmatpush1.msra.mxu0 0.0
        %3674 = vmatprep.subr.mxu0 0.0
        %3675 = vmatpush1.msra.mxu0 0.0
        %3676 = vmatprep.subr.mxu0 0.0
        %3677 = vmatpush1.msra.mxu0 0.0
        %3678 = vmatprep.subr.mxu0 0.0
        %3679 = vmatpush1.msra.mxu0 0.0
        %3680 = vmatprep.subr.mxu0 0.0
        %3681 = vmatpush1.msra.mxu0 0.0
        %3682 = vmatprep.subr.mxu0 0.0
        %3683 = vmatpush1.msra.mxu0 0.0
        %3684 = vmatprep.subr.mxu0 0.0
        %3685 = vmatpush1.msra.mxu0 0.0
        %3686 = vmatprep.subr.mxu0 0.0
        %3687 = vmatpush1.msra.mxu0 0.0
        %3688 = vmatprep.subr.mxu0 0.0
        %3689 = vmatpush1.msra.mxu0 0.0
        %3690 = vmatprep.subr.mxu0 0.0
        %3691 = vmatpush1.msra.mxu0 0.0
        %3692 = vmatprep.subr.mxu0 0.0
        %3693 = vmatpush1.msra.mxu0 0.0
        %3694 = vmatprep.subr.mxu0 0.0
        %3695 = vmatpush1.msra.mxu0 0.0
        %3696 = vmatprep.subr.mxu0 0.0
        %3697 = vmatpush1.msra.mxu0 0.0
        %3698 = vmatprep.subr.mxu0 0.0
        %3699 = vmatpush1.msra.mxu0 0.0
        %3700 = vmatprep.subr.mxu0 0.0
        %3701 = vmatpush1.msra.mxu0 0.0
        %3702 = vmatprep.subr.mxu0 0.0
        %3703 = vmatpush1.msra.mxu0 0.0
        %3704 = vmatprep.subr.mxu0 0.0
        %3705 = vmatpush1.msra.mxu0 0.0
        %3706 = vmatprep.subr.mxu0 0.0
        %3707 = vmatpush1.msra.mxu0 0.0
        %3708 = vmatprep.subr.mxu0 0.0
        %3709 = vmatpush1.msra.mxu0 0.0
        %3710 = vmatprep.subr.mxu0 0.0
        %3711 = vmatpush1.msra.mxu0 0.0
        %3712 = vmatprep.subr.mxu0 0.0
        %3713 = vmatpush1.msra.mxu0 0.0
        %3714 = vmatprep.subr.mxu0 0.0
        %3715 = vmatpush1.msra.mxu0 0.0
        %3716 = vmatprep.subr.mxu0 0.0
        %3717 = vmatpush1.msra.mxu0 0.0
        %3718 = vmatprep.subr.mxu0 0.0
        %3719 = vmatpush1.msra.mxu0 0.0
        %3720 = vmatprep.subr.mxu0 0.0
        %3721 = vmatpush1.msra.mxu0 0.0
        %3722 = vmatprep.subr.mxu0 0.0
        %3723 = vmatpush1.msra.mxu0 0.0
        %3724 = vmatprep.subr.mxu0 0.0
        %3725 = vmatpush1.msra.mxu0 0.0
        %3726 = vmatprep.subr.mxu0 0.0
        %3727 = vmatpush1.msra.mxu0 0.0
        %3728 = vmatprep.subr.mxu0 0.0
        %3729 = vmatpush1.msra.mxu0 0.0
        %3730 = vmatprep.subr.mxu0 0.0
        %3731 = vmatpush1.msra.mxu0 0.0
        %3732 = vmatprep.subr.mxu0 0.0
        %3733 = vmatpush1.msra.mxu0 0.0
        %3734 = vmatprep.mubr.f32.mxu0 0.0
        %3735 = vmatmul.mubr.f32.gmra.mrb[0].mxu0 %v3662
        %v3736 = vpop.f32.mrb[0].mxu0
        %v3737 = vadd.f32 0.0, %v3736
        %v3738 = vpop.f32.mrb[0].mxu0
        %v3739 = vadd.f32 0.0, %v3738
        %3740 = vdwg.mxu0
        %v3741 = vadd.f32 %v3586, %v3737
        %v3742 = vadd.f32 %v3587, %v3739
        %3743 = vmatprep.subr.mxu0 %v2073
        %3744 = vmatpush1.msra.mxu0 %v2072
        %3745 = vmatprep.subr.mxu0 %v2075
        %3746 = vmatpush1.msra.mxu0 %v2074
        %3747 = vmatprep.subr.mxu0 %v2077
        %3748 = vmatpush1.msra.mxu0 %v2076
        %3749 = vmatprep.subr.mxu0 %v2079
        %3750 = vmatpush1.msra.mxu0 %v2078
        %3751 = vmatprep.subr.mxu0 %v2081
        %3752 = vmatpush1.msra.mxu0 %v2080
        %3753 = vmatprep.subr.mxu0 %v2083
        %3754 = vmatpush1.msra.mxu0 %v2082
        %3755 = vmatprep.subr.mxu0 %v2085
        %3756 = vmatpush1.msra.mxu0 %v2084
        %3757 = vmatprep.subr.mxu0 %v2087
        %3758 = vmatpush1.msra.mxu0 %v2086
        %3759 = vmatprep.subr.mxu0 %v2089
        %3760 = vmatpush1.msra.mxu0 %v2088
        %3761 = vmatprep.subr.mxu0 %v2091
        %3762 = vmatpush1.msra.mxu0 %v2090
        %3763 = vmatprep.subr.mxu0 %v2093
        %3764 = vmatpush1.msra.mxu0 %v2092
        %3765 = vmatprep.subr.mxu0 %v2095
        %3766 = vmatpush1.msra.mxu0 %v2094
        %3767 = vmatprep.subr.mxu0 %v2097
        %3768 = vmatpush1.msra.mxu0 %v2096
        %3769 = vmatprep.subr.mxu0 %v2099
        %3770 = vmatpush1.msra.mxu0 %v2098
        %3771 = vmatprep.subr.mxu0 %v2101
        %3772 = vmatpush1.msra.mxu0 %v2100
        %3773 = vmatprep.subr.mxu0 %v2103
        %3774 = vmatpush1.msra.mxu0 %v2102
        %3775 = vmatprep.subr.mxu0 %v2105
        %3776 = vmatpush1.msra.mxu0 %v2104
        %3777 = vmatprep.subr.mxu0 %v2107
        %3778 = vmatpush1.msra.mxu0 %v2106
        %3779 = vmatprep.subr.mxu0 %v2109
        %3780 = vmatpush1.msra.mxu0 %v2108
        %3781 = vmatprep.subr.mxu0 %v2111
        %3782 = vmatpush1.msra.mxu0 %v2110
        %3783 = vmatprep.subr.mxu0 %v2113
        %3784 = vmatpush1.msra.mxu0 %v2112
        %3785 = vmatprep.subr.mxu0 %v2115
        %3786 = vmatpush1.msra.mxu0 %v2114
        %3787 = vmatprep.subr.mxu0 %v2117
        %3788 = vmatpush1.msra.mxu0 %v2116
        %3789 = vmatprep.subr.mxu0 %v2119
        %3790 = vmatpush1.msra.mxu0 %v2118
        %3791 = vmatprep.subr.mxu0 %v2121
        %3792 = vmatpush1.msra.mxu0 %v2120
        %3793 = vmatprep.subr.mxu0 %v2123
        %3794 = vmatpush1.msra.mxu0 %v2122
        %3795 = vmatprep.subr.mxu0 %v2125
        %3796 = vmatpush1.msra.mxu0 %v2124
        %3797 = vmatprep.subr.mxu0 %v2127
        %3798 = vmatpush1.msra.mxu0 %v2126
        %3799 = vmatprep.subr.mxu0 %v2129
        %3800 = vmatpush1.msra.mxu0 %v2128
        %3801 = vmatprep.subr.mxu0 %v2131
        %3802 = vmatpush1.msra.mxu0 %v2130
        %3803 = vmatprep.subr.mxu0 %v2133
        %3804 = vmatpush1.msra.mxu0 %v2132
        %3805 = vmatprep.subr.mxu0 %v2135
        %3806 = vmatpush1.msra.mxu0 %v2134
        %3807 = vmatprep.mubr.f32.mxu0 %v2972
        %3808 = vmatmul.mubr.f32.gmra.mrb[0].mxu0 %v2971
        %v3809 = vpop.f32.mrb[0].mxu0
        %v3810 = vadd.f32 0.0, %v3809
        %v3811 = vpop.f32.mrb[0].mxu0
        %v3812 = vadd.f32 0.0, %v3811
        %3813 = vdwg.mxu0
        %s3814 = scalar_lea.vmem %s8, 20
        %v3815 = vld [vmem:[%s3814] sm:$0x7]
        %v3817 = vsel %vm1249, %v3815, 0
        %v3820 = vsel %vm1253, %v3810, 0
        %v3823 = vsel %vm1253, %v3812, 0
        %3825 = vmatprep.subr.mxu0 %v3823
        %3826 = vmatpush1.msra.mxu0 %v3820
        %3827 = vmatprep.subr.mxu0 0.0
        %3828 = vmatpush1.msra.mxu0 0.0
        %3829 = vmatprep.subr.mxu0 0.0
        %3830 = vmatpush1.msra.mxu0 0.0
        %3831 = vmatprep.subr.mxu0 0.0
        %3832 = vmatpush1.msra.mxu0 0.0
        %3833 = vmatprep.subr.mxu0 0.0
        %3834 = vmatpush1.msra.mxu0 0.0
        %3835 = vmatprep.subr.mxu0 0.0
        %3836 = vmatpush1.msra.mxu0 0.0
        %3837 = vmatprep.subr.mxu0 0.0
        %3838 = vmatpush1.msra.mxu0 0.0
        %3839 = vmatprep.subr.mxu0 0.0
        %3840 = vmatpush1.msra.mxu0 0.0
        %3841 = vmatprep.subr.mxu0 0.0
        %3842 = vmatpush1.msra.mxu0 0.0
        %3843 = vmatprep.subr.mxu0 0.0
        %3844 = vmatpush1.msra.mxu0 0.0
        %3845 = vmatprep.subr.mxu0 0.0
        %3846 = vmatpush1.msra.mxu0 0.0
        %3847 = vmatprep.subr.mxu0 0.0
        %3848 = vmatpush1.msra.mxu0 0.0
        %3849 = vmatprep.subr.mxu0 0.0
        %3850 = vmatpush1.msra.mxu0 0.0
        %3851 = vmatprep.subr.mxu0 0.0
        %3852 = vmatpush1.msra.mxu0 0.0
        %3853 = vmatprep.subr.mxu0 0.0
        %3854 = vmatpush1.msra.mxu0 0.0
        %3855 = vmatprep.subr.mxu0 0.0
        %3856 = vmatpush1.msra.mxu0 0.0
        %3857 = vmatprep.subr.mxu0 0.0
        %3858 = vmatpush1.msra.mxu0 0.0
        %3859 = vmatprep.subr.mxu0 0.0
        %3860 = vmatpush1.msra.mxu0 0.0
        %3861 = vmatprep.subr.mxu0 0.0
        %3862 = vmatpush1.msra.mxu0 0.0
        %3863 = vmatprep.subr.mxu0 0.0
        %3864 = vmatpush1.msra.mxu0 0.0
        %3865 = vmatprep.subr.mxu0 0.0
        %3866 = vmatpush1.msra.mxu0 0.0
        %3867 = vmatprep.subr.mxu0 0.0
        %3868 = vmatpush1.msra.mxu0 0.0
        %3869 = vmatprep.subr.mxu0 0.0
        %3870 = vmatpush1.msra.mxu0 0.0
        %3871 = vmatprep.subr.mxu0 0.0
        %3872 = vmatpush1.msra.mxu0 0.0
        %3873 = vmatprep.subr.mxu0 0.0
        %3874 = vmatpush1.msra.mxu0 0.0
        %3875 = vmatprep.subr.mxu0 0.0
        %3876 = vmatpush1.msra.mxu0 0.0
        %3877 = vmatprep.subr.mxu0 0.0
        %3878 = vmatpush1.msra.mxu0 0.0
        %3879 = vmatprep.subr.mxu0 0.0
        %3880 = vmatpush1.msra.mxu0 0.0
        %3881 = vmatprep.subr.mxu0 0.0
        %3882 = vmatpush1.msra.mxu0 0.0
        %3883 = vmatprep.subr.mxu0 0.0
        %3884 = vmatpush1.msra.mxu0 0.0
        %3885 = vmatprep.subr.mxu0 0.0
        %3886 = vmatpush1.msra.mxu0 0.0
        %3887 = vmatprep.subr.mxu0 0.0
        %3888 = vmatpush1.msra.mxu0 0.0
        %3889 = vmatprep.mubr.f32.mxu0 0.0
        %3890 = vmatmul.mubr.f32.gmra.mrb[0].mxu0 %v3817
        %v3891 = vpop.f32.mrb[0].mxu0
        %v3892 = vadd.f32 0.0, %v3891
        %v3893 = vpop.f32.mrb[0].mxu0
        %v3894 = vadd.f32 0.0, %v3893
        %3895 = vdwg.mxu0
        %v3896 = vadd.f32 %v3741, %v3892
        %v3897 = vadd.f32 %v3742, %v3894
        %3898 = vmatprep.subr.mxu0 %v2293
        %3899 = vmatpush1.msra.mxu0 %v2292
        %3900 = vmatprep.subr.mxu0 %v2295
        %3901 = vmatpush1.msra.mxu0 %v2294
        %3902 = vmatprep.subr.mxu0 %v2297
        %3903 = vmatpush1.msra.mxu0 %v2296
        %3904 = vmatprep.subr.mxu0 %v2299
        %3905 = vmatpush1.msra.mxu0 %v2298
        %3906 = vmatprep.subr.mxu0 %v2301
        %3907 = vmatpush1.msra.mxu0 %v2300
        %3908 = vmatprep.subr.mxu0 %v2303
        %3909 = vmatpush1.msra.mxu0 %v2302
        %3910 = vmatprep.subr.mxu0 %v2305
        %3911 = vmatpush1.msra.mxu0 %v2304
        %3912 = vmatprep.subr.mxu0 %v2307
        %3913 = vmatpush1.msra.mxu0 %v2306
        %3914 = vmatprep.subr.mxu0 %v2309
        %3915 = vmatpush1.msra.mxu0 %v2308
        %3916 = vmatprep.subr.mxu0 %v2311
        %3917 = vmatpush1.msra.mxu0 %v2310
        %3918 = vmatprep.subr.mxu0 %v2313
        %3919 = vmatpush1.msra.mxu0 %v2312
        %3920 = vmatprep.subr.mxu0 %v2315
        %3921 = vmatpush1.msra.mxu0 %v2314
        %3922 = vmatprep.subr.mxu0 %v2317
        %3923 = vmatpush1.msra.mxu0 %v2316
        %3924 = vmatprep.subr.mxu0 %v2319
        %3925 = vmatpush1.msra.mxu0 %v2318
        %3926 = vmatprep.subr.mxu0 %v2321
        %3927 = vmatpush1.msra.mxu0 %v2320
        %3928 = vmatprep.subr.mxu0 %v2323
        %3929 = vmatpush1.msra.mxu0 %v2322
        %3930 = vmatprep.subr.mxu0 %v2325
        %3931 = vmatpush1.msra.mxu0 %v2324
        %3932 = vmatprep.subr.mxu0 %v2327
        %3933 = vmatpush1.msra.mxu0 %v2326
        %3934 = vmatprep.subr.mxu0 %v2329
        %3935 = vmatpush1.msra.mxu0 %v2328
        %3936 = vmatprep.subr.mxu0 %v2331
        %3937 = vmatpush1.msra.mxu0 %v2330
        %3938 = vmatprep.subr.mxu0 %v2333
        %3939 = vmatpush1.msra.mxu0 %v2332
        %3940 = vmatprep.subr.mxu0 %v2335
        %3941 = vmatpush1.msra.mxu0 %v2334
        %3942 = vmatprep.subr.mxu0 %v2337
        %3943 = vmatpush1.msra.mxu0 %v2336
        %3944 = vmatprep.subr.mxu0 %v2339
        %3945 = vmatpush1.msra.mxu0 %v2338
        %3946 = vmatprep.subr.mxu0 %v2341
        %3947 = vmatpush1.msra.mxu0 %v2340
        %3948 = vmatprep.subr.mxu0 %v2343
        %3949 = vmatpush1.msra.mxu0 %v2342
        %3950 = vmatprep.subr.mxu0 %v2345
        %3951 = vmatpush1.msra.mxu0 %v2344
        %3952 = vmatprep.subr.mxu0 %v2347
        %3953 = vmatpush1.msra.mxu0 %v2346
        %3954 = vmatprep.subr.mxu0 %v2349
        %3955 = vmatpush1.msra.mxu0 %v2348
        %3956 = vmatprep.subr.mxu0 %v2351
        %3957 = vmatpush1.msra.mxu0 %v2350
        %3958 = vmatprep.subr.mxu0 %v2353
        %3959 = vmatpush1.msra.mxu0 %v2352
        %3960 = vmatprep.subr.mxu0 %v2355
        %3961 = vmatpush1.msra.mxu0 %v2354
        %3962 = vmatprep.mubr.f32.mxu0 %v2972
        %3963 = vmatmul.mubr.f32.gmra.mrb[0].mxu0 %v2971
        %v3964 = vpop.f32.mrb[0].mxu0
        %v3965 = vadd.f32 0.0, %v3964
        %v3966 = vpop.f32.mrb[0].mxu0
        %v3967 = vadd.f32 0.0, %v3966
        %3968 = vdwg.mxu0
        %s3969 = scalar_lea.vmem %s8, 24
        %v3970 = vld [vmem:[%s3969] sm:$0x7]
        %v3972 = vsel %vm1249, %v3970, 0
        %v3975 = vsel %vm1253, %v3965, 0
        %v3978 = vsel %vm1253, %v3967, 0
        %3980 = vmatprep.subr.mxu0 %v3978
        %3981 = vmatpush1.msra.mxu0 %v3975
        %3982 = vmatprep.subr.mxu0 0.0
        %3983 = vmatpush1.msra.mxu0 0.0
        %3984 = vmatprep.subr.mxu0 0.0
        %3985 = vmatpush1.msra.mxu0 0.0
        %3986 = vmatprep.subr.mxu0 0.0
        %3987 = vmatpush1.msra.mxu0 0.0
        %3988 = vmatprep.subr.mxu0 0.0
        %3989 = vmatpush1.msra.mxu0 0.0
        %3990 = vmatprep.subr.mxu0 0.0
        %3991 = vmatpush1.msra.mxu0 0.0
        %3992 = vmatprep.subr.mxu0 0.0
        %3993 = vmatpush1.msra.mxu0 0.0
        %3994 = vmatprep.subr.mxu0 0.0
        %3995 = vmatpush1.msra.mxu0 0.0
        %3996 = vmatprep.subr.mxu0 0.0
        %3997 = vmatpush1.msra.mxu0 0.0
        %3998 = vmatprep.subr.mxu0 0.0
        %3999 = vmatpush1.msra.mxu0 0.0
        %4000 = vmatprep.subr.mxu0 0.0
        %4001 = vmatpush1.msra.mxu0 0.0
        %4002 = vmatprep.subr.mxu0 0.0
        %4003 = vmatpush1.msra.mxu0 0.0
        %4004 = vmatprep.subr.mxu0 0.0
        %4005 = vmatpush1.msra.mxu0 0.0
        %4006 = vmatprep.subr.mxu0 0.0
        %4007 = vmatpush1.msra.mxu0 0.0
        %4008 = vmatprep.subr.mxu0 0.0
        %4009 = vmatpush1.msra.mxu0 0.0
        %4010 = vmatprep.subr.mxu0 0.0
        %4011 = vmatpush1.msra.mxu0 0.0
        %4012 = vmatprep.subr.mxu0 0.0
        %4013 = vmatpush1.msra.mxu0 0.0
        %4014 = vmatprep.subr.mxu0 0.0
        %4015 = vmatpush1.msra.mxu0 0.0
        %4016 = vmatprep.subr.mxu0 0.0
        %4017 = vmatpush1.msra.mxu0 0.0
        %4018 = vmatprep.subr.mxu0 0.0
        %4019 = vmatpush1.msra.mxu0 0.0
        %4020 = vmatprep.subr.mxu0 0.0
        %4021 = vmatpush1.msra.mxu0 0.0
        %4022 = vmatprep.subr.mxu0 0.0
        %4023 = vmatpush1.msra.mxu0 0.0
        %4024 = vmatprep.subr.mxu0 0.0
        %4025 = vmatpush1.msra.mxu0 0.0
        %4026 = vmatprep.subr.mxu0 0.0
        %4027 = vmatpush1.msra.mxu0 0.0
        %4028 = vmatprep.subr.mxu0 0.0
        %4029 = vmatpush1.msra.mxu0 0.0
        %4030 = vmatprep.subr.mxu0 0.0
        %4031 = vmatpush1.msra.mxu0 0.0
        %4032 = vmatprep.subr.mxu0 0.0
        %4033 = vmatpush1.msra.mxu0 0.0
        %4034 = vmatprep.subr.mxu0 0.0
        %4035 = vmatpush1.msra.mxu0 0.0
        %4036 = vmatprep.subr.mxu0 0.0
        %4037 = vmatpush1.msra.mxu0 0.0
        %4038 = vmatprep.subr.mxu0 0.0
        %4039 = vmatpush1.msra.mxu0 0.0
        %4040 = vmatprep.subr.mxu0 0.0
        %4041 = vmatpush1.msra.mxu0 0.0
        %4042 = vmatprep.subr.mxu0 0.0
        %4043 = vmatpush1.msra.mxu0 0.0
        %4044 = vmatprep.mubr.f32.mxu0 0.0
        %4045 = vmatmul.mubr.f32.gmra.mrb[0].mxu0 %v3972
        %v4046 = vpop.f32.mrb[0].mxu0
        %v4047 = vadd.f32 0.0, %v4046
        %v4048 = vpop.f32.mrb[0].mxu0
        %v4049 = vadd.f32 0.0, %v4048
        %4050 = vdwg.mxu0
        %v4051 = vadd.f32 %v3896, %v4047
        %v4052 = vadd.f32 %v3897, %v4049
        %4053 = vmatprep.subr.mxu0 %v2513
        %4054 = vmatpush1.msra.mxu0 %v2512
        %4055 = vmatprep.subr.mxu0 %v2515
        %4056 = vmatpush1.msra.mxu0 %v2514
        %4057 = vmatprep.subr.mxu0 %v2517
        %4058 = vmatpush1.msra.mxu0 %v2516
        %4059 = vmatprep.subr.mxu0 %v2519
        %4060 = vmatpush1.msra.mxu0 %v2518
        %4061 = vmatprep.subr.mxu0 %v2521
        %4062 = vmatpush1.msra.mxu0 %v2520
        %4063 = vmatprep.subr.mxu0 %v2523
        %4064 = vmatpush1.msra.mxu0 %v2522
        %4065 = vmatprep.subr.mxu0 %v2525
        %4066 = vmatpush1.msra.mxu0 %v2524
        %4067 = vmatprep.subr.mxu0 %v2527
        %4068 = vmatpush1.msra.mxu0 %v2526
        %4069 = vmatprep.subr.mxu0 %v2529
        %4070 = vmatpush1.msra.mxu0 %v2528
        %4071 = vmatprep.subr.mxu0 %v2531
        %4072 = vmatpush1.msra.mxu0 %v2530
        %4073 = vmatprep.subr.mxu0 %v2533
        %4074 = vmatpush1.msra.mxu0 %v2532
        %4075 = vmatprep.subr.mxu0 %v2535
        %4076 = vmatpush1.msra.mxu0 %v2534
        %4077 = vmatprep.subr.mxu0 %v2537
        %4078 = vmatpush1.msra.mxu0 %v2536
        %4079 = vmatprep.subr.mxu0 %v2539
        %4080 = vmatpush1.msra.mxu0 %v2538
        %4081 = vmatprep.subr.mxu0 %v2541
        %4082 = vmatpush1.msra.mxu0 %v2540
        %4083 = vmatprep.subr.mxu0 %v2543
        %4084 = vmatpush1.msra.mxu0 %v2542
        %4085 = vmatprep.subr.mxu0 %v2545
        %4086 = vmatpush1.msra.mxu0 %v2544
        %4087 = vmatprep.subr.mxu0 %v2547
        %4088 = vmatpush1.msra.mxu0 %v2546
        %4089 = vmatprep.subr.mxu0 %v2549
        %4090 = vmatpush1.msra.mxu0 %v2548
        %4091 = vmatprep.subr.mxu0 %v2551
        %4092 = vmatpush1.msra.mxu0 %v2550
        %4093 = vmatprep.subr.mxu0 %v2553
        %4094 = vmatpush1.msra.mxu0 %v2552
        %4095 = vmatprep.subr.mxu0 %v2555
        %4096 = vmatpush1.msra.mxu0 %v2554
        %4097 = vmatprep.subr.mxu0 %v2557
        %4098 = vmatpush1.msra.mxu0 %v2556
        %4099 = vmatprep.subr.mxu0 %v2559
        %4100 = vmatpush1.msra.mxu0 %v2558
        %4101 = vmatprep.subr.mxu0 %v2561
        %4102 = vmatpush1.msra.mxu0 %v2560
        %4103 = vmatprep.subr.mxu0 %v2563
        %4104 = vmatpush1.msra.mxu0 %v2562
        %4105 = vmatprep.subr.mxu0 %v2565
        %4106 = vmatpush1.msra.mxu0 %v2564
        %4107 = vmatprep.subr.mxu0 %v2567
        %4108 = vmatpush1.msra.mxu0 %v2566
        %4109 = vmatprep.subr.mxu0 %v2569
        %4110 = vmatpush1.msra.mxu0 %v2568
        %4111 = vmatprep.subr.mxu0 %v2571
        %4112 = vmatpush1.msra.mxu0 %v2570
        %4113 = vmatprep.subr.mxu0 %v2573
        %4114 = vmatpush1.msra.mxu0 %v2572
        %4115 = vmatprep.subr.mxu0 %v2575
        %4116 = vmatpush1.msra.mxu0 %v2574
        %4117 = vmatprep.mubr.f32.mxu0 %v2972
        %4118 = vmatmul.mubr.f32.gmra.mrb[0].mxu0 %v2971
        %v4119 = vpop.f32.mrb[0].mxu0
        %v4120 = vadd.f32 0.0, %v4119
        %v4121 = vpop.f32.mrb[0].mxu0
        %v4122 = vadd.f32 0.0, %v4121
        %4123 = vdwg.mxu0
        %s4124 = scalar_lea.vmem %s8, 28
        %v4125 = vld [vmem:[%s4124] sm:$0x7]
        %v4127 = vsel %vm1249, %v4125, 0
        %v4130 = vsel %vm1253, %v4120, 0
        %v4133 = vsel %vm1253, %v4122, 0
        %4135 = vmatprep.subr.mxu0 %v4133
        %4136 = vmatpush1.msra.mxu0 %v4130
        %4137 = vmatprep.subr.mxu0 0.0
        %4138 = vmatpush1.msra.mxu0 0.0
        %4139 = vmatprep.subr.mxu0 0.0
        %4140 = vmatpush1.msra.mxu0 0.0
        %4141 = vmatprep.subr.mxu0 0.0
        %4142 = vmatpush1.msra.mxu0 0.0
        %4143 = vmatprep.subr.mxu0 0.0
        %4144 = vmatpush1.msra.mxu0 0.0
        %4145 = vmatprep.subr.mxu0 0.0
        %4146 = vmatpush1.msra.mxu0 0.0
        %4147 = vmatprep.subr.mxu0 0.0
        %4148 = vmatpush1.msra.mxu0 0.0
        %4149 = vmatprep.subr.mxu0 0.0
        %4150 = vmatpush1.msra.mxu0 0.0
        %4151 = vmatprep.subr.mxu0 0.0
        %4152 = vmatpush1.msra.mxu0 0.0
        %4153 = vmatprep.subr.mxu0 0.0
        %4154 = vmatpush1.msra.mxu0 0.0
        %4155 = vmatprep.subr.mxu0 0.0
        %4156 = vmatpush1.msra.mxu0 0.0
        %4157 = vmatprep.subr.mxu0 0.0
        %4158 = vmatpush1.msra.mxu0 0.0
        %4159 = vmatprep.subr.mxu0 0.0
        %4160 = vmatpush1.msra.mxu0 0.0
        %4161 = vmatprep.subr.mxu0 0.0
        %4162 = vmatpush1.msra.mxu0 0.0
        %4163 = vmatprep.subr.mxu0 0.0
        %4164 = vmatpush1.msra.mxu0 0.0
        %4165 = vmatprep.subr.mxu0 0.0
        %4166 = vmatpush1.msra.mxu0 0.0
        %4167 = vmatprep.subr.mxu0 0.0
        %4168 = vmatpush1.msra.mxu0 0.0
        %4169 = vmatprep.subr.mxu0 0.0
        %4170 = vmatpush1.msra.mxu0 0.0
        %4171 = vmatprep.subr.mxu0 0.0
        %4172 = vmatpush1.msra.mxu0 0.0
        %4173 = vmatprep.subr.mxu0 0.0
        %4174 = vmatpush1.msra.mxu0 0.0
        %4175 = vmatprep.subr.mxu0 0.0
        %4176 = vmatpush1.msra.mxu0 0.0
        %4177 = vmatprep.subr.mxu0 0.0
        %4178 = vmatpush1.msra.mxu0 0.0
        %4179 = vmatprep.subr.mxu0 0.0
        %4180 = vmatpush1.msra.mxu0 0.0
        %4181 = vmatprep.subr.mxu0 0.0
        %4182 = vmatpush1.msra.mxu0 0.0
        %4183 = vmatprep.subr.mxu0 0.0
        %4184 = vmatpush1.msra.mxu0 0.0
        %4185 = vmatprep.subr.mxu0 0.0
        %4186 = vmatpush1.msra.mxu0 0.0
        %4187 = vmatprep.subr.mxu0 0.0
        %4188 = vmatpush1.msra.mxu0 0.0
        %4189 = vmatprep.subr.mxu0 0.0
        %4190 = vmatpush1.msra.mxu0 0.0
        %4191 = vmatprep.subr.mxu0 0.0
        %4192 = vmatpush1.msra.mxu0 0.0
        %4193 = vmatprep.subr.mxu0 0.0
        %4194 = vmatpush1.msra.mxu0 0.0
        %4195 = vmatprep.subr.mxu0 0.0
        %4196 = vmatpush1.msra.mxu0 0.0
        %4197 = vmatprep.subr.mxu0 0.0
        %4198 = vmatpush1.msra.mxu0 0.0
        %4199 = vmatprep.mubr.f32.mxu0 0.0
        %4200 = vmatmul.mubr.f32.gmra.mrb[0].mxu0 %v4127
        %v4201 = vpop.f32.mrb[0].mxu0
        %v4202 = vadd.f32 0.0, %v4201
        %v4203 = vpop.f32.mrb[0].mxu0
        %v4204 = vadd.f32 0.0, %v4203
        %4205 = vdwg.mxu0
        %v4206 = vadd.f32 %v4051, %v4202
        %v4207 = vadd.f32 %v4052, %v4204
        %4208 = vmatprep.subr.mxu0 %v2733
        %4209 = vmatpush1.msra.mxu0 %v2732
        %4210 = vmatprep.subr.mxu0 %v2735
        %4211 = vmatpush1.msra.mxu0 %v2734
        %4212 = vmatprep.subr.mxu0 %v2737
        %4213 = vmatpush1.msra.mxu0 %v2736
        %4214 = vmatprep.subr.mxu0 %v2739
        %4215 = vmatpush1.msra.mxu0 %v2738
        %4216 = vmatprep.subr.mxu0 %v2741
        %4217 = vmatpush1.msra.mxu0 %v2740
        %4218 = vmatprep.subr.mxu0 %v2743
        %4219 = vmatpush1.msra.mxu0 %v2742
        %4220 = vmatprep.subr.mxu0 %v2745
        %4221 = vmatpush1.msra.mxu0 %v2744
        %4222 = vmatprep.subr.mxu0 %v2747
        %4223 = vmatpush1.msra.mxu0 %v2746
        %4224 = vmatprep.subr.mxu0 %v2749
        %4225 = vmatpush1.msra.mxu0 %v2748
        %4226 = vmatprep.subr.mxu0 %v2751
        %4227 = vmatpush1.msra.mxu0 %v2750
        %4228 = vmatprep.subr.mxu0 %v2753
        %4229 = vmatpush1.msra.mxu0 %v2752
        %4230 = vmatprep.subr.mxu0 %v2755
        %4231 = vmatpush1.msra.mxu0 %v2754
        %4232 = vmatprep.subr.mxu0 %v2757
        %4233 = vmatpush1.msra.mxu0 %v2756
        %4234 = vmatprep.subr.mxu0 %v2759
        %4235 = vmatpush1.msra.mxu0 %v2758
        %4236 = vmatprep.subr.mxu0 %v2761
        %4237 = vmatpush1.msra.mxu0 %v2760
        %4238 = vmatprep.subr.mxu0 %v2763
        %4239 = vmatpush1.msra.mxu0 %v2762
        %4240 = vmatprep.subr.mxu0 %v2765
        %4241 = vmatpush1.msra.mxu0 %v2764
        %4242 = vmatprep.subr.mxu0 %v2767
        %4243 = vmatpush1.msra.mxu0 %v2766
        %4244 = vmatprep.subr.mxu0 %v2769
        %4245 = vmatpush1.msra.mxu0 %v2768
        %4246 = vmatprep.subr.mxu0 %v2771
        %4247 = vmatpush1.msra.mxu0 %v2770
        %4248 = vmatprep.subr.mxu0 %v2773
        %4249 = vmatpush1.msra.mxu0 %v2772
        %4250 = vmatprep.subr.mxu0 %v2775
        %4251 = vmatpush1.msra.mxu0 %v2774
        %4252 = vmatprep.subr.mxu0 %v2777
        %4253 = vmatpush1.msra.mxu0 %v2776
        %4254 = vmatprep.subr.mxu0 %v2779
        %4255 = vmatpush1.msra.mxu0 %v2778
        %4256 = vmatprep.subr.mxu0 %v2781
        %4257 = vmatpush1.msra.mxu0 %v2780
        %4258 = vmatprep.subr.mxu0 %v2783
        %4259 = vmatpush1.msra.mxu0 %v2782
        %4260 = vmatprep.subr.mxu0 %v2785
        %4261 = vmatpush1.msra.mxu0 %v2784
        %4262 = vmatprep.subr.mxu0 %v2787
        %4263 = vmatpush1.msra.mxu0 %v2786
        %4264 = vmatprep.subr.mxu0 %v2789
        %4265 = vmatpush1.msra.mxu0 %v2788
        %4266 = vmatprep.subr.mxu0 %v2791
        %4267 = vmatpush1.msra.mxu0 %v2790
        %4268 = vmatprep.subr.mxu0 %v2793
        %4269 = vmatpush1.msra.mxu0 %v2792
        %4270 = vmatprep.subr.mxu0 %v2795
        %4271 = vmatpush1.msra.mxu0 %v2794
        %4272 = vmatprep.mubr.f32.mxu0 %v2972
        %4273 = vmatmul.mubr.f32.gmra.mrb[0].mxu0 %v2971
        %v4274 = vpop.f32.mrb[0].mxu0
        %v4275 = vadd.f32 0.0, %v4274
        %v4276 = vpop.f32.mrb[0].mxu0
        %v4277 = vadd.f32 0.0, %v4276
        %4278 = vdwg.mxu0
        %s4279 = scalar_lea.vmem %s8, 32
        %v4280 = vld [vmem:[%s4279] sm:$0x7]
        %v4282 = vsel %vm1249, %v4280, 0
        %v4285 = vsel %vm1253, %v4275, 0
        %v4288 = vsel %vm1253, %v4277, 0
        %4290 = vmatprep.subr.mxu0 %v4288
        %4291 = vmatpush1.msra.mxu0 %v4285
        %4292 = vmatprep.subr.mxu0 0.0
        %4293 = vmatpush1.msra.mxu0 0.0
        %4294 = vmatprep.subr.mxu0 0.0
        %4295 = vmatpush1.msra.mxu0 0.0
        %4296 = vmatprep.subr.mxu0 0.0
        %4297 = vmatpush1.msra.mxu0 0.0
        %4298 = vmatprep.subr.mxu0 0.0
        %4299 = vmatpush1.msra.mxu0 0.0
        %4300 = vmatprep.subr.mxu0 0.0
        %4301 = vmatpush1.msra.mxu0 0.0
        %4302 = vmatprep.subr.mxu0 0.0
        %4303 = vmatpush1.msra.mxu0 0.0
        %4304 = vmatprep.subr.mxu0 0.0
        %4305 = vmatpush1.msra.mxu0 0.0
        %4306 = vmatprep.subr.mxu0 0.0
        %4307 = vmatpush1.msra.mxu0 0.0
        %4308 = vmatprep.subr.mxu0 0.0
        %4309 = vmatpush1.msra.mxu0 0.0
        %4310 = vmatprep.subr.mxu0 0.0
        %4311 = vmatpush1.msra.mxu0 0.0
        %4312 = vmatprep.subr.mxu0 0.0
        %4313 = vmatpush1.msra.mxu0 0.0
        %4314 = vmatprep.subr.mxu0 0.0
        %4315 = vmatpush1.msra.mxu0 0.0
        %4316 = vmatprep.subr.mxu0 0.0
        %4317 = vmatpush1.msra.mxu0 0.0
        %4318 = vmatprep.subr.mxu0 0.0
        %4319 = vmatpush1.msra.mxu0 0.0
        %4320 = vmatprep.subr.mxu0 0.0
        %4321 = vmatpush1.msra.mxu0 0.0
        %4322 = vmatprep.subr.mxu0 0.0
        %4323 = vmatpush1.msra.mxu0 0.0
        %4324 = vmatprep.subr.mxu0 0.0
        %4325 = vmatpush1.msra.mxu0 0.0
        %4326 = vmatprep.subr.mxu0 0.0
        %4327 = vmatpush1.msra.mxu0 0.0
        %4328 = vmatprep.subr.mxu0 0.0
        %4329 = vmatpush1.msra.mxu0 0.0
        %4330 = vmatprep.subr.mxu0 0.0
        %4331 = vmatpush1.msra.mxu0 0.0
        %4332 = vmatprep.subr.mxu0 0.0
        %4333 = vmatpush1.msra.mxu0 0.0
        %4334 = vmatprep.subr.mxu0 0.0
        %4335 = vmatpush1.msra.mxu0 0.0
        %4336 = vmatprep.subr.mxu0 0.0
        %4337 = vmatpush1.msra.mxu0 0.0
        %4338 = vmatprep.subr.mxu0 0.0
        %4339 = vmatpush1.msra.mxu0 0.0
        %4340 = vmatprep.subr.mxu0 0.0
        %4341 = vmatpush1.msra.mxu0 0.0
        %4342 = vmatprep.subr.mxu0 0.0
        %4343 = vmatpush1.msra.mxu0 0.0
        %4344 = vmatprep.subr.mxu0 0.0
        %4345 = vmatpush1.msra.mxu0 0.0
        %4346 = vmatprep.subr.mxu0 0.0
        %4347 = vmatpush1.msra.mxu0 0.0
        %4348 = vmatprep.subr.mxu0 0.0
        %4349 = vmatpush1.msra.mxu0 0.0
        %4350 = vmatprep.subr.mxu0 0.0
        %4351 = vmatpush1.msra.mxu0 0.0
        %4352 = vmatprep.subr.mxu0 0.0
        %4353 = vmatpush1.msra.mxu0 0.0
        %4354 = vmatprep.mubr.f32.mxu0 0.0
        %4355 = vmatmul.mubr.f32.gmra.mrb[0].mxu0 %v4282
        %v4356 = vpop.f32.mrb[0].mxu0
        %v4357 = vadd.f32 0.0, %v4356
        %v4358 = vpop.f32.mrb[0].mxu0
        %v4359 = vadd.f32 0.0, %v4358
        %4360 = vdwg.mxu0
        %v4361 = vadd.f32 %v4206, %v4357
        %v4362 = vadd.f32 %v4207, %v4359
        %v4363 = vld [vmem:[%s9] sm:$0x7]
        %4365 = vset.pattern.permute.xlu0 0
        %4366 = vperm.xlu0 %4365, %v4363
        %v4367 = vpop.permute.xlu0 %4366
        %v4369 = vadd.f32 %v4361, %v4367
        %v4370 = vadd.f32 %v4362, %v4367
        %v4371 = vxor.u32 %v4369, 2147483648
        %v4372 = vxor.u32 %v4370, 2147483648
        %v4373 = vmul.f32 %v4371, 1.442695
        %v4374 = vpow.pop %v4373
        %v4375 = vmul.f32 %v4372, 1.442695
        %v4376 = vpow.pop %v4375
        %v4377 = vadd.f32 %v4374, 1.0
        %v4378 = vadd.f32 %v4376, 1.0
        %v4379 = vrcp.pop %v4377
        %v4380 = vmul.f32 1.0, %v4379
        %v4381 = vrcp.pop %v4378
        %v4382 = vmul.f32 1.0, %v4381
        %v4383 = vmul.f32 %v4369, %v4380
        %v4384 = vmul.f32 %v4370, %v4382
        %4385 = vmatprep.subr.mxu0 %v976
        %4386 = vmatpush1.msra.mxu0 %v975
        %4387 = vmatprep.subr.mxu0 %v978
        %4388 = vmatpush1.msra.mxu0 %v977
        %4389 = vmatprep.subr.mxu0 %v980
        %4390 = vmatpush1.msra.mxu0 %v979
        %4391 = vmatprep.subr.mxu0 %v982
        %4392 = vmatpush1.msra.mxu0 %v981
        %4393 = vmatprep.subr.mxu0 %v984
        %4394 = vmatpush1.msra.mxu0 %v983
        %4395 = vmatprep.subr.mxu0 %v986
        %4396 = vmatpush1.msra.mxu0 %v985
        %4397 = vmatprep.subr.mxu0 %v988
        %4398 = vmatpush1.msra.mxu0 %v987
        %4399 = vmatprep.subr.mxu0 %v990
        %4400 = vmatpush1.msra.mxu0 %v989
        %4401 = vmatprep.subr.mxu0 %v992
        %4402 = vmatpush1.msra.mxu0 %v991
        %4403 = vmatprep.subr.mxu0 %v994
        %4404 = vmatpush1.msra.mxu0 %v993
        %4405 = vmatprep.subr.mxu0 %v996
        %4406 = vmatpush1.msra.mxu0 %v995
        %4407 = vmatprep.subr.mxu0 %v998
        %4408 = vmatpush1.msra.mxu0 %v997
        %4409 = vmatprep.subr.mxu0 %v1000
        %4410 = vmatpush1.msra.mxu0 %v999
        %4411 = vmatprep.subr.mxu0 %v1002
        %4412 = vmatpush1.msra.mxu0 %v1001
        %4413 = vmatprep.subr.mxu0 %v1004
        %4414 = vmatpush1.msra.mxu0 %v1003
        %4415 = vmatprep.subr.mxu0 %v1006
        %4416 = vmatpush1.msra.mxu0 %v1005
        %4417 = vmatprep.subr.mxu0 %v1008
        %4418 = vmatpush1.msra.mxu0 %v1007
        %4419 = vmatprep.subr.mxu0 %v1010
        %4420 = vmatpush1.msra.mxu0 %v1009
        %4421 = vmatprep.subr.mxu0 %v1012
        %4422 = vmatpush1.msra.mxu0 %v1011
        %4423 = vmatprep.subr.mxu0 %v1014
        %4424 = vmatpush1.msra.mxu0 %v1013
        %4425 = vmatprep.subr.mxu0 %v1016
        %4426 = vmatpush1.msra.mxu0 %v1015
        %4427 = vmatprep.subr.mxu0 %v1018
        %4428 = vmatpush1.msra.mxu0 %v1017
        %4429 = vmatprep.subr.mxu0 %v1020
        %4430 = vmatpush1.msra.mxu0 %v1019
        %4431 = vmatprep.subr.mxu0 %v1022
        %4432 = vmatpush1.msra.mxu0 %v1021
        %4433 = vmatprep.subr.mxu0 %v1024
        %4434 = vmatpush1.msra.mxu0 %v1023
        %4435 = vmatprep.subr.mxu0 %v1026
        %4436 = vmatpush1.msra.mxu0 %v1025
        %4437 = vmatprep.subr.mxu0 %v1028
        %4438 = vmatpush1.msra.mxu0 %v1027
        %4439 = vmatprep.subr.mxu0 %v1030
        %4440 = vmatpush1.msra.mxu0 %v1029
        %4441 = vmatprep.subr.mxu0 %v1032
        %4442 = vmatpush1.msra.mxu0 %v1031
        %4443 = vmatprep.subr.mxu0 %v1034
        %4444 = vmatpush1.msra.mxu0 %v1033
        %4445 = vmatprep.subr.mxu0 %v1036
        %4446 = vmatpush1.msra.mxu0 %v1035
        %4447 = vmatprep.subr.mxu0 %v1038
        %4448 = vmatpush1.msra.mxu0 %v1037
        %4449 = vmatprep.mubr.f32.mxu0 %v4384
        %4450 = vmatmul.mubr.f32.gmra.mrb[0].mxu0 %v4383
        %v4451 = vpop.f32.mrb[0].mxu0
        %v4452 = vadd.f32 0.0, %v4451
        %v4453 = vpop.f32.mrb[0].mxu0
        %v4454 = vadd.f32 0.0, %v4453
        %4455 = vdwg.mxu0
        %v4456 = vld [vmem:[%s10] sm:$0x7]
        %4457 = vmatprep.subr.mxu0 %v1113
        %4458 = vmatpush1.msra.mxu0 %v1112
        %4459 = vmatprep.subr.mxu0 %v1115
        %4460 = vmatpush1.msra.mxu0 %v1114
        %4461 = vmatprep.subr.mxu0 %v1117
        %4462 = vmatpush1.msra.mxu0 %v1116
        %4463 = vmatprep.subr.mxu0 %v1119
        %4464 = vmatpush1.msra.mxu0 %v1118
        %4465 = vmatprep.subr.mxu0 %v1121
        %4466 = vmatpush1.msra.mxu0 %v1120
        %4467 = vmatprep.subr.mxu0 %v1123
        %4468 = vmatpush1.msra.mxu0 %v1122
        %4469 = vmatprep.subr.mxu0 %v1125
        %4470 = vmatpush1.msra.mxu0 %v1124
        %4471 = vmatprep.subr.mxu0 %v1127
        %4472 = vmatpush1.msra.mxu0 %v1126
        %4473 = vmatprep.subr.mxu0 %v1129
        %4474 = vmatpush1.msra.mxu0 %v1128
        %4475 = vmatprep.subr.mxu0 %v1131
        %4476 = vmatpush1.msra.mxu0 %v1130
        %4477 = vmatprep.subr.mxu0 %v1133
        %4478 = vmatpush1.msra.mxu0 %v1132
        %4479 = vmatprep.subr.mxu0 %v1135
        %4480 = vmatpush1.msra.mxu0 %v1134
        %4481 = vmatprep.subr.mxu0 %v1137
        %4482 = vmatpush1.msra.mxu0 %v1136
        %4483 = vmatprep.subr.mxu0 %v1139
        %4484 = vmatpush1.msra.mxu0 %v1138
        %4485 = vmatprep.subr.mxu0 %v1141
        %4486 = vmatpush1.msra.mxu0 %v1140
        %4487 = vmatprep.subr.mxu0 %v1143
        %4488 = vmatpush1.msra.mxu0 %v1142
        %4489 = vmatprep.subr.mxu0 %v1145
        %4490 = vmatpush1.msra.mxu0 %v1144
        %4491 = vmatprep.subr.mxu0 %v1147
        %4492 = vmatpush1.msra.mxu0 %v1146
        %4493 = vmatprep.subr.mxu0 %v1149
        %4494 = vmatpush1.msra.mxu0 %v1148
        %4495 = vmatprep.subr.mxu0 %v1151
        %4496 = vmatpush1.msra.mxu0 %v1150
        %4497 = vmatprep.subr.mxu0 %v1153
        %4498 = vmatpush1.msra.mxu0 %v1152
        %4499 = vmatprep.subr.mxu0 %v1155
        %4500 = vmatpush1.msra.mxu0 %v1154
        %4501 = vmatprep.subr.mxu0 %v1157
        %4502 = vmatpush1.msra.mxu0 %v1156
        %4503 = vmatprep.subr.mxu0 %v1159
        %4504 = vmatpush1.msra.mxu0 %v1158
        %4505 = vmatprep.subr.mxu0 %v1161
        %4506 = vmatpush1.msra.mxu0 %v1160
        %4507 = vmatprep.subr.mxu0 %v1163
        %4508 = vmatpush1.msra.mxu0 %v1162
        %4509 = vmatprep.subr.mxu0 %v1165
        %4510 = vmatpush1.msra.mxu0 %v1164
        %4511 = vmatprep.subr.mxu0 %v1167
        %4512 = vmatpush1.msra.mxu0 %v1166
        %4513 = vmatprep.subr.mxu0 %v1169
        %4514 = vmatpush1.msra.mxu0 %v1168
        %4515 = vmatprep.subr.mxu0 %v1171
        %4516 = vmatpush1.msra.mxu0 %v1170
        %4517 = vmatprep.subr.mxu0 %v1173
        %4518 = vmatpush1.msra.mxu0 %v1172
        %4519 = vmatprep.subr.mxu0 %v1175
        %4520 = vmatpush1.msra.mxu0 %v1174
        %4521 = vmatprep.mubr.f32.mxu0 %v4384
        %4522 = vmatmul.mubr.f32.gmra.mrb[0].mxu0 %v4383
        %v4523 = vpop.f32.mrb[0].mxu0
        %v4524 = vadd.f32 0.0, %v4523
        %v4525 = vpop.f32.mrb[0].mxu0
        %v4526 = vadd.f32 0.0, %v4525
        %4527 = vdwg.mxu0
        %s4528 = scalar_lea.vmem %s10, 4
        %v4529 = vld [vmem:[%s4528] sm:$0x7]
        %vm4530 = vcmask 23552
        %v4532 = vsel %vm4530, %v4529, 0
        %vm4534 = vcmask 1042432
        %v4536 = vsel %vm4534, %v4524, 0
        %v4539 = vsel %vm4534, %v4526, 0
        %4541 = vmatprep.subr.mxu0 %v4539
        %4542 = vmatpush1.msra.mxu0 %v4536
        %4543 = vmatprep.subr.mxu0 0.0
        %4544 = vmatpush1.msra.mxu0 0.0
        %4545 = vmatprep.subr.mxu0 0.0
        %4546 = vmatpush1.msra.mxu0 0.0
        %4547 = vmatprep.subr.mxu0 0.0
        %4548 = vmatpush1.msra.mxu0 0.0
        %4549 = vmatprep.subr.mxu0 0.0
        %4550 = vmatpush1.msra.mxu0 0.0
        %4551 = vmatprep.subr.mxu0 0.0
        %4552 = vmatpush1.msra.mxu0 0.0
        %4553 = vmatprep.subr.mxu0 0.0
        %4554 = vmatpush1.msra.mxu0 0.0
        %4555 = vmatprep.subr.mxu0 0.0
        %4556 = vmatpush1.msra.mxu0 0.0
        %4557 = vmatprep.subr.mxu0 0.0
        %4558 = vmatpush1.msra.mxu0 0.0
        %4559 = vmatprep.subr.mxu0 0.0
        %4560 = vmatpush1.msra.mxu0 0.0
        %4561 = vmatprep.subr.mxu0 0.0
        %4562 = vmatpush1.msra.mxu0 0.0
        %4563 = vmatprep.subr.mxu0 0.0
        %4564 = vmatpush1.msra.mxu0 0.0
        %4565 = vmatprep.subr.mxu0 0.0
        %4566 = vmatpush1.msra.mxu0 0.0
        %4567 = vmatprep.subr.mxu0 0.0
        %4568 = vmatpush1.msra.mxu0 0.0
        %4569 = vmatprep.subr.mxu0 0.0
        %4570 = vmatpush1.msra.mxu0 0.0
        %4571 = vmatprep.subr.mxu0 0.0
        %4572 = vmatpush1.msra.mxu0 0.0
        %4573 = vmatprep.subr.mxu0 0.0
        %4574 = vmatpush1.msra.mxu0 0.0
        %4575 = vmatprep.subr.mxu0 0.0
        %4576 = vmatpush1.msra.mxu0 0.0
        %4577 = vmatprep.subr.mxu0 0.0
        %4578 = vmatpush1.msra.mxu0 0.0
        %4579 = vmatprep.subr.mxu0 0.0
        %4580 = vmatpush1.msra.mxu0 0.0
        %4581 = vmatprep.subr.mxu0 0.0
        %4582 = vmatpush1.msra.mxu0 0.0
        %4583 = vmatprep.subr.mxu0 0.0
        %4584 = vmatpush1.msra.mxu0 0.0
        %4585 = vmatprep.subr.mxu0 0.0
        %4586 = vmatpush1.msra.mxu0 0.0
        %4587 = vmatprep.subr.mxu0 0.0
        %4588 = vmatpush1.msra.mxu0 0.0
        %4589 = vmatprep.subr.mxu0 0.0
        %4590 = vmatpush1.msra.mxu0 0.0
        %4591 = vmatprep.subr.mxu0 0.0
        %4592 = vmatpush1.msra.mxu0 0.0
        %4593 = vmatprep.subr.mxu0 0.0
        %4594 = vmatpush1.msra.mxu0 0.0
        %4595 = vmatprep.subr.mxu0 0.0
        %4596 = vmatpush1.msra.mxu0 0.0
        %4597 = vmatprep.subr.mxu0 0.0
        %4598 = vmatpush1.msra.mxu0 0.0
        %4599 = vmatprep.subr.mxu0 0.0
        %4600 = vmatpush1.msra.mxu0 0.0
        %4601 = vmatprep.subr.mxu0 0.0
        %4602 = vmatpush1.msra.mxu0 0.0
        %4603 = vmatprep.subr.mxu0 0.0
        %4604 = vmatpush1.msra.mxu0 0.0
        %4605 = vmatprep.mubr.f32.mxu0 0.0
        %4606 = vmatmul.mubr.f32.gmra.mrb[0].mxu0 %v4532
        %v4607 = vpop.f32.mrb[0].mxu0
        %v4608 = vadd.f32 0.0, %v4607
        %v4609 = vpop.f32.mrb[0].mxu0
        %v4610 = vadd.f32 0.0, %v4609
        %4611 = vdwg.mxu0
        %v4613 = vsel %vm4530, %v4456, 0
        %v4616 = vsel %vm4534, %v4452, 0
        %v4619 = vsel %vm4534, %v4454, 0
        %4621 = vmatprep.subr.mxu0 %v4619
        %4622 = vmatpush1.msra.mxu0 %v4616
        %4623 = vmatprep.subr.mxu0 0.0
        %4624 = vmatpush1.msra.mxu0 0.0
        %4625 = vmatprep.subr.mxu0 0.0
        %4626 = vmatpush1.msra.mxu0 0.0
        %4627 = vmatprep.subr.mxu0 0.0
        %4628 = vmatpush1.msra.mxu0 0.0
        %4629 = vmatprep.subr.mxu0 0.0
        %4630 = vmatpush1.msra.mxu0 0.0
        %4631 = vmatprep.subr.mxu0 0.0
        %4632 = vmatpush1.msra.mxu0 0.0
        %4633 = vmatprep.subr.mxu0 0.0
        %4634 = vmatpush1.msra.mxu0 0.0
        %4635 = vmatprep.subr.mxu0 0.0
        %4636 = vmatpush1.msra.mxu0 0.0
        %4637 = vmatprep.subr.mxu0 0.0
        %4638 = vmatpush1.msra.mxu0 0.0
        %4639 = vmatprep.subr.mxu0 0.0
        %4640 = vmatpush1.msra.mxu0 0.0
        %4641 = vmatprep.subr.mxu0 0.0
        %4642 = vmatpush1.msra.mxu0 0.0
        %4643 = vmatprep.subr.mxu0 0.0
        %4644 = vmatpush1.msra.mxu0 0.0
        %4645 = vmatprep.subr.mxu0 0.0
        %4646 = vmatpush1.msra.mxu0 0.0
        %4647 = vmatprep.subr.mxu0 0.0
        %4648 = vmatpush1.msra.mxu0 0.0
        %4649 = vmatprep.subr.mxu0 0.0
        %4650 = vmatpush1.msra.mxu0 0.0
        %4651 = vmatprep.subr.mxu0 0.0
        %4652 = vmatpush1.msra.mxu0 0.0
        %4653 = vmatprep.subr.mxu0 0.0
        %4654 = vmatpush1.msra.mxu0 0.0
        %4655 = vmatprep.subr.mxu0 0.0
        %4656 = vmatpush1.msra.mxu0 0.0
        %4657 = vmatprep.subr.mxu0 0.0
        %4658 = vmatpush1.msra.mxu0 0.0
        %4659 = vmatprep.subr.mxu0 0.0
        %4660 = vmatpush1.msra.mxu0 0.0
        %4661 = vmatprep.subr.mxu0 0.0
        %4662 = vmatpush1.msra.mxu0 0.0
        %4663 = vmatprep.subr.mxu0 0.0
        %4664 = vmatpush1.msra.mxu0 0.0
        %4665 = vmatprep.subr.mxu0 0.0
        %4666 = vmatpush1.msra.mxu0 0.0
        %4667 = vmatprep.subr.mxu0 0.0
        %4668 = vmatpush1.msra.mxu0 0.0
        %4669 = vmatprep.subr.mxu0 0.0
        %4670 = vmatpush1.msra.mxu0 0.0
        %4671 = vmatprep.subr.mxu0 0.0
        %4672 = vmatpush1.msra.mxu0 0.0
        %4673 = vmatprep.subr.mxu0 0.0
        %4674 = vmatpush1.msra.mxu0 0.0
        %4675 = vmatprep.subr.mxu0 0.0
        %4676 = vmatpush1.msra.mxu0 0.0
        %4677 = vmatprep.subr.mxu0 0.0
        %4678 = vmatpush1.msra.mxu0 0.0
        %4679 = vmatprep.subr.mxu0 0.0
        %4680 = vmatpush1.msra.mxu0 0.0
        %4681 = vmatprep.subr.mxu0 0.0
        %4682 = vmatpush1.msra.mxu0 0.0
        %4683 = vmatprep.subr.mxu0 0.0
        %4684 = vmatpush1.msra.mxu0 0.0
        %4685 = vmatprep.mubr.f32.mxu0 0.0
        %4686 = vmatmul.mubr.f32.gmra.mrb[0].mxu0 %v4613
        %v4687 = vpop.f32.mrb[0].mxu0
        %v4688 = vadd.f32 %v4608, %v4687
        %v4689 = vpop.f32.mrb[0].mxu0
        %v4690 = vadd.f32 %v4610, %v4689
        %4691 = vdwg.mxu0
        %4692 = vmatprep.subr.mxu0 %v1413
        %4693 = vmatpush1.msra.mxu0 %v1412
        %4694 = vmatprep.subr.mxu0 %v1415
        %4695 = vmatpush1.msra.mxu0 %v1414
        %4696 = vmatprep.subr.mxu0 %v1417
        %4697 = vmatpush1.msra.mxu0 %v1416
        %4698 = vmatprep.subr.mxu0 %v1419
        %4699 = vmatpush1.msra.mxu0 %v1418
        %4700 = vmatprep.subr.mxu0 %v1421
        %4701 = vmatpush1.msra.mxu0 %v1420
        %4702 = vmatprep.subr.mxu0 %v1423
        %4703 = vmatpush1.msra.mxu0 %v1422
        %4704 = vmatprep.subr.mxu0 %v1425
        %4705 = vmatpush1.msra.mxu0 %v1424
        %4706 = vmatprep.subr.mxu0 %v1427
        %4707 = vmatpush1.msra.mxu0 %v1426
        %4708 = vmatprep.subr.mxu0 %v1429
        %4709 = vmatpush1.msra.mxu0 %v1428
        %4710 = vmatprep.subr.mxu0 %v1431
        %4711 = vmatpush1.msra.mxu0 %v1430
        %4712 = vmatprep.subr.mxu0 %v1433
        %4713 = vmatpush1.msra.mxu0 %v1432
        %4714 = vmatprep.subr.mxu0 %v1435
        %4715 = vmatpush1.msra.mxu0 %v1434
        %4716 = vmatprep.subr.mxu0 %v1437
        %4717 = vmatpush1.msra.mxu0 %v1436
        %4718 = vmatprep.subr.mxu0 %v1439
        %4719 = vmatpush1.msra.mxu0 %v1438
        %4720 = vmatprep.subr.mxu0 %v1441
        %4721 = vmatpush1.msra.mxu0 %v1440
        %4722 = vmatprep.subr.mxu0 %v1443
        %4723 = vmatpush1.msra.mxu0 %v1442
        %4724 = vmatprep.subr.mxu0 %v1445
        %4725 = vmatpush1.msra.mxu0 %v1444
        %4726 = vmatprep.subr.mxu0 %v1447
        %4727 = vmatpush1.msra.mxu0 %v1446
        %4728 = vmatprep.subr.mxu0 %v1449
        %4729 = vmatpush1.msra.mxu0 %v1448
        %4730 = vmatprep.subr.mxu0 %v1451
        %4731 = vmatpush1.msra.mxu0 %v1450
        %4732 = vmatprep.subr.mxu0 %v1453
        %4733 = vmatpush1.msra.mxu0 %v1452
        %4734 = vmatprep.subr.mxu0 %v1455
        %4735 = vmatpush1.msra.mxu0 %v1454
        %4736 = vmatprep.subr.mxu0 %v1457
        %4737 = vmatpush1.msra.mxu0 %v1456
        %4738 = vmatprep.subr.mxu0 %v1459
        %4739 = vmatpush1.msra.mxu0 %v1458
        %4740 = vmatprep.subr.mxu0 %v1461
        %4741 = vmatpush1.msra.mxu0 %v1460
        %4742 = vmatprep.subr.mxu0 %v1463
        %4743 = vmatpush1.msra.mxu0 %v1462
        %4744 = vmatprep.subr.mxu0 %v1465
        %4745 = vmatpush1.msra.mxu0 %v1464
        %4746 = vmatprep.subr.mxu0 %v1467
        %4747 = vmatpush1.msra.mxu0 %v1466
        %4748 = vmatprep.subr.mxu0 %v1469
        %4749 = vmatpush1.msra.mxu0 %v1468
        %4750 = vmatprep.subr.mxu0 %v1471
        %4751 = vmatpush1.msra.mxu0 %v1470
        %4752 = vmatprep.subr.mxu0 %v1473
        %4753 = vmatpush1.msra.mxu0 %v1472
        %4754 = vmatprep.subr.mxu0 %v1475
        %4755 = vmatpush1.msra.mxu0 %v1474
        %4756 = vmatprep.mubr.f32.mxu0 %v4384
        %4757 = vmatmul.mubr.f32.gmra.mrb[0].mxu0 %v4383
        %v4758 = vpop.f32.mrb[0].mxu0
        %v4759 = vadd.f32 0.0, %v4758
        %v4760 = vpop.f32.mrb[0].mxu0
        %v4761 = vadd.f32 0.0, %v4760
        %4762 = vdwg.mxu0
        %s4763 = scalar_lea.vmem %s10, 8
        %v4764 = vld [vmem:[%s4763] sm:$0x7]
        %v4766 = vsel %vm4530, %v4764, 0
        %v4769 = vsel %vm4534, %v4759, 0
        %v4772 = vsel %vm4534, %v4761, 0
        %4774 = vmatprep.subr.mxu0 %v4772
        %4775 = vmatpush1.msra.mxu0 %v4769
        %4776 = vmatprep.subr.mxu0 0.0
        %4777 = vmatpush1.msra.mxu0 0.0
        %4778 = vmatprep.subr.mxu0 0.0
        %4779 = vmatpush1.msra.mxu0 0.0
        %4780 = vmatprep.subr.mxu0 0.0
        %4781 = vmatpush1.msra.mxu0 0.0
        %4782 = vmatprep.subr.mxu0 0.0
        %4783 = vmatpush1.msra.mxu0 0.0
        %4784 = vmatprep.subr.mxu0 0.0
        %4785 = vmatpush1.msra.mxu0 0.0
        %4786 = vmatprep.subr.mxu0 0.0
        %4787 = vmatpush1.msra.mxu0 0.0
        %4788 = vmatprep.subr.mxu0 0.0
        %4789 = vmatpush1.msra.mxu0 0.0
        %4790 = vmatprep.subr.mxu0 0.0
        %4791 = vmatpush1.msra.mxu0 0.0
        %4792 = vmatprep.subr.mxu0 0.0
        %4793 = vmatpush1.msra.mxu0 0.0
        %4794 = vmatprep.subr.mxu0 0.0
        %4795 = vmatpush1.msra.mxu0 0.0
        %4796 = vmatprep.subr.mxu0 0.0
        %4797 = vmatpush1.msra.mxu0 0.0
        %4798 = vmatprep.subr.mxu0 0.0
        %4799 = vmatpush1.msra.mxu0 0.0
        %4800 = vmatprep.subr.mxu0 0.0
        %4801 = vmatpush1.msra.mxu0 0.0
        %4802 = vmatprep.subr.mxu0 0.0
        %4803 = vmatpush1.msra.mxu0 0.0
        %4804 = vmatprep.subr.mxu0 0.0
        %4805 = vmatpush1.msra.mxu0 0.0
        %4806 = vmatprep.subr.mxu0 0.0
        %4807 = vmatpush1.msra.mxu0 0.0
        %4808 = vmatprep.subr.mxu0 0.0
        %4809 = vmatpush1.msra.mxu0 0.0
        %4810 = vmatprep.subr.mxu0 0.0
        %4811 = vmatpush1.msra.mxu0 0.0
        %4812 = vmatprep.subr.mxu0 0.0
        %4813 = vmatpush1.msra.mxu0 0.0
        %4814 = vmatprep.subr.mxu0 0.0
        %4815 = vmatpush1.msra.mxu0 0.0
        %4816 = vmatprep.subr.mxu0 0.0
        %4817 = vmatpush1.msra.mxu0 0.0
        %4818 = vmatprep.subr.mxu0 0.0
        %4819 = vmatpush1.msra.mxu0 0.0
        %4820 = vmatprep.subr.mxu0 0.0
        %4821 = vmatpush1.msra.mxu0 0.0
        %4822 = vmatprep.subr.mxu0 0.0
        %4823 = vmatpush1.msra.mxu0 0.0
        %4824 = vmatprep.subr.mxu0 0.0
        %4825 = vmatpush1.msra.mxu0 0.0
        %4826 = vmatprep.subr.mxu0 0.0
        %4827 = vmatpush1.msra.mxu0 0.0
        %4828 = vmatprep.subr.mxu0 0.0
        %4829 = vmatpush1.msra.mxu0 0.0
        %4830 = vmatprep.subr.mxu0 0.0
        %4831 = vmatpush1.msra.mxu0 0.0
        %4832 = vmatprep.subr.mxu0 0.0
        %4833 = vmatpush1.msra.mxu0 0.0
        %4834 = vmatprep.subr.mxu0 0.0
        %4835 = vmatpush1.msra.mxu0 0.0
        %4836 = vmatprep.subr.mxu0 0.0
        %4837 = vmatpush1.msra.mxu0 0.0
        %4838 = vmatprep.mubr.f32.mxu0 0.0
        %4839 = vmatmul.mubr.f32.gmra.mrb[0].mxu0 %v4766
        %v4840 = vpop.f32.mrb[0].mxu0
        %v4841 = vadd.f32 0.0, %v4840
        %v4842 = vpop.f32.mrb[0].mxu0
        %v4843 = vadd.f32 0.0, %v4842
        %4844 = vdwg.mxu0
        %v4845 = vadd.f32 %v4688, %v4841
        %v4846 = vadd.f32 %v4690, %v4843
        %4847 = vmatprep.subr.mxu0 %v1633
        %4848 = vmatpush1.msra.mxu0 %v1632
        %4849 = vmatprep.subr.mxu0 %v1635
        %4850 = vmatpush1.msra.mxu0 %v1634
        %4851 = vmatprep.subr.mxu0 %v1637
        %4852 = vmatpush1.msra.mxu0 %v1636
        %4853 = vmatprep.subr.mxu0 %v1639
        %4854 = vmatpush1.msra.mxu0 %v1638
        %4855 = vmatprep.subr.mxu0 %v1641
        %4856 = vmatpush1.msra.mxu0 %v1640
        %4857 = vmatprep.subr.mxu0 %v1643
        %4858 = vmatpush1.msra.mxu0 %v1642
        %4859 = vmatprep.subr.mxu0 %v1645
        %4860 = vmatpush1.msra.mxu0 %v1644
        %4861 = vmatprep.subr.mxu0 %v1647
        %4862 = vmatpush1.msra.mxu0 %v1646
        %4863 = vmatprep.subr.mxu0 %v1649
        %4864 = vmatpush1.msra.mxu0 %v1648
        %4865 = vmatprep.subr.mxu0 %v1651
        %4866 = vmatpush1.msra.mxu0 %v1650
        %4867 = vmatprep.subr.mxu0 %v1653
        %4868 = vmatpush1.msra.mxu0 %v1652
        %4869 = vmatprep.subr.mxu0 %v1655
        %4870 = vmatpush1.msra.mxu0 %v1654
        %4871 = vmatprep.subr.mxu0 %v1657
        %4872 = vmatpush1.msra.mxu0 %v1656
        %4873 = vmatprep.subr.mxu0 %v1659
        %4874 = vmatpush1.msra.mxu0 %v1658
        %4875 = vmatprep.subr.mxu0 %v1661
        %4876 = vmatpush1.msra.mxu0 %v1660
        %4877 = vmatprep.subr.mxu0 %v1663
        %4878 = vmatpush1.msra.mxu0 %v1662
        %4879 = vmatprep.subr.mxu0 %v1665
        %4880 = vmatpush1.msra.mxu0 %v1664
        %4881 = vmatprep.subr.mxu0 %v1667
        %4882 = vmatpush1.msra.mxu0 %v1666
        %4883 = vmatprep.subr.mxu0 %v1669
        %4884 = vmatpush1.msra.mxu0 %v1668
        %4885 = vmatprep.subr.mxu0 %v1671
        %4886 = vmatpush1.msra.mxu0 %v1670
        %4887 = vmatprep.subr.mxu0 %v1673
        %4888 = vmatpush1.msra.mxu0 %v1672
        %4889 = vmatprep.subr.mxu0 %v1675
        %4890 = vmatpush1.msra.mxu0 %v1674
        %4891 = vmatprep.subr.mxu0 %v1677
        %4892 = vmatpush1.msra.mxu0 %v1676
        %4893 = vmatprep.subr.mxu0 %v1679
        %4894 = vmatpush1.msra.mxu0 %v1678
        %4895 = vmatprep.subr.mxu0 %v1681
        %4896 = vmatpush1.msra.mxu0 %v1680
        %4897 = vmatprep.subr.mxu0 %v1683
        %4898 = vmatpush1.msra.mxu0 %v1682
        %4899 = vmatprep.subr.mxu0 %v1685
        %4900 = vmatpush1.msra.mxu0 %v1684
        %4901 = vmatprep.subr.mxu0 %v1687
        %4902 = vmatpush1.msra.mxu0 %v1686
        %4903 = vmatprep.subr.mxu0 %v1689
        %4904 = vmatpush1.msra.mxu0 %v1688
        %4905 = vmatprep.subr.mxu0 %v1691
        %4906 = vmatpush1.msra.mxu0 %v1690
        %4907 = vmatprep.subr.mxu0 %v1693
        %4908 = vmatpush1.msra.mxu0 %v1692
        %4909 = vmatprep.subr.mxu0 %v1695
        %4910 = vmatpush1.msra.mxu0 %v1694
        %4911 = vmatprep.mubr.f32.mxu0 %v4384
        %4912 = vmatmul.mubr.f32.gmra.mrb[0].mxu0 %v4383
        %v4913 = vpop.f32.mrb[0].mxu0
        %v4914 = vadd.f32 0.0, %v4913
        %v4915 = vpop.f32.mrb[0].mxu0
        %v4916 = vadd.f32 0.0, %v4915
        %4917 = vdwg.mxu0
        %s4918 = scalar_lea.vmem %s10, 12
        %v4919 = vld [vmem:[%s4918] sm:$0x7]
        %v4921 = vsel %vm4530, %v4919, 0
        %v4924 = vsel %vm4534, %v4914, 0
        %v4927 = vsel %vm4534, %v4916, 0
        %4929 = vmatprep.subr.mxu0 %v4927
        %4930 = vmatpush1.msra.mxu0 %v4924
        %4931 = vmatprep.subr.mxu0 0.0
        %4932 = vmatpush1.msra.mxu0 0.0
        %4933 = vmatprep.subr.mxu0 0.0
        %4934 = vmatpush1.msra.mxu0 0.0
        %4935 = vmatprep.subr.mxu0 0.0
        %4936 = vmatpush1.msra.mxu0 0.0
        %4937 = vmatprep.subr.mxu0 0.0
        %4938 = vmatpush1.msra.mxu0 0.0
        %4939 = vmatprep.subr.mxu0 0.0
        %4940 = vmatpush1.msra.mxu0 0.0
        %4941 = vmatprep.subr.mxu0 0.0
        %4942 = vmatpush1.msra.mxu0 0.0
        %4943 = vmatprep.subr.mxu0 0.0
        %4944 = vmatpush1.msra.mxu0 0.0
        %4945 = vmatprep.subr.mxu0 0.0
        %4946 = vmatpush1.msra.mxu0 0.0
        %4947 = vmatprep.subr.mxu0 0.0
        %4948 = vmatpush1.msra.mxu0 0.0
        %4949 = vmatprep.subr.mxu0 0.0
        %4950 = vmatpush1.msra.mxu0 0.0
        %4951 = vmatprep.subr.mxu0 0.0
        %4952 = vmatpush1.msra.mxu0 0.0
        %4953 = vmatprep.subr.mxu0 0.0
        %4954 = vmatpush1.msra.mxu0 0.0
        %4955 = vmatprep.subr.mxu0 0.0
        %4956 = vmatpush1.msra.mxu0 0.0
        %4957 = vmatprep.subr.mxu0 0.0
        %4958 = vmatpush1.msra.mxu0 0.0
        %4959 = vmatprep.subr.mxu0 0.0
        %4960 = vmatpush1.msra.mxu0 0.0
        %4961 = vmatprep.subr.mxu0 0.0
        %4962 = vmatpush1.msra.mxu0 0.0
        %4963 = vmatprep.subr.mxu0 0.0
        %4964 = vmatpush1.msra.mxu0 0.0
        %4965 = vmatprep.subr.mxu0 0.0
        %4966 = vmatpush1.msra.mxu0 0.0
        %4967 = vmatprep.subr.mxu0 0.0
        %4968 = vmatpush1.msra.mxu0 0.0
        %4969 = vmatprep.subr.mxu0 0.0
        %4970 = vmatpush1.msra.mxu0 0.0
        %4971 = vmatprep.subr.mxu0 0.0
        %4972 = vmatpush1.msra.mxu0 0.0
        %4973 = vmatprep.subr.mxu0 0.0
        %4974 = vmatpush1.msra.mxu0 0.0
        %4975 = vmatprep.subr.mxu0 0.0
        %4976 = vmatpush1.msra.mxu0 0.0
        %4977 = vmatprep.subr.mxu0 0.0
        %4978 = vmatpush1.msra.mxu0 0.0
        %4979 = vmatprep.subr.mxu0 0.0
        %4980 = vmatpush1.msra.mxu0 0.0
        %4981 = vmatprep.subr.mxu0 0.0
        %4982 = vmatpush1.msra.mxu0 0.0
        %4983 = vmatprep.subr.mxu0 0.0
        %4984 = vmatpush1.msra.mxu0 0.0
        %4985 = vmatprep.subr.mxu0 0.0
        %4986 = vmatpush1.msra.mxu0 0.0
        %4987 = vmatprep.subr.mxu0 0.0
        %4988 = vmatpush1.msra.mxu0 0.0
        %4989 = vmatprep.subr.mxu0 0.0
        %4990 = vmatpush1.msra.mxu0 0.0
        %4991 = vmatprep.subr.mxu0 0.0
        %4992 = vmatpush1.msra.mxu0 0.0
        %4993 = vmatprep.mubr.f32.mxu0 0.0
        %4994 = vmatmul.mubr.f32.gmra.mrb[0].mxu0 %v4921
        %v4995 = vpop.f32.mrb[0].mxu0
        %v4996 = vadd.f32 0.0, %v4995
        %v4997 = vpop.f32.mrb[0].mxu0
        %v4998 = vadd.f32 0.0, %v4997
        %4999 = vdwg.mxu0
        %v5000 = vadd.f32 %v4845, %v4996
        %v5001 = vadd.f32 %v4846, %v4998
        %5002 = vmatprep.subr.mxu0 %v1853
        %5003 = vmatpush1.msra.mxu0 %v1852
        %5004 = vmatprep.subr.mxu0 %v1855
        %5005 = vmatpush1.msra.mxu0 %v1854
        %5006 = vmatprep.subr.mxu0 %v1857
        %5007 = vmatpush1.msra.mxu0 %v1856
        %5008 = vmatprep.subr.mxu0 %v1859
        %5009 = vmatpush1.msra.mxu0 %v1858
        %5010 = vmatprep.subr.mxu0 %v1861
        %5011 = vmatpush1.msra.mxu0 %v1860
        %5012 = vmatprep.subr.mxu0 %v1863
        %5013 = vmatpush1.msra.mxu0 %v1862
        %5014 = vmatprep.subr.mxu0 %v1865
        %5015 = vmatpush1.msra.mxu0 %v1864
        %5016 = vmatprep.subr.mxu0 %v1867
        %5017 = vmatpush1.msra.mxu0 %v1866
        %5018 = vmatprep.subr.mxu0 %v1869
        %5019 = vmatpush1.msra.mxu0 %v1868
        %5020 = vmatprep.subr.mxu0 %v1871
        %5021 = vmatpush1.msra.mxu0 %v1870
        %5022 = vmatprep.subr.mxu0 %v1873
        %5023 = vmatpush1.msra.mxu0 %v1872
        %5024 = vmatprep.subr.mxu0 %v1875
        %5025 = vmatpush1.msra.mxu0 %v1874
        %5026 = vmatprep.subr.mxu0 %v1877
        %5027 = vmatpush1.msra.mxu0 %v1876
        %5028 = vmatprep.subr.mxu0 %v1879
        %5029 = vmatpush1.msra.mxu0 %v1878
        %5030 = vmatprep.subr.mxu0 %v1881
        %5031 = vmatpush1.msra.mxu0 %v1880
        %5032 = vmatprep.subr.mxu0 %v1883
        %5033 = vmatpush1.msra.mxu0 %v1882
        %5034 = vmatprep.subr.mxu0 %v1885
        %5035 = vmatpush1.msra.mxu0 %v1884
        %5036 = vmatprep.subr.mxu0 %v1887
        %5037 = vmatpush1.msra.mxu0 %v1886
        %5038 = vmatprep.subr.mxu0 %v1889
        %5039 = vmatpush1.msra.mxu0 %v1888
        %5040 = vmatprep.subr.mxu0 %v1891
        %5041 = vmatpush1.msra.mxu0 %v1890
        %5042 = vmatprep.subr.mxu0 %v1893
        %5043 = vmatpush1.msra.mxu0 %v1892
        %5044 = vmatprep.subr.mxu0 %v1895
        %5045 = vmatpush1.msra.mxu0 %v1894
        %5046 = vmatprep.subr.mxu0 %v1897
        %5047 = vmatpush1.msra.mxu0 %v1896
        %5048 = vmatprep.subr.mxu0 %v1899
        %5049 = vmatpush1.msra.mxu0 %v1898
        %5050 = vmatprep.subr.mxu0 %v1901
        %5051 = vmatpush1.msra.mxu0 %v1900
        %5052 = vmatprep.subr.mxu0 %v1903
        %5053 = vmatpush1.msra.mxu0 %v1902
        %5054 = vmatprep.subr.mxu0 %v1905
        %5055 = vmatpush1.msra.mxu0 %v1904
        %5056 = vmatprep.subr.mxu0 %v1907
        %5057 = vmatpush1.msra.mxu0 %v1906
        %5058 = vmatprep.subr.mxu0 %v1909
        %5059 = vmatpush1.msra.mxu0 %v1908
        %5060 = vmatprep.subr.mxu0 %v1911
        %5061 = vmatpush1.msra.mxu0 %v1910
        %5062 = vmatprep.subr.mxu0 %v1913
        %5063 = vmatpush1.msra.mxu0 %v1912
        %5064 = vmatprep.subr.mxu0 %v1915
        %5065 = vmatpush1.msra.mxu0 %v1914
        %5066 = vmatprep.mubr.f32.mxu0 %v4384
        %5067 = vmatmul.mubr.f32.gmra.mrb[0].mxu0 %v4383
        %v5068 = vpop.f32.mrb[0].mxu0
        %v5069 = vadd.f32 0.0, %v5068
        %v5070 = vpop.f32.mrb[0].mxu0
        %v5071 = vadd.f32 0.0, %v5070
        %5072 = vdwg.mxu0
        %s5073 = scalar_lea.vmem %s10, 16
        %v5074 = vld [vmem:[%s5073] sm:$0x7]
        %v5076 = vsel %vm4530, %v5074, 0
        %v5079 = vsel %vm4534, %v5069, 0
        %v5082 = vsel %vm4534, %v5071, 0
        %5084 = vmatprep.subr.mxu0 %v5082
        %5085 = vmatpush1.msra.mxu0 %v5079
        %5086 = vmatprep.subr.mxu0 0.0
        %5087 = vmatpush1.msra.mxu0 0.0
        %5088 = vmatprep.subr.mxu0 0.0
        %5089 = vmatpush1.msra.mxu0 0.0
        %5090 = vmatprep.subr.mxu0 0.0
        %5091 = vmatpush1.msra.mxu0 0.0
        %5092 = vmatprep.subr.mxu0 0.0
        %5093 = vmatpush1.msra.mxu0 0.0
        %5094 = vmatprep.subr.mxu0 0.0
        %5095 = vmatpush1.msra.mxu0 0.0
        %5096 = vmatprep.subr.mxu0 0.0
        %5097 = vmatpush1.msra.mxu0 0.0
        %5098 = vmatprep.subr.mxu0 0.0
        %5099 = vmatpush1.msra.mxu0 0.0
        %5100 = vmatprep.subr.mxu0 0.0
        %5101 = vmatpush1.msra.mxu0 0.0
        %5102 = vmatprep.subr.mxu0 0.0
        %5103 = vmatpush1.msra.mxu0 0.0
        %5104 = vmatprep.subr.mxu0 0.0
        %5105 = vmatpush1.msra.mxu0 0.0
        %5106 = vmatprep.subr.mxu0 0.0
        %5107 = vmatpush1.msra.mxu0 0.0
        %5108 = vmatprep.subr.mxu0 0.0
        %5109 = vmatpush1.msra.mxu0 0.0
        %5110 = vmatprep.subr.mxu0 0.0
        %5111 = vmatpush1.msra.mxu0 0.0
        %5112 = vmatprep.subr.mxu0 0.0
        %5113 = vmatpush1.msra.mxu0 0.0
        %5114 = vmatprep.subr.mxu0 0.0
        %5115 = vmatpush1.msra.mxu0 0.0
        %5116 = vmatprep.subr.mxu0 0.0
        %5117 = vmatpush1.msra.mxu0 0.0
        %5118 = vmatprep.subr.mxu0 0.0
        %5119 = vmatpush1.msra.mxu0 0.0
        %5120 = vmatprep.subr.mxu0 0.0
        %5121 = vmatpush1.msra.mxu0 0.0
        %5122 = vmatprep.subr.mxu0 0.0
        %5123 = vmatpush1.msra.mxu0 0.0
        %5124 = vmatprep.subr.mxu0 0.0
        %5125 = vmatpush1.msra.mxu0 0.0
        %5126 = vmatprep.subr.mxu0 0.0
        %5127 = vmatpush1.msra.mxu0 0.0
        %5128 = vmatprep.subr.mxu0 0.0
        %5129 = vmatpush1.msra.mxu0 0.0
        %5130 = vmatprep.subr.mxu0 0.0
        %5131 = vmatpush1.msra.mxu0 0.0
        %5132 = vmatprep.subr.mxu0 0.0
        %5133 = vmatpush1.msra.mxu0 0.0
        %5134 = vmatprep.subr.mxu0 0.0
        %5135 = vmatpush1.msra.mxu0 0.0
        %5136 = vmatprep.subr.mxu0 0.0
        %5137 = vmatpush1.msra.mxu0 0.0
        %5138 = vmatprep.subr.mxu0 0.0
        %5139 = vmatpush1.msra.mxu0 0.0
        %5140 = vmatprep.subr.mxu0 0.0
        %5141 = vmatpush1.msra.mxu0 0.0
        %5142 = vmatprep.subr.mxu0 0.0
        %5143 = vmatpush1.msra.mxu0 0.0
        %5144 = vmatprep.subr.mxu0 0.0
        %5145 = vmatpush1.msra.mxu0 0.0
        %5146 = vmatprep.subr.mxu0 0.0
        %5147 = vmatpush1.msra.mxu0 0.0
        %5148 = vmatprep.mubr.f32.mxu0 0.0
        %5149 = vmatmul.mubr.f32.gmra.mrb[0].mxu0 %v5076
        %v5150 = vpop.f32.mrb[0].mxu0
        %v5151 = vadd.f32 0.0, %v5150
        %v5152 = vpop.f32.mrb[0].mxu0
        %v5153 = vadd.f32 0.0, %v5152
        %5154 = vdwg.mxu0
        %v5155 = vadd.f32 %v5000, %v5151
        %v5156 = vadd.f32 %v5001, %v5153
        %5157 = vmatprep.subr.mxu0 %v2073
        %5158 = vmatpush1.msra.mxu0 %v2072
        %5159 = vmatprep.subr.mxu0 %v2075
        %5160 = vmatpush1.msra.mxu0 %v2074
        %5161 = vmatprep.subr.mxu0 %v2077
        %5162 = vmatpush1.msra.mxu0 %v2076
        %5163 = vmatprep.subr.mxu0 %v2079
        %5164 = vmatpush1.msra.mxu0 %v2078
        %5165 = vmatprep.subr.mxu0 %v2081
        %5166 = vmatpush1.msra.mxu0 %v2080
        %5167 = vmatprep.subr.mxu0 %v2083
        %5168 = vmatpush1.msra.mxu0 %v2082
        %5169 = vmatprep.subr.mxu0 %v2085
        %5170 = vmatpush1.msra.mxu0 %v2084
        %5171 = vmatprep.subr.mxu0 %v2087
        %5172 = vmatpush1.msra.mxu0 %v2086
        %5173 = vmatprep.subr.mxu0 %v2089
        %5174 = vmatpush1.msra.mxu0 %v2088
        %5175 = vmatprep.subr.mxu0 %v2091
        %5176 = vmatpush1.msra.mxu0 %v2090
        %5177 = vmatprep.subr.mxu0 %v2093
        %5178 = vmatpush1.msra.mxu0 %v2092
        %5179 = vmatprep.subr.mxu0 %v2095
        %5180 = vmatpush1.msra.mxu0 %v2094
        %5181 = vmatprep.subr.mxu0 %v2097
        %5182 = vmatpush1.msra.mxu0 %v2096
        %5183 = vmatprep.subr.mxu0 %v2099
        %5184 = vmatpush1.msra.mxu0 %v2098
        %5185 = vmatprep.subr.mxu0 %v2101
        %5186 = vmatpush1.msra.mxu0 %v2100
        %5187 = vmatprep.subr.mxu0 %v2103
        %5188 = vmatpush1.msra.mxu0 %v2102
        %5189 = vmatprep.subr.mxu0 %v2105
        %5190 = vmatpush1.msra.mxu0 %v2104
        %5191 = vmatprep.subr.mxu0 %v2107
        %5192 = vmatpush1.msra.mxu0 %v2106
        %5193 = vmatprep.subr.mxu0 %v2109
        %5194 = vmatpush1.msra.mxu0 %v2108
        %5195 = vmatprep.subr.mxu0 %v2111
        %5196 = vmatpush1.msra.mxu0 %v2110
        %5197 = vmatprep.subr.mxu0 %v2113
        %5198 = vmatpush1.msra.mxu0 %v2112
        %5199 = vmatprep.subr.mxu0 %v2115
        %5200 = vmatpush1.msra.mxu0 %v2114
        %5201 = vmatprep.subr.mxu0 %v2117
        %5202 = vmatpush1.msra.mxu0 %v2116
        %5203 = vmatprep.subr.mxu0 %v2119
        %5204 = vmatpush1.msra.mxu0 %v2118
        %5205 = vmatprep.subr.mxu0 %v2121
        %5206 = vmatpush1.msra.mxu0 %v2120
        %5207 = vmatprep.subr.mxu0 %v2123
        %5208 = vmatpush1.msra.mxu0 %v2122
        %5209 = vmatprep.subr.mxu0 %v2125
        %5210 = vmatpush1.msra.mxu0 %v2124
        %5211 = vmatprep.subr.mxu0 %v2127
        %5212 = vmatpush1.msra.mxu0 %v2126
        %5213 = vmatprep.subr.mxu0 %v2129
        %5214 = vmatpush1.msra.mxu0 %v2128
        %5215 = vmatprep.subr.mxu0 %v2131
        %5216 = vmatpush1.msra.mxu0 %v2130
        %5217 = vmatprep.subr.mxu0 %v2133
        %5218 = vmatpush1.msra.mxu0 %v2132
        %5219 = vmatprep.subr.mxu0 %v2135
        %5220 = vmatpush1.msra.mxu0 %v2134
        %5221 = vmatprep.mubr.f32.mxu0 %v4384
        %5222 = vmatmul.mubr.f32.gmra.mrb[0].mxu0 %v4383
        %v5223 = vpop.f32.mrb[0].mxu0
        %v5224 = vadd.f32 0.0, %v5223
        %v5225 = vpop.f32.mrb[0].mxu0
        %v5226 = vadd.f32 0.0, %v5225
        %5227 = vdwg.mxu0
        %s5228 = scalar_lea.vmem %s10, 20
        %v5229 = vld [vmem:[%s5228] sm:$0x7]
        %v5231 = vsel %vm4530, %v5229, 0
        %v5234 = vsel %vm4534, %v5224, 0
        %v5237 = vsel %vm4534, %v5226, 0
        %5239 = vmatprep.subr.mxu0 %v5237
        %5240 = vmatpush1.msra.mxu0 %v5234
        %5241 = vmatprep.subr.mxu0 0.0
        %5242 = vmatpush1.msra.mxu0 0.0
        %5243 = vmatprep.subr.mxu0 0.0
        %5244 = vmatpush1.msra.mxu0 0.0
        %5245 = vmatprep.subr.mxu0 0.0
        %5246 = vmatpush1.msra.mxu0 0.0
        %5247 = vmatprep.subr.mxu0 0.0
        %5248 = vmatpush1.msra.mxu0 0.0
        %5249 = vmatprep.subr.mxu0 0.0
        %5250 = vmatpush1.msra.mxu0 0.0
        %5251 = vmatprep.subr.mxu0 0.0
        %5252 = vmatpush1.msra.mxu0 0.0
        %5253 = vmatprep.subr.mxu0 0.0
        %5254 = vmatpush1.msra.mxu0 0.0
        %5255 = vmatprep.subr.mxu0 0.0
        %5256 = vmatpush1.msra.mxu0 0.0
        %5257 = vmatprep.subr.mxu0 0.0
        %5258 = vmatpush1.msra.mxu0 0.0
        %5259 = vmatprep.subr.mxu0 0.0
        %5260 = vmatpush1.msra.mxu0 0.0
        %5261 = vmatprep.subr.mxu0 0.0
        %5262 = vmatpush1.msra.mxu0 0.0
        %5263 = vmatprep.subr.mxu0 0.0
        %5264 = vmatpush1.msra.mxu0 0.0
        %5265 = vmatprep.subr.mxu0 0.0
        %5266 = vmatpush1.msra.mxu0 0.0
        %5267 = vmatprep.subr.mxu0 0.0
        %5268 = vmatpush1.msra.mxu0 0.0
        %5269 = vmatprep.subr.mxu0 0.0
        %5270 = vmatpush1.msra.mxu0 0.0
        %5271 = vmatprep.subr.mxu0 0.0
        %5272 = vmatpush1.msra.mxu0 0.0
        %5273 = vmatprep.subr.mxu0 0.0
        %5274 = vmatpush1.msra.mxu0 0.0
        %5275 = vmatprep.subr.mxu0 0.0
        %5276 = vmatpush1.msra.mxu0 0.0
        %5277 = vmatprep.subr.mxu0 0.0
        %5278 = vmatpush1.msra.mxu0 0.0
        %5279 = vmatprep.subr.mxu0 0.0
        %5280 = vmatpush1.msra.mxu0 0.0
        %5281 = vmatprep.subr.mxu0 0.0
        %5282 = vmatpush1.msra.mxu0 0.0
        %5283 = vmatprep.subr.mxu0 0.0
        %5284 = vmatpush1.msra.mxu0 0.0
        %5285 = vmatprep.subr.mxu0 0.0
        %5286 = vmatpush1.msra.mxu0 0.0
        %5287 = vmatprep.subr.mxu0 0.0
        %5288 = vmatpush1.msra.mxu0 0.0
        %5289 = vmatprep.subr.mxu0 0.0
        %5290 = vmatpush1.msra.mxu0 0.0
        %5291 = vmatprep.subr.mxu0 0.0
        %5292 = vmatpush1.msra.mxu0 0.0
        %5293 = vmatprep.subr.mxu0 0.0
        %5294 = vmatpush1.msra.mxu0 0.0
        %5295 = vmatprep.subr.mxu0 0.0
        %5296 = vmatpush1.msra.mxu0 0.0
        %5297 = vmatprep.subr.mxu0 0.0
        %5298 = vmatpush1.msra.mxu0 0.0
        %5299 = vmatprep.subr.mxu0 0.0
        %5300 = vmatpush1.msra.mxu0 0.0
        %5301 = vmatprep.subr.mxu0 0.0
        %5302 = vmatpush1.msra.mxu0 0.0
        %5303 = vmatprep.mubr.f32.mxu0 0.0
        %5304 = vmatmul.mubr.f32.gmra.mrb[0].mxu0 %v5231
        %v5305 = vpop.f32.mrb[0].mxu0
        %v5306 = vadd.f32 0.0, %v5305
        %v5307 = vpop.f32.mrb[0].mxu0
        %v5308 = vadd.f32 0.0, %v5307
        %5309 = vdwg.mxu0
        %v5310 = vadd.f32 %v5155, %v5306
        %v5311 = vadd.f32 %v5156, %v5308
        %5312 = vmatprep.subr.mxu0 %v2293
        %5313 = vmatpush1.msra.mxu0 %v2292
        %5314 = vmatprep.subr.mxu0 %v2295
        %5315 = vmatpush1.msra.mxu0 %v2294
        %5316 = vmatprep.subr.mxu0 %v2297
        %5317 = vmatpush1.msra.mxu0 %v2296
        %5318 = vmatprep.subr.mxu0 %v2299
        %5319 = vmatpush1.msra.mxu0 %v2298
        %5320 = vmatprep.subr.mxu0 %v2301
        %5321 = vmatpush1.msra.mxu0 %v2300
        %5322 = vmatprep.subr.mxu0 %v2303
        %5323 = vmatpush1.msra.mxu0 %v2302
        %5324 = vmatprep.subr.mxu0 %v2305
        %5325 = vmatpush1.msra.mxu0 %v2304
        %5326 = vmatprep.subr.mxu0 %v2307
        %5327 = vmatpush1.msra.mxu0 %v2306
        %5328 = vmatprep.subr.mxu0 %v2309
        %5329 = vmatpush1.msra.mxu0 %v2308
        %5330 = vmatprep.subr.mxu0 %v2311
        %5331 = vmatpush1.msra.mxu0 %v2310
        %5332 = vmatprep.subr.mxu0 %v2313
        %5333 = vmatpush1.msra.mxu0 %v2312
        %5334 = vmatprep.subr.mxu0 %v2315
        %5335 = vmatpush1.msra.mxu0 %v2314
        %5336 = vmatprep.subr.mxu0 %v2317
        %5337 = vmatpush1.msra.mxu0 %v2316
        %5338 = vmatprep.subr.mxu0 %v2319
        %5339 = vmatpush1.msra.mxu0 %v2318
        %5340 = vmatprep.subr.mxu0 %v2321
        %5341 = vmatpush1.msra.mxu0 %v2320
        %5342 = vmatprep.subr.mxu0 %v2323
        %5343 = vmatpush1.msra.mxu0 %v2322
        %5344 = vmatprep.subr.mxu0 %v2325
        %5345 = vmatpush1.msra.mxu0 %v2324
        %5346 = vmatprep.subr.mxu0 %v2327
        %5347 = vmatpush1.msra.mxu0 %v2326
        %5348 = vmatprep.subr.mxu0 %v2329
        %5349 = vmatpush1.msra.mxu0 %v2328
        %5350 = vmatprep.subr.mxu0 %v2331
        %5351 = vmatpush1.msra.mxu0 %v2330
        %5352 = vmatprep.subr.mxu0 %v2333
        %5353 = vmatpush1.msra.mxu0 %v2332
        %5354 = vmatprep.subr.mxu0 %v2335
        %5355 = vmatpush1.msra.mxu0 %v2334
        %5356 = vmatprep.subr.mxu0 %v2337
        %5357 = vmatpush1.msra.mxu0 %v2336
        %5358 = vmatprep.subr.mxu0 %v2339
        %5359 = vmatpush1.msra.mxu0 %v2338
        %5360 = vmatprep.subr.mxu0 %v2341
        %5361 = vmatpush1.msra.mxu0 %v2340
        %5362 = vmatprep.subr.mxu0 %v2343
        %5363 = vmatpush1.msra.mxu0 %v2342
        %5364 = vmatprep.subr.mxu0 %v2345
        %5365 = vmatpush1.msra.mxu0 %v2344
        %5366 = vmatprep.subr.mxu0 %v2347
        %5367 = vmatpush1.msra.mxu0 %v2346
        %5368 = vmatprep.subr.mxu0 %v2349
        %5369 = vmatpush1.msra.mxu0 %v2348
        %5370 = vmatprep.subr.mxu0 %v2351
        %5371 = vmatpush1.msra.mxu0 %v2350
        %5372 = vmatprep.subr.mxu0 %v2353
        %5373 = vmatpush1.msra.mxu0 %v2352
        %5374 = vmatprep.subr.mxu0 %v2355
        %5375 = vmatpush1.msra.mxu0 %v2354
        %5376 = vmatprep.mubr.f32.mxu0 %v4384
        %5377 = vmatmul.mubr.f32.gmra.mrb[0].mxu0 %v4383
        %v5378 = vpop.f32.mrb[0].mxu0
        %v5379 = vadd.f32 0.0, %v5378
        %v5380 = vpop.f32.mrb[0].mxu0
        %v5381 = vadd.f32 0.0, %v5380
        %5382 = vdwg.mxu0
        %s5383 = scalar_lea.vmem %s10, 24
        %v5384 = vld [vmem:[%s5383] sm:$0x7]
        %v5386 = vsel %vm4530, %v5384, 0
        %v5389 = vsel %vm4534, %v5379, 0
        %v5392 = vsel %vm4534, %v5381, 0
        %5394 = vmatprep.subr.mxu0 %v5392
        %5395 = vmatpush1.msra.mxu0 %v5389
        %5396 = vmatprep.subr.mxu0 0.0
        %5397 = vmatpush1.msra.mxu0 0.0
        %5398 = vmatprep.subr.mxu0 0.0
        %5399 = vmatpush1.msra.mxu0 0.0
        %5400 = vmatprep.subr.mxu0 0.0
        %5401 = vmatpush1.msra.mxu0 0.0
        %5402 = vmatprep.subr.mxu0 0.0
        %5403 = vmatpush1.msra.mxu0 0.0
        %5404 = vmatprep.subr.mxu0 0.0
        %5405 = vmatpush1.msra.mxu0 0.0
        %5406 = vmatprep.subr.mxu0 0.0
        %5407 = vmatpush1.msra.mxu0 0.0
        %5408 = vmatprep.subr.mxu0 0.0
        %5409 = vmatpush1.msra.mxu0 0.0
        %5410 = vmatprep.subr.mxu0 0.0
        %5411 = vmatpush1.msra.mxu0 0.0
        %5412 = vmatprep.subr.mxu0 0.0
        %5413 = vmatpush1.msra.mxu0 0.0
        %5414 = vmatprep.subr.mxu0 0.0
        %5415 = vmatpush1.msra.mxu0 0.0
        %5416 = vmatprep.subr.mxu0 0.0
        %5417 = vmatpush1.msra.mxu0 0.0
        %5418 = vmatprep.subr.mxu0 0.0
        %5419 = vmatpush1.msra.mxu0 0.0
        %5420 = vmatprep.subr.mxu0 0.0
        %5421 = vmatpush1.msra.mxu0 0.0
        %5422 = vmatprep.subr.mxu0 0.0
        %5423 = vmatpush1.msra.mxu0 0.0
        %5424 = vmatprep.subr.mxu0 0.0
        %5425 = vmatpush1.msra.mxu0 0.0
        %5426 = vmatprep.subr.mxu0 0.0
        %5427 = vmatpush1.msra.mxu0 0.0
        %5428 = vmatprep.subr.mxu0 0.0
        %5429 = vmatpush1.msra.mxu0 0.0
        %5430 = vmatprep.subr.mxu0 0.0
        %5431 = vmatpush1.msra.mxu0 0.0
        %5432 = vmatprep.subr.mxu0 0.0
        %5433 = vmatpush1.msra.mxu0 0.0
        %5434 = vmatprep.subr.mxu0 0.0
        %5435 = vmatpush1.msra.mxu0 0.0
        %5436 = vmatprep.subr.mxu0 0.0
        %5437 = vmatpush1.msra.mxu0 0.0
        %5438 = vmatprep.subr.mxu0 0.0
        %5439 = vmatpush1.msra.mxu0 0.0
        %5440 = vmatprep.subr.mxu0 0.0
        %5441 = vmatpush1.msra.mxu0 0.0
        %5442 = vmatprep.subr.mxu0 0.0
        %5443 = vmatpush1.msra.mxu0 0.0
        %5444 = vmatprep.subr.mxu0 0.0
        %5445 = vmatpush1.msra.mxu0 0.0
        %5446 = vmatprep.subr.mxu0 0.0
        %5447 = vmatpush1.msra.mxu0 0.0
        %5448 = vmatprep.subr.mxu0 0.0
        %5449 = vmatpush1.msra.mxu0 0.0
        %5450 = vmatprep.subr.mxu0 0.0
        %5451 = vmatpush1.msra.mxu0 0.0
        %5452 = vmatprep.subr.mxu0 0.0
        %5453 = vmatpush1.msra.mxu0 0.0
        %5454 = vmatprep.subr.mxu0 0.0
        %5455 = vmatpush1.msra.mxu0 0.0
        %5456 = vmatprep.subr.mxu0 0.0
        %5457 = vmatpush1.msra.mxu0 0.0
        %5458 = vmatprep.mubr.f32.mxu0 0.0
        %5459 = vmatmul.mubr.f32.gmra.mrb[0].mxu0 %v5386
        %v5460 = vpop.f32.mrb[0].mxu0
        %v5461 = vadd.f32 0.0, %v5460
        %v5462 = vpop.f32.mrb[0].mxu0
        %v5463 = vadd.f32 0.0, %v5462
        %5464 = vdwg.mxu0
        %v5465 = vadd.f32 %v5310, %v5461
        %v5466 = vadd.f32 %v5311, %v5463
        %5467 = vmatprep.subr.mxu0 %v2513
        %5468 = vmatpush1.msra.mxu0 %v2512
        %5469 = vmatprep.subr.mxu0 %v2515
        %5470 = vmatpush1.msra.mxu0 %v2514
        %5471 = vmatprep.subr.mxu0 %v2517
        %5472 = vmatpush1.msra.mxu0 %v2516
        %5473 = vmatprep.subr.mxu0 %v2519
        %5474 = vmatpush1.msra.mxu0 %v2518
        %5475 = vmatprep.subr.mxu0 %v2521
        %5476 = vmatpush1.msra.mxu0 %v2520
        %5477 = vmatprep.subr.mxu0 %v2523
        %5478 = vmatpush1.msra.mxu0 %v2522
        %5479 = vmatprep.subr.mxu0 %v2525
        %5480 = vmatpush1.msra.mxu0 %v2524
        %5481 = vmatprep.subr.mxu0 %v2527
        %5482 = vmatpush1.msra.mxu0 %v2526
        %5483 = vmatprep.subr.mxu0 %v2529
        %5484 = vmatpush1.msra.mxu0 %v2528
        %5485 = vmatprep.subr.mxu0 %v2531
        %5486 = vmatpush1.msra.mxu0 %v2530
        %5487 = vmatprep.subr.mxu0 %v2533
        %5488 = vmatpush1.msra.mxu0 %v2532
        %5489 = vmatprep.subr.mxu0 %v2535
        %5490 = vmatpush1.msra.mxu0 %v2534
        %5491 = vmatprep.subr.mxu0 %v2537
        %5492 = vmatpush1.msra.mxu0 %v2536
        %5493 = vmatprep.subr.mxu0 %v2539
        %5494 = vmatpush1.msra.mxu0 %v2538
        %5495 = vmatprep.subr.mxu0 %v2541
        %5496 = vmatpush1.msra.mxu0 %v2540
        %5497 = vmatprep.subr.mxu0 %v2543
        %5498 = vmatpush1.msra.mxu0 %v2542
        %5499 = vmatprep.subr.mxu0 %v2545
        %5500 = vmatpush1.msra.mxu0 %v2544
        %5501 = vmatprep.subr.mxu0 %v2547
        %5502 = vmatpush1.msra.mxu0 %v2546
        %5503 = vmatprep.subr.mxu0 %v2549
        %5504 = vmatpush1.msra.mxu0 %v2548
        %5505 = vmatprep.subr.mxu0 %v2551
        %5506 = vmatpush1.msra.mxu0 %v2550
        %5507 = vmatprep.subr.mxu0 %v2553
        %5508 = vmatpush1.msra.mxu0 %v2552
        %5509 = vmatprep.subr.mxu0 %v2555
        %5510 = vmatpush1.msra.mxu0 %v2554
        %5511 = vmatprep.subr.mxu0 %v2557
        %5512 = vmatpush1.msra.mxu0 %v2556
        %5513 = vmatprep.subr.mxu0 %v2559
        %5514 = vmatpush1.msra.mxu0 %v2558
        %5515 = vmatprep.subr.mxu0 %v2561
        %5516 = vmatpush1.msra.mxu0 %v2560
        %5517 = vmatprep.subr.mxu0 %v2563
        %5518 = vmatpush1.msra.mxu0 %v2562
        %5519 = vmatprep.subr.mxu0 %v2565
        %5520 = vmatpush1.msra.mxu0 %v2564
        %5521 = vmatprep.subr.mxu0 %v2567
        %5522 = vmatpush1.msra.mxu0 %v2566
        %5523 = vmatprep.subr.mxu0 %v2569
        %5524 = vmatpush1.msra.mxu0 %v2568
        %5525 = vmatprep.subr.mxu0 %v2571
        %5526 = vmatpush1.msra.mxu0 %v2570
        %5527 = vmatprep.subr.mxu0 %v2573
        %5528 = vmatpush1.msra.mxu0 %v2572
        %5529 = vmatprep.subr.mxu0 %v2575
        %5530 = vmatpush1.msra.mxu0 %v2574
        %5531 = vmatprep.mubr.f32.mxu0 %v4384
        %5532 = vmatmul.mubr.f32.gmra.mrb[0].mxu0 %v4383
        %v5533 = vpop.f32.mrb[0].mxu0
        %v5534 = vadd.f32 0.0, %v5533
        %v5535 = vpop.f32.mrb[0].mxu0
        %v5536 = vadd.f32 0.0, %v5535
        %5537 = vdwg.mxu0
        %s5538 = scalar_lea.vmem %s10, 28
        %v5539 = vld [vmem:[%s5538] sm:$0x7]
        %v5541 = vsel %vm4530, %v5539, 0
        %v5544 = vsel %vm4534, %v5534, 0
        %v5547 = vsel %vm4534, %v5536, 0
        %5549 = vmatprep.subr.mxu0 %v5547
        %5550 = vmatpush1.msra.mxu0 %v5544
        %5551 = vmatprep.subr.mxu0 0.0
        %5552 = vmatpush1.msra.mxu0 0.0
        %5553 = vmatprep.subr.mxu0 0.0
        %5554 = vmatpush1.msra.mxu0 0.0
        %5555 = vmatprep.subr.mxu0 0.0
        %5556 = vmatpush1.msra.mxu0 0.0
        %5557 = vmatprep.subr.mxu0 0.0
        %5558 = vmatpush1.msra.mxu0 0.0
        %5559 = vmatprep.subr.mxu0 0.0
        %5560 = vmatpush1.msra.mxu0 0.0
        %5561 = vmatprep.subr.mxu0 0.0
        %5562 = vmatpush1.msra.mxu0 0.0
        %5563 = vmatprep.subr.mxu0 0.0
        %5564 = vmatpush1.msra.mxu0 0.0
        %5565 = vmatprep.subr.mxu0 0.0
        %5566 = vmatpush1.msra.mxu0 0.0
        %5567 = vmatprep.subr.mxu0 0.0
        %5568 = vmatpush1.msra.mxu0 0.0
        %5569 = vmatprep.subr.mxu0 0.0
        %5570 = vmatpush1.msra.mxu0 0.0
        %5571 = vmatprep.subr.mxu0 0.0
        %5572 = vmatpush1.msra.mxu0 0.0
        %5573 = vmatprep.subr.mxu0 0.0
        %5574 = vmatpush1.msra.mxu0 0.0
        %5575 = vmatprep.subr.mxu0 0.0
        %5576 = vmatpush1.msra.mxu0 0.0
        %5577 = vmatprep.subr.mxu0 0.0
        %5578 = vmatpush1.msra.mxu0 0.0
        %5579 = vmatprep.subr.mxu0 0.0
        %5580 = vmatpush1.msra.mxu0 0.0
        %5581 = vmatprep.subr.mxu0 0.0
        %5582 = vmatpush1.msra.mxu0 0.0
        %5583 = vmatprep.subr.mxu0 0.0
        %5584 = vmatpush1.msra.mxu0 0.0
        %5585 = vmatprep.subr.mxu0 0.0
        %5586 = vmatpush1.msra.mxu0 0.0
        %5587 = vmatprep.subr.mxu0 0.0
        %5588 = vmatpush1.msra.mxu0 0.0
        %5589 = vmatprep.subr.mxu0 0.0
        %5590 = vmatpush1.msra.mxu0 0.0
        %5591 = vmatprep.subr.mxu0 0.0
        %5592 = vmatpush1.msra.mxu0 0.0
        %5593 = vmatprep.subr.mxu0 0.0
        %5594 = vmatpush1.msra.mxu0 0.0
        %5595 = vmatprep.subr.mxu0 0.0
        %5596 = vmatpush1.msra.mxu0 0.0
        %5597 = vmatprep.subr.mxu0 0.0
        %5598 = vmatpush1.msra.mxu0 0.0
        %5599 = vmatprep.subr.mxu0 0.0
        %5600 = vmatpush1.msra.mxu0 0.0
        %5601 = vmatprep.subr.mxu0 0.0
        %5602 = vmatpush1.msra.mxu0 0.0
        %5603 = vmatprep.subr.mxu0 0.0
        %5604 = vmatpush1.msra.mxu0 0.0
        %5605 = vmatprep.subr.mxu0 0.0
        %5606 = vmatpush1.msra.mxu0 0.0
        %5607 = vmatprep.subr.mxu0 0.0
        %5608 = vmatpush1.msra.mxu0 0.0
        %5609 = vmatprep.subr.mxu0 0.0
        %5610 = vmatpush1.msra.mxu0 0.0
        %5611 = vmatprep.subr.mxu0 0.0
        %5612 = vmatpush1.msra.mxu0 0.0
        %5613 = vmatprep.mubr.f32.mxu0 0.0
        %5614 = vmatmul.mubr.f32.gmra.mrb[0].mxu0 %v5541
        %v5615 = vpop.f32.mrb[0].mxu0
        %v5616 = vadd.f32 0.0, %v5615
        %v5617 = vpop.f32.mrb[0].mxu0
        %v5618 = vadd.f32 0.0, %v5617
        %5619 = vdwg.mxu0
        %v5620 = vadd.f32 %v5465, %v5616
        %v5621 = vadd.f32 %v5466, %v5618
        %5622 = vmatprep.subr.mxu0 %v2733
        %5623 = vmatpush1.msra.mxu0 %v2732
        %5624 = vmatprep.subr.mxu0 %v2735
        %5625 = vmatpush1.msra.mxu0 %v2734
        %5626 = vmatprep.subr.mxu0 %v2737
        %5627 = vmatpush1.msra.mxu0 %v2736
        %5628 = vmatprep.subr.mxu0 %v2739
        %5629 = vmatpush1.msra.mxu0 %v2738
        %5630 = vmatprep.subr.mxu0 %v2741
        %5631 = vmatpush1.msra.mxu0 %v2740
        %5632 = vmatprep.subr.mxu0 %v2743
        %5633 = vmatpush1.msra.mxu0 %v2742
        %5634 = vmatprep.subr.mxu0 %v2745
        %5635 = vmatpush1.msra.mxu0 %v2744
        %5636 = vmatprep.subr.mxu0 %v2747
        %5637 = vmatpush1.msra.mxu0 %v2746
        %5638 = vmatprep.subr.mxu0 %v2749
        %5639 = vmatpush1.msra.mxu0 %v2748
        %5640 = vmatprep.subr.mxu0 %v2751
        %5641 = vmatpush1.msra.mxu0 %v2750
        %5642 = vmatprep.subr.mxu0 %v2753
        %5643 = vmatpush1.msra.mxu0 %v2752
        %5644 = vmatprep.subr.mxu0 %v2755
        %5645 = vmatpush1.msra.mxu0 %v2754
        %5646 = vmatprep.subr.mxu0 %v2757
        %5647 = vmatpush1.msra.mxu0 %v2756
        %5648 = vmatprep.subr.mxu0 %v2759
        %5649 = vmatpush1.msra.mxu0 %v2758
        %5650 = vmatprep.subr.mxu0 %v2761
        %5651 = vmatpush1.msra.mxu0 %v2760
        %5652 = vmatprep.subr.mxu0 %v2763
        %5653 = vmatpush1.msra.mxu0 %v2762
        %5654 = vmatprep.subr.mxu0 %v2765
        %5655 = vmatpush1.msra.mxu0 %v2764
        %5656 = vmatprep.subr.mxu0 %v2767
        %5657 = vmatpush1.msra.mxu0 %v2766
        %5658 = vmatprep.subr.mxu0 %v2769
        %5659 = vmatpush1.msra.mxu0 %v2768
        %5660 = vmatprep.subr.mxu0 %v2771
        %5661 = vmatpush1.msra.mxu0 %v2770
        %5662 = vmatprep.subr.mxu0 %v2773
        %5663 = vmatpush1.msra.mxu0 %v2772
        %5664 = vmatprep.subr.mxu0 %v2775
        %5665 = vmatpush1.msra.mxu0 %v2774
        %5666 = vmatprep.subr.mxu0 %v2777
        %5667 = vmatpush1.msra.mxu0 %v2776
        %5668 = vmatprep.subr.mxu0 %v2779
        %5669 = vmatpush1.msra.mxu0 %v2778
        %5670 = vmatprep.subr.mxu0 %v2781
        %5671 = vmatpush1.msra.mxu0 %v2780
        %5672 = vmatprep.subr.mxu0 %v2783
        %5673 = vmatpush1.msra.mxu0 %v2782
        %5674 = vmatprep.subr.mxu0 %v2785
        %5675 = vmatpush1.msra.mxu0 %v2784
        %5676 = vmatprep.subr.mxu0 %v2787
        %5677 = vmatpush1.msra.mxu0 %v2786
        %5678 = vmatprep.subr.mxu0 %v2789
        %5679 = vmatpush1.msra.mxu0 %v2788
        %5680 = vmatprep.subr.mxu0 %v2791
        %5681 = vmatpush1.msra.mxu0 %v2790
        %5682 = vmatprep.subr.mxu0 %v2793
        %5683 = vmatpush1.msra.mxu0 %v2792
        %5684 = vmatprep.subr.mxu0 %v2795
        %5685 = vmatpush1.msra.mxu0 %v2794
        %5686 = vmatprep.mubr.f32.mxu0 %v4384
        %5687 = vmatmul.mubr.f32.gmra.mrb[0].mxu0 %v4383
        %v5688 = vpop.f32.mrb[0].mxu0
        %v5689 = vadd.f32 0.0, %v5688
        %v5690 = vpop.f32.mrb[0].mxu0
        %v5691 = vadd.f32 0.0, %v5690
        %5692 = vdwg.mxu0
        %s5693 = scalar_lea.vmem %s10, 32
        %v5694 = vld [vmem:[%s5693] sm:$0x7]
        %v5696 = vsel %vm4530, %v5694, 0
        %v5699 = vsel %vm4534, %v5689, 0
        %v5702 = vsel %vm4534, %v5691, 0
        %5704 = vmatprep.subr.mxu0 %v5702
        %5705 = vmatpush1.msra.mxu0 %v5699
        %5706 = vmatprep.subr.mxu0 0.0
        %5707 = vmatpush1.msra.mxu0 0.0
        %5708 = vmatprep.subr.mxu0 0.0
        %5709 = vmatpush1.msra.mxu0 0.0
        %5710 = vmatprep.subr.mxu0 0.0
        %5711 = vmatpush1.msra.mxu0 0.0
        %5712 = vmatprep.subr.mxu0 0.0
        %5713 = vmatpush1.msra.mxu0 0.0
        %5714 = vmatprep.subr.mxu0 0.0
        %5715 = vmatpush1.msra.mxu0 0.0
        %5716 = vmatprep.subr.mxu0 0.0
        %5717 = vmatpush1.msra.mxu0 0.0
        %5718 = vmatprep.subr.mxu0 0.0
        %5719 = vmatpush1.msra.mxu0 0.0
        %5720 = vmatprep.subr.mxu0 0.0
        %5721 = vmatpush1.msra.mxu0 0.0
        %5722 = vmatprep.subr.mxu0 0.0
        %5723 = vmatpush1.msra.mxu0 0.0
        %5724 = vmatprep.subr.mxu0 0.0
        %5725 = vmatpush1.msra.mxu0 0.0
        %5726 = vmatprep.subr.mxu0 0.0
        %5727 = vmatpush1.msra.mxu0 0.0
        %5728 = vmatprep.subr.mxu0 0.0
        %5729 = vmatpush1.msra.mxu0 0.0
        %5730 = vmatprep.subr.mxu0 0.0
        %5731 = vmatpush1.msra.mxu0 0.0
        %5732 = vmatprep.subr.mxu0 0.0
        %5733 = vmatpush1.msra.mxu0 0.0
        %5734 = vmatprep.subr.mxu0 0.0
        %5735 = vmatpush1.msra.mxu0 0.0
        %5736 = vmatprep.subr.mxu0 0.0
        %5737 = vmatpush1.msra.mxu0 0.0
        %5738 = vmatprep.subr.mxu0 0.0
        %5739 = vmatpush1.msra.mxu0 0.0
        %5740 = vmatprep.subr.mxu0 0.0
        %5741 = vmatpush1.msra.mxu0 0.0
        %5742 = vmatprep.subr.mxu0 0.0
        %5743 = vmatpush1.msra.mxu0 0.0
        %5744 = vmatprep.subr.mxu0 0.0
        %5745 = vmatpush1.msra.mxu0 0.0
        %5746 = vmatprep.subr.mxu0 0.0
        %5747 = vmatpush1.msra.mxu0 0.0
        %5748 = vmatprep.subr.mxu0 0.0
        %5749 = vmatpush1.msra.mxu0 0.0
        %5750 = vmatprep.subr.mxu0 0.0
        %5751 = vmatpush1.msra.mxu0 0.0
        %5752 = vmatprep.subr.mxu0 0.0
        %5753 = vmatpush1.msra.mxu0 0.0
        %5754 = vmatprep.subr.mxu0 0.0
        %5755 = vmatpush1.msra.mxu0 0.0
        %5756 = vmatprep.subr.mxu0 0.0
        %5757 = vmatpush1.msra.mxu0 0.0
        %5758 = vmatprep.subr.mxu0 0.0
        %5759 = vmatpush1.msra.mxu0 0.0
        %5760 = vmatprep.subr.mxu0 0.0
        %5761 = vmatpush1.msra.mxu0 0.0
        %5762 = vmatprep.subr.mxu0 0.0
        %5763 = vmatpush1.msra.mxu0 0.0
        %5764 = vmatprep.subr.mxu0 0.0
        %5765 = vmatpush1.msra.mxu0 0.0
        %5766 = vmatprep.subr.mxu0 0.0
        %5767 = vmatpush1.msra.mxu0 0.0
        %5768 = vmatprep.mubr.f32.mxu0 0.0
        %5769 = vmatmul.mubr.f32.gmra.mrb[0].mxu0 %v5696
        %v5770 = vpop.f32.mrb[0].mxu0
        %v5771 = vadd.f32 0.0, %v5770
        %v5772 = vpop.f32.mrb[0].mxu0
        %v5773 = vadd.f32 0.0, %v5772
        %5774 = vdwg.mxu0
        %v5775 = vadd.f32 %v5620, %v5771
        %v5776 = vadd.f32 %v5621, %v5773
        %v5777 = vld [vmem:[%s11] sm:$0x7]
        %5779 = vset.pattern.permute.xlu0 0
        %5780 = vperm.xlu0 %5779, %v5777
        %v5781 = vpop.permute.xlu0 %5780
        %v5783 = vadd.f32 %v5775, %v5781
        %v5784 = vadd.f32 %v5776, %v5781
        %v5785 = vxor.u32 %v5783, 2147483648
        %v5786 = vxor.u32 %v5784, 2147483648
        %v5787 = vmul.f32 %v5785, 1.442695
        %v5788 = vpow.pop %v5787
        %v5789 = vmul.f32 %v5786, 1.442695
        %v5790 = vpow.pop %v5789
        %v5791 = vadd.f32 %v5788, 1.0
        %v5792 = vadd.f32 %v5790, 1.0
        %v5793 = vrcp.pop %v5791
        %v5794 = vmul.f32 1.0, %v5793
        %v5795 = vrcp.pop %v5792
        %v5796 = vmul.f32 1.0, %v5795
        %v5797 = vmul.f32 %v5783, %v5794
        %v5798 = vmul.f32 %v5784, %v5796
        %5799 = vmatprep.subr.mxu0 %v976
        %5800 = vmatpush1.msra.mxu0 %v975
        %5801 = vmatprep.subr.mxu0 %v978
        %5802 = vmatpush1.msra.mxu0 %v977
        %5803 = vmatprep.subr.mxu0 %v980
        %5804 = vmatpush1.msra.mxu0 %v979
        %5805 = vmatprep.subr.mxu0 %v982
        %5806 = vmatpush1.msra.mxu0 %v981
        %5807 = vmatprep.subr.mxu0 %v984
        %5808 = vmatpush1.msra.mxu0 %v983
        %5809 = vmatprep.subr.mxu0 %v986
        %5810 = vmatpush1.msra.mxu0 %v985
        %5811 = vmatprep.subr.mxu0 %v988
        %5812 = vmatpush1.msra.mxu0 %v987
        %5813 = vmatprep.subr.mxu0 %v990
        %5814 = vmatpush1.msra.mxu0 %v989
        %5815 = vmatprep.subr.mxu0 %v992
        %5816 = vmatpush1.msra.mxu0 %v991
        %5817 = vmatprep.subr.mxu0 %v994
        %5818 = vmatpush1.msra.mxu0 %v993
        %5819 = vmatprep.subr.mxu0 %v996
        %5820 = vmatpush1.msra.mxu0 %v995
        %5821 = vmatprep.subr.mxu0 %v998
        %5822 = vmatpush1.msra.mxu0 %v997
        %5823 = vmatprep.subr.mxu0 %v1000
        %5824 = vmatpush1.msra.mxu0 %v999
        %5825 = vmatprep.subr.mxu0 %v1002
        %5826 = vmatpush1.msra.mxu0 %v1001
        %5827 = vmatprep.subr.mxu0 %v1004
        %5828 = vmatpush1.msra.mxu0 %v1003
        %5829 = vmatprep.subr.mxu0 %v1006
        %5830 = vmatpush1.msra.mxu0 %v1005
        %5831 = vmatprep.subr.mxu0 %v1008
        %5832 = vmatpush1.msra.mxu0 %v1007
        %5833 = vmatprep.subr.mxu0 %v1010
        %5834 = vmatpush1.msra.mxu0 %v1009
        %5835 = vmatprep.subr.mxu0 %v1012
        %5836 = vmatpush1.msra.mxu0 %v1011
        %5837 = vmatprep.subr.mxu0 %v1014
        %5838 = vmatpush1.msra.mxu0 %v1013
        %5839 = vmatprep.subr.mxu0 %v1016
        %5840 = vmatpush1.msra.mxu0 %v1015
        %5841 = vmatprep.subr.mxu0 %v1018
        %5842 = vmatpush1.msra.mxu0 %v1017
        %5843 = vmatprep.subr.mxu0 %v1020
        %5844 = vmatpush1.msra.mxu0 %v1019
        %5845 = vmatprep.subr.mxu0 %v1022
        %5846 = vmatpush1.msra.mxu0 %v1021
        %5847 = vmatprep.subr.mxu0 %v1024
        %5848 = vmatpush1.msra.mxu0 %v1023
        %5849 = vmatprep.subr.mxu0 %v1026
        %5850 = vmatpush1.msra.mxu0 %v1025
        %5851 = vmatprep.subr.mxu0 %v1028
        %5852 = vmatpush1.msra.mxu0 %v1027
        %5853 = vmatprep.subr.mxu0 %v1030
        %5854 = vmatpush1.msra.mxu0 %v1029
        %5855 = vmatprep.subr.mxu0 %v1032
        %5856 = vmatpush1.msra.mxu0 %v1031
        %5857 = vmatprep.subr.mxu0 %v1034
        %5858 = vmatpush1.msra.mxu0 %v1033
        %5859 = vmatprep.subr.mxu0 %v1036
        %5860 = vmatpush1.msra.mxu0 %v1035
        %5861 = vmatprep.subr.mxu0 %v1038
        %5862 = vmatpush1.msra.mxu0 %v1037
        %5863 = vmatprep.mubr.f32.mxu0 %v5798
        %5864 = vmatmul.mubr.f32.gmra.mrb[0].mxu0 %v5797
        %v5865 = vpop.f32.mrb[0].mxu0
        %v5866 = vadd.f32 0.0, %v5865
        %v5867 = vpop.f32.mrb[0].mxu0
        %v5868 = vadd.f32 0.0, %v5867
        %5869 = vdwg.mxu0
        %v5870 = vld [vmem:[%s12] sm:$0x7]
        %5871 = vmatprep.subr.mxu0 %v1113
        %5872 = vmatpush1.msra.mxu0 %v1112
        %5873 = vmatprep.subr.mxu0 %v1115
        %5874 = vmatpush1.msra.mxu0 %v1114
        %5875 = vmatprep.subr.mxu0 %v1117
        %5876 = vmatpush1.msra.mxu0 %v1116
        %5877 = vmatprep.subr.mxu0 %v1119
        %5878 = vmatpush1.msra.mxu0 %v1118
        %5879 = vmatprep.subr.mxu0 %v1121
        %5880 = vmatpush1.msra.mxu0 %v1120
        %5881 = vmatprep.subr.mxu0 %v1123
        %5882 = vmatpush1.msra.mxu0 %v1122
        %5883 = vmatprep.subr.mxu0 %v1125
        %5884 = vmatpush1.msra.mxu0 %v1124
        %5885 = vmatprep.subr.mxu0 %v1127
        %5886 = vmatpush1.msra.mxu0 %v1126
        %5887 = vmatprep.subr.mxu0 %v1129
        %5888 = vmatpush1.msra.mxu0 %v1128
        %5889 = vmatprep.subr.mxu0 %v1131
        %5890 = vmatpush1.msra.mxu0 %v1130
        %5891 = vmatprep.subr.mxu0 %v1133
        %5892 = vmatpush1.msra.mxu0 %v1132
        %5893 = vmatprep.subr.mxu0 %v1135
        %5894 = vmatpush1.msra.mxu0 %v1134
        %5895 = vmatprep.subr.mxu0 %v1137
        %5896 = vmatpush1.msra.mxu0 %v1136
        %5897 = vmatprep.subr.mxu0 %v1139
        %5898 = vmatpush1.msra.mxu0 %v1138
        %5899 = vmatprep.subr.mxu0 %v1141
        %5900 = vmatpush1.msra.mxu0 %v1140
        %5901 = vmatprep.subr.mxu0 %v1143
        %5902 = vmatpush1.msra.mxu0 %v1142
        %5903 = vmatprep.subr.mxu0 %v1145
        %5904 = vmatpush1.msra.mxu0 %v1144
        %5905 = vmatprep.subr.mxu0 %v1147
        %5906 = vmatpush1.msra.mxu0 %v1146
        %5907 = vmatprep.subr.mxu0 %v1149
        %5908 = vmatpush1.msra.mxu0 %v1148
        %5909 = vmatprep.subr.mxu0 %v1151
        %5910 = vmatpush1.msra.mxu0 %v1150
        %5911 = vmatprep.subr.mxu0 %v1153
        %5912 = vmatpush1.msra.mxu0 %v1152
        %5913 = vmatprep.subr.mxu0 %v1155
        %5914 = vmatpush1.msra.mxu0 %v1154
        %5915 = vmatprep.subr.mxu0 %v1157
        %5916 = vmatpush1.msra.mxu0 %v1156
        %5917 = vmatprep.subr.mxu0 %v1159
        %5918 = vmatpush1.msra.mxu0 %v1158
        %5919 = vmatprep.subr.mxu0 %v1161
        %5920 = vmatpush1.msra.mxu0 %v1160
        %5921 = vmatprep.subr.mxu0 %v1163
        %5922 = vmatpush1.msra.mxu0 %v1162
        %5923 = vmatprep.subr.mxu0 %v1165
        %5924 = vmatpush1.msra.mxu0 %v1164
        %5925 = vmatprep.subr.mxu0 %v1167
        %5926 = vmatpush1.msra.mxu0 %v1166
        %5927 = vmatprep.subr.mxu0 %v1169
        %5928 = vmatpush1.msra.mxu0 %v1168
        %5929 = vmatprep.subr.mxu0 %v1171
        %5930 = vmatpush1.msra.mxu0 %v1170
        %5931 = vmatprep.subr.mxu0 %v1173
        %5932 = vmatpush1.msra.mxu0 %v1172
        %5933 = vmatprep.subr.mxu0 %v1175
        %5934 = vmatpush1.msra.mxu0 %v1174
        %5935 = vmatprep.mubr.f32.mxu0 %v5798
        %5936 = vmatmul.mubr.f32.gmra.mrb[0].mxu0 %v5797
        %v5937 = vpop.f32.mrb[0].mxu0
        %v5938 = vadd.f32 0.0, %v5937
        %v5939 = vpop.f32.mrb[0].mxu0
        %v5940 = vadd.f32 0.0, %v5939
        %5941 = vdwg.mxu0
        %s5942 = scalar_lea.vmem %s12, 4
        %v5943 = vld [vmem:[%s5942] sm:$0x7]
        %v5945 = vsel %vm4530, %v5943, 0
        %v5948 = vsel %vm4534, %v5938, 0
        %v5951 = vsel %vm4534, %v5940, 0
        %5953 = vmatprep.subr.mxu0 %v5951
        %5954 = vmatpush1.msra.mxu0 %v5948
        %5955 = vmatprep.subr.mxu0 0.0
        %5956 = vmatpush1.msra.mxu0 0.0
        %5957 = vmatprep.subr.mxu0 0.0
        %5958 = vmatpush1.msra.mxu0 0.0
        %5959 = vmatprep.subr.mxu0 0.0
        %5960 = vmatpush1.msra.mxu0 0.0
        %5961 = vmatprep.subr.mxu0 0.0
        %5962 = vmatpush1.msra.mxu0 0.0
        %5963 = vmatprep.subr.mxu0 0.0
        %5964 = vmatpush1.msra.mxu0 0.0
        %5965 = vmatprep.subr.mxu0 0.0
        %5966 = vmatpush1.msra.mxu0 0.0
        %5967 = vmatprep.subr.mxu0 0.0
        %5968 = vmatpush1.msra.mxu0 0.0
        %5969 = vmatprep.subr.mxu0 0.0
        %5970 = vmatpush1.msra.mxu0 0.0
        %5971 = vmatprep.subr.mxu0 0.0
        %5972 = vmatpush1.msra.mxu0 0.0
        %5973 = vmatprep.subr.mxu0 0.0
        %5974 = vmatpush1.msra.mxu0 0.0
        %5975 = vmatprep.subr.mxu0 0.0
        %5976 = vmatpush1.msra.mxu0 0.0
        %5977 = vmatprep.subr.mxu0 0.0
        %5978 = vmatpush1.msra.mxu0 0.0
        %5979 = vmatprep.subr.mxu0 0.0
        %5980 = vmatpush1.msra.mxu0 0.0
        %5981 = vmatprep.subr.mxu0 0.0
        %5982 = vmatpush1.msra.mxu0 0.0
        %5983 = vmatprep.subr.mxu0 0.0
        %5984 = vmatpush1.msra.mxu0 0.0
        %5985 = vmatprep.subr.mxu0 0.0
        %5986 = vmatpush1.msra.mxu0 0.0
        %5987 = vmatprep.subr.mxu0 0.0
        %5988 = vmatpush1.msra.mxu0 0.0
        %5989 = vmatprep.subr.mxu0 0.0
        %5990 = vmatpush1.msra.mxu0 0.0
        %5991 = vmatprep.subr.mxu0 0.0
        %5992 = vmatpush1.msra.mxu0 0.0
        %5993 = vmatprep.subr.mxu0 0.0
        %5994 = vmatpush1.msra.mxu0 0.0
        %5995 = vmatprep.subr.mxu0 0.0
        %5996 = vmatpush1.msra.mxu0 0.0
        %5997 = vmatprep.subr.mxu0 0.0
        %5998 = vmatpush1.msra.mxu0 0.0
        %5999 = vmatprep.subr.mxu0 0.0
        %6000 = vmatpush1.msra.mxu0 0.0
        %6001 = vmatprep.subr.mxu0 0.0
        %6002 = vmatpush1.msra.mxu0 0.0
        %6003 = vmatprep.subr.mxu0 0.0
        %6004 = vmatpush1.msra.mxu0 0.0
        %6005 = vmatprep.subr.mxu0 0.0
        %6006 = vmatpush1.msra.mxu0 0.0
        %6007 = vmatprep.subr.mxu0 0.0
        %6008 = vmatpush1.msra.mxu0 0.0
        %6009 = vmatprep.subr.mxu0 0.0
        %6010 = vmatpush1.msra.mxu0 0.0
        %6011 = vmatprep.subr.mxu0 0.0
        %6012 = vmatpush1.msra.mxu0 0.0
        %6013 = vmatprep.subr.mxu0 0.0
        %6014 = vmatpush1.msra.mxu0 0.0
        %6015 = vmatprep.subr.mxu0 0.0
        %6016 = vmatpush1.msra.mxu0 0.0
        %6017 = vmatprep.mubr.f32.mxu0 0.0
        %6018 = vmatmul.mubr.f32.gmra.mrb[0].mxu0 %v5945
        %v6019 = vpop.f32.mrb[0].mxu0
        %v6020 = vadd.f32 0.0, %v6019
        %v6021 = vpop.f32.mrb[0].mxu0
        %v6022 = vadd.f32 0.0, %v6021
        %6023 = vdwg.mxu0
        %v6025 = vsel %vm4530, %v5870, 0
        %v6028 = vsel %vm4534, %v5866, 0
        %v6031 = vsel %vm4534, %v5868, 0
        %6033 = vmatprep.subr.mxu0 %v6031
        %6034 = vmatpush1.msra.mxu0 %v6028
        %6035 = vmatprep.subr.mxu0 0.0
        %6036 = vmatpush1.msra.mxu0 0.0
        %6037 = vmatprep.subr.mxu0 0.0
        %6038 = vmatpush1.msra.mxu0 0.0
        %6039 = vmatprep.subr.mxu0 0.0
        %6040 = vmatpush1.msra.mxu0 0.0
        %6041 = vmatprep.subr.mxu0 0.0
        %6042 = vmatpush1.msra.mxu0 0.0
        %6043 = vmatprep.subr.mxu0 0.0
        %6044 = vmatpush1.msra.mxu0 0.0
        %6045 = vmatprep.subr.mxu0 0.0
        %6046 = vmatpush1.msra.mxu0 0.0
        %6047 = vmatprep.subr.mxu0 0.0
        %6048 = vmatpush1.msra.mxu0 0.0
        %6049 = vmatprep.subr.mxu0 0.0
        %6050 = vmatpush1.msra.mxu0 0.0
        %6051 = vmatprep.subr.mxu0 0.0
        %6052 = vmatpush1.msra.mxu0 0.0
        %6053 = vmatprep.subr.mxu0 0.0
        %6054 = vmatpush1.msra.mxu0 0.0
        %6055 = vmatprep.subr.mxu0 0.0
        %6056 = vmatpush1.msra.mxu0 0.0
        %6057 = vmatprep.subr.mxu0 0.0
        %6058 = vmatpush1.msra.mxu0 0.0
        %6059 = vmatprep.subr.mxu0 0.0
        %6060 = vmatpush1.msra.mxu0 0.0
        %6061 = vmatprep.subr.mxu0 0.0
        %6062 = vmatpush1.msra.mxu0 0.0
        %6063 = vmatprep.subr.mxu0 0.0
        %6064 = vmatpush1.msra.mxu0 0.0
        %6065 = vmatprep.subr.mxu0 0.0
        %6066 = vmatpush1.msra.mxu0 0.0
        %6067 = vmatprep.subr.mxu0 0.0
        %6068 = vmatpush1.msra.mxu0 0.0
        %6069 = vmatprep.subr.mxu0 0.0
        %6070 = vmatpush1.msra.mxu0 0.0
        %6071 = vmatprep.subr.mxu0 0.0
        %6072 = vmatpush1.msra.mxu0 0.0
        %6073 = vmatprep.subr.mxu0 0.0
        %6074 = vmatpush1.msra.mxu0 0.0
        %6075 = vmatprep.subr.mxu0 0.0
        %6076 = vmatpush1.msra.mxu0 0.0
        %6077 = vmatprep.subr.mxu0 0.0
        %6078 = vmatpush1.msra.mxu0 0.0
        %6079 = vmatprep.subr.mxu0 0.0
        %6080 = vmatpush1.msra.mxu0 0.0
        %6081 = vmatprep.subr.mxu0 0.0
        %6082 = vmatpush1.msra.mxu0 0.0
        %6083 = vmatprep.subr.mxu0 0.0
        %6084 = vmatpush1.msra.mxu0 0.0
        %6085 = vmatprep.subr.mxu0 0.0
        %6086 = vmatpush1.msra.mxu0 0.0
        %6087 = vmatprep.subr.mxu0 0.0
        %6088 = vmatpush1.msra.mxu0 0.0
        %6089 = vmatprep.subr.mxu0 0.0
        %6090 = vmatpush1.msra.mxu0 0.0
        %6091 = vmatprep.subr.mxu0 0.0
        %6092 = vmatpush1.msra.mxu0 0.0
        %6093 = vmatprep.subr.mxu0 0.0
        %6094 = vmatpush1.msra.mxu0 0.0
        %6095 = vmatprep.subr.mxu0 0.0
        %6096 = vmatpush1.msra.mxu0 0.0
        %6097 = vmatprep.mubr.f32.mxu0 0.0
        %6098 = vmatmul.mubr.f32.gmra.mrb[0].mxu0 %v6025
        %v6099 = vpop.f32.mrb[0].mxu0
        %v6100 = vadd.f32 %v6020, %v6099
        %v6101 = vpop.f32.mrb[0].mxu0
        %v6102 = vadd.f32 %v6022, %v6101
        %6103 = vdwg.mxu0
        %6104 = vmatprep.subr.mxu0 %v1413
        %6105 = vmatpush1.msra.mxu0 %v1412
        %6106 = vmatprep.subr.mxu0 %v1415
        %6107 = vmatpush1.msra.mxu0 %v1414
        %6108 = vmatprep.subr.mxu0 %v1417
        %6109 = vmatpush1.msra.mxu0 %v1416
        %6110 = vmatprep.subr.mxu0 %v1419
        %6111 = vmatpush1.msra.mxu0 %v1418
        %6112 = vmatprep.subr.mxu0 %v1421
        %6113 = vmatpush1.msra.mxu0 %v1420
        %6114 = vmatprep.subr.mxu0 %v1423
        %6115 = vmatpush1.msra.mxu0 %v1422
        %6116 = vmatprep.subr.mxu0 %v1425
        %6117 = vmatpush1.msra.mxu0 %v1424
        %6118 = vmatprep.subr.mxu0 %v1427
        %6119 = vmatpush1.msra.mxu0 %v1426
        %6120 = vmatprep.subr.mxu0 %v1429
        %6121 = vmatpush1.msra.mxu0 %v1428
        %6122 = vmatprep.subr.mxu0 %v1431
        %6123 = vmatpush1.msra.mxu0 %v1430
        %6124 = vmatprep.subr.mxu0 %v1433
        %6125 = vmatpush1.msra.mxu0 %v1432
        %6126 = vmatprep.subr.mxu0 %v1435
        %6127 = vmatpush1.msra.mxu0 %v1434
        %6128 = vmatprep.subr.mxu0 %v1437
        %6129 = vmatpush1.msra.mxu0 %v1436
        %6130 = vmatprep.subr.mxu0 %v1439
        %6131 = vmatpush1.msra.mxu0 %v1438
        %6132 = vmatprep.subr.mxu0 %v1441
        %6133 = vmatpush1.msra.mxu0 %v1440
        %6134 = vmatprep.subr.mxu0 %v1443
        %6135 = vmatpush1.msra.mxu0 %v1442
        %6136 = vmatprep.subr.mxu0 %v1445
        %6137 = vmatpush1.msra.mxu0 %v1444
        %6138 = vmatprep.subr.mxu0 %v1447
        %6139 = vmatpush1.msra.mxu0 %v1446
        %6140 = vmatprep.subr.mxu0 %v1449
        %6141 = vmatpush1.msra.mxu0 %v1448
        %6142 = vmatprep.subr.mxu0 %v1451
        %6143 = vmatpush1.msra.mxu0 %v1450
        %6144 = vmatprep.subr.mxu0 %v1453
        %6145 = vmatpush1.msra.mxu0 %v1452
        %6146 = vmatprep.subr.mxu0 %v1455
        %6147 = vmatpush1.msra.mxu0 %v1454
        %6148 = vmatprep.subr.mxu0 %v1457
        %6149 = vmatpush1.msra.mxu0 %v1456
        %6150 = vmatprep.subr.mxu0 %v1459
        %6151 = vmatpush1.msra.mxu0 %v1458
        %6152 = vmatprep.subr.mxu0 %v1461
        %6153 = vmatpush1.msra.mxu0 %v1460
        %6154 = vmatprep.subr.mxu0 %v1463
        %6155 = vmatpush1.msra.mxu0 %v1462
        %6156 = vmatprep.subr.mxu0 %v1465
        %6157 = vmatpush1.msra.mxu0 %v1464
        %6158 = vmatprep.subr.mxu0 %v1467
        %6159 = vmatpush1.msra.mxu0 %v1466
        %6160 = vmatprep.subr.mxu0 %v1469
        %6161 = vmatpush1.msra.mxu0 %v1468
        %6162 = vmatprep.subr.mxu0 %v1471
        %6163 = vmatpush1.msra.mxu0 %v1470
        %6164 = vmatprep.subr.mxu0 %v1473
        %6165 = vmatpush1.msra.mxu0 %v1472
        %6166 = vmatprep.subr.mxu0 %v1475
        %6167 = vmatpush1.msra.mxu0 %v1474
        %6168 = vmatprep.mubr.f32.mxu0 %v5798
        %6169 = vmatmul.mubr.f32.gmra.mrb[0].mxu0 %v5797
        %v6170 = vpop.f32.mrb[0].mxu0
        %v6171 = vadd.f32 0.0, %v6170
        %v6172 = vpop.f32.mrb[0].mxu0
        %v6173 = vadd.f32 0.0, %v6172
        %6174 = vdwg.mxu0
        %s6175 = scalar_lea.vmem %s12, 8
        %v6176 = vld [vmem:[%s6175] sm:$0x7]
        %v6178 = vsel %vm4530, %v6176, 0
        %v6181 = vsel %vm4534, %v6171, 0
        %v6184 = vsel %vm4534, %v6173, 0
        %6186 = vmatprep.subr.mxu0 %v6184
        %6187 = vmatpush1.msra.mxu0 %v6181
        %6188 = vmatprep.subr.mxu0 0.0
        %6189 = vmatpush1.msra.mxu0 0.0
        %6190 = vmatprep.subr.mxu0 0.0
        %6191 = vmatpush1.msra.mxu0 0.0
        %6192 = vmatprep.subr.mxu0 0.0
        %6193 = vmatpush1.msra.mxu0 0.0
        %6194 = vmatprep.subr.mxu0 0.0
        %6195 = vmatpush1.msra.mxu0 0.0
        %6196 = vmatprep.subr.mxu0 0.0
        %6197 = vmatpush1.msra.mxu0 0.0
        %6198 = vmatprep.subr.mxu0 0.0
        %6199 = vmatpush1.msra.mxu0 0.0
        %6200 = vmatprep.subr.mxu0 0.0
        %6201 = vmatpush1.msra.mxu0 0.0
        %6202 = vmatprep.subr.mxu0 0.0
        %6203 = vmatpush1.msra.mxu0 0.0
        %6204 = vmatprep.subr.mxu0 0.0
        %6205 = vmatpush1.msra.mxu0 0.0
        %6206 = vmatprep.subr.mxu0 0.0
        %6207 = vmatpush1.msra.mxu0 0.0
        %6208 = vmatprep.subr.mxu0 0.0
        %6209 = vmatpush1.msra.mxu0 0.0
        %6210 = vmatprep.subr.mxu0 0.0
        %6211 = vmatpush1.msra.mxu0 0.0
        %6212 = vmatprep.subr.mxu0 0.0
        %6213 = vmatpush1.msra.mxu0 0.0
        %6214 = vmatprep.subr.mxu0 0.0
        %6215 = vmatpush1.msra.mxu0 0.0
        %6216 = vmatprep.subr.mxu0 0.0
        %6217 = vmatpush1.msra.mxu0 0.0
        %6218 = vmatprep.subr.mxu0 0.0
        %6219 = vmatpush1.msra.mxu0 0.0
        %6220 = vmatprep.subr.mxu0 0.0
        %6221 = vmatpush1.msra.mxu0 0.0
        %6222 = vmatprep.subr.mxu0 0.0
        %6223 = vmatpush1.msra.mxu0 0.0
        %6224 = vmatprep.subr.mxu0 0.0
        %6225 = vmatpush1.msra.mxu0 0.0
        %6226 = vmatprep.subr.mxu0 0.0
        %6227 = vmatpush1.msra.mxu0 0.0
        %6228 = vmatprep.subr.mxu0 0.0
        %6229 = vmatpush1.msra.mxu0 0.0
        %6230 = vmatprep.subr.mxu0 0.0
        %6231 = vmatpush1.msra.mxu0 0.0
        %6232 = vmatprep.subr.mxu0 0.0
        %6233 = vmatpush1.msra.mxu0 0.0
        %6234 = vmatprep.subr.mxu0 0.0
        %6235 = vmatpush1.msra.mxu0 0.0
        %6236 = vmatprep.subr.mxu0 0.0
        %6237 = vmatpush1.msra.mxu0 0.0
        %6238 = vmatprep.subr.mxu0 0.0
        %6239 = vmatpush1.msra.mxu0 0.0
        %6240 = vmatprep.subr.mxu0 0.0
        %6241 = vmatpush1.msra.mxu0 0.0
        %6242 = vmatprep.subr.mxu0 0.0
        %6243 = vmatpush1.msra.mxu0 0.0
        %6244 = vmatprep.subr.mxu0 0.0
        %6245 = vmatpush1.msra.mxu0 0.0
        %6246 = vmatprep.subr.mxu0 0.0
        %6247 = vmatpush1.msra.mxu0 0.0
        %6248 = vmatprep.subr.mxu0 0.0
        %6249 = vmatpush1.msra.mxu0 0.0
        %6250 = vmatprep.mubr.f32.mxu0 0.0
        %6251 = vmatmul.mubr.f32.gmra.mrb[0].mxu0 %v6178
        %v6252 = vpop.f32.mrb[0].mxu0
        %v6253 = vadd.f32 0.0, %v6252
        %v6254 = vpop.f32.mrb[0].mxu0
        %v6255 = vadd.f32 0.0, %v6254
        %6256 = vdwg.mxu0
        %v6257 = vadd.f32 %v6100, %v6253
        %v6258 = vadd.f32 %v6102, %v6255
        %6259 = vmatprep.subr.mxu0 %v1633
        %6260 = vmatpush1.msra.mxu0 %v1632
        %6261 = vmatprep.subr.mxu0 %v1635
        %6262 = vmatpush1.msra.mxu0 %v1634
        %6263 = vmatprep.subr.mxu0 %v1637
        %6264 = vmatpush1.msra.mxu0 %v1636
        %6265 = vmatprep.subr.mxu0 %v1639
        %6266 = vmatpush1.msra.mxu0 %v1638
        %6267 = vmatprep.subr.mxu0 %v1641
        %6268 = vmatpush1.msra.mxu0 %v1640
        %6269 = vmatprep.subr.mxu0 %v1643
        %6270 = vmatpush1.msra.mxu0 %v1642
        %6271 = vmatprep.subr.mxu0 %v1645
        %6272 = vmatpush1.msra.mxu0 %v1644
        %6273 = vmatprep.subr.mxu0 %v1647
        %6274 = vmatpush1.msra.mxu0 %v1646
        %6275 = vmatprep.subr.mxu0 %v1649
        %6276 = vmatpush1.msra.mxu0 %v1648
        %6277 = vmatprep.subr.mxu0 %v1651
        %6278 = vmatpush1.msra.mxu0 %v1650
        %6279 = vmatprep.subr.mxu0 %v1653
        %6280 = vmatpush1.msra.mxu0 %v1652
        %6281 = vmatprep.subr.mxu0 %v1655
        %6282 = vmatpush1.msra.mxu0 %v1654
        %6283 = vmatprep.subr.mxu0 %v1657
        %6284 = vmatpush1.msra.mxu0 %v1656
        %6285 = vmatprep.subr.mxu0 %v1659
        %6286 = vmatpush1.msra.mxu0 %v1658
        %6287 = vmatprep.subr.mxu0 %v1661
        %6288 = vmatpush1.msra.mxu0 %v1660
        %6289 = vmatprep.subr.mxu0 %v1663
        %6290 = vmatpush1.msra.mxu0 %v1662
        %6291 = vmatprep.subr.mxu0 %v1665
        %6292 = vmatpush1.msra.mxu0 %v1664
        %6293 = vmatprep.subr.mxu0 %v1667
        %6294 = vmatpush1.msra.mxu0 %v1666
        %6295 = vmatprep.subr.mxu0 %v1669
        %6296 = vmatpush1.msra.mxu0 %v1668
        %6297 = vmatprep.subr.mxu0 %v1671
        %6298 = vmatpush1.msra.mxu0 %v1670
        %6299 = vmatprep.subr.mxu0 %v1673
        %6300 = vmatpush1.msra.mxu0 %v1672
        %6301 = vmatprep.subr.mxu0 %v1675
        %6302 = vmatpush1.msra.mxu0 %v1674
        %6303 = vmatprep.subr.mxu0 %v1677
        %6304 = vmatpush1.msra.mxu0 %v1676
        %6305 = vmatprep.subr.mxu0 %v1679
        %6306 = vmatpush1.msra.mxu0 %v1678
        %6307 = vmatprep.subr.mxu0 %v1681
        %6308 = vmatpush1.msra.mxu0 %v1680
        %6309 = vmatprep.subr.mxu0 %v1683
        %6310 = vmatpush1.msra.mxu0 %v1682
        %6311 = vmatprep.subr.mxu0 %v1685
        %6312 = vmatpush1.msra.mxu0 %v1684
        %6313 = vmatprep.subr.mxu0 %v1687
        %6314 = vmatpush1.msra.mxu0 %v1686
        %6315 = vmatprep.subr.mxu0 %v1689
        %6316 = vmatpush1.msra.mxu0 %v1688
        %6317 = vmatprep.subr.mxu0 %v1691
        %6318 = vmatpush1.msra.mxu0 %v1690
        %6319 = vmatprep.subr.mxu0 %v1693
        %6320 = vmatpush1.msra.mxu0 %v1692
        %6321 = vmatprep.subr.mxu0 %v1695
        %6322 = vmatpush1.msra.mxu0 %v1694
        %6323 = vmatprep.mubr.f32.mxu0 %v5798
        %6324 = vmatmul.mubr.f32.gmra.mrb[0].mxu0 %v5797
        %v6325 = vpop.f32.mrb[0].mxu0
        %v6326 = vadd.f32 0.0, %v6325
        %v6327 = vpop.f32.mrb[0].mxu0
        %v6328 = vadd.f32 0.0, %v6327
        %6329 = vdwg.mxu0
        %s6330 = scalar_lea.vmem %s12, 12
        %v6331 = vld [vmem:[%s6330] sm:$0x7]
        %v6333 = vsel %vm4530, %v6331, 0
        %v6336 = vsel %vm4534, %v6326, 0
        %v6339 = vsel %vm4534, %v6328, 0
        %6341 = vmatprep.subr.mxu0 %v6339
        %6342 = vmatpush1.msra.mxu0 %v6336
        %6343 = vmatprep.subr.mxu0 0.0
        %6344 = vmatpush1.msra.mxu0 0.0
        %6345 = vmatprep.subr.mxu0 0.0
        %6346 = vmatpush1.msra.mxu0 0.0
        %6347 = vmatprep.subr.mxu0 0.0
        %6348 = vmatpush1.msra.mxu0 0.0
        %6349 = vmatprep.subr.mxu0 0.0
        %6350 = vmatpush1.msra.mxu0 0.0
        %6351 = vmatprep.subr.mxu0 0.0
        %6352 = vmatpush1.msra.mxu0 0.0
        %6353 = vmatprep.subr.mxu0 0.0
        %6354 = vmatpush1.msra.mxu0 0.0
        %6355 = vmatprep.subr.mxu0 0.0
        %6356 = vmatpush1.msra.mxu0 0.0
        %6357 = vmatprep.subr.mxu0 0.0
        %6358 = vmatpush1.msra.mxu0 0.0
        %6359 = vmatprep.subr.mxu0 0.0
        %6360 = vmatpush1.msra.mxu0 0.0
        %6361 = vmatprep.subr.mxu0 0.0
        %6362 = vmatpush1.msra.mxu0 0.0
        %6363 = vmatprep.subr.mxu0 0.0
        %6364 = vmatpush1.msra.mxu0 0.0
        %6365 = vmatprep.subr.mxu0 0.0
        %6366 = vmatpush1.msra.mxu0 0.0
        %6367 = vmatprep.subr.mxu0 0.0
        %6368 = vmatpush1.msra.mxu0 0.0
        %6369 = vmatprep.subr.mxu0 0.0
        %6370 = vmatpush1.msra.mxu0 0.0
        %6371 = vmatprep.subr.mxu0 0.0
        %6372 = vmatpush1.msra.mxu0 0.0
        %6373 = vmatprep.subr.mxu0 0.0
        %6374 = vmatpush1.msra.mxu0 0.0
        %6375 = vmatprep.subr.mxu0 0.0
        %6376 = vmatpush1.msra.mxu0 0.0
        %6377 = vmatprep.subr.mxu0 0.0
        %6378 = vmatpush1.msra.mxu0 0.0
        %6379 = vmatprep.subr.mxu0 0.0
        %6380 = vmatpush1.msra.mxu0 0.0
        %6381 = vmatprep.subr.mxu0 0.0
        %6382 = vmatpush1.msra.mxu0 0.0
        %6383 = vmatprep.subr.mxu0 0.0
        %6384 = vmatpush1.msra.mxu0 0.0
        %6385 = vmatprep.subr.mxu0 0.0
        %6386 = vmatpush1.msra.mxu0 0.0
        %6387 = vmatprep.subr.mxu0 0.0
        %6388 = vmatpush1.msra.mxu0 0.0
        %6389 = vmatprep.subr.mxu0 0.0
        %6390 = vmatpush1.msra.mxu0 0.0
        %6391 = vmatprep.subr.mxu0 0.0
        %6392 = vmatpush1.msra.mxu0 0.0
        %6393 = vmatprep.subr.mxu0 0.0
        %6394 = vmatpush1.msra.mxu0 0.0
        %6395 = vmatprep.subr.mxu0 0.0
        %6396 = vmatpush1.msra.mxu0 0.0
        %6397 = vmatprep.subr.mxu0 0.0
        %6398 = vmatpush1.msra.mxu0 0.0
        %6399 = vmatprep.subr.mxu0 0.0
        %6400 = vmatpush1.msra.mxu0 0.0
        %6401 = vmatprep.subr.mxu0 0.0
        %6402 = vmatpush1.msra.mxu0 0.0
        %6403 = vmatprep.subr.mxu0 0.0
        %6404 = vmatpush1.msra.mxu0 0.0
        %6405 = vmatprep.mubr.f32.mxu0 0.0
        %6406 = vmatmul.mubr.f32.gmra.mrb[0].mxu0 %v6333
        %v6407 = vpop.f32.mrb[0].mxu0
        %v6408 = vadd.f32 0.0, %v6407
        %v6409 = vpop.f32.mrb[0].mxu0
        %v6410 = vadd.f32 0.0, %v6409
        %6411 = vdwg.mxu0
        %v6412 = vadd.f32 %v6257, %v6408
        %v6413 = vadd.f32 %v6258, %v6410
        %6414 = vmatprep.subr.mxu0 %v1853
        %6415 = vmatpush1.msra.mxu0 %v1852
        %6416 = vmatprep.subr.mxu0 %v1855
        %6417 = vmatpush1.msra.mxu0 %v1854
        %6418 = vmatprep.subr.mxu0 %v1857
        %6419 = vmatpush1.msra.mxu0 %v1856
        %6420 = vmatprep.subr.mxu0 %v1859
        %6421 = vmatpush1.msra.mxu0 %v1858
        %6422 = vmatprep.subr.mxu0 %v1861
        %6423 = vmatpush1.msra.mxu0 %v1860
        %6424 = vmatprep.subr.mxu0 %v1863
        %6425 = vmatpush1.msra.mxu0 %v1862
        %6426 = vmatprep.subr.mxu0 %v1865
        %6427 = vmatpush1.msra.mxu0 %v1864
        %6428 = vmatprep.subr.mxu0 %v1867
        %6429 = vmatpush1.msra.mxu0 %v1866
        %6430 = vmatprep.subr.mxu0 %v1869
        %6431 = vmatpush1.msra.mxu0 %v1868
        %6432 = vmatprep.subr.mxu0 %v1871
        %6433 = vmatpush1.msra.mxu0 %v1870
        %6434 = vmatprep.subr.mxu0 %v1873
        %6435 = vmatpush1.msra.mxu0 %v1872
        %6436 = vmatprep.subr.mxu0 %v1875
        %6437 = vmatpush1.msra.mxu0 %v1874
        %6438 = vmatprep.subr.mxu0 %v1877
        %6439 = vmatpush1.msra.mxu0 %v1876
        %6440 = vmatprep.subr.mxu0 %v1879
        %6441 = vmatpush1.msra.mxu0 %v1878
        %6442 = vmatprep.subr.mxu0 %v1881
        %6443 = vmatpush1.msra.mxu0 %v1880
        %6444 = vmatprep.subr.mxu0 %v1883
        %6445 = vmatpush1.msra.mxu0 %v1882
        %6446 = vmatprep.subr.mxu0 %v1885
        %6447 = vmatpush1.msra.mxu0 %v1884
        %6448 = vmatprep.subr.mxu0 %v1887
        %6449 = vmatpush1.msra.mxu0 %v1886
        %6450 = vmatprep.subr.mxu0 %v1889
        %6451 = vmatpush1.msra.mxu0 %v1888
        %6452 = vmatprep.subr.mxu0 %v1891
        %6453 = vmatpush1.msra.mxu0 %v1890
        %6454 = vmatprep.subr.mxu0 %v1893
        %6455 = vmatpush1.msra.mxu0 %v1892
        %6456 = vmatprep.subr.mxu0 %v1895
        %6457 = vmatpush1.msra.mxu0 %v1894
        %6458 = vmatprep.subr.mxu0 %v1897
        %6459 = vmatpush1.msra.mxu0 %v1896
        %6460 = vmatprep.subr.mxu0 %v1899
        %6461 = vmatpush1.msra.mxu0 %v1898
        %6462 = vmatprep.subr.mxu0 %v1901
        %6463 = vmatpush1.msra.mxu0 %v1900
        %6464 = vmatprep.subr.mxu0 %v1903
        %6465 = vmatpush1.msra.mxu0 %v1902
        %6466 = vmatprep.subr.mxu0 %v1905
        %6467 = vmatpush1.msra.mxu0 %v1904
        %6468 = vmatprep.subr.mxu0 %v1907
        %6469 = vmatpush1.msra.mxu0 %v1906
        %6470 = vmatprep.subr.mxu0 %v1909
        %6471 = vmatpush1.msra.mxu0 %v1908
        %6472 = vmatprep.subr.mxu0 %v1911
        %6473 = vmatpush1.msra.mxu0 %v1910
        %6474 = vmatprep.subr.mxu0 %v1913
        %6475 = vmatpush1.msra.mxu0 %v1912
        %6476 = vmatprep.subr.mxu0 %v1915
        %6477 = vmatpush1.msra.mxu0 %v1914
        %6478 = vmatprep.mubr.f32.mxu0 %v5798
        %6479 = vmatmul.mubr.f32.gmra.mrb[0].mxu0 %v5797
        %v6480 = vpop.f32.mrb[0].mxu0
        %v6481 = vadd.f32 0.0, %v6480
        %v6482 = vpop.f32.mrb[0].mxu0
        %v6483 = vadd.f32 0.0, %v6482
        %6484 = vdwg.mxu0
        %s6485 = scalar_lea.vmem %s12, 16
        %v6486 = vld [vmem:[%s6485] sm:$0x7]
        %v6488 = vsel %vm4530, %v6486, 0
        %v6491 = vsel %vm4534, %v6481, 0
        %v6494 = vsel %vm4534, %v6483, 0
        %6496 = vmatprep.subr.mxu0 %v6494
        %6497 = vmatpush1.msra.mxu0 %v6491
        %6498 = vmatprep.subr.mxu0 0.0
        %6499 = vmatpush1.msra.mxu0 0.0
        %6500 = vmatprep.subr.mxu0 0.0
        %6501 = vmatpush1.msra.mxu0 0.0
        %6502 = vmatprep.subr.mxu0 0.0
        %6503 = vmatpush1.msra.mxu0 0.0
        %6504 = vmatprep.subr.mxu0 0.0
        %6505 = vmatpush1.msra.mxu0 0.0
        %6506 = vmatprep.subr.mxu0 0.0
        %6507 = vmatpush1.msra.mxu0 0.0
        %6508 = vmatprep.subr.mxu0 0.0
        %6509 = vmatpush1.msra.mxu0 0.0
        %6510 = vmatprep.subr.mxu0 0.0
        %6511 = vmatpush1.msra.mxu0 0.0
        %6512 = vmatprep.subr.mxu0 0.0
        %6513 = vmatpush1.msra.mxu0 0.0
        %6514 = vmatprep.subr.mxu0 0.0
        %6515 = vmatpush1.msra.mxu0 0.0
        %6516 = vmatprep.subr.mxu0 0.0
        %6517 = vmatpush1.msra.mxu0 0.0
        %6518 = vmatprep.subr.mxu0 0.0
        %6519 = vmatpush1.msra.mxu0 0.0
        %6520 = vmatprep.subr.mxu0 0.0
        %6521 = vmatpush1.msra.mxu0 0.0
        %6522 = vmatprep.subr.mxu0 0.0
        %6523 = vmatpush1.msra.mxu0 0.0
        %6524 = vmatprep.subr.mxu0 0.0
        %6525 = vmatpush1.msra.mxu0 0.0
        %6526 = vmatprep.subr.mxu0 0.0
        %6527 = vmatpush1.msra.mxu0 0.0
        %6528 = vmatprep.subr.mxu0 0.0
        %6529 = vmatpush1.msra.mxu0 0.0
        %6530 = vmatprep.subr.mxu0 0.0
        %6531 = vmatpush1.msra.mxu0 0.0
        %6532 = vmatprep.subr.mxu0 0.0
        %6533 = vmatpush1.msra.mxu0 0.0
        %6534 = vmatprep.subr.mxu0 0.0
        %6535 = vmatpush1.msra.mxu0 0.0
        %6536 = vmatprep.subr.mxu0 0.0
        %6537 = vmatpush1.msra.mxu0 0.0
        %6538 = vmatprep.subr.mxu0 0.0
        %6539 = vmatpush1.msra.mxu0 0.0
        %6540 = vmatprep.subr.mxu0 0.0
        %6541 = vmatpush1.msra.mxu0 0.0
        %6542 = vmatprep.subr.mxu0 0.0
        %6543 = vmatpush1.msra.mxu0 0.0
        %6544 = vmatprep.subr.mxu0 0.0
        %6545 = vmatpush1.msra.mxu0 0.0
        %6546 = vmatprep.subr.mxu0 0.0
        %6547 = vmatpush1.msra.mxu0 0.0
        %6548 = vmatprep.subr.mxu0 0.0
        %6549 = vmatpush1.msra.mxu0 0.0
        %6550 = vmatprep.subr.mxu0 0.0
        %6551 = vmatpush1.msra.mxu0 0.0
        %6552 = vmatprep.subr.mxu0 0.0
        %6553 = vmatpush1.msra.mxu0 0.0
        %6554 = vmatprep.subr.mxu0 0.0
        %6555 = vmatpush1.msra.mxu0 0.0
        %6556 = vmatprep.subr.mxu0 0.0
        %6557 = vmatpush1.msra.mxu0 0.0
        %6558 = vmatprep.subr.mxu0 0.0
        %6559 = vmatpush1.msra.mxu0 0.0
        %6560 = vmatprep.mubr.f32.mxu0 0.0
        %6561 = vmatmul.mubr.f32.gmra.mrb[0].mxu0 %v6488
        %v6562 = vpop.f32.mrb[0].mxu0
        %v6563 = vadd.f32 0.0, %v6562
        %v6564 = vpop.f32.mrb[0].mxu0
        %v6565 = vadd.f32 0.0, %v6564
        %6566 = vdwg.mxu0
        %v6567 = vadd.f32 %v6412, %v6563
        %v6568 = vadd.f32 %v6413, %v6565
        %6569 = vmatprep.subr.mxu0 %v2073
        %6570 = vmatpush1.msra.mxu0 %v2072
        %6571 = vmatprep.subr.mxu0 %v2075
        %6572 = vmatpush1.msra.mxu0 %v2074
        %6573 = vmatprep.subr.mxu0 %v2077
        %6574 = vmatpush1.msra.mxu0 %v2076
        %6575 = vmatprep.subr.mxu0 %v2079
        %6576 = vmatpush1.msra.mxu0 %v2078
        %6577 = vmatprep.subr.mxu0 %v2081
        %6578 = vmatpush1.msra.mxu0 %v2080
        %6579 = vmatprep.subr.mxu0 %v2083
        %6580 = vmatpush1.msra.mxu0 %v2082
        %6581 = vmatprep.subr.mxu0 %v2085
        %6582 = vmatpush1.msra.mxu0 %v2084
        %6583 = vmatprep.subr.mxu0 %v2087
        %6584 = vmatpush1.msra.mxu0 %v2086
        %6585 = vmatprep.subr.mxu0 %v2089
        %6586 = vmatpush1.msra.mxu0 %v2088
        %6587 = vmatprep.subr.mxu0 %v2091
        %6588 = vmatpush1.msra.mxu0 %v2090
        %6589 = vmatprep.subr.mxu0 %v2093
        %6590 = vmatpush1.msra.mxu0 %v2092
        %6591 = vmatprep.subr.mxu0 %v2095
        %6592 = vmatpush1.msra.mxu0 %v2094
        %6593 = vmatprep.subr.mxu0 %v2097
        %6594 = vmatpush1.msra.mxu0 %v2096
        %6595 = vmatprep.subr.mxu0 %v2099
        %6596 = vmatpush1.msra.mxu0 %v2098
        %6597 = vmatprep.subr.mxu0 %v2101
        %6598 = vmatpush1.msra.mxu0 %v2100
        %6599 = vmatprep.subr.mxu0 %v2103
        %6600 = vmatpush1.msra.mxu0 %v2102
        %6601 = vmatprep.subr.mxu0 %v2105
        %6602 = vmatpush1.msra.mxu0 %v2104
        %6603 = vmatprep.subr.mxu0 %v2107
        %6604 = vmatpush1.msra.mxu0 %v2106
        %6605 = vmatprep.subr.mxu0 %v2109
        %6606 = vmatpush1.msra.mxu0 %v2108
        %6607 = vmatprep.subr.mxu0 %v2111
        %6608 = vmatpush1.msra.mxu0 %v2110
        %6609 = vmatprep.subr.mxu0 %v2113
        %6610 = vmatpush1.msra.mxu0 %v2112
        %6611 = vmatprep.subr.mxu0 %v2115
        %6612 = vmatpush1.msra.mxu0 %v2114
        %6613 = vmatprep.subr.mxu0 %v2117
        %6614 = vmatpush1.msra.mxu0 %v2116
        %6615 = vmatprep.subr.mxu0 %v2119
        %6616 = vmatpush1.msra.mxu0 %v2118
        %6617 = vmatprep.subr.mxu0 %v2121
        %6618 = vmatpush1.msra.mxu0 %v2120
        %6619 = vmatprep.subr.mxu0 %v2123
        %6620 = vmatpush1.msra.mxu0 %v2122
        %6621 = vmatprep.subr.mxu0 %v2125
        %6622 = vmatpush1.msra.mxu0 %v2124
        %6623 = vmatprep.subr.mxu0 %v2127
        %6624 = vmatpush1.msra.mxu0 %v2126
        %6625 = vmatprep.subr.mxu0 %v2129
        %6626 = vmatpush1.msra.mxu0 %v2128
        %6627 = vmatprep.subr.mxu0 %v2131
        %6628 = vmatpush1.msra.mxu0 %v2130
        %6629 = vmatprep.subr.mxu0 %v2133
        %6630 = vmatpush1.msra.mxu0 %v2132
        %6631 = vmatprep.subr.mxu0 %v2135
        %6632 = vmatpush1.msra.mxu0 %v2134
        %6633 = vmatprep.mubr.f32.mxu0 %v5798
        %6634 = vmatmul.mubr.f32.gmra.mrb[0].mxu0 %v5797
        %v6635 = vpop.f32.mrb[0].mxu0
        %v6636 = vadd.f32 0.0, %v6635
        %v6637 = vpop.f32.mrb[0].mxu0
        %v6638 = vadd.f32 0.0, %v6637
        %6639 = vdwg.mxu0
        %s6640 = scalar_lea.vmem %s12, 20
        %v6641 = vld [vmem:[%s6640] sm:$0x7]
        %v6643 = vsel %vm4530, %v6641, 0
        %v6646 = vsel %vm4534, %v6636, 0
        %v6649 = vsel %vm4534, %v6638, 0
        %6651 = vmatprep.subr.mxu0 %v6649
        %6652 = vmatpush1.msra.mxu0 %v6646
        %6653 = vmatprep.subr.mxu0 0.0
        %6654 = vmatpush1.msra.mxu0 0.0
        %6655 = vmatprep.subr.mxu0 0.0
        %6656 = vmatpush1.msra.mxu0 0.0
        %6657 = vmatprep.subr.mxu0 0.0
        %6658 = vmatpush1.msra.mxu0 0.0
        %6659 = vmatprep.subr.mxu0 0.0
        %6660 = vmatpush1.msra.mxu0 0.0
        %6661 = vmatprep.subr.mxu0 0.0
        %6662 = vmatpush1.msra.mxu0 0.0
        %6663 = vmatprep.subr.mxu0 0.0
        %6664 = vmatpush1.msra.mxu0 0.0
        %6665 = vmatprep.subr.mxu0 0.0
        %6666 = vmatpush1.msra.mxu0 0.0
        %6667 = vmatprep.subr.mxu0 0.0
        %6668 = vmatpush1.msra.mxu0 0.0
        %6669 = vmatprep.subr.mxu0 0.0
        %6670 = vmatpush1.msra.mxu0 0.0
        %6671 = vmatprep.subr.mxu0 0.0
        %6672 = vmatpush1.msra.mxu0 0.0
        %6673 = vmatprep.subr.mxu0 0.0
        %6674 = vmatpush1.msra.mxu0 0.0
        %6675 = vmatprep.subr.mxu0 0.0
        %6676 = vmatpush1.msra.mxu0 0.0
        %6677 = vmatprep.subr.mxu0 0.0
        %6678 = vmatpush1.msra.mxu0 0.0
        %6679 = vmatprep.subr.mxu0 0.0
        %6680 = vmatpush1.msra.mxu0 0.0
        %6681 = vmatprep.subr.mxu0 0.0
        %6682 = vmatpush1.msra.mxu0 0.0
        %6683 = vmatprep.subr.mxu0 0.0
        %6684 = vmatpush1.msra.mxu0 0.0
        %6685 = vmatprep.subr.mxu0 0.0
        %6686 = vmatpush1.msra.mxu0 0.0
        %6687 = vmatprep.subr.mxu0 0.0
        %6688 = vmatpush1.msra.mxu0 0.0
        %6689 = vmatprep.subr.mxu0 0.0
        %6690 = vmatpush1.msra.mxu0 0.0
        %6691 = vmatprep.subr.mxu0 0.0
        %6692 = vmatpush1.msra.mxu0 0.0
        %6693 = vmatprep.subr.mxu0 0.0
        %6694 = vmatpush1.msra.mxu0 0.0
        %6695 = vmatprep.subr.mxu0 0.0
        %6696 = vmatpush1.msra.mxu0 0.0
        %6697 = vmatprep.subr.mxu0 0.0
        %6698 = vmatpush1.msra.mxu0 0.0
        %6699 = vmatprep.subr.mxu0 0.0
        %6700 = vmatpush1.msra.mxu0 0.0
        %6701 = vmatprep.subr.mxu0 0.0
        %6702 = vmatpush1.msra.mxu0 0.0
        %6703 = vmatprep.subr.mxu0 0.0
        %6704 = vmatpush1.msra.mxu0 0.0
        %6705 = vmatprep.subr.mxu0 0.0
        %6706 = vmatpush1.msra.mxu0 0.0
        %6707 = vmatprep.subr.mxu0 0.0
        %6708 = vmatpush1.msra.mxu0 0.0
        %6709 = vmatprep.subr.mxu0 0.0
        %6710 = vmatpush1.msra.mxu0 0.0
        %6711 = vmatprep.subr.mxu0 0.0
        %6712 = vmatpush1.msra.mxu0 0.0
        %6713 = vmatprep.subr.mxu0 0.0
        %6714 = vmatpush1.msra.mxu0 0.0
        %6715 = vmatprep.mubr.f32.mxu0 0.0
        %6716 = vmatmul.mubr.f32.gmra.mrb[0].mxu0 %v6643
        %v6717 = vpop.f32.mrb[0].mxu0
        %v6718 = vadd.f32 0.0, %v6717
        %v6719 = vpop.f32.mrb[0].mxu0
        %v6720 = vadd.f32 0.0, %v6719
        %6721 = vdwg.mxu0
        %v6722 = vadd.f32 %v6567, %v6718
        %v6723 = vadd.f32 %v6568, %v6720
        %6724 = vmatprep.subr.mxu0 %v2293
        %6725 = vmatpush1.msra.mxu0 %v2292
        %6726 = vmatprep.subr.mxu0 %v2295
        %6727 = vmatpush1.msra.mxu0 %v2294
        %6728 = vmatprep.subr.mxu0 %v2297
        %6729 = vmatpush1.msra.mxu0 %v2296
        %6730 = vmatprep.subr.mxu0 %v2299
        %6731 = vmatpush1.msra.mxu0 %v2298
        %6732 = vmatprep.subr.mxu0 %v2301
        %6733 = vmatpush1.msra.mxu0 %v2300
        %6734 = vmatprep.subr.mxu0 %v2303
        %6735 = vmatpush1.msra.mxu0 %v2302
        %6736 = vmatprep.subr.mxu0 %v2305
        %6737 = vmatpush1.msra.mxu0 %v2304
        %6738 = vmatprep.subr.mxu0 %v2307
        %6739 = vmatpush1.msra.mxu0 %v2306
        %6740 = vmatprep.subr.mxu0 %v2309
        %6741 = vmatpush1.msra.mxu0 %v2308
        %6742 = vmatprep.subr.mxu0 %v2311
        %6743 = vmatpush1.msra.mxu0 %v2310
        %6744 = vmatprep.subr.mxu0 %v2313
        %6745 = vmatpush1.msra.mxu0 %v2312
        %6746 = vmatprep.subr.mxu0 %v2315
        %6747 = vmatpush1.msra.mxu0 %v2314
        %6748 = vmatprep.subr.mxu0 %v2317
        %6749 = vmatpush1.msra.mxu0 %v2316
        %6750 = vmatprep.subr.mxu0 %v2319
        %6751 = vmatpush1.msra.mxu0 %v2318
        %6752 = vmatprep.subr.mxu0 %v2321
        %6753 = vmatpush1.msra.mxu0 %v2320
        %6754 = vmatprep.subr.mxu0 %v2323
        %6755 = vmatpush1.msra.mxu0 %v2322
        %6756 = vmatprep.subr.mxu0 %v2325
        %6757 = vmatpush1.msra.mxu0 %v2324
        %6758 = vmatprep.subr.mxu0 %v2327
        %6759 = vmatpush1.msra.mxu0 %v2326
        %6760 = vmatprep.subr.mxu0 %v2329
        %6761 = vmatpush1.msra.mxu0 %v2328
        %6762 = vmatprep.subr.mxu0 %v2331
        %6763 = vmatpush1.msra.mxu0 %v2330
        %6764 = vmatprep.subr.mxu0 %v2333
        %6765 = vmatpush1.msra.mxu0 %v2332
        %6766 = vmatprep.subr.mxu0 %v2335
        %6767 = vmatpush1.msra.mxu0 %v2334
        %6768 = vmatprep.subr.mxu0 %v2337
        %6769 = vmatpush1.msra.mxu0 %v2336
        %6770 = vmatprep.subr.mxu0 %v2339
        %6771 = vmatpush1.msra.mxu0 %v2338
        %6772 = vmatprep.subr.mxu0 %v2341
        %6773 = vmatpush1.msra.mxu0 %v2340
        %6774 = vmatprep.subr.mxu0 %v2343
        %6775 = vmatpush1.msra.mxu0 %v2342
        %6776 = vmatprep.subr.mxu0 %v2345
        %6777 = vmatpush1.msra.mxu0 %v2344
        %6778 = vmatprep.subr.mxu0 %v2347
        %6779 = vmatpush1.msra.mxu0 %v2346
        %6780 = vmatprep.subr.mxu0 %v2349
        %6781 = vmatpush1.msra.mxu0 %v2348
        %6782 = vmatprep.subr.mxu0 %v2351
        %6783 = vmatpush1.msra.mxu0 %v2350
        %6784 = vmatprep.subr.mxu0 %v2353
        %6785 = vmatpush1.msra.mxu0 %v2352
        %6786 = vmatprep.subr.mxu0 %v2355
        %6787 = vmatpush1.msra.mxu0 %v2354
        %6788 = vmatprep.mubr.f32.mxu0 %v5798
        %6789 = vmatmul.mubr.f32.gmra.mrb[0].mxu0 %v5797
        %v6790 = vpop.f32.mrb[0].mxu0
        %v6791 = vadd.f32 0.0, %v6790
        %v6792 = vpop.f32.mrb[0].mxu0
        %v6793 = vadd.f32 0.0, %v6792
        %6794 = vdwg.mxu0
        %s6795 = scalar_lea.vmem %s12, 24
        %v6796 = vld [vmem:[%s6795] sm:$0x7]
        %v6798 = vsel %vm4530, %v6796, 0
        %v6801 = vsel %vm4534, %v6791, 0
        %v6804 = vsel %vm4534, %v6793, 0
        %6806 = vmatprep.subr.mxu0 %v6804
        %6807 = vmatpush1.msra.mxu0 %v6801
        %6808 = vmatprep.subr.mxu0 0.0
        %6809 = vmatpush1.msra.mxu0 0.0
        %6810 = vmatprep.subr.mxu0 0.0
        %6811 = vmatpush1.msra.mxu0 0.0
        %6812 = vmatprep.subr.mxu0 0.0
        %6813 = vmatpush1.msra.mxu0 0.0
        %6814 = vmatprep.subr.mxu0 0.0
        %6815 = vmatpush1.msra.mxu0 0.0
        %6816 = vmatprep.subr.mxu0 0.0
        %6817 = vmatpush1.msra.mxu0 0.0
        %6818 = vmatprep.subr.mxu0 0.0
        %6819 = vmatpush1.msra.mxu0 0.0
        %6820 = vmatprep.subr.mxu0 0.0
        %6821 = vmatpush1.msra.mxu0 0.0
        %6822 = vmatprep.subr.mxu0 0.0
        %6823 = vmatpush1.msra.mxu0 0.0
        %6824 = vmatprep.subr.mxu0 0.0
        %6825 = vmatpush1.msra.mxu0 0.0
        %6826 = vmatprep.subr.mxu0 0.0
        %6827 = vmatpush1.msra.mxu0 0.0
        %6828 = vmatprep.subr.mxu0 0.0
        %6829 = vmatpush1.msra.mxu0 0.0
        %6830 = vmatprep.subr.mxu0 0.0
        %6831 = vmatpush1.msra.mxu0 0.0
        %6832 = vmatprep.subr.mxu0 0.0
        %6833 = vmatpush1.msra.mxu0 0.0
        %6834 = vmatprep.subr.mxu0 0.0
        %6835 = vmatpush1.msra.mxu0 0.0
        %6836 = vmatprep.subr.mxu0 0.0
        %6837 = vmatpush1.msra.mxu0 0.0
        %6838 = vmatprep.subr.mxu0 0.0
        %6839 = vmatpush1.msra.mxu0 0.0
        %6840 = vmatprep.subr.mxu0 0.0
        %6841 = vmatpush1.msra.mxu0 0.0
        %6842 = vmatprep.subr.mxu0 0.0
        %6843 = vmatpush1.msra.mxu0 0.0
        %6844 = vmatprep.subr.mxu0 0.0
        %6845 = vmatpush1.msra.mxu0 0.0
        %6846 = vmatprep.subr.mxu0 0.0
        %6847 = vmatpush1.msra.mxu0 0.0
        %6848 = vmatprep.subr.mxu0 0.0
        %6849 = vmatpush1.msra.mxu0 0.0
        %6850 = vmatprep.subr.mxu0 0.0
        %6851 = vmatpush1.msra.mxu0 0.0
        %6852 = vmatprep.subr.mxu0 0.0
        %6853 = vmatpush1.msra.mxu0 0.0
        %6854 = vmatprep.subr.mxu0 0.0
        %6855 = vmatpush1.msra.mxu0 0.0
        %6856 = vmatprep.subr.mxu0 0.0
        %6857 = vmatpush1.msra.mxu0 0.0
        %6858 = vmatprep.subr.mxu0 0.0
        %6859 = vmatpush1.msra.mxu0 0.0
        %6860 = vmatprep.subr.mxu0 0.0
        %6861 = vmatpush1.msra.mxu0 0.0
        %6862 = vmatprep.subr.mxu0 0.0
        %6863 = vmatpush1.msra.mxu0 0.0
        %6864 = vmatprep.subr.mxu0 0.0
        %6865 = vmatpush1.msra.mxu0 0.0
        %6866 = vmatprep.subr.mxu0 0.0
        %6867 = vmatpush1.msra.mxu0 0.0
        %6868 = vmatprep.subr.mxu0 0.0
        %6869 = vmatpush1.msra.mxu0 0.0
        %6870 = vmatprep.mubr.f32.mxu0 0.0
        %6871 = vmatmul.mubr.f32.gmra.mrb[0].mxu0 %v6798
        %v6872 = vpop.f32.mrb[0].mxu0
        %v6873 = vadd.f32 0.0, %v6872
        %v6874 = vpop.f32.mrb[0].mxu0
        %v6875 = vadd.f32 0.0, %v6874
        %6876 = vdwg.mxu0
        %v6877 = vadd.f32 %v6722, %v6873
        %v6878 = vadd.f32 %v6723, %v6875
        %6879 = vmatprep.subr.mxu0 %v2513
        %6880 = vmatpush1.msra.mxu0 %v2512
        %6881 = vmatprep.subr.mxu0 %v2515
        %6882 = vmatpush1.msra.mxu0 %v2514
        %6883 = vmatprep.subr.mxu0 %v2517
        %6884 = vmatpush1.msra.mxu0 %v2516
        %6885 = vmatprep.subr.mxu0 %v2519
        %6886 = vmatpush1.msra.mxu0 %v2518
        %6887 = vmatprep.subr.mxu0 %v2521
        %6888 = vmatpush1.msra.mxu0 %v2520
        %6889 = vmatprep.subr.mxu0 %v2523
        %6890 = vmatpush1.msra.mxu0 %v2522
        %6891 = vmatprep.subr.mxu0 %v2525
        %6892 = vmatpush1.msra.mxu0 %v2524
        %6893 = vmatprep.subr.mxu0 %v2527
        %6894 = vmatpush1.msra.mxu0 %v2526
        %6895 = vmatprep.subr.mxu0 %v2529
        %6896 = vmatpush1.msra.mxu0 %v2528
        %6897 = vmatprep.subr.mxu0 %v2531
        %6898 = vmatpush1.msra.mxu0 %v2530
        %6899 = vmatprep.subr.mxu0 %v2533
        %6900 = vmatpush1.msra.mxu0 %v2532
        %6901 = vmatprep.subr.mxu0 %v2535
        %6902 = vmatpush1.msra.mxu0 %v2534
        %6903 = vmatprep.subr.mxu0 %v2537
        %6904 = vmatpush1.msra.mxu0 %v2536
        %6905 = vmatprep.subr.mxu0 %v2539
        %6906 = vmatpush1.msra.mxu0 %v2538
        %6907 = vmatprep.subr.mxu0 %v2541
        %6908 = vmatpush1.msra.mxu0 %v2540
        %6909 = vmatprep.subr.mxu0 %v2543
        %6910 = vmatpush1.msra.mxu0 %v2542
        %6911 = vmatprep.subr.mxu0 %v2545
        %6912 = vmatpush1.msra.mxu0 %v2544
        %6913 = vmatprep.subr.mxu0 %v2547
        %6914 = vmatpush1.msra.mxu0 %v2546
        %6915 = vmatprep.subr.mxu0 %v2549
        %6916 = vmatpush1.msra.mxu0 %v2548
        %6917 = vmatprep.subr.mxu0 %v2551
        %6918 = vmatpush1.msra.mxu0 %v2550
        %6919 = vmatprep.subr.mxu0 %v2553
        %6920 = vmatpush1.msra.mxu0 %v2552
        %6921 = vmatprep.subr.mxu0 %v2555
        %6922 = vmatpush1.msra.mxu0 %v2554
        %6923 = vmatprep.subr.mxu0 %v2557
        %6924 = vmatpush1.msra.mxu0 %v2556
        %6925 = vmatprep.subr.mxu0 %v2559
        %6926 = vmatpush1.msra.mxu0 %v2558
        %6927 = vmatprep.subr.mxu0 %v2561
        %6928 = vmatpush1.msra.mxu0 %v2560
        %6929 = vmatprep.subr.mxu0 %v2563
        %6930 = vmatpush1.msra.mxu0 %v2562
        %6931 = vmatprep.subr.mxu0 %v2565
        %6932 = vmatpush1.msra.mxu0 %v2564
        %6933 = vmatprep.subr.mxu0 %v2567
        %6934 = vmatpush1.msra.mxu0 %v2566
        %6935 = vmatprep.subr.mxu0 %v2569
        %6936 = vmatpush1.msra.mxu0 %v2568
        %6937 = vmatprep.subr.mxu0 %v2571
        %6938 = vmatpush1.msra.mxu0 %v2570
        %6939 = vmatprep.subr.mxu0 %v2573
        %6940 = vmatpush1.msra.mxu0 %v2572
        %6941 = vmatprep.subr.mxu0 %v2575
        %6942 = vmatpush1.msra.mxu0 %v2574
        %6943 = vmatprep.mubr.f32.mxu0 %v5798
        %6944 = vmatmul.mubr.f32.gmra.mrb[0].mxu0 %v5797
        %v6945 = vpop.f32.mrb[0].mxu0
        %v6946 = vadd.f32 0.0, %v6945
        %v6947 = vpop.f32.mrb[0].mxu0
        %v6948 = vadd.f32 0.0, %v6947
        %6949 = vdwg.mxu0
        %s6950 = scalar_lea.vmem %s12, 28
        %v6951 = vld [vmem:[%s6950] sm:$0x7]
        %v6953 = vsel %vm4530, %v6951, 0
        %v6956 = vsel %vm4534, %v6946, 0
        %v6959 = vsel %vm4534, %v6948, 0
        %6961 = vmatprep.subr.mxu0 %v6959
        %6962 = vmatpush1.msra.mxu0 %v6956
        %6963 = vmatprep.subr.mxu0 0.0
        %6964 = vmatpush1.msra.mxu0 0.0
        %6965 = vmatprep.subr.mxu0 0.0
        %6966 = vmatpush1.msra.mxu0 0.0
        %6967 = vmatprep.subr.mxu0 0.0
        %6968 = vmatpush1.msra.mxu0 0.0
        %6969 = vmatprep.subr.mxu0 0.0
        %6970 = vmatpush1.msra.mxu0 0.0
        %6971 = vmatprep.subr.mxu0 0.0
        %6972 = vmatpush1.msra.mxu0 0.0
        %6973 = vmatprep.subr.mxu0 0.0
        %6974 = vmatpush1.msra.mxu0 0.0
        %6975 = vmatprep.subr.mxu0 0.0
        %6976 = vmatpush1.msra.mxu0 0.0
        %6977 = vmatprep.subr.mxu0 0.0
        %6978 = vmatpush1.msra.mxu0 0.0
        %6979 = vmatprep.subr.mxu0 0.0
        %6980 = vmatpush1.msra.mxu0 0.0
        %6981 = vmatprep.subr.mxu0 0.0
        %6982 = vmatpush1.msra.mxu0 0.0
        %6983 = vmatprep.subr.mxu0 0.0
        %6984 = vmatpush1.msra.mxu0 0.0
        %6985 = vmatprep.subr.mxu0 0.0
        %6986 = vmatpush1.msra.mxu0 0.0
        %6987 = vmatprep.subr.mxu0 0.0
        %6988 = vmatpush1.msra.mxu0 0.0
        %6989 = vmatprep.subr.mxu0 0.0
        %6990 = vmatpush1.msra.mxu0 0.0
        %6991 = vmatprep.subr.mxu0 0.0
        %6992 = vmatpush1.msra.mxu0 0.0
        %6993 = vmatprep.subr.mxu0 0.0
        %6994 = vmatpush1.msra.mxu0 0.0
        %6995 = vmatprep.subr.mxu0 0.0
        %6996 = vmatpush1.msra.mxu0 0.0
        %6997 = vmatprep.subr.mxu0 0.0
        %6998 = vmatpush1.msra.mxu0 0.0
        %6999 = vmatprep.subr.mxu0 0.0
        %7000 = vmatpush1.msra.mxu0 0.0
        %7001 = vmatprep.subr.mxu0 0.0
        %7002 = vmatpush1.msra.mxu0 0.0
        %7003 = vmatprep.subr.mxu0 0.0
        %7004 = vmatpush1.msra.mxu0 0.0
        %7005 = vmatprep.subr.mxu0 0.0
        %7006 = vmatpush1.msra.mxu0 0.0
        %7007 = vmatprep.subr.mxu0 0.0
        %7008 = vmatpush1.msra.mxu0 0.0
        %7009 = vmatprep.subr.mxu0 0.0
        %7010 = vmatpush1.msra.mxu0 0.0
        %7011 = vmatprep.subr.mxu0 0.0
        %7012 = vmatpush1.msra.mxu0 0.0
        %7013 = vmatprep.subr.mxu0 0.0
        %7014 = vmatpush1.msra.mxu0 0.0
        %7015 = vmatprep.subr.mxu0 0.0
        %7016 = vmatpush1.msra.mxu0 0.0
        %7017 = vmatprep.subr.mxu0 0.0
        %7018 = vmatpush1.msra.mxu0 0.0
        %7019 = vmatprep.subr.mxu0 0.0
        %7020 = vmatpush1.msra.mxu0 0.0
        %7021 = vmatprep.subr.mxu0 0.0
        %7022 = vmatpush1.msra.mxu0 0.0
        %7023 = vmatprep.subr.mxu0 0.0
        %7024 = vmatpush1.msra.mxu0 0.0
        %7025 = vmatprep.mubr.f32.mxu0 0.0
        %7026 = vmatmul.mubr.f32.gmra.mrb[0].mxu0 %v6953
        %v7027 = vpop.f32.mrb[0].mxu0
        %v7028 = vadd.f32 0.0, %v7027
        %v7029 = vpop.f32.mrb[0].mxu0
        %v7030 = vadd.f32 0.0, %v7029
        %7031 = vdwg.mxu0
        %v7032 = vadd.f32 %v6877, %v7028
        %v7033 = vadd.f32 %v6878, %v7030
        %7034 = vmatprep.subr.mxu0 %v2733
        %7035 = vmatpush1.msra.mxu0 %v2732
        %7036 = vmatprep.subr.mxu0 %v2735
        %7037 = vmatpush1.msra.mxu0 %v2734
        %7038 = vmatprep.subr.mxu0 %v2737
        %7039 = vmatpush1.msra.mxu0 %v2736
        %7040 = vmatprep.subr.mxu0 %v2739
        %7041 = vmatpush1.msra.mxu0 %v2738
        %7042 = vmatprep.subr.mxu0 %v2741
        %7043 = vmatpush1.msra.mxu0 %v2740
        %7044 = vmatprep.subr.mxu0 %v2743
        %7045 = vmatpush1.msra.mxu0 %v2742
        %7046 = vmatprep.subr.mxu0 %v2745
        %7047 = vmatpush1.msra.mxu0 %v2744
        %7048 = vmatprep.subr.mxu0 %v2747
        %7049 = vmatpush1.msra.mxu0 %v2746
        %7050 = vmatprep.subr.mxu0 %v2749
        %7051 = vmatpush1.msra.mxu0 %v2748
        %7052 = vmatprep.subr.mxu0 %v2751
        %7053 = vmatpush1.msra.mxu0 %v2750
        %7054 = vmatprep.subr.mxu0 %v2753
        %7055 = vmatpush1.msra.mxu0 %v2752
        %7056 = vmatprep.subr.mxu0 %v2755
        %7057 = vmatpush1.msra.mxu0 %v2754
        %7058 = vmatprep.subr.mxu0 %v2757
        %7059 = vmatpush1.msra.mxu0 %v2756
        %7060 = vmatprep.subr.mxu0 %v2759
        %7061 = vmatpush1.msra.mxu0 %v2758
        %7062 = vmatprep.subr.mxu0 %v2761
        %7063 = vmatpush1.msra.mxu0 %v2760
        %7064 = vmatprep.subr.mxu0 %v2763
        %7065 = vmatpush1.msra.mxu0 %v2762
        %7066 = vmatprep.subr.mxu0 %v2765
        %7067 = vmatpush1.msra.mxu0 %v2764
        %7068 = vmatprep.subr.mxu0 %v2767
        %7069 = vmatpush1.msra.mxu0 %v2766
        %7070 = vmatprep.subr.mxu0 %v2769
        %7071 = vmatpush1.msra.mxu0 %v2768
        %7072 = vmatprep.subr.mxu0 %v2771
        %7073 = vmatpush1.msra.mxu0 %v2770
        %7074 = vmatprep.subr.mxu0 %v2773
        %7075 = vmatpush1.msra.mxu0 %v2772
        %7076 = vmatprep.subr.mxu0 %v2775
        %7077 = vmatpush1.msra.mxu0 %v2774
        %7078 = vmatprep.subr.mxu0 %v2777
        %7079 = vmatpush1.msra.mxu0 %v2776
        %7080 = vmatprep.subr.mxu0 %v2779
        %7081 = vmatpush1.msra.mxu0 %v2778
        %7082 = vmatprep.subr.mxu0 %v2781
        %7083 = vmatpush1.msra.mxu0 %v2780
        %7084 = vmatprep.subr.mxu0 %v2783
        %7085 = vmatpush1.msra.mxu0 %v2782
        %7086 = vmatprep.subr.mxu0 %v2785
        %7087 = vmatpush1.msra.mxu0 %v2784
        %7088 = vmatprep.subr.mxu0 %v2787
        %7089 = vmatpush1.msra.mxu0 %v2786
        %7090 = vmatprep.subr.mxu0 %v2789
        %7091 = vmatpush1.msra.mxu0 %v2788
        %7092 = vmatprep.subr.mxu0 %v2791
        %7093 = vmatpush1.msra.mxu0 %v2790
        %7094 = vmatprep.subr.mxu0 %v2793
        %7095 = vmatpush1.msra.mxu0 %v2792
        %7096 = vmatprep.subr.mxu0 %v2795
        %7097 = vmatpush1.msra.mxu0 %v2794
        %7098 = vmatprep.mubr.f32.mxu0 %v5798
        %7099 = vmatmul.mubr.f32.gmra.mrb[0].mxu0 %v5797
        %v7100 = vpop.f32.mrb[0].mxu0
        %v7101 = vadd.f32 0.0, %v7100
        %v7102 = vpop.f32.mrb[0].mxu0
        %v7103 = vadd.f32 0.0, %v7102
        %7104 = vdwg.mxu0
        %s7105 = scalar_lea.vmem %s12, 32
        %v7106 = vld [vmem:[%s7105] sm:$0x7]
        %v7108 = vsel %vm4530, %v7106, 0
        %v7111 = vsel %vm4534, %v7101, 0
        %v7114 = vsel %vm4534, %v7103, 0
        %7116 = vmatprep.subr.mxu0 %v7114
        %7117 = vmatpush1.msra.mxu0 %v7111
        %7118 = vmatprep.subr.mxu0 0.0
        %7119 = vmatpush1.msra.mxu0 0.0
        %7120 = vmatprep.subr.mxu0 0.0
        %7121 = vmatpush1.msra.mxu0 0.0
        %7122 = vmatprep.subr.mxu0 0.0
        %7123 = vmatpush1.msra.mxu0 0.0
        %7124 = vmatprep.subr.mxu0 0.0
        %7125 = vmatpush1.msra.mxu0 0.0
        %7126 = vmatprep.subr.mxu0 0.0
        %7127 = vmatpush1.msra.mxu0 0.0
        %7128 = vmatprep.subr.mxu0 0.0
        %7129 = vmatpush1.msra.mxu0 0.0
        %7130 = vmatprep.subr.mxu0 0.0
        %7131 = vmatpush1.msra.mxu0 0.0
        %7132 = vmatprep.subr.mxu0 0.0
        %7133 = vmatpush1.msra.mxu0 0.0
        %7134 = vmatprep.subr.mxu0 0.0
        %7135 = vmatpush1.msra.mxu0 0.0
        %7136 = vmatprep.subr.mxu0 0.0
        %7137 = vmatpush1.msra.mxu0 0.0
        %7138 = vmatprep.subr.mxu0 0.0
        %7139 = vmatpush1.msra.mxu0 0.0
        %7140 = vmatprep.subr.mxu0 0.0
        %7141 = vmatpush1.msra.mxu0 0.0
        %7142 = vmatprep.subr.mxu0 0.0
        %7143 = vmatpush1.msra.mxu0 0.0
        %7144 = vmatprep.subr.mxu0 0.0
        %7145 = vmatpush1.msra.mxu0 0.0
        %7146 = vmatprep.subr.mxu0 0.0
        %7147 = vmatpush1.msra.mxu0 0.0
        %7148 = vmatprep.subr.mxu0 0.0
        %7149 = vmatpush1.msra.mxu0 0.0
        %7150 = vmatprep.subr.mxu0 0.0
        %7151 = vmatpush1.msra.mxu0 0.0
        %7152 = vmatprep.subr.mxu0 0.0
        %7153 = vmatpush1.msra.mxu0 0.0
        %7154 = vmatprep.subr.mxu0 0.0
        %7155 = vmatpush1.msra.mxu0 0.0
        %7156 = vmatprep.subr.mxu0 0.0
        %7157 = vmatpush1.msra.mxu0 0.0
        %7158 = vmatprep.subr.mxu0 0.0
        %7159 = vmatpush1.msra.mxu0 0.0
        %7160 = vmatprep.subr.mxu0 0.0
        %7161 = vmatpush1.msra.mxu0 0.0
        %7162 = vmatprep.subr.mxu0 0.0
        %7163 = vmatpush1.msra.mxu0 0.0
        %7164 = vmatprep.subr.mxu0 0.0
        %7165 = vmatpush1.msra.mxu0 0.0
        %7166 = vmatprep.subr.mxu0 0.0
        %7167 = vmatpush1.msra.mxu0 0.0
        %7168 = vmatprep.subr.mxu0 0.0
        %7169 = vmatpush1.msra.mxu0 0.0
        %7170 = vmatprep.subr.mxu0 0.0
        %7171 = vmatpush1.msra.mxu0 0.0
        %7172 = vmatprep.subr.mxu0 0.0
        %7173 = vmatpush1.msra.mxu0 0.0
        %7174 = vmatprep.subr.mxu0 0.0
        %7175 = vmatpush1.msra.mxu0 0.0
        %7176 = vmatprep.subr.mxu0 0.0
        %7177 = vmatpush1.msra.mxu0 0.0
        %7178 = vmatprep.subr.mxu0 0.0
        %7179 = vmatpush1.msra.mxu0 0.0
        %7180 = vmatprep.mubr.f32.mxu0 0.0
        %7181 = vmatmul.mubr.f32.gmra.mrb[0].mxu0 %v7108
        %v7182 = vpop.f32.mrb[0].mxu0
        %v7183 = vadd.f32 0.0, %v7182
        %v7184 = vpop.f32.mrb[0].mxu0
        %v7185 = vadd.f32 0.0, %v7184
        %7186 = vdwg.mxu0
        %v7187 = vadd.f32 %v7032, %v7183
        %v7188 = vadd.f32 %v7033, %v7185
        %v7189 = vld [vmem:[%s13] sm:$0x7]
        %7191 = vset.pattern.permute.xlu0 0
        %7192 = vperm.xlu0 %7191, %v7189
        %v7193 = vpop.permute.xlu0 %7192
        %v7195 = vadd.f32 %v7187, %v7193
        %v7196 = vadd.f32 %v7188, %v7193
        %v7199 = vcombine.low %v7195, %v7196
        %7201 = vst [vmem:[%s555] sm:$0x77] %v7199
        %p7202 = scmp.lt.s32.totalorder %s30, 1
        %s7203 = scalar_select %p7202, %s30, 1
        %s7204 = smul.addr %s7203, 2
        %s7205 = smul.addr %s7204, 4
        %s7206 = scalar_lea.vmem %s14, %s7205
        // Predicated region
        $region97: #{tpu_custom_call.1} parent=75 // pred_check
          %p7207 = pneg %p352
        $region98: #{tpu_custom_call.1} parent=75 // pred_check_branch
          %7209 = sbr.rel (%p7207) target = $region100
        $region99: #{tpu_custom_call.1} parent=75 // pred_region
          _
        $region100: #{tpu_custom_call.1} parent=75 // pred_fallthru
          _
      $region76: #{tpu_custom_call.1} parent=5 // pred_fallthru
        _
      %p7210 = scmp.le.s32.totalorder 2, %s25
      // Predicated region
      $region101: #{tpu_custom_call.1} parent=5 // pred_check
        %p7211 = pneg %p7210
      $region102: #{tpu_custom_call.1} parent=5 // pred_check_branch
        %7213 = sbr.rel (%p7211) target = $region104
      $region103: #{tpu_custom_call.1} parent=5 // pred_region
        %s7214 = ssub.s32 %s25, 2
        // Predicated region
        $region105: #{tpu_custom_call.1} parent=103 // pred_check
          %p7215 = pneg %p358
        $region106: #{tpu_custom_call.1} parent=103 // pred_check_branch
          %7217 = sbr.rel (%p7215) target = $region108
        $region107: #{tpu_custom_call.1} parent=103 // pred_region
          %p7218 = scmp.lt.s32.totalorder %s31, 1
          %s7219 = scalar_select %p7218, %s31, 1
          %s7220 = smul.addr %s7219, 2
          %s7221 = smul.addr %s7220, 4
          %s7222 = scalar_lea.vmem %s14, %s7221
        $region108: #{tpu_custom_call.1} parent=103 // pred_fallthru
          _
      $region104: #{tpu_custom_call.1} parent=5 // pred_fallthru
        _
    $region6: #{tpu_custom_call.1} parent=1 // loop_footer
      %s29 = sadd.s32 1, %s25
    $region7: #{tpu_custom_call.1} parent=1 // loop_footer_branch
      %24 = sbr.rel target = $region3
    $region8: #{tpu_custom_call.1} parent=1 // loop_exit
      _
    %7223 = vsyncpa [#allocation4], 1
    %s7224 = scalar_lea.sflag [#allocation4], 1
    %7225 = vsyncpa %s7224, 1
    %7226 = vsyncpa [#allocation6], 1
    %7227 = vsyncpa [#allocation9], 1

</llo_original>
